<compile_context>
chip_gen: v6e
topology: v6e:2x2x1
jax: 0.10.0
libtpu: 0.0.40
codegen_flags: <defaults>
</compile_context>

<pallas_src>
import functools

import jax
import jax.numpy as jnp
from jax.experimental import pallas as pl
from jax.experimental.pallas import tpu as pltpu


def _round_up(x, m):
    return ((x + m - 1) // m) * m


def _pad_to(x, shape):
    return jnp.pad(x, [(0, s - d) for d, s in zip(x.shape, shape)])


# ----------------------------------------------------------------------------
# Kernel 1: conv(im2col matmul) + ReLU + per-batch mean pool (scratch
#           accumulation) + Linear + BatchNorm(batch stats) + ReLU
#           grid = (B, HW_tiles), both "arbitrary" (BN finalize needs all rows)
# ----------------------------------------------------------------------------
def cnn_audio_kernel(p_ref, wc_ref, bc_ref, wl_ref, bl_ref, g_ref, beta_ref,
                     o_ref, acc_ref, *, inv_hw, eps):
    b = pl.program_id(0)
    m = pl.program_id(1)

    @pl.when(jnp.logical_and(b == 0, m == 0))
    def _init():
        acc_ref[...] = jnp.zeros_like(acc_ref)

    # conv as matmul on this HW tile, then ReLU, then partial sum over the tile
    y = jnp.dot(p_ref[0], wc_ref[...], preferred_element_type=jnp.float32)
    y = jnp.maximum(y + bc_ref[...], 0.0)                      # (TILE_HW, Cp)
    part = jnp.sum(y, axis=0, keepdims=True)                   # (1, Cp)

    # masked accumulate into row `b` of the (B, Cp) scratch (no dynamic slicing)
    row_ids = jax.lax.broadcasted_iota(jnp.int32, acc_ref.shape, 0)
    acc_ref[...] = acc_ref[...] + jnp.where(row_ids == b, part, 0.0)

    @pl.when(jnp.logical_and(b == pl.num_programs(0) - 1,
                             m == pl.num_programs(1) - 1))
    def _finalize():
        pooled = acc_ref[...] * inv_hw                                    # (B, Cp)
        z = jnp.dot(pooled.astype(jnp.bfloat16), wl_ref[...],
                    preferred_element_type=jnp.float32) + bl_ref[...]     # (B, Hp)
        mean = jnp.mean(z, axis=0, keepdims=True)
        var = jnp.mean((z - mean) ** 2, axis=0, keepdims=True)  # biased (BN fwd)
        zhat = (z - mean) * jax.lax.rsqrt(var + eps)
        o_ref[...] = jnp.maximum(zhat * g_ref[...] + beta_ref[...], 0.0)


def cnn_audio_encoder(patches, w_col, conv_b, lin_w, lin_b, gamma, beta):
    B, HW, K = patches.shape
    Cp = w_col.shape[1]
    Hp = lin_w.shape[1]

    tile_hw = HW
    for cand in (512, 256, 128):
        if HW % cand == 0:
            tile_hw = cand
            break
    n_tiles = HW // tile_hw

    kernel = functools.partial(cnn_audio_kernel, inv_hw=1.0 / HW, eps=1e-5)
    return pl.pallas_call(
        kernel,
        out_shape=jax.ShapeDtypeStruct((B, Hp), jnp.float32),
        grid=(B, n_tiles),
        in_specs=[
            pl.BlockSpec((1, tile_hw, K), lambda b, m: (b, m, 0)),   # patches tile
            pl.BlockSpec((K, Cp), lambda b, m: (0, 0)),              # conv weight
            pl.BlockSpec((1, Cp), lambda b, m: (0, 0)),              # conv bias
            pl.BlockSpec((Cp, Hp), lambda b, m: (0, 0)),             # audio_linear W
            pl.BlockSpec((1, Hp), lambda b, m: (0, 0)),              # audio_linear b
            pl.BlockSpec((1, Hp), lambda b, m: (0, 0)),              # BN gamma
            pl.BlockSpec((1, Hp), lambda b, m: (0, 0)),              # BN beta
        ],
        out_specs=pl.BlockSpec((B, Hp), lambda b, m: (0, 0)),
        scratch_shapes=[pltpu.VMEM((B, Cp), jnp.float32)],
        compiler_params=pltpu.CompilerParams(
            dimension_semantics=("arbitrary", "arbitrary"),
            vmem_limit_bytes=32 * 1024 * 1024),
    )(patches, w_col, conv_b, lin_w, lin_b, gamma, beta)


# ----------------------------------------------------------------------------
# Kernel 2: fused LSTM encoder + decoder, chunked time grid, state in VMEM.
#           Inputs/outputs are time-major so per-step reads/writes index the
#           leading axis; word gates are precomputed (hoisted projection).
# ----------------------------------------------------------------------------
def _gates_to_hc(gates, c):
    # PyTorch LSTM gate order: i, f, g, o (each Hp wide after per-gate padding)
    H = c.shape[-1]
    i = jax.nn.sigmoid(gates[:, 0 * H:1 * H])
    f = jax.nn.sigmoid(gates[:, 1 * H:2 * H])
    g = jnp.tanh(gates[:, 2 * H:3 * H])
    o = jax.nn.sigmoid(gates[:, 3 * H:4 * H])
    c_new = f * c + i * g
    h_new = o * jnp.tanh(c_new)
    return h_new, c_new


def fused_lstm_kernel(wg_ref, ae_ref, ewa_ref, ewh_ref, dwi_ref, dwh_ref,
                      db_ref, o_ref, he_scr, ce_scr, hd_scr, cd_scr, ag_scr,
                      *, t_chunk):
    c = pl.program_id(0)

    @pl.when(c == 0)
    def _init():
        he_scr[...] = jnp.zeros_like(he_scr)
        ce_scr[...] = jnp.zeros_like(ce_scr)
        hd_scr[...] = ae_ref[...]            # decoder h0 = audio_embeds
        cd_scr[...] = ae_ref[...]            # decoder c0 = audio_embeds
        # time-invariant audio contribution to the encoder gates (once)
        ag_scr[...] = jnp.dot(ae_ref[...].astype(jnp.bfloat16), ewa_ref[...],
                              preferred_element_type=jnp.float32)

    for s in range(t_chunk):                 # unrolled; t_chunk is static
        # ---- decoder step (global t = c*t_chunk + s), consumes encoder h of t-1
        def _decoder_step():
            gates = (jnp.dot(he_scr[...].astype(jnp.bfloat16), dwi_ref[...],
                             preferred_element_type=jnp.float32)
                     + jnp.dot(hd_scr[...].astype(jnp.bfloat16), dwh_ref[...],
                               preferred_element_type=jnp.float32)
                     + db_ref[...])
            h_new, c_new = _gates_to_hc(gates, cd_scr[...])
            hd_scr[...] = h_new
            cd_scr[...] = c_new

        if s == 0:
            pl.when(c > 0)(_decoder_step)    # global t == 0 -> no decoder step
        else:
            _decoder_step()

        # decoder hidden for this step; the global slot 0 is a dummy (sliced off)
        o_ref[s] = hd_scr[...]

        # ---- encoder step t: precomputed word gate + h@W_hh + audio gate
        gates = (wg_ref[s]
                 + jnp.dot(he_scr[...].astype(jnp.bfloat16), ewh_ref[...],
                           preferred_element_type=jnp.float32)
                 + ag_scr[...])
        h_new, c_new = _gates_to_hc(gates, ce_scr[...])
        he_scr[...] = h_new
        ce_scr[...] = c_new


def fused_lstm(word_gates, audio_embeds, ewa, ewh, dwi, dwh, db, *, t_chunk):
    T_pad, B, G = word_gates.shape           # G = 4*Hp
    Hp = audio_embeds.shape[1]
    n_chunks = T_pad // t_chunk
    kernel = functools.partial(fused_lstm_kernel, t_chunk=t_chunk)
    return pl.pallas_call(
        kernel,
        out_shape=jax.ShapeDtypeStruct((T_pad, B, Hp), jnp.float32),
        grid=(n_chunks,),
        in_specs=[
            pl.BlockSpec((t_chunk, B, G), lambda c: (c, 0, 0)),  # word gates chunk
            pl.BlockSpec((B, Hp), lambda c: (0, 0)),             # audio_embeds
            pl.BlockSpec((Hp, G), lambda c: (0, 0)),             # enc W_ih (audio)
            pl.BlockSpec((Hp, G), lambda c: (0, 0)),             # enc W_hh
            pl.BlockSpec((Hp, G), lambda c: (0, 0)),             # dec W_ih
            pl.BlockSpec((Hp, G), lambda c: (0, 0)),             # dec W_hh
            pl.BlockSpec((1, G), lambda c: (0, 0)),              # dec bias
        ],
        out_specs=pl.BlockSpec((t_chunk, B, Hp), lambda c: (c, 0, 0)),
        scratch_shapes=[
            pltpu.VMEM((B, Hp), jnp.float32),   # encoder h
            pltpu.VMEM((B, Hp), jnp.float32),   # encoder c
            pltpu.VMEM((B, Hp), jnp.float32),   # decoder h
            pltpu.VMEM((B, Hp), jnp.float32),   # decoder c
            pltpu.VMEM((B, G), jnp.float32),    # audio gate (time-invariant)
        ],
        compiler_params=pltpu.CompilerParams(
            dimension_semantics=("arbitrary",),
            vmem_limit_bytes=32 * 1024 * 1024),
    )(word_gates, audio_embeds, ewa, ewh, dwi, dwh, db)


# ----------------------------------------------------------------------------
# Kernel 3: generic tiled (M, K) @ (K, N) + bias  — 2-D grid over (M, N).
#           Used for the hoisted word-gate projection and the vocab projection.
# ----------------------------------------------------------------------------
def matmul_bias_kernel(x_ref, w_ref, b_ref, o_ref):
    o_ref[...] = (jnp.dot(x_ref[...], w_ref[...],
                          preferred_element_type=jnp.float32) + b_ref[...])


def matmul_bias(x, w, b):
    M, K = x.shape
    N = w.shape[1]

    tn = N
    for cand in (512, 256, 128):
        if N % cand == 0:
            tn = cand
            break
    tm = 256 if M >= 256 else _round_up(M, 8)
    Mp = _round_up(M, tm)
    xp = jnp.pad(x, ((0, Mp - M), (0, 0))) if Mp != M else x

    out = pl.pallas_call(
        matmul_bias_kernel,
        out_shape=jax.ShapeDtypeStruct((Mp, N), jnp.float32),
        grid=(Mp // tm, N // tn),
        in_specs=[
            pl.BlockSpec((tm, K), lambda i, j: (i, 0)),
            pl.BlockSpec((K, tn), lambda i, j: (0, j)),
            pl.BlockSpec((1, tn), lambda i, j: (0, j)),
        ],
        out_specs=pl.BlockSpec((tm, tn), lambda i, j: (i, j)),
        compiler_params=pltpu.CompilerParams(
            dimension_semantics=("parallel", "parallel"),
            vmem_limit_bytes=32 * 1024 * 1024),
    )(xp, w, b)
    return out[:M] if Mp != M else out


# ----------------------------------------------------------------------------
# Glue: im2col, one-time parameter preparation, full forward
# ----------------------------------------------------------------------------
def im2col_3x3_same(x):
    # x: (B, C, H, W) NCHW -> (B, H*W, C*9); patch index = c*9 + dh*3 + dw,
    # matching conv_w.reshape(C_out, C_in*9).
    B, C, H, W = x.shape
    xp = jnp.pad(x, ((0, 0), (0, 0), (1, 1), (1, 1)))
    cols = []
    for dh in range(3):
        for dw in range(3):
            cols.append(xp[:, :, dh:dh + H, dw:dw + W])
    p = jnp.stack(cols, axis=2)            # (B, C, 9, H, W)
    p = p.transpose(0, 3, 4, 1, 2)         # (B, H, W, C, 9)
    return p.reshape(B, H * W, C * 9)


def _pad_gate_mat(w, in_pad, h, hp):
    # (in_dim, 4*h) -> (in_pad, 4*hp), padding EACH gate block (i|f|g|o) to hp.
    in_dim = w.shape[0]
    w4 = w.reshape(in_dim, 4, h)
    w4 = jnp.pad(w4, ((0, in_pad - in_dim), (0, 0), (0, hp - h)))
    return w4.reshape(in_pad, 4 * hp)


def prepare_params(params):
    """One-time weight prep (reshape/split/pad/cast) hoisted out of the forward."""
    conv_w = params["conv_w"]                       # (C_feat, C_in, 3, 3)
    c_feat, c_in = conv_w.shape[0], conv_w.shape[1]
    H = params["lin_w"].shape[1]
    Dw = params["emb"].shape[1]
    V = params["fc_w"].shape[1]
    K = c_in * 9
    Cp = _round_up(c_feat, 128)
    Hp = _round_up(H, 128)
    Vp = _round_up(V, 128)

    pp = {}
    pp["w_col"] = _pad_to(conv_w.reshape(c_feat, K).T, (K, Cp)).astype(jnp.bfloat16)
    pp["conv_b"] = _pad_to(params["conv_b"], (1, Cp))
    pp["lin_w"] = _pad_to(params["lin_w"], (Cp, Hp)).astype(jnp.bfloat16)
    pp["lin_b"] = _pad_to(params["lin_b"], (1, Hp))
    pp["bn_gamma"] = _pad_to(params["bn_gamma"], (1, Hp))
    pp["bn_beta"] = _pad_to(params["bn_beta"], (1, Hp))
    pp["emb"] = params["emb"]
    # early-fusion encoder: W_ih rows [:H] act on audio_embeds, [H:] on word emb
    pp["enc_wa"] = _pad_gate_mat(params["enc_wih"][:H], Hp, H, Hp).astype(jnp.bfloat16)
    pp["enc_ww"] = _pad_gate_mat(params["enc_wih"][H:], Dw, H, Hp).astype(jnp.bfloat16)
    pp["enc_whh"] = _pad_gate_mat(params["enc_whh"], Hp, H, Hp).astype(jnp.bfloat16)
    pp["enc_b"] = _pad_gate_mat(params["enc_b"], 1, H, Hp)          # f32
    pp["dec_wih"] = _pad_gate_mat(params["dec_wih"], Hp, H, Hp).astype(jnp.bfloat16)
    pp["dec_whh"] = _pad_gate_mat(params["dec_whh"], Hp, H, Hp).astype(jnp.bfloat16)
    pp["dec_b"] = _pad_gate_mat(params["dec_b"], 1, H, Hp)          # f32
    pp["fc_w"] = _pad_to(params["fc_w"], (Hp, Vp)).astype(jnp.bfloat16)
    pp["fc_b"] = _pad_to(params["fc_b"], (1, Vp))
    return pp


def init_params(key, *, c_in, c_feat, hidden, d_word, vocab_size):
    ks = jax.random.split(key, 16)
    s = 0.1
    p = {}
    p["conv_w"] = s * jax.random.normal(ks[0], (c_feat, c_in, 3, 3), jnp.float32)
    p["conv_b"] = s * jax.random.normal(ks[1], (1, c_feat), jnp.float32)
    p["lin_w"] = s * jax.random.normal(ks[2], (c_feat, hidden), jnp.float32)
    p["lin_b"] = s * jax.random.normal(ks[3], (1, hidden), jnp.float32)
    p["bn_gamma"] = jnp.ones((1, hidden), jnp.float32)     # PyTorch BN default init
    p["bn_beta"] = jnp.zeros((1, hidden), jnp.float32)
    p["emb"] = s * jax.random.normal(ks[4], (vocab_size, d_word), jnp.float32)
    d_enc_in = hidden + d_word                              # early fusion
    p["enc_wih"] = s * jax.random.normal(ks[5], (d_enc_in, 4 * hidden), jnp.float32)
    p["enc_whh"] = s * jax.random.normal(ks[6], (hidden, 4 * hidden), jnp.float32)
    p["enc_b"] = s * jax.random.normal(ks[7], (1, 4 * hidden), jnp.float32)
    p["dec_wih"] = s * jax.random.normal(ks[8], (hidden, 4 * hidden), jnp.float32)
    p["dec_whh"] = s * jax.random.normal(ks[9], (hidden, 4 * hidden), jnp.float32)
    p["dec_b"] = s * jax.random.normal(ks[10], (1, 4 * hidden), jnp.float32)
    p["fc_w"] = s * jax.random.normal(ks[11], (hidden, vocab_size), jnp.float32)
    p["fc_b"] = s * jax.random.normal(ks[12], (1, vocab_size), jnp.float32)
    return p


def cnn_lstm_caption_forward(pp, audio, audio_len, tokens, cap_len, *,
                             vocab_size, teacher_forcing=True, t_chunk=8):
    B = audio.shape[0]
    S = tokens.shape[1]
    Hp = pp["lin_w"].shape[1]
    Vp = pp["fc_w"].shape[1]
    G = pp["enc_whh"].shape[1]                                 # 4*Hp

    # ---- 1+2. CNNEncoder + audio_linear + BN + ReLU (tiled, pooled in-kernel)
    patches = im2col_3x3_same(audio).astype(jnp.bfloat16)      # (B, HW, C_in*9)
    audio_embeds = cnn_audio_encoder(
        patches, pp["w_col"], pp["conv_b"], pp["lin_w"], pp["lin_b"],
        pp["bn_gamma"], pp["bn_beta"])                         # (B, Hp)

    # ---- 3. word embeddings (time-major) + hoisted encoder word-gate projection
    we_tm = pp["emb"][tokens.T].astype(jnp.bfloat16)           # (S, B, Dw)
    Dw = we_tm.shape[-1]
    wg = matmul_bias(we_tm.reshape(S * B, Dw), pp["enc_ww"], pp["enc_b"])
    wg = wg.reshape(S, B, G)                                   # (S, B, 4Hp)

    # ---- 4+5. fused LSTM encoder + decoder over the chunked time grid
    n_steps = S - 1 if teacher_forcing else S
    t_grid = n_steps + 1
    T_pad = _round_up(t_grid, t_chunk)
    if T_pad > S:   # padded/extra encoder steps feed zero word gates (unused)
        wg = jnp.pad(wg, ((0, T_pad - S), (0, 0), (0, 0)))
    # TODO(synk): teacher_forcing=False greedy decode (feeding back argmax
    #             predictions) is not modelled; extra steps just see zero input.

    dec_h = fused_lstm(wg, audio_embeds, pp["enc_wa"], pp["enc_whh"],
                       pp["dec_wih"], pp["dec_whh"], pp["dec_b"],
                       t_chunk=t_chunk)                        # (T_pad, B, Hp)

    # ---- 5b. vocab projection hoisted out of the loop (lane-padded V)
    # slot 0 is a dummy (PyTorch never writes outputs[:, 0, :])
    h = dec_h[1:1 + n_steps]                                   # (n_steps, B, Hp)
    h = jnp.transpose(h, (1, 0, 2)).reshape(B * n_steps, Hp).astype(jnp.bfloat16)
    logits = matmul_bias(h, pp["fc_w"], pp["fc_b"])            # (B*n_steps, Vp)
    return logits.reshape(B, n_steps, Vp)[:, :, :vocab_size]   # == outputs[:, 1:, :]


if __name__ == "__main__":
    key = jax.random.PRNGKey(0)
    k_par, k_aud, k_tok = jax.random.split(key, 3)

    # Small, forward-consistent shapes.
    B, C_IN, FREQ, TIME = 2, 4, 16, 16       # audio: NCHW
    C_FEAT = 8                               # audio_encoder.audio_feature_dim
    HIDDEN = 32                              # hidden_dim_encoder == hidden_dim_decoder
    D_WORD = 16                              # word embedding dim
    VOCAB = 40                               # vocab.size
    SEQ = 8                                  # caption length

    params = init_params(k_par, c_in=C_IN, c_feat=C_FEAT, hidden=HIDDEN,
                         d_word=D_WORD, vocab_size=VOCAB)
    prepped = prepare_params(params)         # one-time weight prep (outside jit)

    audio = jax.random.normal(k_aud, (B, C_IN, FREQ, TIME), jnp.float32)
    audio_len = jnp.full((B,), FREQ * TIME, jnp.int32)
    tokens = jax.random.randint(k_tok, (B, SEQ), 0, VOCAB, dtype=jnp.int32)
    cap_len = jnp.full((B,), SEQ, jnp.int32)

    fwd = jax.jit(cnn_lstm_caption_forward,
                  static_argnames=("vocab_size", "teacher_forcing", "t_chunk"))
    out = fwd(prepped, audio, audio_len, tokens, cap_len,
              vocab_size=VOCAB, teacher_forcing=True)
    out = jax.block_until_ready(out)

    assert out.shape == (B, SEQ - 1, VOCAB), out.shape
    assert out.dtype == jnp.float32
    assert bool(jnp.all(jnp.isfinite(out)))
    print("KERNEL_OK")
</pallas_src>

<mosaic_0001>
module attributes {stable_mosaic.version = 11 : i64} {
  func.func @cnn_audio_kernel(%arg0: i32, %arg1: i32, %arg2: memref<1x256x36xbf16, #tpu.memory_space<vmem>>, %arg3: memref<36x128xbf16, #tpu.memory_space<vmem>>, %arg4: memref<1x128xf32, #tpu.memory_space<vmem>>, %arg5: memref<128x128xbf16, #tpu.memory_space<vmem>>, %arg6: memref<1x128xf32, #tpu.memory_space<vmem>>, %arg7: memref<1x128xf32, #tpu.memory_space<vmem>>, %arg8: memref<1x128xf32, #tpu.memory_space<vmem>>, %arg9: memref<2x128xf32, #tpu.memory_space<vmem>>, %arg10: memref<2x128xf32, #tpu.memory_space<vmem>>) attributes {dimension_semantics = [#tpu.dimension_semantics<arbitrary>, #tpu.dimension_semantics<arbitrary>], iteration_bounds = array<i64: 2, 1>, scalar_prefetch = 0 : i64, scratch_operands = 1 : i64, tpu.core_type = #tpu.core_type<tc>, window_params = [{transform_indices = @transform_0, window_bounds = array<i64: 1, 256, 36>}, {pipeline_mode = #tpu.pipeline_mode<synchronous>, transform_indices = @transform_1, window_bounds = array<i64: 36, 128>}, {pipeline_mode = #tpu.pipeline_mode<synchronous>, transform_indices = @transform_2, window_bounds = array<i64: 1, 128>}, {pipeline_mode = #tpu.pipeline_mode<synchronous>, transform_indices = @transform_3, window_bounds = array<i64: 128, 128>}, {pipeline_mode = #tpu.pipeline_mode<synchronous>, transform_indices = @transform_4, window_bounds = array<i64: 1, 128>}, {pipeline_mode = #tpu.pipeline_mode<synchronous>, transform_indices = @transform_5, window_bounds = array<i64: 1, 128>}, {pipeline_mode = #tpu.pipeline_mode<synchronous>, transform_indices = @transform_6, window_bounds = array<i64: 1, 128>}, {pipeline_mode = #tpu.pipeline_mode<synchronous>, transform_indices = @transform_7, window_bounds = array<i64: 2, 128>}]} {
    %c0_i32 = arith.constant 0 : i32
    %0 = arith.cmpi eq, %arg0, %c0_i32 : i32
    %c0_i32_0 = arith.constant 0 : i32
    %1 = arith.cmpi eq, %arg1, %c0_i32_0 : i32
    %2 = arith.andi %0, %1 : i1
    %3 = arith.extui %2 : i1 to i32
    %c0_i32_1 = arith.constant 0 : i32
    %4 = arith.cmpi ne, %3, %c0_i32_1 : i32
    scf.if %4 {
      %cst_17 = arith.constant 0.000000e+00 : f32
      %31 = vector.broadcast %cst_17 : f32 to vector<2x128xf32>
      %c0_18 = arith.constant 0 : index
      %c0_19 = arith.constant 0 : index
      %32 = vector.load %arg10[%c0_18, %c0_19] : memref<2x128xf32, #tpu.memory_space<vmem>>, vector<2x128xf32>
      tpu.vector_store %arg10[%c0_18, %c0_19], %31 {strides = array<i32>} : memref<2x128xf32, #tpu.memory_space<vmem>>, vector<2x128xf32>,
    } else {
    }
    %c0 = arith.constant 0 : index
    %c0_2 = arith.constant 0 : index
    %c0_3 = arith.constant 0 : index
    %5 = vector.load %arg2[%c0, %c0_2, %c0_3] : memref<1x256x36xbf16, #tpu.memory_space<vmem>>, vector<1x256x36xbf16>
    %6 = vector.shape_cast %5 : vector<1x256x36xbf16> to vector<256x36xbf16>
    %c0_4 = arith.constant 0 : index
    %c0_5 = arith.constant 0 : index
    %7 = vector.load %arg3[%c0_4, %c0_5] : memref<36x128xbf16, #tpu.memory_space<vmem>>, vector<36x128xbf16>
    %cst = arith.constant dense<0.000000e+00> : vector<256x128xf32>
    %8 = tpu.matmul %6, %7, %cst {dimension_numbers = #tpu.dot_dimension_numbers<[1], [0], [0], [1], [0, 0, 1, 1], [], []>} : vector<256x36xbf16>, vector<36x128xbf16>, vector<256x128xf32> -> vector<256x128xf32>
    %c0_6 = arith.constant 0 : index
    %c0_7 = arith.constant 0 : index
    %9 = vector.load %arg4[%c0_6, %c0_7] : memref<1x128xf32, #tpu.memory_space<vmem>>, vector<1x128xf32>
    %10 = vector.broadcast %9 : vector<1x128xf32> to vector<256x128xf32>
    %11 = arith.addf %8, %10 : vector<256x128xf32>
    %cst_8 = arith.constant 0.000000e+00 : f32
    %12 = vector.broadcast %cst_8 : f32 to vector<256x128xf32>
    %13 = arith.maximumf %11, %12 : vector<256x128xf32>
    %cst_9 = arith.constant dense<0.000000e+00> : vector<128xf32>
    %14 = vector.multi_reduction <add>, %13, %cst_9 [0] : vector<256x128xf32> to vector<128xf32>
    %15 = vector.shape_cast %14 : vector<128xf32> to vector<1x128xf32>
    %16 = tpu.iota {dimensions = array<i32: 0>} : vector<2x128xi32>
    %c0_10 = arith.constant 0 : index
    %c0_11 = arith.constant 0 : index
    %17 = vector.load %arg10[%c0_10, %c0_11] : memref<2x128xf32, #tpu.memory_space<vmem>>, vector<2x128xf32>
    %18 = vector.broadcast %arg0 : i32 to vector<2x128xi32>
    %19 = arith.cmpi eq, %16, %18 : vector<2x128xi32>
    %cst_12 = arith.constant 0.000000e+00 : f32
    %20 = vector.shape_cast %15 : vector<1x128xf32> to vector<1x128xf32>
    %21 = vector.broadcast %20 : vector<1x128xf32> to vector<2x128xf32>
    %22 = vector.broadcast %cst_12 : f32 to vector<2x128xf32>
    %23 = arith.select %19, %21, %22 : vector<2x128xi1>, vector<2x128xf32>
    %24 = arith.addf %17, %23 : vector<2x128xf32>
    %c0_13 = arith.constant 0 : index
    %c0_14 = arith.constant 0 : index
    %25 = vector.load %arg10[%c0_13, %c0_14] : memref<2x128xf32, #tpu.memory_space<vmem>>, vector<2x128xf32>
    tpu.vector_store %arg10[%c0_13, %c0_14], %24 {strides = array<i32>} : memref<2x128xf32, #tpu.memory_space<vmem>>, vector<2x128xf32>,
    %c1_i32 = arith.constant 1 : i32
    %26 = arith.cmpi eq, %arg0, %c1_i32 : i32
    %c0_i32_15 = arith.constant 0 : i32
    %27 = arith.cmpi eq, %arg1, %c0_i32_15 : i32
    %28 = arith.andi %26, %27 : i1
    %29 = arith.extui %28 : i1 to i32
    %c0_i32_16 = arith.constant 0 : i32
    %30 = arith.cmpi ne, %29, %c0_i32_16 : i32
    scf.if %30 {
      %c0_17 = arith.constant 0 : index
      %c0_18 = arith.constant 0 : index
      %31 = vector.load %arg10[%c0_17, %c0_18] : memref<2x128xf32, #tpu.memory_space<vmem>>, vector<2x128xf32>
      %cst_19 = arith.constant 3.906250e-03 : f32
      %32 = vector.broadcast %cst_19 : f32 to vector<2x128xf32>
      %33 = arith.mulf %31, %32 : vector<2x128xf32>
      %34 = arith.truncf %33 : vector<2x128xf32> to vector<2x128xbf16>
      %c0_20 = arith.constant 0 : index
      %c0_21 = arith.constant 0 : index
      %35 = vector.load %arg5[%c0_20, %c0_21] : memref<128x128xbf16, #tpu.memory_space<vmem>>, vector<128x128xbf16>
      %cst_22 = arith.constant dense<0.000000e+00> : vector<2x128xf32>
      %36 = tpu.matmul %34, %35, %cst_22 {dimension_numbers = #tpu.dot_dimension_numbers<[1], [0], [0], [1], [0, 0, 1, 1], [], []>} : vector<2x128xbf16>, vector<128x128xbf16>, vector<2x128xf32> -> vector<2x128xf32>
      %c0_23 = arith.constant 0 : index
      %c0_24 = arith.constant 0 : index
      %37 = vector.load %arg6[%c0_23, %c0_24] : memref<1x128xf32, #tpu.memory_space<vmem>>, vector<1x128xf32>
      %38 = vector.broadcast %37 : vector<1x128xf32> to vector<2x128xf32>
      %39 = arith.addf %36, %38 : vector<2x128xf32>
      %cst_25 = arith.constant dense<0.000000e+00> : vector<128xf32>
      %40 = vector.multi_reduction <add>, %39, %cst_25 [0] : vector<2x128xf32> to vector<128xf32>
      %41 = vector.shape_cast %40 : vector<128xf32> to vector<1x128xf32>
      %cst_26 = arith.constant 2.000000e+00 : f32
      %42 = vector.broadcast %cst_26 : f32 to vector<1x128xf32>
      %43 = arith.divf %41, %42 : vector<1x128xf32>
      %44 = vector.broadcast %43 : vector<1x128xf32> to vector<2x128xf32>
      %45 = arith.subf %39, %44 : vector<2x128xf32>
      %46 = arith.mulf %45, %45 : vector<2x128xf32>
      %cst_27 = arith.constant dense<0.000000e+00> : vector<128xf32>
      %47 = vector.multi_reduction <add>, %46, %cst_27 [0] : vector<2x128xf32> to vector<128xf32>
      %48 = vector.shape_cast %47 : vector<128xf32> to vector<1x128xf32>
      %cst_28 = arith.constant 2.000000e+00 : f32
      %49 = vector.broadcast %cst_28 : f32 to vector<1x128xf32>
      %50 = arith.divf %48, %49 : vector<1x128xf32>
      %51 = vector.broadcast %43 : vector<1x128xf32> to vector<2x128xf32>
      %52 = arith.subf %39, %51 : vector<2x128xf32>
      %cst_29 = arith.constant 9.99999974E-6 : f32
      %53 = vector.broadcast %cst_29 : f32 to vector<1x128xf32>
      %54 = arith.addf %50, %53 : vector<1x128xf32>
      %55 = math.rsqrt %54 : vector<1x128xf32>
      %56 = vector.broadcast %55 : vector<1x128xf32> to vector<2x128xf32>
      %57 = arith.mulf %52, %56 : vector<2x128xf32>
      %c0_30 = arith.constant 0 : index
      %c0_31 = arith.constant 0 : index
      %58 = vector.load %arg7[%c0_30, %c0_31] : memref<1x128xf32, #tpu.memory_space<vmem>>, vector<1x128xf32>
      %59 = vector.broadcast %58 : vector<1x128xf32> to vector<2x128xf32>
      %60 = arith.mulf %57, %59 : vector<2x128xf32>
      %c0_32 = arith.constant 0 : index
      %c0_33 = arith.constant 0 : index
      %61 = vector.load %arg8[%c0_32, %c0_33] : memref<1x128xf32, #tpu.memory_space<vmem>>, vector<1x128xf32>
      %62 = vector.broadcast %61 : vector<1x128xf32> to vector<2x128xf32>
      %63 = arith.addf %60, %62 : vector<2x128xf32>
      %cst_34 = arith.constant 0.000000e+00 : f32
      %64 = vector.broadcast %cst_34 : f32 to vector<2x128xf32>
      %65 = arith.maximumf %63, %64 : vector<2x128xf32>
      %c0_35 = arith.constant 0 : index
      %c0_36 = arith.constant 0 : index
      %66 = vector.load %arg9[%c0_35, %c0_36] : memref<2x128xf32, #tpu.memory_space<vmem>>, vector<2x128xf32>
      tpu.vector_store %arg9[%c0_35, %c0_36], %65 {strides = array<i32>} : memref<2x128xf32, #tpu.memory_space<vmem>>, vector<2x128xf32>,
    } else {
    }
    return
  }
  func.func @transform_0(%arg0: i32, %arg1: i32) -> (i32, i32, i32) {
    %c0_i32 = arith.constant 0 : i32
    %c0_i32_0 = arith.constant 0 : i32
    return %arg0, %arg1, %c0_i32 : i32, i32, i32
  }
  func.func @transform_1(%arg0: i32, %arg1: i32) -> (i32, i32) {
    %c0_i32 = arith.constant 0 : i32
    %c0_i32_0 = arith.constant 0 : i32
    %c0_i32_1 = arith.constant 0 : i32
    return %c0_i32, %c0_i32_0 : i32, i32
  }
  func.func @transform_2(%arg0: i32, %arg1: i32) -> (i32, i32) {
    %c0_i32 = arith.constant 0 : i32
    %c0_i32_0 = arith.constant 0 : i32
    %c0_i32_1 = arith.constant 0 : i32
    return %c0_i32, %c0_i32_0 : i32, i32
  }
  func.func @transform_3(%arg0: i32, %arg1: i32) -> (i32, i32) {
    %c0_i32 = arith.constant 0 : i32
    %c0_i32_0 = arith.constant 0 : i32
    %c0_i32_1 = arith.constant 0 : i32
    return %c0_i32, %c0_i32_0 : i32, i32
  }
  func.func @transform_4(%arg0: i32, %arg1: i32) -> (i32, i32) {
    %c0_i32 = arith.constant 0 : i32
    %c0_i32_0 = arith.constant 0 : i32
    %c0_i32_1 = arith.constant 0 : i32
    return %c0_i32, %c0_i32_0 : i32, i32
  }
  func.func @transform_5(%arg0: i32, %arg1: i32) -> (i32, i32) {
    %c0_i32 = arith.constant 0 : i32
    %c0_i32_0 = arith.constant 0 : i32
    %c0_i32_1 = arith.constant 0 : i32
    return %c0_i32, %c0_i32_0 : i32, i32
  }
  func.func @transform_6(%arg0: i32, %arg1: i32) -> (i32, i32) {
    %c0_i32 = arith.constant 0 : i32
    %c0_i32_0 = arith.constant 0 : i32
    %c0_i32_1 = arith.constant 0 : i32
    return %c0_i32, %c0_i32_0 : i32, i32
  }
  func.func @transform_7(%arg0: i32, %arg1: i32) -> (i32, i32) {
    %c0_i32 = arith.constant 0 : i32
    %c0_i32_0 = arith.constant 0 : i32
    %c0_i32_1 = arith.constant 0 : i32
    return %c0_i32, %c0_i32_0 : i32, i32
  }
}

module attributes {stable_mosaic.version = 11 : i64} {
  func.func @matmul_bias_kernel(%arg0: i32, %arg1: i32, %arg2: memref<16x16xbf16, #tpu.memory_space<vmem>>, %arg3: memref<16x512xbf16, #tpu.memory_space<vmem>>, %arg4: memref<1x512xf32, #tpu.memory_space<vmem>>, %arg5: memref<16x512xf32, #tpu.memory_space<vmem>>) attributes {dimension_semantics = [#tpu.dimension_semantics<parallel>, #tpu.dimension_semantics<parallel>], iteration_bounds = array<i64: 1, 1>, scalar_prefetch = 0 : i64, scratch_operands = 0 : i64, tpu.core_type = #tpu.core_type<tc>, window_params = [{transform_indices = @transform_0, window_bounds = array<i64: 16, 16>}, {transform_indices = @transform_1, window_bounds = array<i64: 16, 512>}, {transform_indices = @transform_2, window_bounds = array<i64: 1, 512>}, {transform_indices = @transform_3, window_bounds = array<i64: 16, 512>}]} {
    %c0 = arith.constant 0 : index
    %c0_0 = arith.constant 0 : index
    %0 = vector.load %arg2[%c0, %c0_0] : memref<16x16xbf16, #tpu.memory_space<vmem>>, vector<16x16xbf16>
    %c0_1 = arith.constant 0 : index
    %c0_2 = arith.constant 0 : index
    %1 = vector.load %arg3[%c0_1, %c0_2] : memref<16x512xbf16, #tpu.memory_space<vmem>>, vector<16x512xbf16>
    %cst = arith.constant dense<0.000000e+00> : vector<16x512xf32>
    %2 = tpu.matmul %0, %1, %cst {dimension_numbers = #tpu.dot_dimension_numbers<[1], [0], [0], [1], [0, 0, 1, 1], [], []>} : vector<16x16xbf16>, vector<16x512xbf16>, vector<16x512xf32> -> vector<16x512xf32>
    %c0_3 = arith.constant 0 : index
    %c0_4 = arith.constant 0 : index
    %3 = vector.load %arg4[%c0_3, %c0_4] : memref<1x512xf32, #tpu.memory_space<vmem>>, vector<1x512xf32>
    %4 = vector.broadcast %3 : vector<1x512xf32> to vector<16x512xf32>
    %5 = arith.addf %2, %4 : vector<16x512xf32>
    %c0_5 = arith.constant 0 : index
    %c0_6 = arith.constant 0 : index
    %6 = vector.load %arg5[%c0_5, %c0_6] : memref<16x512xf32, #tpu.memory_space<vmem>>, vector<16x512xf32>
    tpu.vector_store %arg5[%c0_5, %c0_6], %5 {strides = array<i32>} : memref<16x512xf32, #tpu.memory_space<vmem>>, vector<16x512xf32>,
    return
  }
  func.func @transform_0(%arg0: i32, %arg1: i32) -> (i32, i32) {
    %c0_i32 = arith.constant 0 : i32
    %c0_i32_0 = arith.constant 0 : i32
    return %arg0, %c0_i32 : i32, i32
  }
  func.func @transform_1(%arg0: i32, %arg1: i32) -> (i32, i32) {
    %c0_i32 = arith.constant 0 : i32
    %c0_i32_0 = arith.constant 0 : i32
    return %c0_i32, %arg1 : i32, i32
  }
  func.func @transform_2(%arg0: i32, %arg1: i32) -> (i32, i32) {
    %c0_i32 = arith.constant 0 : i32
    %c0_i32_0 = arith.constant 0 : i32
    return %c0_i32, %arg1 : i32, i32
  }
  func.func @transform_3(%arg0: i32, %arg1: i32) -> (i32, i32) {
    %c0_i32 = arith.constant 0 : i32
    return %arg0, %arg1 : i32, i32
  }
}

module attributes {stable_mosaic.version = 11 : i64} {
  func.func @fused_lstm_kernel(%arg0: i32, %arg1: memref<8x2x512xf32, #tpu.memory_space<vmem>>, %arg2: memref<2x128xf32, #tpu.memory_space<vmem>>, %arg3: memref<128x512xbf16, #tpu.memory_space<vmem>>, %arg4: memref<128x512xbf16, #tpu.memory_space<vmem>>, %arg5: memref<128x512xbf16, #tpu.memory_space<vmem>>, %arg6: memref<128x512xbf16, #tpu.memory_space<vmem>>, %arg7: memref<1x512xf32, #tpu.memory_space<vmem>>, %arg8: memref<8x2x128xf32, #tpu.memory_space<vmem>>, %arg9: memref<2x128xf32, #tpu.memory_space<vmem>>, %arg10: memref<2x128xf32, #tpu.memory_space<vmem>>, %arg11: memref<2x128xf32, #tpu.memory_space<vmem>>, %arg12: memref<2x128xf32, #tpu.memory_space<vmem>>, %arg13: memref<2x512xf32, #tpu.memory_space<vmem>>) attributes {dimension_semantics = [#tpu.dimension_semantics<arbitrary>], iteration_bounds = array<i64: 1>, scalar_prefetch = 0 : i64, scratch_operands = 5 : i64, tpu.core_type = #tpu.core_type<tc>, window_params = [{transform_indices = @transform_0, window_bounds = array<i64: 8, 2, 512>}, {pipeline_mode = #tpu.pipeline_mode<synchronous>, transform_indices = @transform_1, window_bounds = array<i64: 2, 128>}, {pipeline_mode = #tpu.pipeline_mode<synchronous>, transform_indices = @transform_2, window_bounds = array<i64: 128, 512>}, {pipeline_mode = #tpu.pipeline_mode<synchronous>, transform_indices = @transform_3, window_bounds = array<i64: 128, 512>}, {pipeline_mode = #tpu.pipeline_mode<synchronous>, transform_indices = @transform_4, window_bounds = array<i64: 128, 512>}, {pipeline_mode = #tpu.pipeline_mode<synchronous>, transform_indices = @transform_5, window_bounds = array<i64: 128, 512>}, {pipeline_mode = #tpu.pipeline_mode<synchronous>, transform_indices = @transform_6, window_bounds = array<i64: 1, 512>}, {transform_indices = @transform_7, window_bounds = array<i64: 8, 2, 128>}]} {
    %c0_i32 = arith.constant 0 : i32
    %0 = arith.cmpi eq, %arg0, %c0_i32 : i32
    %1 = arith.extui %0 : i1 to i32
    %c0_i32_0 = arith.constant 0 : i32
    %2 = arith.cmpi ne, %1, %c0_i32_0 : i32
    scf.if %2 {
      %cst_333 = arith.constant 0.000000e+00 : f32
      %614 = vector.broadcast %cst_333 : f32 to vector<2x128xf32>
      %c0_334 = arith.constant 0 : index
      %c0_335 = arith.constant 0 : index
      %615 = vector.load %arg9[%c0_334, %c0_335] : memref<2x128xf32, #tpu.memory_space<vmem>>, vector<2x128xf32>
      tpu.vector_store %arg9[%c0_334, %c0_335], %614 {strides = array<i32>} : memref<2x128xf32, #tpu.memory_space<vmem>>, vector<2x128xf32>,
      %cst_336 = arith.constant 0.000000e+00 : f32
      %616 = vector.broadcast %cst_336 : f32 to vector<2x128xf32>
      %c0_337 = arith.constant 0 : index
      %c0_338 = arith.constant 0 : index
      %617 = vector.load %arg10[%c0_337, %c0_338] : memref<2x128xf32, #tpu.memory_space<vmem>>, vector<2x128xf32>
      tpu.vector_store %arg10[%c0_337, %c0_338], %616 {strides = array<i32>} : memref<2x128xf32, #tpu.memory_space<vmem>>, vector<2x128xf32>,
      %c0_339 = arith.constant 0 : index
      %c0_340 = arith.constant 0 : index
      %618 = vector.load %arg2[%c0_339, %c0_340] : memref<2x128xf32, #tpu.memory_space<vmem>>, vector<2x128xf32>
      %c0_341 = arith.constant 0 : index
      %c0_342 = arith.constant 0 : index
      %619 = vector.load %arg11[%c0_341, %c0_342] : memref<2x128xf32, #tpu.memory_space<vmem>>, vector<2x128xf32>
      tpu.vector_store %arg11[%c0_341, %c0_342], %618 {strides = array<i32>} : memref<2x128xf32, #tpu.memory_space<vmem>>, vector<2x128xf32>,
      %c0_343 = arith.constant 0 : index
      %c0_344 = arith.constant 0 : index
      %620 = vector.load %arg2[%c0_343, %c0_344] : memref<2x128xf32, #tpu.memory_space<vmem>>, vector<2x128xf32>
      %c0_345 = arith.constant 0 : index
      %c0_346 = arith.constant 0 : index
      %621 = vector.load %arg12[%c0_345, %c0_346] : memref<2x128xf32, #tpu.memory_space<vmem>>, vector<2x128xf32>
      tpu.vector_store %arg12[%c0_345, %c0_346], %620 {strides = array<i32>} : memref<2x128xf32, #tpu.memory_space<vmem>>, vector<2x128xf32>,
      %c0_347 = arith.constant 0 : index
      %c0_348 = arith.constant 0 : index
      %622 = vector.load %arg2[%c0_347, %c0_348] : memref<2x128xf32, #tpu.memory_space<vmem>>, vector<2x128xf32>
      %623 = arith.truncf %622 : vector<2x128xf32> to vector<2x128xbf16>
      %c0_349 = arith.constant 0 : index
      %c0_350 = arith.constant 0 : index
      %624 = vector.load %arg3[%c0_349, %c0_350] : memref<128x512xbf16, #tpu.memory_space<vmem>>, vector<128x512xbf16>
      %cst_351 = arith.constant dense<0.000000e+00> : vector<2x512xf32>
      %625 = tpu.matmul %623, %624, %cst_351 {dimension_numbers = #tpu.dot_dimension_numbers<[1], [0], [0], [1], [0, 0, 1, 1], [], []>} : vector<2x128xbf16>, vector<128x512xbf16>, vector<2x512xf32> -> vector<2x512xf32>
      %c0_352 = arith.constant 0 : index
      %c0_353 = arith.constant 0 : index
      %626 = vector.load %arg13[%c0_352, %c0_353] : memref<2x512xf32, #tpu.memory_space<vmem>>, vector<2x512xf32>
      tpu.vector_store %arg13[%c0_352, %c0_353], %625 {strides = array<i32>} : memref<2x512xf32, #tpu.memory_space<vmem>>, vector<2x512xf32>,
    } else {
    }
    %c0_i32_1 = arith.constant 0 : i32
    %3 = arith.cmpi sgt, %arg0, %c0_i32_1 : i32
    %4 = arith.extui %3 : i1 to i32
    %c0_i32_2 = arith.constant 0 : i32
    %5 = arith.cmpi ne, %4, %c0_i32_2 : i32
    scf.if %5 {
      %c0_333 = arith.constant 0 : index
      %c0_334 = arith.constant 0 : index
      %614 = vector.load %arg9[%c0_333, %c0_334] : memref<2x128xf32, #tpu.memory_space<vmem>>, vector<2x128xf32>
      %615 = arith.truncf %614 : vector<2x128xf32> to vector<2x128xbf16>
      %c0_335 = arith.constant 0 : index
      %c0_336 = arith.constant 0 : index
      %616 = vector.load %arg5[%c0_335, %c0_336] : memref<128x512xbf16, #tpu.memory_space<vmem>>, vector<128x512xbf16>
      %cst_337 = arith.constant dense<0.000000e+00> : vector<2x512xf32>
      %617 = tpu.matmul %615, %616, %cst_337 {dimension_numbers = #tpu.dot_dimension_numbers<[1], [0], [0], [1], [0, 0, 1, 1], [], []>} : vector<2x128xbf16>, vector<128x512xbf16>, vector<2x512xf32> -> vector<2x512xf32>
      %c0_338 = arith.constant 0 : index
      %c0_339 = arith.constant 0 : index
      %618 = vector.load %arg11[%c0_338, %c0_339] : memref<2x128xf32, #tpu.memory_space<vmem>>, vector<2x128xf32>
      %619 = arith.truncf %618 : vector<2x128xf32> to vector<2x128xbf16>
      %c0_340 = arith.constant 0 : index
      %c0_341 = arith.constant 0 : index
      %620 = vector.load %arg6[%c0_340, %c0_341] : memref<128x512xbf16, #tpu.memory_space<vmem>>, vector<128x512xbf16>
      %cst_342 = arith.constant dense<0.000000e+00> : vector<2x512xf32>
      %621 = tpu.matmul %619, %620, %cst_342 {dimension_numbers = #tpu.dot_dimension_numbers<[1], [0], [0], [1], [0, 0, 1, 1], [], []>} : vector<2x128xbf16>, vector<128x512xbf16>, vector<2x512xf32> -> vector<2x512xf32>
      %622 = arith.addf %617, %621 : vector<2x512xf32>
      %c0_343 = arith.constant 0 : index
      %c0_344 = arith.constant 0 : index
      %623 = vector.load %arg7[%c0_343, %c0_344] : memref<1x512xf32, #tpu.memory_space<vmem>>, vector<1x512xf32>
      %624 = vector.broadcast %623 : vector<1x512xf32> to vector<2x512xf32>
      %625 = arith.addf %622, %624 : vector<2x512xf32>
      %c0_345 = arith.constant 0 : index
      %c0_346 = arith.constant 0 : index
      %626 = vector.load %arg12[%c0_345, %c0_346] : memref<2x128xf32, #tpu.memory_space<vmem>>, vector<2x128xf32>
      %627 = vector.extract_strided_slice %625 {offsets = [0, 0], sizes = [2, 128], strides = [1, 1]} : vector<2x512xf32> to vector<2x128xf32>
      %628 = arith.negf %627 : vector<2x128xf32>
      %629 = math.exp %628 : vector<2x128xf32>
      %cst_347 = arith.constant 1.000000e+00 : f32
      %630 = vector.broadcast %cst_347 : f32 to vector<2x128xf32>
      %631 = arith.addf %630, %629 : vector<2x128xf32>
      %632 = arith.divf %630, %631 : vector<2x128xf32>
      %633 = vector.extract_strided_slice %625 {offsets = [0, 128], sizes = [2, 128], strides = [1, 1]} : vector<2x512xf32> to vector<2x128xf32>
      %634 = arith.negf %633 : vector<2x128xf32>
      %635 = math.exp %634 : vector<2x128xf32>
      %cst_348 = arith.constant 1.000000e+00 : f32
      %636 = vector.broadcast %cst_348 : f32 to vector<2x128xf32>
      %637 = arith.addf %636, %635 : vector<2x128xf32>
      %638 = arith.divf %636, %637 : vector<2x128xf32>
      %639 = vector.extract_strided_slice %625 {offsets = [0, 256], sizes = [2, 128], strides = [1, 1]} : vector<2x512xf32> to vector<2x128xf32>
      %640 = math.tanh %639 : vector<2x128xf32>
      %641 = vector.extract_strided_slice %625 {offsets = [0, 384], sizes = [2, 128], strides = [1, 1]} : vector<2x512xf32> to vector<2x128xf32>
      %642 = arith.negf %641 : vector<2x128xf32>
      %643 = math.exp %642 : vector<2x128xf32>
      %cst_349 = arith.constant 1.000000e+00 : f32
      %644 = vector.broadcast %cst_349 : f32 to vector<2x128xf32>
      %645 = arith.addf %644, %643 : vector<2x128xf32>
      %646 = arith.divf %644, %645 : vector<2x128xf32>
      %647 = arith.mulf %638, %626 : vector<2x128xf32>
      %648 = arith.mulf %632, %640 : vector<2x128xf32>
      %649 = arith.addf %647, %648 : vector<2x128xf32>
      %650 = math.tanh %649 : vector<2x128xf32>
      %651 = arith.mulf %646, %650 : vector<2x128xf32>
      %c0_350 = arith.constant 0 : index
      %c0_351 = arith.constant 0 : index
      %652 = vector.load %arg11[%c0_350, %c0_351] : memref<2x128xf32, #tpu.memory_space<vmem>>, vector<2x128xf32>
      tpu.vector_store %arg11[%c0_350, %c0_351], %651 {strides = array<i32>} : memref<2x128xf32, #tpu.memory_space<vmem>>, vector<2x128xf32>,
      %c0_352 = arith.constant 0 : index
      %c0_353 = arith.constant 0 : index
      %653 = vector.load %arg12[%c0_352, %c0_353] : memref<2x128xf32, #tpu.memory_space<vmem>>, vector<2x128xf32>
      tpu.vector_store %arg12[%c0_352, %c0_353], %649 {strides = array<i32>} : memref<2x128xf32, #tpu.memory_space<vmem>>, vector<2x128xf32>,
    } else {
    }
    %c0 = arith.constant 0 : index
    %c0_3 = arith.constant 0 : index
    %6 = vector.load %arg11[%c0, %c0_3] : memref<2x128xf32, #tpu.memory_space<vmem>>, vector<2x128xf32>
    %c0_4 = arith.constant 0 : index
    %c0_5 = arith.constant 0 : index
    %c0_6 = arith.constant 0 : index
    %7 = vector.load %arg8[%c0_4, %c0_5, %c0_6] : memref<8x2x128xf32, #tpu.memory_space<vmem>>, vector<1x2x128xf32>
    %8 = vector.shape_cast %7 : vector<1x2x128xf32> to vector<2x128xf32>
    %9 = vector.shape_cast %6 : vector<2x128xf32> to vector<1x2x128xf32>
    tpu.vector_store %arg8[%c0_4, %c0_5, %c0_6], %9 {strides = array<i32>} : memref<8x2x128xf32, #tpu.memory_space<vmem>>, vector<1x2x128xf32>,
    %c0_7 = arith.constant 0 : index
    %c0_8 = arith.constant 0 : index
    %c0_9 = arith.constant 0 : index
    %10 = vector.load %arg1[%c0_7, %c0_8, %c0_9] : memref<8x2x512xf32, #tpu.memory_space<vmem>>, vector<1x2x512xf32>
    %11 = vector.shape_cast %10 : vector<1x2x512xf32> to vector<2x512xf32>
    %c0_10 = arith.constant 0 : index
    %c0_11 = arith.constant 0 : index
    %12 = vector.load %arg9[%c0_10, %c0_11] : memref<2x128xf32, #tpu.memory_space<vmem>>, vector<2x128xf32>
    %13 = arith.truncf %12 : vector<2x128xf32> to vector<2x128xbf16>
    %c0_12 = arith.constant 0 : index
    %c0_13 = arith.constant 0 : index
    %14 = vector.load %arg4[%c0_12, %c0_13] : memref<128x512xbf16, #tpu.memory_space<vmem>>, vector<128x512xbf16>
    %cst = arith.constant dense<0.000000e+00> : vector<2x512xf32>
    %15 = tpu.matmul %13, %14, %cst {dimension_numbers = #tpu.dot_dimension_numbers<[1], [0], [0], [1], [0, 0, 1, 1], [], []>} : vector<2x128xbf16>, vector<128x512xbf16>, vector<2x512xf32> -> vector<2x512xf32>
    %16 = arith.addf %11, %15 : vector<2x512xf32>
    %c0_14 = arith.constant 0 : index
    %c0_15 = arith.constant 0 : index
    %17 = vector.load %arg13[%c0_14, %c0_15] : memref<2x512xf32, #tpu.memory_space<vmem>>, vector<2x512xf32>
    %18 = arith.addf %16, %17 : vector<2x512xf32>
    %c0_16 = arith.constant 0 : index
    %c0_17 = arith.constant 0 : index
    %19 = vector.load %arg10[%c0_16, %c0_17] : memref<2x128xf32, #tpu.memory_space<vmem>>, vector<2x128xf32>
    %20 = vector.extract_strided_slice %18 {offsets = [0, 0], sizes = [2, 128], strides = [1, 1]} : vector<2x512xf32> to vector<2x128xf32>
    %21 = arith.negf %20 : vector<2x128xf32>
    %22 = math.exp %21 : vector<2x128xf32>
    %cst_18 = arith.constant 1.000000e+00 : f32
    %23 = vector.broadcast %cst_18 : f32 to vector<2x128xf32>
    %24 = arith.addf %23, %22 : vector<2x128xf32>
    %25 = arith.divf %23, %24 : vector<2x128xf32>
    %26 = vector.extract_strided_slice %18 {offsets = [0, 128], sizes = [2, 128], strides = [1, 1]} : vector<2x512xf32> to vector<2x128xf32>
    %27 = arith.negf %26 : vector<2x128xf32>
    %28 = math.exp %27 : vector<2x128xf32>
    %cst_19 = arith.constant 1.000000e+00 : f32
    %29 = vector.broadcast %cst_19 : f32 to vector<2x128xf32>
    %30 = arith.addf %29, %28 : vector<2x128xf32>
    %31 = arith.divf %29, %30 : vector<2x128xf32>
    %32 = vector.extract_strided_slice %18 {offsets = [0, 256], sizes = [2, 128], strides = [1, 1]} : vector<2x512xf32> to vector<2x128xf32>
    %33 = math.tanh %32 : vector<2x128xf32>
    %34 = vector.extract_strided_slice %18 {offsets = [0, 384], sizes = [2, 128], strides = [1, 1]} : vector<2x512xf32> to vector<2x128xf32>
    %35 = arith.negf %34 : vector<2x128xf32>
    %36 = math.exp %35 : vector<2x128xf32>
    %cst_20 = arith.constant 1.000000e+00 : f32
    %37 = vector.broadcast %cst_20 : f32 to vector<2x128xf32>
    %38 = arith.addf %37, %36 : vector<2x128xf32>
    %39 = arith.divf %37, %38 : vector<2x128xf32>
    %40 = arith.mulf %31, %19 : vector<2x128xf32>
    %41 = arith.mulf %25, %33 : vector<2x128xf32>
    %42 = arith.addf %40, %41 : vector<2x128xf32>
    %43 = math.tanh %42 : vector<2x128xf32>
    %44 = arith.mulf %39, %43 : vector<2x128xf32>
    %c0_21 = arith.constant 0 : index
    %c0_22 = arith.constant 0 : index
    %45 = vector.load %arg9[%c0_21, %c0_22] : memref<2x128xf32, #tpu.memory_space<vmem>>, vector<2x128xf32>
    tpu.vector_store %arg9[%c0_21, %c0_22], %44 {strides = array<i32>} : memref<2x128xf32, #tpu.memory_space<vmem>>, vector<2x128xf32>,
    %c0_23 = arith.constant 0 : index
    %c0_24 = arith.constant 0 : index
    %46 = vector.load %arg10[%c0_23, %c0_24] : memref<2x128xf32, #tpu.memory_space<vmem>>, vector<2x128xf32>
    tpu.vector_store %arg10[%c0_23, %c0_24], %42 {strides = array<i32>} : memref<2x128xf32, #tpu.memory_space<vmem>>, vector<2x128xf32>,
    %c0_25 = arith.constant 0 : index
    %c0_26 = arith.constant 0 : index
    %47 = vector.load %arg9[%c0_25, %c0_26] : memref<2x128xf32, #tpu.memory_space<vmem>>, vector<2x128xf32>
    %48 = arith.truncf %47 : vector<2x128xf32> to vector<2x128xbf16>
    %c0_27 = arith.constant 0 : index
    %c0_28 = arith.constant 0 : index
    %49 = vector.load %arg5[%c0_27, %c0_28] : memref<128x512xbf16, #tpu.memory_space<vmem>>, vector<128x512xbf16>
    %cst_29 = arith.constant dense<0.000000e+00> : vector<2x512xf32>
    %50 = tpu.matmul %48, %49, %cst_29 {dimension_numbers = #tpu.dot_dimension_numbers<[1], [0], [0], [1], [0, 0, 1, 1], [], []>} : vector<2x128xbf16>, vector<128x512xbf16>, vector<2x512xf32> -> vector<2x512xf32>
    %c0_30 = arith.constant 0 : index
    %c0_31 = arith.constant 0 : index
    %51 = vector.load %arg11[%c0_30, %c0_31] : memref<2x128xf32, #tpu.memory_space<vmem>>, vector<2x128xf32>
    %52 = arith.truncf %51 : vector<2x128xf32> to vector<2x128xbf16>
    %c0_32 = arith.constant 0 : index
    %c0_33 = arith.constant 0 : index
    %53 = vector.load %arg6[%c0_32, %c0_33] : memref<128x512xbf16, #tpu.memory_space<vmem>>, vector<128x512xbf16>
    %cst_34 = arith.constant dense<0.000000e+00> : vector<2x512xf32>
    %54 = tpu.matmul %52, %53, %cst_34 {dimension_numbers = #tpu.dot_dimension_numbers<[1], [0], [0], [1], [0, 0, 1, 1], [], []>} : vector<2x128xbf16>, vector<128x512xbf16>, vector<2x512xf32> -> vector<2x512xf32>
    %55 = arith.addf %50, %54 : vector<2x512xf32>
    %c0_35 = arith.constant 0 : index
    %c0_36 = arith.constant 0 : index
    %56 = vector.load %arg7[%c0_35, %c0_36] : memref<1x512xf32, #tpu.memory_space<vmem>>, vector<1x512xf32>
    %57 = vector.broadcast %56 : vector<1x512xf32> to vector<2x512xf32>
    %58 = arith.addf %55, %57 : vector<2x512xf32>
    %c0_37 = arith.constant 0 : index
    %c0_38 = arith.constant 0 : index
    %59 = vector.load %arg12[%c0_37, %c0_38] : memref<2x128xf32, #tpu.memory_space<vmem>>, vector<2x128xf32>
    %60 = vector.extract_strided_slice %58 {offsets = [0, 0], sizes = [2, 128], strides = [1, 1]} : vector<2x512xf32> to vector<2x128xf32>
    %61 = arith.negf %60 : vector<2x128xf32>
    %62 = math.exp %61 : vector<2x128xf32>
    %cst_39 = arith.constant 1.000000e+00 : f32
    %63 = vector.broadcast %cst_39 : f32 to vector<2x128xf32>
    %64 = arith.addf %63, %62 : vector<2x128xf32>
    %65 = arith.divf %63, %64 : vector<2x128xf32>
    %66 = vector.extract_strided_slice %58 {offsets = [0, 128], sizes = [2, 128], strides = [1, 1]} : vector<2x512xf32> to vector<2x128xf32>
    %67 = arith.negf %66 : vector<2x128xf32>
    %68 = math.exp %67 : vector<2x128xf32>
    %cst_40 = arith.constant 1.000000e+00 : f32
    %69 = vector.broadcast %cst_40 : f32 to vector<2x128xf32>
    %70 = arith.addf %69, %68 : vector<2x128xf32>
    %71 = arith.divf %69, %70 : vector<2x128xf32>
    %72 = vector.extract_strided_slice %58 {offsets = [0, 256], sizes = [2, 128], strides = [1, 1]} : vector<2x512xf32> to vector<2x128xf32>
    %73 = math.tanh %72 : vector<2x128xf32>
    %74 = vector.extract_strided_slice %58 {offsets = [0, 384], sizes = [2, 128], strides = [1, 1]} : vector<2x512xf32> to vector<2x128xf32>
    %75 = arith.negf %74 : vector<2x128xf32>
    %76 = math.exp %75 : vector<2x128xf32>
    %cst_41 = arith.constant 1.000000e+00 : f32
    %77 = vector.broadcast %cst_41 : f32 to vector<2x128xf32>
    %78 = arith.addf %77, %76 : vector<2x128xf32>
    %79 = arith.divf %77, %78 : vector<2x128xf32>
    %80 = arith.mulf %71, %59 : vector<2x128xf32>
    %81 = arith.mulf %65, %73 : vector<2x128xf32>
    %82 = arith.addf %80, %81 : vector<2x128xf32>
    %83 = math.tanh %82 : vector<2x128xf32>
    %84 = arith.mulf %79, %83 : vector<2x128xf32>
    %c0_42 = arith.constant 0 : index
    %c0_43 = arith.constant 0 : index
    %85 = vector.load %arg11[%c0_42, %c0_43] : memref<2x128xf32, #tpu.memory_space<vmem>>, vector<2x128xf32>
    tpu.vector_store %arg11[%c0_42, %c0_43], %84 {strides = array<i32>} : memref<2x128xf32, #tpu.memory_space<vmem>>, vector<2x128xf32>,
    %c0_44 = arith.constant 0 : index
    %c0_45 = arith.constant 0 : index
    %86 = vector.load %arg12[%c0_44, %c0_45] : memref<2x128xf32, #tpu.memory_space<vmem>>, vector<2x128xf32>
    tpu.vector_store %arg12[%c0_44, %c0_45], %82 {strides = array<i32>} : memref<2x128xf32, #tpu.memory_space<vmem>>, vector<2x128xf32>,
    %c0_46 = arith.constant 0 : index
    %c0_47 = arith.constant 0 : index
    %87 = vector.load %arg11[%c0_46, %c0_47] : memref<2x128xf32, #tpu.memory_space<vmem>>, vector<2x128xf32>
    %c1 = arith.constant 1 : index
    %c0_48 = arith.constant 0 : index
    %c0_49 = arith.constant 0 : index
    %88 = vector.load %arg8[%c1, %c0_48, %c0_49] : memref<8x2x128xf32, #tpu.memory_space<vmem>>, vector<1x2x128xf32>
    %89 = vector.shape_cast %88 : vector<1x2x128xf32> to vector<2x128xf32>
    %90 = vector.shape_cast %87 : vector<2x128xf32> to vector<1x2x128xf32>
    tpu.vector_store %arg8[%c1, %c0_48, %c0_49], %90 {strides = array<i32>} : memref<8x2x128xf32, #tpu.memory_space<vmem>>, vector<1x2x128xf32>,
    %c1_50 = arith.constant 1 : index
    %c0_51 = arith.constant 0 : index
    %c0_52 = arith.constant 0 : index
    %91 = vector.load %arg1[%c1_50, %c0_51, %c0_52] : memref<8x2x512xf32, #tpu.memory_space<vmem>>, vector<1x2x512xf32>
    %92 = vector.shape_cast %91 : vector<1x2x512xf32> to vector<2x512xf32>
    %c0_53 = arith.constant 0 : index
    %c0_54 = arith.constant 0 : index
    %93 = vector.load %arg9[%c0_53, %c0_54] : memref<2x128xf32, #tpu.memory_space<vmem>>, vector<2x128xf32>
    %94 = arith.truncf %93 : vector<2x128xf32> to vector<2x128xbf16>
    %c0_55 = arith.constant 0 : index
    %c0_56 = arith.constant 0 : index
    %95 = vector.load %arg4[%c0_55, %c0_56] : memref<128x512xbf16, #tpu.memory_space<vmem>>, vector<128x512xbf16>
    %cst_57 = arith.constant dense<0.000000e+00> : vector<2x512xf32>
    %96 = tpu.matmul %94, %95, %cst_57 {dimension_numbers = #tpu.dot_dimension_numbers<[1], [0], [0], [1], [0, 0, 1, 1], [], []>} : vector<2x128xbf16>, vector<128x512xbf16>, vector<2x512xf32> -> vector<2x512xf32>
    %97 = arith.addf %92, %96 : vector<2x512xf32>
    %c0_58 = arith.constant 0 : index
    %c0_59 = arith.constant 0 : index
    %98 = vector.load %arg13[%c0_58, %c0_59] : memref<2x512xf32, #tpu.memory_space<vmem>>, vector<2x512xf32>
    %99 = arith.addf %97, %98 : vector<2x512xf32>
    %c0_60 = arith.constant 0 : index
    %c0_61 = arith.constant 0 : index
    %100 = vector.load %arg10[%c0_60, %c0_61] : memref<2x128xf32, #tpu.memory_space<vmem>>, vector<2x128xf32>
    %101 = vector.extract_strided_slice %99 {offsets = [0, 0], sizes = [2, 128], strides = [1, 1]} : vector<2x512xf32> to vector<2x128xf32>
    %102 = arith.negf %101 : vector<2x128xf32>
    %103 = math.exp %102 : vector<2x128xf32>
    %cst_62 = arith.constant 1.000000e+00 : f32
    %104 = vector.broadcast %cst_62 : f32 to vector<2x128xf32>
    %105 = arith.addf %104, %103 : vector<2x128xf32>
    %106 = arith.divf %104, %105 : vector<2x128xf32>
    %107 = vector.extract_strided_slice %99 {offsets = [0, 128], sizes = [2, 128], strides = [1, 1]} : vector<2x512xf32> to vector<2x128xf32>
    %108 = arith.negf %107 : vector<2x128xf32>
    %109 = math.exp %108 : vector<2x128xf32>
    %cst_63 = arith.constant 1.000000e+00 : f32
    %110 = vector.broadcast %cst_63 : f32 to vector<2x128xf32>
    %111 = arith.addf %110, %109 : vector<2x128xf32>
    %112 = arith.divf %110, %111 : vector<2x128xf32>
    %113 = vector.extract_strided_slice %99 {offsets = [0, 256], sizes = [2, 128], strides = [1, 1]} : vector<2x512xf32> to vector<2x128xf32>
    %114 = math.tanh %113 : vector<2x128xf32>
    %115 = vector.extract_strided_slice %99 {offsets = [0, 384], sizes = [2, 128], strides = [1, 1]} : vector<2x512xf32> to vector<2x128xf32>
    %116 = arith.negf %115 : vector<2x128xf32>
    %117 = math.exp %116 : vector<2x128xf32>
    %cst_64 = arith.constant 1.000000e+00 : f32
    %118 = vector.broadcast %cst_64 : f32 to vector<2x128xf32>
    %119 = arith.addf %118, %117 : vector<2x128xf32>
    %120 = arith.divf %118, %119 : vector<2x128xf32>
    %121 = arith.mulf %112, %100 : vector<2x128xf32>
    %122 = arith.mulf %106, %114 : vector<2x128xf32>
    %123 = arith.addf %121, %122 : vector<2x128xf32>
    %124 = math.tanh %123 : vector<2x128xf32>
    %125 = arith.mulf %120, %124 : vector<2x128xf32>
    %c0_65 = arith.constant 0 : index
    %c0_66 = arith.constant 0 : index
    %126 = vector.load %arg9[%c0_65, %c0_66] : memref<2x128xf32, #tpu.memory_space<vmem>>, vector<2x128xf32>
    tpu.vector_store %arg9[%c0_65, %c0_66], %125 {strides = array<i32>} : memref<2x128xf32, #tpu.memory_space<vmem>>, vector<2x128xf32>,
    %c0_67 = arith.constant 0 : index
    %c0_68 = arith.constant 0 : index
    %127 = vector.load %arg10[%c0_67, %c0_68] : memref<2x128xf32, #tpu.memory_space<vmem>>, vector<2x128xf32>
    tpu.vector_store %arg10[%c0_67, %c0_68], %123 {strides = array<i32>} : memref<2x128xf32, #tpu.memory_space<vmem>>, vector<2x128xf32>,
    %c0_69 = arith.constant 0 : index
    %c0_70 = arith.constant 0 : index
    %128 = vector.load %arg9[%c0_69, %c0_70] : memref<2x128xf32, #tpu.memory_space<vmem>>, vector<2x128xf32>
    %129 = arith.truncf %128 : vector<2x128xf32> to vector<2x128xbf16>
    %c0_71 = arith.constant 0 : index
    %c0_72 = arith.constant 0 : index
    %130 = vector.load %arg5[%c0_71, %c0_72] : memref<128x512xbf16, #tpu.memory_space<vmem>>, vector<128x512xbf16>
    %cst_73 = arith.constant dense<0.000000e+00> : vector<2x512xf32>
    %131 = tpu.matmul %129, %130, %cst_73 {dimension_numbers = #tpu.dot_dimension_numbers<[1], [0], [0], [1], [0, 0, 1, 1], [], []>} : vector<2x128xbf16>, vector<128x512xbf16>, vector<2x512xf32> -> vector<2x512xf32>
    %c0_74 = arith.constant 0 : index
    %c0_75 = arith.constant 0 : index
    %132 = vector.load %arg11[%c0_74, %c0_75] : memref<2x128xf32, #tpu.memory_space<vmem>>, vector<2x128xf32>
    %133 = arith.truncf %132 : vector<2x128xf32> to vector<2x128xbf16>
    %c0_76 = arith.constant 0 : index
    %c0_77 = arith.constant 0 : index
    %134 = vector.load %arg6[%c0_76, %c0_77] : memref<128x512xbf16, #tpu.memory_space<vmem>>, vector<128x512xbf16>
    %cst_78 = arith.constant dense<0.000000e+00> : vector<2x512xf32>
    %135 = tpu.matmul %133, %134, %cst_78 {dimension_numbers = #tpu.dot_dimension_numbers<[1], [0], [0], [1], [0, 0, 1, 1], [], []>} : vector<2x128xbf16>, vector<128x512xbf16>, vector<2x512xf32> -> vector<2x512xf32>
    %136 = arith.addf %131, %135 : vector<2x512xf32>
    %c0_79 = arith.constant 0 : index
    %c0_80 = arith.constant 0 : index
    %137 = vector.load %arg7[%c0_79, %c0_80] : memref<1x512xf32, #tpu.memory_space<vmem>>, vector<1x512xf32>
    %138 = vector.broadcast %137 : vector<1x512xf32> to vector<2x512xf32>
    %139 = arith.addf %136, %138 : vector<2x512xf32>
    %c0_81 = arith.constant 0 : index
    %c0_82 = arith.constant 0 : index
    %140 = vector.load %arg12[%c0_81, %c0_82] : memref<2x128xf32, #tpu.memory_space<vmem>>, vector<2x128xf32>
    %141 = vector.extract_strided_slice %139 {offsets = [0, 0], sizes = [2, 128], strides = [1, 1]} : vector<2x512xf32> to vector<2x128xf32>
    %142 = arith.negf %141 : vector<2x128xf32>
    %143 = math.exp %142 : vector<2x128xf32>
    %cst_83 = arith.constant 1.000000e+00 : f32
    %144 = vector.broadcast %cst_83 : f32 to vector<2x128xf32>
    %145 = arith.addf %144, %143 : vector<2x128xf32>
    %146 = arith.divf %144, %145 : vector<2x128xf32>
    %147 = vector.extract_strided_slice %139 {offsets = [0, 128], sizes = [2, 128], strides = [1, 1]} : vector<2x512xf32> to vector<2x128xf32>
    %148 = arith.negf %147 : vector<2x128xf32>
    %149 = math.exp %148 : vector<2x128xf32>
    %cst_84 = arith.constant 1.000000e+00 : f32
    %150 = vector.broadcast %cst_84 : f32 to vector<2x128xf32>
    %151 = arith.addf %150, %149 : vector<2x128xf32>
    %152 = arith.divf %150, %151 : vector<2x128xf32>
    %153 = vector.extract_strided_slice %139 {offsets = [0, 256], sizes = [2, 128], strides = [1, 1]} : vector<2x512xf32> to vector<2x128xf32>
    %154 = math.tanh %153 : vector<2x128xf32>
    %155 = vector.extract_strided_slice %139 {offsets = [0, 384], sizes = [2, 128], strides = [1, 1]} : vector<2x512xf32> to vector<2x128xf32>
    %156 = arith.negf %155 : vector<2x128xf32>
    %157 = math.exp %156 : vector<2x128xf32>
    %cst_85 = arith.constant 1.000000e+00 : f32
    %158 = vector.broadcast %cst_85 : f32 to vector<2x128xf32>
    %159 = arith.addf %158, %157 : vector<2x128xf32>
    %160 = arith.divf %158, %159 : vector<2x128xf32>
    %161 = arith.mulf %152, %140 : vector<2x128xf32>
    %162 = arith.mulf %146, %154 : vector<2x128xf32>
    %163 = arith.addf %161, %162 : vector<2x128xf32>
    %164 = math.tanh %163 : vector<2x128xf32>
    %165 = arith.mulf %160, %164 : vector<2x128xf32>
    %c0_86 = arith.constant 0 : index
    %c0_87 = arith.constant 0 : index
    %166 = vector.load %arg11[%c0_86, %c0_87] : memref<2x128xf32, #tpu.memory_space<vmem>>, vector<2x128xf32>
    tpu.vector_store %arg11[%c0_86, %c0_87], %165 {strides = array<i32>} : memref<2x128xf32, #tpu.memory_space<vmem>>, vector<2x128xf32>,
    %c0_88 = arith.constant 0 : index
    %c0_89 = arith.constant 0 : index
    %167 = vector.load %arg12[%c0_88, %c0_89] : memref<2x128xf32, #tpu.memory_space<vmem>>, vector<2x128xf32>
    tpu.vector_store %arg12[%c0_88, %c0_89], %163 {strides = array<i32>} : memref<2x128xf32, #tpu.memory_space<vmem>>, vector<2x128xf32>,
    %c0_90 = arith.constant 0 : index
    %c0_91 = arith.constant 0 : index
    %168 = vector.load %arg11[%c0_90, %c0_91] : memref<2x128xf32, #tpu.memory_space<vmem>>, vector<2x128xf32>
    %c2 = arith.constant 2 : index
    %c0_92 = arith.constant 0 : index
    %c0_93 = arith.constant 0 : index
    %169 = vector.load %arg8[%c2, %c0_92, %c0_93] : memref<8x2x128xf32, #tpu.memory_space<vmem>>, vector<1x2x128xf32>
    %170 = vector.shape_cast %169 : vector<1x2x128xf32> to vector<2x128xf32>
    %171 = vector.shape_cast %168 : vector<2x128xf32> to vector<1x2x128xf32>
    tpu.vector_store %arg8[%c2, %c0_92, %c0_93], %171 {strides = array<i32>} : memref<8x2x128xf32, #tpu.memory_space<vmem>>, vector<1x2x128xf32>,
    %c2_94 = arith.constant 2 : index
    %c0_95 = arith.constant 0 : index
    %c0_96 = arith.constant 0 : index
    %172 = vector.load %arg1[%c2_94, %c0_95, %c0_96] : memref<8x2x512xf32, #tpu.memory_space<vmem>>, vector<1x2x512xf32>
    %173 = vector.shape_cast %172 : vector<1x2x512xf32> to vector<2x512xf32>
    %c0_97 = arith.constant 0 : index
    %c0_98 = arith.constant 0 : index
    %174 = vector.load %arg9[%c0_97, %c0_98] : memref<2x128xf32, #tpu.memory_space<vmem>>, vector<2x128xf32>
    %175 = arith.truncf %174 : vector<2x128xf32> to vector<2x128xbf16>
    %c0_99 = arith.constant 0 : index
    %c0_100 = arith.constant 0 : index
    %176 = vector.load %arg4[%c0_99, %c0_100] : memref<128x512xbf16, #tpu.memory_space<vmem>>, vector<128x512xbf16>
    %cst_101 = arith.constant dense<0.000000e+00> : vector<2x512xf32>
    %177 = tpu.matmul %175, %176, %cst_101 {dimension_numbers = #tpu.dot_dimension_numbers<[1], [0], [0], [1], [0, 0, 1, 1], [], []>} : vector<2x128xbf16>, vector<128x512xbf16>, vector<2x512xf32> -> vector<2x512xf32>
    %178 = arith.addf %173, %177 : vector<2x512xf32>
    %c0_102 = arith.constant 0 : index
    %c0_103 = arith.constant 0 : index
    %179 = vector.load %arg13[%c0_102, %c0_103] : memref<2x512xf32, #tpu.memory_space<vmem>>, vector<2x512xf32>
    %180 = arith.addf %178, %179 : vector<2x512xf32>
    %c0_104 = arith.constant 0 : index
    %c0_105 = arith.constant 0 : index
    %181 = vector.load %arg10[%c0_104, %c0_105] : memref<2x128xf32, #tpu.memory_space<vmem>>, vector<2x128xf32>
    %182 = vector.extract_strided_slice %180 {offsets = [0, 0], sizes = [2, 128], strides = [1, 1]} : vector<2x512xf32> to vector<2x128xf32>
    %183 = arith.negf %182 : vector<2x128xf32>
    %184 = math.exp %183 : vector<2x128xf32>
    %cst_106 = arith.constant 1.000000e+00 : f32
    %185 = vector.broadcast %cst_106 : f32 to vector<2x128xf32>
    %186 = arith.addf %185, %184 : vector<2x128xf32>
    %187 = arith.divf %185, %186 : vector<2x128xf32>
    %188 = vector.extract_strided_slice %180 {offsets = [0, 128], sizes = [2, 128], strides = [1, 1]} : vector<2x512xf32> to vector<2x128xf32>
    %189 = arith.negf %188 : vector<2x128xf32>
    %190 = math.exp %189 : vector<2x128xf32>
    %cst_107 = arith.constant 1.000000e+00 : f32
    %191 = vector.broadcast %cst_107 : f32 to vector<2x128xf32>
    %192 = arith.addf %191, %190 : vector<2x128xf32>
    %193 = arith.divf %191, %192 : vector<2x128xf32>
    %194 = vector.extract_strided_slice %180 {offsets = [0, 256], sizes = [2, 128], strides = [1, 1]} : vector<2x512xf32> to vector<2x128xf32>
    %195 = math.tanh %194 : vector<2x128xf32>
    %196 = vector.extract_strided_slice %180 {offsets = [0, 384], sizes = [2, 128], strides = [1, 1]} : vector<2x512xf32> to vector<2x128xf32>
    %197 = arith.negf %196 : vector<2x128xf32>
    %198 = math.exp %197 : vector<2x128xf32>
    %cst_108 = arith.constant 1.000000e+00 : f32
    %199 = vector.broadcast %cst_108 : f32 to vector<2x128xf32>
    %200 = arith.addf %199, %198 : vector<2x128xf32>
    %201 = arith.divf %199, %200 : vector<2x128xf32>
    %202 = arith.mulf %193, %181 : vector<2x128xf32>
    %203 = arith.mulf %187, %195 : vector<2x128xf32>
    %204 = arith.addf %202, %203 : vector<2x128xf32>
    %205 = math.tanh %204 : vector<2x128xf32>
    %206 = arith.mulf %201, %205 : vector<2x128xf32>
    %c0_109 = arith.constant 0 : index
    %c0_110 = arith.constant 0 : index
    %207 = vector.load %arg9[%c0_109, %c0_110] : memref<2x128xf32, #tpu.memory_space<vmem>>, vector<2x128xf32>
    tpu.vector_store %arg9[%c0_109, %c0_110], %206 {strides = array<i32>} : memref<2x128xf32, #tpu.memory_space<vmem>>, vector<2x128xf32>,
    %c0_111 = arith.constant 0 : index
    %c0_112 = arith.constant 0 : index
    %208 = vector.load %arg10[%c0_111, %c0_112] : memref<2x128xf32, #tpu.memory_space<vmem>>, vector<2x128xf32>
    tpu.vector_store %arg10[%c0_111, %c0_112], %204 {strides = array<i32>} : memref<2x128xf32, #tpu.memory_space<vmem>>, vector<2x128xf32>,
    %c0_113 = arith.constant 0 : index
    %c0_114 = arith.constant 0 : index
    %209 = vector.load %arg9[%c0_113, %c0_114] : memref<2x128xf32, #tpu.memory_space<vmem>>, vector<2x128xf32>
    %210 = arith.truncf %209 : vector<2x128xf32> to vector<2x128xbf16>
    %c0_115 = arith.constant 0 : index
    %c0_116 = arith.constant 0 : index
    %211 = vector.load %arg5[%c0_115, %c0_116] : memref<128x512xbf16, #tpu.memory_space<vmem>>, vector<128x512xbf16>
    %cst_117 = arith.constant dense<0.000000e+00> : vector<2x512xf32>
    %212 = tpu.matmul %210, %211, %cst_117 {dimension_numbers = #tpu.dot_dimension_numbers<[1], [0], [0], [1], [0, 0, 1, 1], [], []>} : vector<2x128xbf16>, vector<128x512xbf16>, vector<2x512xf32> -> vector<2x512xf32>
    %c0_118 = arith.constant 0 : index
    %c0_119 = arith.constant 0 : index
    %213 = vector.load %arg11[%c0_118, %c0_119] : memref<2x128xf32, #tpu.memory_space<vmem>>, vector<2x128xf32>
    %214 = arith.truncf %213 : vector<2x128xf32> to vector<2x128xbf16>
    %c0_120 = arith.constant 0 : index
    %c0_121 = arith.constant 0 : index
    %215 = vector.load %arg6[%c0_120, %c0_121] : memref<128x512xbf16, #tpu.memory_space<vmem>>, vector<128x512xbf16>
    %cst_122 = arith.constant dense<0.000000e+00> : vector<2x512xf32>
    %216 = tpu.matmul %214, %215, %cst_122 {dimension_numbers = #tpu.dot_dimension_numbers<[1], [0], [0], [1], [0, 0, 1, 1], [], []>} : vector<2x128xbf16>, vector<128x512xbf16>, vector<2x512xf32> -> vector<2x512xf32>
    %217 = arith.addf %212, %216 : vector<2x512xf32>
    %c0_123 = arith.constant 0 : index
    %c0_124 = arith.constant 0 : index
    %218 = vector.load %arg7[%c0_123, %c0_124] : memref<1x512xf32, #tpu.memory_space<vmem>>, vector<1x512xf32>
    %219 = vector.broadcast %218 : vector<1x512xf32> to vector<2x512xf32>
    %220 = arith.addf %217, %219 : vector<2x512xf32>
    %c0_125 = arith.constant 0 : index
    %c0_126 = arith.constant 0 : index
    %221 = vector.load %arg12[%c0_125, %c0_126] : memref<2x128xf32, #tpu.memory_space<vmem>>, vector<2x128xf32>
    %222 = vector.extract_strided_slice %220 {offsets = [0, 0], sizes = [2, 128], strides = [1, 1]} : vector<2x512xf32> to vector<2x128xf32>
    %223 = arith.negf %222 : vector<2x128xf32>
    %224 = math.exp %223 : vector<2x128xf32>
    %cst_127 = arith.constant 1.000000e+00 : f32
    %225 = vector.broadcast %cst_127 : f32 to vector<2x128xf32>
    %226 = arith.addf %225, %224 : vector<2x128xf32>
    %227 = arith.divf %225, %226 : vector<2x128xf32>
    %228 = vector.extract_strided_slice %220 {offsets = [0, 128], sizes = [2, 128], strides = [1, 1]} : vector<2x512xf32> to vector<2x128xf32>
    %229 = arith.negf %228 : vector<2x128xf32>
    %230 = math.exp %229 : vector<2x128xf32>
    %cst_128 = arith.constant 1.000000e+00 : f32
    %231 = vector.broadcast %cst_128 : f32 to vector<2x128xf32>
    %232 = arith.addf %231, %230 : vector<2x128xf32>
    %233 = arith.divf %231, %232 : vector<2x128xf32>
    %234 = vector.extract_strided_slice %220 {offsets = [0, 256], sizes = [2, 128], strides = [1, 1]} : vector<2x512xf32> to vector<2x128xf32>
    %235 = math.tanh %234 : vector<2x128xf32>
    %236 = vector.extract_strided_slice %220 {offsets = [0, 384], sizes = [2, 128], strides = [1, 1]} : vector<2x512xf32> to vector<2x128xf32>
    %237 = arith.negf %236 : vector<2x128xf32>
    %238 = math.exp %237 : vector<2x128xf32>
    %cst_129 = arith.constant 1.000000e+00 : f32
    %239 = vector.broadcast %cst_129 : f32 to vector<2x128xf32>
    %240 = arith.addf %239, %238 : vector<2x128xf32>
    %241 = arith.divf %239, %240 : vector<2x128xf32>
    %242 = arith.mulf %233, %221 : vector<2x128xf32>
    %243 = arith.mulf %227, %235 : vector<2x128xf32>
    %244 = arith.addf %242, %243 : vector<2x128xf32>
    %245 = math.tanh %244 : vector<2x128xf32>
    %246 = arith.mulf %241, %245 : vector<2x128xf32>
    %c0_130 = arith.constant 0 : index
    %c0_131 = arith.constant 0 : index
    %247 = vector.load %arg11[%c0_130, %c0_131] : memref<2x128xf32, #tpu.memory_space<vmem>>, vector<2x128xf32>
    tpu.vector_store %arg11[%c0_130, %c0_131], %246 {strides = array<i32>} : memref<2x128xf32, #tpu.memory_space<vmem>>, vector<2x128xf32>,
    %c0_132 = arith.constant 0 : index
    %c0_133 = arith.constant 0 : index
    %248 = vector.load %arg12[%c0_132, %c0_133] : memref<2x128xf32, #tpu.memory_space<vmem>>, vector<2x128xf32>
    tpu.vector_store %arg12[%c0_132, %c0_133], %244 {strides = array<i32>} : memref<2x128xf32, #tpu.memory_space<vmem>>, vector<2x128xf32>,
    %c0_134 = arith.constant 0 : index
    %c0_135 = arith.constant 0 : index
    %249 = vector.load %arg11[%c0_134, %c0_135] : memref<2x128xf32, #tpu.memory_space<vmem>>, vector<2x128xf32>
    %c3 = arith.constant 3 : index
    %c0_136 = arith.constant 0 : index
    %c0_137 = arith.constant 0 : index
    %250 = vector.load %arg8[%c3, %c0_136, %c0_137] : memref<8x2x128xf32, #tpu.memory_space<vmem>>, vector<1x2x128xf32>
    %251 = vector.shape_cast %250 : vector<1x2x128xf32> to vector<2x128xf32>
    %252 = vector.shape_cast %249 : vector<2x128xf32> to vector<1x2x128xf32>
    tpu.vector_store %arg8[%c3, %c0_136, %c0_137], %252 {strides = array<i32>} : memref<8x2x128xf32, #tpu.memory_space<vmem>>, vector<1x2x128xf32>,
    %c3_138 = arith.constant 3 : index
    %c0_139 = arith.constant 0 : index
    %c0_140 = arith.constant 0 : index
    %253 = vector.load %arg1[%c3_138, %c0_139, %c0_140] : memref<8x2x512xf32, #tpu.memory_space<vmem>>, vector<1x2x512xf32>
    %254 = vector.shape_cast %253 : vector<1x2x512xf32> to vector<2x512xf32>
    %c0_141 = arith.constant 0 : index
    %c0_142 = arith.constant 0 : index
    %255 = vector.load %arg9[%c0_141, %c0_142] : memref<2x128xf32, #tpu.memory_space<vmem>>, vector<2x128xf32>
    %256 = arith.truncf %255 : vector<2x128xf32> to vector<2x128xbf16>
    %c0_143 = arith.constant 0 : index
    %c0_144 = arith.constant 0 : index
    %257 = vector.load %arg4[%c0_143, %c0_144] : memref<128x512xbf16, #tpu.memory_space<vmem>>, vector<128x512xbf16>
    %cst_145 = arith.constant dense<0.000000e+00> : vector<2x512xf32>
    %258 = tpu.matmul %256, %257, %cst_145 {dimension_numbers = #tpu.dot_dimension_numbers<[1], [0], [0], [1], [0, 0, 1, 1], [], []>} : vector<2x128xbf16>, vector<128x512xbf16>, vector<2x512xf32> -> vector<2x512xf32>
    %259 = arith.addf %254, %258 : vector<2x512xf32>
    %c0_146 = arith.constant 0 : index
    %c0_147 = arith.constant 0 : index
    %260 = vector.load %arg13[%c0_146, %c0_147] : memref<2x512xf32, #tpu.memory_space<vmem>>, vector<2x512xf32>
    %261 = arith.addf %259, %260 : vector<2x512xf32>
    %c0_148 = arith.constant 0 : index
    %c0_149 = arith.constant 0 : index
    %262 = vector.load %arg10[%c0_148, %c0_149] : memref<2x128xf32, #tpu.memory_space<vmem>>, vector<2x128xf32>
    %263 = vector.extract_strided_slice %261 {offsets = [0, 0], sizes = [2, 128], strides = [1, 1]} : vector<2x512xf32> to vector<2x128xf32>
    %264 = arith.negf %263 : vector<2x128xf32>
    %265 = math.exp %264 : vector<2x128xf32>
    %cst_150 = arith.constant 1.000000e+00 : f32
    %266 = vector.broadcast %cst_150 : f32 to vector<2x128xf32>
    %267 = arith.addf %266, %265 : vector<2x128xf32>
    %268 = arith.divf %266, %267 : vector<2x128xf32>
    %269 = vector.extract_strided_slice %261 {offsets = [0, 128], sizes = [2, 128], strides = [1, 1]} : vector<2x512xf32> to vector<2x128xf32>
    %270 = arith.negf %269 : vector<2x128xf32>
    %271 = math.exp %270 : vector<2x128xf32>
    %cst_151 = arith.constant 1.000000e+00 : f32
    %272 = vector.broadcast %cst_151 : f32 to vector<2x128xf32>
    %273 = arith.addf %272, %271 : vector<2x128xf32>
    %274 = arith.divf %272, %273 : vector<2x128xf32>
    %275 = vector.extract_strided_slice %261 {offsets = [0, 256], sizes = [2, 128], strides = [1, 1]} : vector<2x512xf32> to vector<2x128xf32>
    %276 = math.tanh %275 : vector<2x128xf32>
    %277 = vector.extract_strided_slice %261 {offsets = [0, 384], sizes = [2, 128], strides = [1, 1]} : vector<2x512xf32> to vector<2x128xf32>
    %278 = arith.negf %277 : vector<2x128xf32>
    %279 = math.exp %278 : vector<2x128xf32>
    %cst_152 = arith.constant 1.000000e+00 : f32
    %280 = vector.broadcast %cst_152 : f32 to vector<2x128xf32>
    %281 = arith.addf %280, %279 : vector<2x128xf32>
    %282 = arith.divf %280, %281 : vector<2x128xf32>
    %283 = arith.mulf %274, %262 : vector<2x128xf32>
    %284 = arith.mulf %268, %276 : vector<2x128xf32>
    %285 = arith.addf %283, %284 : vector<2x128xf32>
    %286 = math.tanh %285 : vector<2x128xf32>
    %287 = arith.mulf %282, %286 : vector<2x128xf32>
    %c0_153 = arith.constant 0 : index
    %c0_154 = arith.constant 0 : index
    %288 = vector.load %arg9[%c0_153, %c0_154] : memref<2x128xf32, #tpu.memory_space<vmem>>, vector<2x128xf32>
    tpu.vector_store %arg9[%c0_153, %c0_154], %287 {strides = array<i32>} : memref<2x128xf32, #tpu.memory_space<vmem>>, vector<2x128xf32>,
    %c0_155 = arith.constant 0 : index
    %c0_156 = arith.constant 0 : index
    %289 = vector.load %arg10[%c0_155, %c0_156] : memref<2x128xf32, #tpu.memory_space<vmem>>, vector<2x128xf32>
    tpu.vector_store %arg10[%c0_155, %c0_156], %285 {strides = array<i32>} : memref<2x128xf32, #tpu.memory_space<vmem>>, vector<2x128xf32>,
    %c0_157 = arith.constant 0 : index
    %c0_158 = arith.constant 0 : index
    %290 = vector.load %arg9[%c0_157, %c0_158] : memref<2x128xf32, #tpu.memory_space<vmem>>, vector<2x128xf32>
    %291 = arith.truncf %290 : vector<2x128xf32> to vector<2x128xbf16>
    %c0_159 = arith.constant 0 : index
    %c0_160 = arith.constant 0 : index
    %292 = vector.load %arg5[%c0_159, %c0_160] : memref<128x512xbf16, #tpu.memory_space<vmem>>, vector<128x512xbf16>
    %cst_161 = arith.constant dense<0.000000e+00> : vector<2x512xf32>
    %293 = tpu.matmul %291, %292, %cst_161 {dimension_numbers = #tpu.dot_dimension_numbers<[1], [0], [0], [1], [0, 0, 1, 1], [], []>} : vector<2x128xbf16>, vector<128x512xbf16>, vector<2x512xf32> -> vector<2x512xf32>
    %c0_162 = arith.constant 0 : index
    %c0_163 = arith.constant 0 : index
    %294 = vector.load %arg11[%c0_162, %c0_163] : memref<2x128xf32, #tpu.memory_space<vmem>>, vector<2x128xf32>
    %295 = arith.truncf %294 : vector<2x128xf32> to vector<2x128xbf16>
    %c0_164 = arith.constant 0 : index
    %c0_165 = arith.constant 0 : index
    %296 = vector.load %arg6[%c0_164, %c0_165] : memref<128x512xbf16, #tpu.memory_space<vmem>>, vector<128x512xbf16>
    %cst_166 = arith.constant dense<0.000000e+00> : vector<2x512xf32>
    %297 = tpu.matmul %295, %296, %cst_166 {dimension_numbers = #tpu.dot_dimension_numbers<[1], [0], [0], [1], [0, 0, 1, 1], [], []>} : vector<2x128xbf16>, vector<128x512xbf16>, vector<2x512xf32> -> vector<2x512xf32>
    %298 = arith.addf %293, %297 : vector<2x512xf32>
    %c0_167 = arith.constant 0 : index
    %c0_168 = arith.constant 0 : index
    %299 = vector.load %arg7[%c0_167, %c0_168] : memref<1x512xf32, #tpu.memory_space<vmem>>, vector<1x512xf32>
    %300 = vector.broadcast %299 : vector<1x512xf32> to vector<2x512xf32>
    %301 = arith.addf %298, %300 : vector<2x512xf32>
    %c0_169 = arith.constant 0 : index
    %c0_170 = arith.constant 0 : index
    %302 = vector.load %arg12[%c0_169, %c0_170] : memref<2x128xf32, #tpu.memory_space<vmem>>, vector<2x128xf32>
    %303 = vector.extract_strided_slice %301 {offsets = [0, 0], sizes = [2, 128], strides = [1, 1]} : vector<2x512xf32> to vector<2x128xf32>
    %304 = arith.negf %303 : vector<2x128xf32>
    %305 = math.exp %304 : vector<2x128xf32>
    %cst_171 = arith.constant 1.000000e+00 : f32
    %306 = vector.broadcast %cst_171 : f32 to vector<2x128xf32>
    %307 = arith.addf %306, %305 : vector<2x128xf32>
    %308 = arith.divf %306, %307 : vector<2x128xf32>
    %309 = vector.extract_strided_slice %301 {offsets = [0, 128], sizes = [2, 128], strides = [1, 1]} : vector<2x512xf32> to vector<2x128xf32>
    %310 = arith.negf %309 : vector<2x128xf32>
    %311 = math.exp %310 : vector<2x128xf32>
    %cst_172 = arith.constant 1.000000e+00 : f32
    %312 = vector.broadcast %cst_172 : f32 to vector<2x128xf32>
    %313 = arith.addf %312, %311 : vector<2x128xf32>
    %314 = arith.divf %312, %313 : vector<2x128xf32>
    %315 = vector.extract_strided_slice %301 {offsets = [0, 256], sizes = [2, 128], strides = [1, 1]} : vector<2x512xf32> to vector<2x128xf32>
    %316 = math.tanh %315 : vector<2x128xf32>
    %317 = vector.extract_strided_slice %301 {offsets = [0, 384], sizes = [2, 128], strides = [1, 1]} : vector<2x512xf32> to vector<2x128xf32>
    %318 = arith.negf %317 : vector<2x128xf32>
    %319 = math.exp %318 : vector<2x128xf32>
    %cst_173 = arith.constant 1.000000e+00 : f32
    %320 = vector.broadcast %cst_173 : f32 to vector<2x128xf32>
    %321 = arith.addf %320, %319 : vector<2x128xf32>
    %322 = arith.divf %320, %321 : vector<2x128xf32>
    %323 = arith.mulf %314, %302 : vector<2x128xf32>
    %324 = arith.mulf %308, %316 : vector<2x128xf32>
    %325 = arith.addf %323, %324 : vector<2x128xf32>
    %326 = math.tanh %325 : vector<2x128xf32>
    %327 = arith.mulf %322, %326 : vector<2x128xf32>
    %c0_174 = arith.constant 0 : index
    %c0_175 = arith.constant 0 : index
    %328 = vector.load %arg11[%c0_174, %c0_175] : memref<2x128xf32, #tpu.memory_space<vmem>>, vector<2x128xf32>
    tpu.vector_store %arg11[%c0_174, %c0_175], %327 {strides = array<i32>} : memref<2x128xf32, #tpu.memory_space<vmem>>, vector<2x128xf32>,
    %c0_176 = arith.constant 0 : index
    %c0_177 = arith.constant 0 : index
    %329 = vector.load %arg12[%c0_176, %c0_177] : memref<2x128xf32, #tpu.memory_space<vmem>>, vector<2x128xf32>
    tpu.vector_store %arg12[%c0_176, %c0_177], %325 {strides = array<i32>} : memref<2x128xf32, #tpu.memory_space<vmem>>, vector<2x128xf32>,
    %c0_178 = arith.constant 0 : index
    %c0_179 = arith.constant 0 : index
    %330 = vector.load %arg11[%c0_178, %c0_179] : memref<2x128xf32, #tpu.memory_space<vmem>>, vector<2x128xf32>
    %c4 = arith.constant 4 : index
    %c0_180 = arith.constant 0 : index
    %c0_181 = arith.constant 0 : index
    %331 = vector.load %arg8[%c4, %c0_180, %c0_181] : memref<8x2x128xf32, #tpu.memory_space<vmem>>, vector<1x2x128xf32>
    %332 = vector.shape_cast %331 : vector<1x2x128xf32> to vector<2x128xf32>
    %333 = vector.shape_cast %330 : vector<2x128xf32> to vector<1x2x128xf32>
    tpu.vector_store %arg8[%c4, %c0_180, %c0_181], %333 {strides = array<i32>} : memref<8x2x128xf32, #tpu.memory_space<vmem>>, vector<1x2x128xf32>,
    %c4_182 = arith.constant 4 : index
    %c0_183 = arith.constant 0 : index
    %c0_184 = arith.constant 0 : index
    %334 = vector.load %arg1[%c4_182, %c0_183, %c0_184] : memref<8x2x512xf32, #tpu.memory_space<vmem>>, vector<1x2x512xf32>
    %335 = vector.shape_cast %334 : vector<1x2x512xf32> to vector<2x512xf32>
    %c0_185 = arith.constant 0 : index
    %c0_186 = arith.constant 0 : index
    %336 = vector.load %arg9[%c0_185, %c0_186] : memref<2x128xf32, #tpu.memory_space<vmem>>, vector<2x128xf32>
    %337 = arith.truncf %336 : vector<2x128xf32> to vector<2x128xbf16>
    %c0_187 = arith.constant 0 : index
    %c0_188 = arith.constant 0 : index
    %338 = vector.load %arg4[%c0_187, %c0_188] : memref<128x512xbf16, #tpu.memory_space<vmem>>, vector<128x512xbf16>
    %cst_189 = arith.constant dense<0.000000e+00> : vector<2x512xf32>
    %339 = tpu.matmul %337, %338, %cst_189 {dimension_numbers = #tpu.dot_dimension_numbers<[1], [0], [0], [1], [0, 0, 1, 1], [], []>} : vector<2x128xbf16>, vector<128x512xbf16>, vector<2x512xf32> -> vector<2x512xf32>
    %340 = arith.addf %335, %339 : vector<2x512xf32>
    %c0_190 = arith.constant 0 : index
    %c0_191 = arith.constant 0 : index
    %341 = vector.load %arg13[%c0_190, %c0_191] : memref<2x512xf32, #tpu.memory_space<vmem>>, vector<2x512xf32>
    %342 = arith.addf %340, %341 : vector<2x512xf32>
    %c0_192 = arith.constant 0 : index
    %c0_193 = arith.constant 0 : index
    %343 = vector.load %arg10[%c0_192, %c0_193] : memref<2x128xf32, #tpu.memory_space<vmem>>, vector<2x128xf32>
    %344 = vector.extract_strided_slice %342 {offsets = [0, 0], sizes = [2, 128], strides = [1, 1]} : vector<2x512xf32> to vector<2x128xf32>
    %345 = arith.negf %344 : vector<2x128xf32>
    %346 = math.exp %345 : vector<2x128xf32>
    %cst_194 = arith.constant 1.000000e+00 : f32
    %347 = vector.broadcast %cst_194 : f32 to vector<2x128xf32>
    %348 = arith.addf %347, %346 : vector<2x128xf32>
    %349 = arith.divf %347, %348 : vector<2x128xf32>
    %350 = vector.extract_strided_slice %342 {offsets = [0, 128], sizes = [2, 128], strides = [1, 1]} : vector<2x512xf32> to vector<2x128xf32>
    %351 = arith.negf %350 : vector<2x128xf32>
    %352 = math.exp %351 : vector<2x128xf32>
    %cst_195 = arith.constant 1.000000e+00 : f32
    %353 = vector.broadcast %cst_195 : f32 to vector<2x128xf32>
    %354 = arith.addf %353, %352 : vector<2x128xf32>
    %355 = arith.divf %353, %354 : vector<2x128xf32>
    %356 = vector.extract_strided_slice %342 {offsets = [0, 256], sizes = [2, 128], strides = [1, 1]} : vector<2x512xf32> to vector<2x128xf32>
    %357 = math.tanh %356 : vector<2x128xf32>
    %358 = vector.extract_strided_slice %342 {offsets = [0, 384], sizes = [2, 128], strides = [1, 1]} : vector<2x512xf32> to vector<2x128xf32>
    %359 = arith.negf %358 : vector<2x128xf32>
    %360 = math.exp %359 : vector<2x128xf32>
    %cst_196 = arith.constant 1.000000e+00 : f32
    %361 = vector.broadcast %cst_196 : f32 to vector<2x128xf32>
    %362 = arith.addf %361, %360 : vector<2x128xf32>
    %363 = arith.divf %361, %362 : vector<2x128xf32>
    %364 = arith.mulf %355, %343 : vector<2x128xf32>
    %365 = arith.mulf %349, %357 : vector<2x128xf32>
    %366 = arith.addf %364, %365 : vector<2x128xf32>
    %367 = math.tanh %366 : vector<2x128xf32>
    %368 = arith.mulf %363, %367 : vector<2x128xf32>
    %c0_197 = arith.constant 0 : index
    %c0_198 = arith.constant 0 : index
    %369 = vector.load %arg9[%c0_197, %c0_198] : memref<2x128xf32, #tpu.memory_space<vmem>>, vector<2x128xf32>
    tpu.vector_store %arg9[%c0_197, %c0_198], %368 {strides = array<i32>} : memref<2x128xf32, #tpu.memory_space<vmem>>, vector<2x128xf32>,
    %c0_199 = arith.constant 0 : index
    %c0_200 = arith.constant 0 : index
    %370 = vector.load %arg10[%c0_199, %c0_200] : memref<2x128xf32, #tpu.memory_space<vmem>>, vector<2x128xf32>
    tpu.vector_store %arg10[%c0_199, %c0_200], %366 {strides = array<i32>} : memref<2x128xf32, #tpu.memory_space<vmem>>, vector<2x128xf32>,
    %c0_201 = arith.constant 0 : index
    %c0_202 = arith.constant 0 : index
    %371 = vector.load %arg9[%c0_201, %c0_202] : memref<2x128xf32, #tpu.memory_space<vmem>>, vector<2x128xf32>
    %372 = arith.truncf %371 : vector<2x128xf32> to vector<2x128xbf16>
    %c0_203 = arith.constant 0 : index
    %c0_204 = arith.constant 0 : index
    %373 = vector.load %arg5[%c0_203, %c0_204] : memref<128x512xbf16, #tpu.memory_space<vmem>>, vector<128x512xbf16>
    %cst_205 = arith.constant dense<0.000000e+00> : vector<2x512xf32>
    %374 = tpu.matmul %372, %373, %cst_205 {dimension_numbers = #tpu.dot_dimension_numbers<[1], [0], [0], [1], [0, 0, 1, 1], [], []>} : vector<2x128xbf16>, vector<128x512xbf16>, vector<2x512xf32> -> vector<2x512xf32>
    %c0_206 = arith.constant 0 : index
    %c0_207 = arith.constant 0 : index
    %375 = vector.load %arg11[%c0_206, %c0_207] : memref<2x128xf32, #tpu.memory_space<vmem>>, vector<2x128xf32>
    %376 = arith.truncf %375 : vector<2x128xf32> to vector<2x128xbf16>
    %c0_208 = arith.constant 0 : index
    %c0_209 = arith.constant 0 : index
    %377 = vector.load %arg6[%c0_208, %c0_209] : memref<128x512xbf16, #tpu.memory_space<vmem>>, vector<128x512xbf16>
    %cst_210 = arith.constant dense<0.000000e+00> : vector<2x512xf32>
    %378 = tpu.matmul %376, %377, %cst_210 {dimension_numbers = #tpu.dot_dimension_numbers<[1], [0], [0], [1], [0, 0, 1, 1], [], []>} : vector<2x128xbf16>, vector<128x512xbf16>, vector<2x512xf32> -> vector<2x512xf32>
    %379 = arith.addf %374, %378 : vector<2x512xf32>
    %c0_211 = arith.constant 0 : index
    %c0_212 = arith.constant 0 : index
    %380 = vector.load %arg7[%c0_211, %c0_212] : memref<1x512xf32, #tpu.memory_space<vmem>>, vector<1x512xf32>
    %381 = vector.broadcast %380 : vector<1x512xf32> to vector<2x512xf32>
    %382 = arith.addf %379, %381 : vector<2x512xf32>
    %c0_213 = arith.constant 0 : index
    %c0_214 = arith.constant 0 : index
    %383 = vector.load %arg12[%c0_213, %c0_214] : memref<2x128xf32, #tpu.memory_space<vmem>>, vector<2x128xf32>
    %384 = vector.extract_strided_slice %382 {offsets = [0, 0], sizes = [2, 128], strides = [1, 1]} : vector<2x512xf32> to vector<2x128xf32>
    %385 = arith.negf %384 : vector<2x128xf32>
    %386 = math.exp %385 : vector<2x128xf32>
    %cst_215 = arith.constant 1.000000e+00 : f32
    %387 = vector.broadcast %cst_215 : f32 to vector<2x128xf32>
    %388 = arith.addf %387, %386 : vector<2x128xf32>
    %389 = arith.divf %387, %388 : vector<2x128xf32>
    %390 = vector.extract_strided_slice %382 {offsets = [0, 128], sizes = [2, 128], strides = [1, 1]} : vector<2x512xf32> to vector<2x128xf32>
    %391 = arith.negf %390 : vector<2x128xf32>
    %392 = math.exp %391 : vector<2x128xf32>
    %cst_216 = arith.constant 1.000000e+00 : f32
    %393 = vector.broadcast %cst_216 : f32 to vector<2x128xf32>
    %394 = arith.addf %393, %392 : vector<2x128xf32>
    %395 = arith.divf %393, %394 : vector<2x128xf32>
    %396 = vector.extract_strided_slice %382 {offsets = [0, 256], sizes = [2, 128], strides = [1, 1]} : vector<2x512xf32> to vector<2x128xf32>
    %397 = math.tanh %396 : vector<2x128xf32>
    %398 = vector.extract_strided_slice %382 {offsets = [0, 384], sizes = [2, 128], strides = [1, 1]} : vector<2x512xf32> to vector<2x128xf32>
    %399 = arith.negf %398 : vector<2x128xf32>
    %400 = math.exp %399 : vector<2x128xf32>
    %cst_217 = arith.constant 1.000000e+00 : f32
    %401 = vector.broadcast %cst_217 : f32 to vector<2x128xf32>
    %402 = arith.addf %401, %400 : vector<2x128xf32>
    %403 = arith.divf %401, %402 : vector<2x128xf32>
    %404 = arith.mulf %395, %383 : vector<2x128xf32>
    %405 = arith.mulf %389, %397 : vector<2x128xf32>
    %406 = arith.addf %404, %405 : vector<2x128xf32>
    %407 = math.tanh %406 : vector<2x128xf32>
    %408 = arith.mulf %403, %407 : vector<2x128xf32>
    %c0_218 = arith.constant 0 : index
    %c0_219 = arith.constant 0 : index
    %409 = vector.load %arg11[%c0_218, %c0_219] : memref<2x128xf32, #tpu.memory_space<vmem>>, vector<2x128xf32>
    tpu.vector_store %arg11[%c0_218, %c0_219], %408 {strides = array<i32>} : memref<2x128xf32, #tpu.memory_space<vmem>>, vector<2x128xf32>,
    %c0_220 = arith.constant 0 : index
    %c0_221 = arith.constant 0 : index
    %410 = vector.load %arg12[%c0_220, %c0_221] : memref<2x128xf32, #tpu.memory_space<vmem>>, vector<2x128xf32>
    tpu.vector_store %arg12[%c0_220, %c0_221], %406 {strides = array<i32>} : memref<2x128xf32, #tpu.memory_space<vmem>>, vector<2x128xf32>,
    %c0_222 = arith.constant 0 : index
    %c0_223 = arith.constant 0 : index
    %411 = vector.load %arg11[%c0_222, %c0_223] : memref<2x128xf32, #tpu.memory_space<vmem>>, vector<2x128xf32>
    %c5 = arith.constant 5 : index
    %c0_224 = arith.constant 0 : index
    %c0_225 = arith.constant 0 : index
    %412 = vector.load %arg8[%c5, %c0_224, %c0_225] : memref<8x2x128xf32, #tpu.memory_space<vmem>>, vector<1x2x128xf32>
    %413 = vector.shape_cast %412 : vector<1x2x128xf32> to vector<2x128xf32>
    %414 = vector.shape_cast %411 : vector<2x128xf32> to vector<1x2x128xf32>
    tpu.vector_store %arg8[%c5, %c0_224, %c0_225], %414 {strides = array<i32>} : memref<8x2x128xf32, #tpu.memory_space<vmem>>, vector<1x2x128xf32>,
    %c5_226 = arith.constant 5 : index
    %c0_227 = arith.constant 0 : index
    %c0_228 = arith.constant 0 : index
    %415 = vector.load %arg1[%c5_226, %c0_227, %c0_228] : memref<8x2x512xf32, #tpu.memory_space<vmem>>, vector<1x2x512xf32>
    %416 = vector.shape_cast %415 : vector<1x2x512xf32> to vector<2x512xf32>
    %c0_229 = arith.constant 0 : index
    %c0_230 = arith.constant 0 : index
    %417 = vector.load %arg9[%c0_229, %c0_230] : memref<2x128xf32, #tpu.memory_space<vmem>>, vector<2x128xf32>
    %418 = arith.truncf %417 : vector<2x128xf32> to vector<2x128xbf16>
    %c0_231 = arith.constant 0 : index
    %c0_232 = arith.constant 0 : index
    %419 = vector.load %arg4[%c0_231, %c0_232] : memref<128x512xbf16, #tpu.memory_space<vmem>>, vector<128x512xbf16>
    %cst_233 = arith.constant dense<0.000000e+00> : vector<2x512xf32>
    %420 = tpu.matmul %418, %419, %cst_233 {dimension_numbers = #tpu.dot_dimension_numbers<[1], [0], [0], [1], [0, 0, 1, 1], [], []>} : vector<2x128xbf16>, vector<128x512xbf16>, vector<2x512xf32> -> vector<2x512xf32>
    %421 = arith.addf %416, %420 : vector<2x512xf32>
    %c0_234 = arith.constant 0 : index
    %c0_235 = arith.constant 0 : index
    %422 = vector.load %arg13[%c0_234, %c0_235] : memref<2x512xf32, #tpu.memory_space<vmem>>, vector<2x512xf32>
    %423 = arith.addf %421, %422 : vector<2x512xf32>
    %c0_236 = arith.constant 0 : index
    %c0_237 = arith.constant 0 : index
    %424 = vector.load %arg10[%c0_236, %c0_237] : memref<2x128xf32, #tpu.memory_space<vmem>>, vector<2x128xf32>
    %425 = vector.extract_strided_slice %423 {offsets = [0, 0], sizes = [2, 128], strides = [1, 1]} : vector<2x512xf32> to vector<2x128xf32>
    %426 = arith.negf %425 : vector<2x128xf32>
    %427 = math.exp %426 : vector<2x128xf32>
    %cst_238 = arith.constant 1.000000e+00 : f32
    %428 = vector.broadcast %cst_238 : f32 to vector<2x128xf32>
    %429 = arith.addf %428, %427 : vector<2x128xf32>
    %430 = arith.divf %428, %429 : vector<2x128xf32>
    %431 = vector.extract_strided_slice %423 {offsets = [0, 128], sizes = [2, 128], strides = [1, 1]} : vector<2x512xf32> to vector<2x128xf32>
    %432 = arith.negf %431 : vector<2x128xf32>
    %433 = math.exp %432 : vector<2x128xf32>
    %cst_239 = arith.constant 1.000000e+00 : f32
    %434 = vector.broadcast %cst_239 : f32 to vector<2x128xf32>
    %435 = arith.addf %434, %433 : vector<2x128xf32>
    %436 = arith.divf %434, %435 : vector<2x128xf32>
    %437 = vector.extract_strided_slice %423 {offsets = [0, 256], sizes = [2, 128], strides = [1, 1]} : vector<2x512xf32> to vector<2x128xf32>
    %438 = math.tanh %437 : vector<2x128xf32>
    %439 = vector.extract_strided_slice %423 {offsets = [0, 384], sizes = [2, 128], strides = [1, 1]} : vector<2x512xf32> to vector<2x128xf32>
    %440 = arith.negf %439 : vector<2x128xf32>
    %441 = math.exp %440 : vector<2x128xf32>
    %cst_240 = arith.constant 1.000000e+00 : f32
    %442 = vector.broadcast %cst_240 : f32 to vector<2x128xf32>
    %443 = arith.addf %442, %441 : vector<2x128xf32>
    %444 = arith.divf %442, %443 : vector<2x128xf32>
    %445 = arith.mulf %436, %424 : vector<2x128xf32>
    %446 = arith.mulf %430, %438 : vector<2x128xf32>
    %447 = arith.addf %445, %446 : vector<2x128xf32>
    %448 = math.tanh %447 : vector<2x128xf32>
    %449 = arith.mulf %444, %448 : vector<2x128xf32>
    %c0_241 = arith.constant 0 : index
    %c0_242 = arith.constant 0 : index
    %450 = vector.load %arg9[%c0_241, %c0_242] : memref<2x128xf32, #tpu.memory_space<vmem>>, vector<2x128xf32>
    tpu.vector_store %arg9[%c0_241, %c0_242], %449 {strides = array<i32>} : memref<2x128xf32, #tpu.memory_space<vmem>>, vector<2x128xf32>,
    %c0_243 = arith.constant 0 : index
    %c0_244 = arith.constant 0 : index
    %451 = vector.load %arg10[%c0_243, %c0_244] : memref<2x128xf32, #tpu.memory_space<vmem>>, vector<2x128xf32>
    tpu.vector_store %arg10[%c0_243, %c0_244], %447 {strides = array<i32>} : memref<2x128xf32, #tpu.memory_space<vmem>>, vector<2x128xf32>,
    %c0_245 = arith.constant 0 : index
    %c0_246 = arith.constant 0 : index
    %452 = vector.load %arg9[%c0_245, %c0_246] : memref<2x128xf32, #tpu.memory_space<vmem>>, vector<2x128xf32>
    %453 = arith.truncf %452 : vector<2x128xf32> to vector<2x128xbf16>
    %c0_247 = arith.constant 0 : index
    %c0_248 = arith.constant 0 : index
    %454 = vector.load %arg5[%c0_247, %c0_248] : memref<128x512xbf16, #tpu.memory_space<vmem>>, vector<128x512xbf16>
    %cst_249 = arith.constant dense<0.000000e+00> : vector<2x512xf32>
    %455 = tpu.matmul %453, %454, %cst_249 {dimension_numbers = #tpu.dot_dimension_numbers<[1], [0], [0], [1], [0, 0, 1, 1], [], []>} : vector<2x128xbf16>, vector<128x512xbf16>, vector<2x512xf32> -> vector<2x512xf32>
    %c0_250 = arith.constant 0 : index
    %c0_251 = arith.constant 0 : index
    %456 = vector.load %arg11[%c0_250, %c0_251] : memref<2x128xf32, #tpu.memory_space<vmem>>, vector<2x128xf32>
    %457 = arith.truncf %456 : vector<2x128xf32> to vector<2x128xbf16>
    %c0_252 = arith.constant 0 : index
    %c0_253 = arith.constant 0 : index
    %458 = vector.load %arg6[%c0_252, %c0_253] : memref<128x512xbf16, #tpu.memory_space<vmem>>, vector<128x512xbf16>
    %cst_254 = arith.constant dense<0.000000e+00> : vector<2x512xf32>
    %459 = tpu.matmul %457, %458, %cst_254 {dimension_numbers = #tpu.dot_dimension_numbers<[1], [0], [0], [1], [0, 0, 1, 1], [], []>} : vector<2x128xbf16>, vector<128x512xbf16>, vector<2x512xf32> -> vector<2x512xf32>
    %460 = arith.addf %455, %459 : vector<2x512xf32>
    %c0_255 = arith.constant 0 : index
    %c0_256 = arith.constant 0 : index
    %461 = vector.load %arg7[%c0_255, %c0_256] : memref<1x512xf32, #tpu.memory_space<vmem>>, vector<1x512xf32>
    %462 = vector.broadcast %461 : vector<1x512xf32> to vector<2x512xf32>
    %463 = arith.addf %460, %462 : vector<2x512xf32>
    %c0_257 = arith.constant 0 : index
    %c0_258 = arith.constant 0 : index
    %464 = vector.load %arg12[%c0_257, %c0_258] : memref<2x128xf32, #tpu.memory_space<vmem>>, vector<2x128xf32>
    %465 = vector.extract_strided_slice %463 {offsets = [0, 0], sizes = [2, 128], strides = [1, 1]} : vector<2x512xf32> to vector<2x128xf32>
    %466 = arith.negf %465 : vector<2x128xf32>
    %467 = math.exp %466 : vector<2x128xf32>
    %cst_259 = arith.constant 1.000000e+00 : f32
    %468 = vector.broadcast %cst_259 : f32 to vector<2x128xf32>
    %469 = arith.addf %468, %467 : vector<2x128xf32>
    %470 = arith.divf %468, %469 : vector<2x128xf32>
    %471 = vector.extract_strided_slice %463 {offsets = [0, 128], sizes = [2, 128], strides = [1, 1]} : vector<2x512xf32> to vector<2x128xf32>
    %472 = arith.negf %471 : vector<2x128xf32>
    %473 = math.exp %472 : vector<2x128xf32>
    %cst_260 = arith.constant 1.000000e+00 : f32
    %474 = vector.broadcast %cst_260 : f32 to vector<2x128xf32>
    %475 = arith.addf %474, %473 : vector<2x128xf32>
    %476 = arith.divf %474, %475 : vector<2x128xf32>
    %477 = vector.extract_strided_slice %463 {offsets = [0, 256], sizes = [2, 128], strides = [1, 1]} : vector<2x512xf32> to vector<2x128xf32>
    %478 = math.tanh %477 : vector<2x128xf32>
    %479 = vector.extract_strided_slice %463 {offsets = [0, 384], sizes = [2, 128], strides = [1, 1]} : vector<2x512xf32> to vector<2x128xf32>
    %480 = arith.negf %479 : vector<2x128xf32>
    %481 = math.exp %480 : vector<2x128xf32>
    %cst_261 = arith.constant 1.000000e+00 : f32
    %482 = vector.broadcast %cst_261 : f32 to vector<2x128xf32>
    %483 = arith.addf %482, %481 : vector<2x128xf32>
    %484 = arith.divf %482, %483 : vector<2x128xf32>
    %485 = arith.mulf %476, %464 : vector<2x128xf32>
    %486 = arith.mulf %470, %478 : vector<2x128xf32>
    %487 = arith.addf %485, %486 : vector<2x128xf32>
    %488 = math.tanh %487 : vector<2x128xf32>
    %489 = arith.mulf %484, %488 : vector<2x128xf32>
    %c0_262 = arith.constant 0 : index
    %c0_263 = arith.constant 0 : index
    %490 = vector.load %arg11[%c0_262, %c0_263] : memref<2x128xf32, #tpu.memory_space<vmem>>, vector<2x128xf32>
    tpu.vector_store %arg11[%c0_262, %c0_263], %489 {strides = array<i32>} : memref<2x128xf32, #tpu.memory_space<vmem>>, vector<2x128xf32>,
    %c0_264 = arith.constant 0 : index
    %c0_265 = arith.constant 0 : index
    %491 = vector.load %arg12[%c0_264, %c0_265] : memref<2x128xf32, #tpu.memory_space<vmem>>, vector<2x128xf32>
    tpu.vector_store %arg12[%c0_264, %c0_265], %487 {strides = array<i32>} : memref<2x128xf32, #tpu.memory_space<vmem>>, vector<2x128xf32>,
    %c0_266 = arith.constant 0 : index
    %c0_267 = arith.constant 0 : index
    %492 = vector.load %arg11[%c0_266, %c0_267] : memref<2x128xf32, #tpu.memory_space<vmem>>, vector<2x128xf32>
    %c6 = arith.constant 6 : index
    %c0_268 = arith.constant 0 : index
    %c0_269 = arith.constant 0 : index
    %493 = vector.load %arg8[%c6, %c0_268, %c0_269] : memref<8x2x128xf32, #tpu.memory_space<vmem>>, vector<1x2x128xf32>
    %494 = vector.shape_cast %493 : vector<1x2x128xf32> to vector<2x128xf32>
    %495 = vector.shape_cast %492 : vector<2x128xf32> to vector<1x2x128xf32>
    tpu.vector_store %arg8[%c6, %c0_268, %c0_269], %495 {strides = array<i32>} : memref<8x2x128xf32, #tpu.memory_space<vmem>>, vector<1x2x128xf32>,
    %c6_270 = arith.constant 6 : index
    %c0_271 = arith.constant 0 : index
    %c0_272 = arith.constant 0 : index
    %496 = vector.load %arg1[%c6_270, %c0_271, %c0_272] : memref<8x2x512xf32, #tpu.memory_space<vmem>>, vector<1x2x512xf32>
    %497 = vector.shape_cast %496 : vector<1x2x512xf32> to vector<2x512xf32>
    %c0_273 = arith.constant 0 : index
    %c0_274 = arith.constant 0 : index
    %498 = vector.load %arg9[%c0_273, %c0_274] : memref<2x128xf32, #tpu.memory_space<vmem>>, vector<2x128xf32>
    %499 = arith.truncf %498 : vector<2x128xf32> to vector<2x128xbf16>
    %c0_275 = arith.constant 0 : index
    %c0_276 = arith.constant 0 : index
    %500 = vector.load %arg4[%c0_275, %c0_276] : memref<128x512xbf16, #tpu.memory_space<vmem>>, vector<128x512xbf16>
    %cst_277 = arith.constant dense<0.000000e+00> : vector<2x512xf32>
    %501 = tpu.matmul %499, %500, %cst_277 {dimension_numbers = #tpu.dot_dimension_numbers<[1], [0], [0], [1], [0, 0, 1, 1], [], []>} : vector<2x128xbf16>, vector<128x512xbf16>, vector<2x512xf32> -> vector<2x512xf32>
    %502 = arith.addf %497, %501 : vector<2x512xf32>
    %c0_278 = arith.constant 0 : index
    %c0_279 = arith.constant 0 : index
    %503 = vector.load %arg13[%c0_278, %c0_279] : memref<2x512xf32, #tpu.memory_space<vmem>>, vector<2x512xf32>
    %504 = arith.addf %502, %503 : vector<2x512xf32>
    %c0_280 = arith.constant 0 : index
    %c0_281 = arith.constant 0 : index
    %505 = vector.load %arg10[%c0_280, %c0_281] : memref<2x128xf32, #tpu.memory_space<vmem>>, vector<2x128xf32>
    %506 = vector.extract_strided_slice %504 {offsets = [0, 0], sizes = [2, 128], strides = [1, 1]} : vector<2x512xf32> to vector<2x128xf32>
    %507 = arith.negf %506 : vector<2x128xf32>
    %508 = math.exp %507 : vector<2x128xf32>
    %cst_282 = arith.constant 1.000000e+00 : f32
    %509 = vector.broadcast %cst_282 : f32 to vector<2x128xf32>
    %510 = arith.addf %509, %508 : vector<2x128xf32>
    %511 = arith.divf %509, %510 : vector<2x128xf32>
    %512 = vector.extract_strided_slice %504 {offsets = [0, 128], sizes = [2, 128], strides = [1, 1]} : vector<2x512xf32> to vector<2x128xf32>
    %513 = arith.negf %512 : vector<2x128xf32>
    %514 = math.exp %513 : vector<2x128xf32>
    %cst_283 = arith.constant 1.000000e+00 : f32
    %515 = vector.broadcast %cst_283 : f32 to vector<2x128xf32>
    %516 = arith.addf %515, %514 : vector<2x128xf32>
    %517 = arith.divf %515, %516 : vector<2x128xf32>
    %518 = vector.extract_strided_slice %504 {offsets = [0, 256], sizes = [2, 128], strides = [1, 1]} : vector<2x512xf32> to vector<2x128xf32>
    %519 = math.tanh %518 : vector<2x128xf32>
    %520 = vector.extract_strided_slice %504 {offsets = [0, 384], sizes = [2, 128], strides = [1, 1]} : vector<2x512xf32> to vector<2x128xf32>
    %521 = arith.negf %520 : vector<2x128xf32>
    %522 = math.exp %521 : vector<2x128xf32>
    %cst_284 = arith.constant 1.000000e+00 : f32
    %523 = vector.broadcast %cst_284 : f32 to vector<2x128xf32>
    %524 = arith.addf %523, %522 : vector<2x128xf32>
    %525 = arith.divf %523, %524 : vector<2x128xf32>
    %526 = arith.mulf %517, %505 : vector<2x128xf32>
    %527 = arith.mulf %511, %519 : vector<2x128xf32>
    %528 = arith.addf %526, %527 : vector<2x128xf32>
    %529 = math.tanh %528 : vector<2x128xf32>
    %530 = arith.mulf %525, %529 : vector<2x128xf32>
    %c0_285 = arith.constant 0 : index
    %c0_286 = arith.constant 0 : index
    %531 = vector.load %arg9[%c0_285, %c0_286] : memref<2x128xf32, #tpu.memory_space<vmem>>, vector<2x128xf32>
    tpu.vector_store %arg9[%c0_285, %c0_286], %530 {strides = array<i32>} : memref<2x128xf32, #tpu.memory_space<vmem>>, vector<2x128xf32>,
    %c0_287 = arith.constant 0 : index
    %c0_288 = arith.constant 0 : index
    %532 = vector.load %arg10[%c0_287, %c0_288] : memref<2x128xf32, #tpu.memory_space<vmem>>, vector<2x128xf32>
    tpu.vector_store %arg10[%c0_287, %c0_288], %528 {strides = array<i32>} : memref<2x128xf32, #tpu.memory_space<vmem>>, vector<2x128xf32>,
    %c0_289 = arith.constant 0 : index
    %c0_290 = arith.constant 0 : index
    %533 = vector.load %arg9[%c0_289, %c0_290] : memref<2x128xf32, #tpu.memory_space<vmem>>, vector<2x128xf32>
    %534 = arith.truncf %533 : vector<2x128xf32> to vector<2x128xbf16>
    %c0_291 = arith.constant 0 : index
    %c0_292 = arith.constant 0 : index
    %535 = vector.load %arg5[%c0_291, %c0_292] : memref<128x512xbf16, #tpu.memory_space<vmem>>, vector<128x512xbf16>
    %cst_293 = arith.constant dense<0.000000e+00> : vector<2x512xf32>
    %536 = tpu.matmul %534, %535, %cst_293 {dimension_numbers = #tpu.dot_dimension_numbers<[1], [0], [0], [1], [0, 0, 1, 1], [], []>} : vector<2x128xbf16>, vector<128x512xbf16>, vector<2x512xf32> -> vector<2x512xf32>
    %c0_294 = arith.constant 0 : index
    %c0_295 = arith.constant 0 : index
    %537 = vector.load %arg11[%c0_294, %c0_295] : memref<2x128xf32, #tpu.memory_space<vmem>>, vector<2x128xf32>
    %538 = arith.truncf %537 : vector<2x128xf32> to vector<2x128xbf16>
    %c0_296 = arith.constant 0 : index
    %c0_297 = arith.constant 0 : index
    %539 = vector.load %arg6[%c0_296, %c0_297] : memref<128x512xbf16, #tpu.memory_space<vmem>>, vector<128x512xbf16>
    %cst_298 = arith.constant dense<0.000000e+00> : vector<2x512xf32>
    %540 = tpu.matmul %538, %539, %cst_298 {dimension_numbers = #tpu.dot_dimension_numbers<[1], [0], [0], [1], [0, 0, 1, 1], [], []>} : vector<2x128xbf16>, vector<128x512xbf16>, vector<2x512xf32> -> vector<2x512xf32>
    %541 = arith.addf %536, %540 : vector<2x512xf32>
    %c0_299 = arith.constant 0 : index
    %c0_300 = arith.constant 0 : index
    %542 = vector.load %arg7[%c0_299, %c0_300] : memref<1x512xf32, #tpu.memory_space<vmem>>, vector<1x512xf32>
    %543 = vector.broadcast %542 : vector<1x512xf32> to vector<2x512xf32>
    %544 = arith.addf %541, %543 : vector<2x512xf32>
    %c0_301 = arith.constant 0 : index
    %c0_302 = arith.constant 0 : index
    %545 = vector.load %arg12[%c0_301, %c0_302] : memref<2x128xf32, #tpu.memory_space<vmem>>, vector<2x128xf32>
    %546 = vector.extract_strided_slice %544 {offsets = [0, 0], sizes = [2, 128], strides = [1, 1]} : vector<2x512xf32> to vector<2x128xf32>
    %547 = arith.negf %546 : vector<2x128xf32>
    %548 = math.exp %547 : vector<2x128xf32>
    %cst_303 = arith.constant 1.000000e+00 : f32
    %549 = vector.broadcast %cst_303 : f32 to vector<2x128xf32>
    %550 = arith.addf %549, %548 : vector<2x128xf32>
    %551 = arith.divf %549, %550 : vector<2x128xf32>
    %552 = vector.extract_strided_slice %544 {offsets = [0, 128], sizes = [2, 128], strides = [1, 1]} : vector<2x512xf32> to vector<2x128xf32>
    %553 = arith.negf %552 : vector<2x128xf32>
    %554 = math.exp %553 : vector<2x128xf32>
    %cst_304 = arith.constant 1.000000e+00 : f32
    %555 = vector.broadcast %cst_304 : f32 to vector<2x128xf32>
    %556 = arith.addf %555, %554 : vector<2x128xf32>
    %557 = arith.divf %555, %556 : vector<2x128xf32>
    %558 = vector.extract_strided_slice %544 {offsets = [0, 256], sizes = [2, 128], strides = [1, 1]} : vector<2x512xf32> to vector<2x128xf32>
    %559 = math.tanh %558 : vector<2x128xf32>
    %560 = vector.extract_strided_slice %544 {offsets = [0, 384], sizes = [2, 128], strides = [1, 1]} : vector<2x512xf32> to vector<2x128xf32>
    %561 = arith.negf %560 : vector<2x128xf32>
    %562 = math.exp %561 : vector<2x128xf32>
    %cst_305 = arith.constant 1.000000e+00 : f32
    %563 = vector.broadcast %cst_305 : f32 to vector<2x128xf32>
    %564 = arith.addf %563, %562 : vector<2x128xf32>
    %565 = arith.divf %563, %564 : vector<2x128xf32>
    %566 = arith.mulf %557, %545 : vector<2x128xf32>
    %567 = arith.mulf %551, %559 : vector<2x128xf32>
    %568 = arith.addf %566, %567 : vector<2x128xf32>
    %569 = math.tanh %568 : vector<2x128xf32>
    %570 = arith.mulf %565, %569 : vector<2x128xf32>
    %c0_306 = arith.constant 0 : index
    %c0_307 = arith.constant 0 : index
    %571 = vector.load %arg11[%c0_306, %c0_307] : memref<2x128xf32, #tpu.memory_space<vmem>>, vector<2x128xf32>
    tpu.vector_store %arg11[%c0_306, %c0_307], %570 {strides = array<i32>} : memref<2x128xf32, #tpu.memory_space<vmem>>, vector<2x128xf32>,
    %c0_308 = arith.constant 0 : index
    %c0_309 = arith.constant 0 : index
    %572 = vector.load %arg12[%c0_308, %c0_309] : memref<2x128xf32, #tpu.memory_space<vmem>>, vector<2x128xf32>
    tpu.vector_store %arg12[%c0_308, %c0_309], %568 {strides = array<i32>} : memref<2x128xf32, #tpu.memory_space<vmem>>, vector<2x128xf32>,
    %c0_310 = arith.constant 0 : index
    %c0_311 = arith.constant 0 : index
    %573 = vector.load %arg11[%c0_310, %c0_311] : memref<2x128xf32, #tpu.memory_space<vmem>>, vector<2x128xf32>
    %c7 = arith.constant 7 : index
    %c0_312 = arith.constant 0 : index
    %c0_313 = arith.constant 0 : index
    %574 = vector.load %arg8[%c7, %c0_312, %c0_313] : memref<8x2x128xf32, #tpu.memory_space<vmem>>, vector<1x2x128xf32>
    %575 = vector.shape_cast %574 : vector<1x2x128xf32> to vector<2x128xf32>
    %576 = vector.shape_cast %573 : vector<2x128xf32> to vector<1x2x128xf32>
    tpu.vector_store %arg8[%c7, %c0_312, %c0_313], %576 {strides = array<i32>} : memref<8x2x128xf32, #tpu.memory_space<vmem>>, vector<1x2x128xf32>,
    %c7_314 = arith.constant 7 : index
    %c0_315 = arith.constant 0 : index
    %c0_316 = arith.constant 0 : index
    %577 = vector.load %arg1[%c7_314, %c0_315, %c0_316] : memref<8x2x512xf32, #tpu.memory_space<vmem>>, vector<1x2x512xf32>
    %578 = vector.shape_cast %577 : vector<1x2x512xf32> to vector<2x512xf32>
    %c0_317 = arith.constant 0 : index
    %c0_318 = arith.constant 0 : index
    %579 = vector.load %arg9[%c0_317, %c0_318] : memref<2x128xf32, #tpu.memory_space<vmem>>, vector<2x128xf32>
    %580 = arith.truncf %579 : vector<2x128xf32> to vector<2x128xbf16>
    %c0_319 = arith.constant 0 : index
    %c0_320 = arith.constant 0 : index
    %581 = vector.load %arg4[%c0_319, %c0_320] : memref<128x512xbf16, #tpu.memory_space<vmem>>, vector<128x512xbf16>
    %cst_321 = arith.constant dense<0.000000e+00> : vector<2x512xf32>
    %582 = tpu.matmul %580, %581, %cst_321 {dimension_numbers = #tpu.dot_dimension_numbers<[1], [0], [0], [1], [0, 0, 1, 1], [], []>} : vector<2x128xbf16>, vector<128x512xbf16>, vector<2x512xf32> -> vector<2x512xf32>
    %583 = arith.addf %578, %582 : vector<2x512xf32>
    %c0_322 = arith.constant 0 : index
    %c0_323 = arith.constant 0 : index
    %584 = vector.load %arg13[%c0_322, %c0_323] : memref<2x512xf32, #tpu.memory_space<vmem>>, vector<2x512xf32>
    %585 = arith.addf %583, %584 : vector<2x512xf32>
    %c0_324 = arith.constant 0 : index
    %c0_325 = arith.constant 0 : index
    %586 = vector.load %arg10[%c0_324, %c0_325] : memref<2x128xf32, #tpu.memory_space<vmem>>, vector<2x128xf32>
    %587 = vector.extract_strided_slice %585 {offsets = [0, 0], sizes = [2, 128], strides = [1, 1]} : vector<2x512xf32> to vector<2x128xf32>
    %588 = arith.negf %587 : vector<2x128xf32>
    %589 = math.exp %588 : vector<2x128xf32>
    %cst_326 = arith.constant 1.000000e+00 : f32
    %590 = vector.broadcast %cst_326 : f32 to vector<2x128xf32>
    %591 = arith.addf %590, %589 : vector<2x128xf32>
    %592 = arith.divf %590, %591 : vector<2x128xf32>
    %593 = vector.extract_strided_slice %585 {offsets = [0, 128], sizes = [2, 128], strides = [1, 1]} : vector<2x512xf32> to vector<2x128xf32>
    %594 = arith.negf %593 : vector<2x128xf32>
    %595 = math.exp %594 : vector<2x128xf32>
    %cst_327 = arith.constant 1.000000e+00 : f32
    %596 = vector.broadcast %cst_327 : f32 to vector<2x128xf32>
    %597 = arith.addf %596, %595 : vector<2x128xf32>
    %598 = arith.divf %596, %597 : vector<2x128xf32>
    %599 = vector.extract_strided_slice %585 {offsets = [0, 256], sizes = [2, 128], strides = [1, 1]} : vector<2x512xf32> to vector<2x128xf32>
    %600 = math.tanh %599 : vector<2x128xf32>
    %601 = vector.extract_strided_slice %585 {offsets = [0, 384], sizes = [2, 128], strides = [1, 1]} : vector<2x512xf32> to vector<2x128xf32>
    %602 = arith.negf %601 : vector<2x128xf32>
    %603 = math.exp %602 : vector<2x128xf32>
    %cst_328 = arith.constant 1.000000e+00 : f32
    %604 = vector.broadcast %cst_328 : f32 to vector<2x128xf32>
    %605 = arith.addf %604, %603 : vector<2x128xf32>
    %606 = arith.divf %604, %605 : vector<2x128xf32>
    %607 = arith.mulf %598, %586 : vector<2x128xf32>
    %608 = arith.mulf %592, %600 : vector<2x128xf32>
    %609 = arith.addf %607, %608 : vector<2x128xf32>
    %610 = math.tanh %609 : vector<2x128xf32>
    %611 = arith.mulf %606, %610 : vector<2x128xf32>
    %c0_329 = arith.constant 0 : index
    %c0_330 = arith.constant 0 : index
    %612 = vector.load %arg9[%c0_329, %c0_330] : memref<2x128xf32, #tpu.memory_space<vmem>>, vector<2x128xf32>
    tpu.vector_store %arg9[%c0_329, %c0_330], %611 {strides = array<i32>} : memref<2x128xf32, #tpu.memory_space<vmem>>, vector<2x128xf32>,
    %c0_331 = arith.constant 0 : index
    %c0_332 = arith.constant 0 : index
    %613 = vector.load %arg10[%c0_331, %c0_332] : memref<2x128xf32, #tpu.memory_space<vmem>>, vector<2x128xf32>
    tpu.vector_store %arg10[%c0_331, %c0_332], %609 {strides = array<i32>} : memref<2x128xf32, #tpu.memory_space<vmem>>, vector<2x128xf32>,
    return
  }
  func.func @transform_0(%arg0: i32) -> (i32, i32, i32) {
    %c0_i32 = arith.constant 0 : i32
    %c0_i32_0 = arith.constant 0 : i32
    %c0_i32_1 = arith.constant 0 : i32
    return %arg0, %c0_i32, %c0_i32_0 : i32, i32, i32
  }
  func.func @transform_1(%arg0: i32) -> (i32, i32) {
    %c0_i32 = arith.constant 0 : i32
    %c0_i32_0 = arith.constant 0 : i32
    %c0_i32_1 = arith.constant 0 : i32
    return %c0_i32, %c0_i32_0 : i32, i32
  }
  func.func @transform_2(%arg0: i32) -> (i32, i32) {
    %c0_i32 = arith.constant 0 : i32
    %c0_i32_0 = arith.constant 0 : i32
    %c0_i32_1 = arith.constant 0 : i32
    return %c0_i32, %c0_i32_0 : i32, i32
  }
  func.func @transform_3(%arg0: i32) -> (i32, i32) {
    %c0_i32 = arith.constant 0 : i32
    %c0_i32_0 = arith.constant 0 : i32
    %c0_i32_1 = arith.constant 0 : i32
    return %c0_i32, %c0_i32_0 : i32, i32
  }
  func.func @transform_4(%arg0: i32) -> (i32, i32) {
    %c0_i32 = arith.constant 0 : i32
    %c0_i32_0 = arith.constant 0 : i32
    %c0_i32_1 = arith.constant 0 : i32
    return %c0_i32, %c0_i32_0 : i32, i32
  }
  func.func @transform_5(%arg0: i32) -> (i32, i32) {
    %c0_i32 = arith.constant 0 : i32
    %c0_i32_0 = arith.constant 0 : i32
    %c0_i32_1 = arith.constant 0 : i32
    return %c0_i32, %c0_i32_0 : i32, i32
  }
  func.func @transform_6(%arg0: i32) -> (i32, i32) {
    %c0_i32 = arith.constant 0 : i32
    %c0_i32_0 = arith.constant 0 : i32
    %c0_i32_1 = arith.constant 0 : i32
    return %c0_i32, %c0_i32_0 : i32, i32
  }
  func.func @transform_7(%arg0: i32) -> (i32, i32, i32) {
    %c0_i32 = arith.constant 0 : i32
    %c0_i32_0 = arith.constant 0 : i32
    %c0_i32_1 = arith.constant 0 : i32
    return %arg0, %c0_i32, %c0_i32_0 : i32, i32, i32
  }
}

module attributes {stable_mosaic.version = 11 : i64} {
  func.func @matmul_bias_kernel(%arg0: i32, %arg1: i32, %arg2: memref<16x128xbf16, #tpu.memory_space<vmem>>, %arg3: memref<128x128xbf16, #tpu.memory_space<vmem>>, %arg4: memref<1x128xf32, #tpu.memory_space<vmem>>, %arg5: memref<16x128xf32, #tpu.memory_space<vmem>>) attributes {dimension_semantics = [#tpu.dimension_semantics<parallel>, #tpu.dimension_semantics<parallel>], iteration_bounds = array<i64: 1, 1>, scalar_prefetch = 0 : i64, scratch_operands = 0 : i64, tpu.core_type = #tpu.core_type<tc>, window_params = [{transform_indices = @transform_0, window_bounds = array<i64: 16, 128>}, {transform_indices = @transform_1, window_bounds = array<i64: 128, 128>}, {transform_indices = @transform_2, window_bounds = array<i64: 1, 128>}, {transform_indices = @transform_3, window_bounds = array<i64: 16, 128>}]} {
    %c0 = arith.constant 0 : index
    %c0_0 = arith.constant 0 : index
    %0 = vector.load %arg2[%c0, %c0_0] : memref<16x128xbf16, #tpu.memory_space<vmem>>, vector<16x128xbf16>
    %c0_1 = arith.constant 0 : index
    %c0_2 = arith.constant 0 : index
    %1 = vector.load %arg3[%c0_1, %c0_2] : memref<128x128xbf16, #tpu.memory_space<vmem>>, vector<128x128xbf16>
    %cst = arith.constant dense<0.000000e+00> : vector<16x128xf32>
    %2 = tpu.matmul %0, %1, %cst {dimension_numbers = #tpu.dot_dimension_numbers<[1], [0], [0], [1], [0, 0, 1, 1], [], []>} : vector<16x128xbf16>, vector<128x128xbf16>, vector<16x128xf32> -> vector<16x128xf32>
    %c0_3 = arith.constant 0 : index
    %c0_4 = arith.constant 0 : index
    %3 = vector.load %arg4[%c0_3, %c0_4] : memref<1x128xf32, #tpu.memory_space<vmem>>, vector<1x128xf32>
    %4 = vector.broadcast %3 : vector<1x128xf32> to vector<16x128xf32>
    %5 = arith.addf %2, %4 : vector<16x128xf32>
    %c0_5 = arith.constant 0 : index
    %c0_6 = arith.constant 0 : index
    %6 = vector.load %arg5[%c0_5, %c0_6] : memref<16x128xf32, #tpu.memory_space<vmem>>, vector<16x128xf32>
    tpu.vector_store %arg5[%c0_5, %c0_6], %5 {strides = array<i32>} : memref<16x128xf32, #tpu.memory_space<vmem>>, vector<16x128xf32>,
    return
  }
  func.func @transform_0(%arg0: i32, %arg1: i32) -> (i32, i32) {
    %c0_i32 = arith.constant 0 : i32
    %c0_i32_0 = arith.constant 0 : i32
    return %arg0, %c0_i32 : i32, i32
  }
  func.func @transform_1(%arg0: i32, %arg1: i32) -> (i32, i32) {
    %c0_i32 = arith.constant 0 : i32
    %c0_i32_0 = arith.constant 0 : i32
    return %c0_i32, %arg1 : i32, i32
  }
  func.func @transform_2(%arg0: i32, %arg1: i32) -> (i32, i32) {
    %c0_i32 = arith.constant 0 : i32
    %c0_i32_0 = arith.constant 0 : i32
    return %c0_i32, %arg1 : i32, i32
  }
  func.func @transform_3(%arg0: i32, %arg1: i32) -> (i32, i32) {
    %c0_i32 = arith.constant 0 : i32
    return %arg0, %arg1 : i32, i32
  }
}

</mosaic_0001>

<llo_original>
// kernel: cnn_lstm_caption_forward.5
$region0: #{cnn_lstm_caption_forward.5}
  #allocation0 [shape = 'u32[]', space=smem, size = 0x4, offset = 0x4, fixed_abs, tag = 'smem constant byte address 0x4 - core index']
  #allocation1 [shape = 'u32[144,128]{1,0:T(1,128)}', space=vmem, size = 0x12000, scoped, tag = 'internal scratch']
  %s0 = inlined_call_operand.vmem [shape: bf16[16,16], index: 0, kind: input, shape index: {}]
  %s1 = inlined_call_operand.vmem [shape: bf16[16,512], index: 1, kind: input, shape index: {}]
  %s2 = inlined_call_operand.vmem [shape: f32[1,512], index: 2, kind: input, shape index: {}]
  %s3 = inlined_call_operand.vmem [shape: f32[16,512], index: 3, kind: output, shape index: {}]
  %s4 = sld [smem:[#allocation0]]
  $region22: #{cnn_lstm_caption_forward.5} parent=0
    _
  %s6 = ssub.s32 1, %s4
  %s7 = scalar_select 0, %s6, %s4
  // Predicated region
  $region2: #{cnn_lstm_caption_forward.5} parent=0 // pred_check
    _
  $region3: #{cnn_lstm_caption_forward.5} parent=0 // pred_check_branch
    %9 = sbr.rel (0) target = $region5
  $region4: #{cnn_lstm_caption_forward.5} parent=0 // pred_region
    _
  $region5: #{cnn_lstm_caption_forward.5} parent=0 // pred_fallthru
    _
  // Predicated region
  $region6: #{cnn_lstm_caption_forward.5} parent=0 // pred_check
    _
  $region7: #{cnn_lstm_caption_forward.5} parent=0 // pred_check_branch
    %11 = sbr.rel (0) target = $region9
  $region8: #{cnn_lstm_caption_forward.5} parent=0 // pred_region
    _
  $region9: #{cnn_lstm_caption_forward.5} parent=0 // pred_fallthru
    _
  // Predicated region
  $region10: #{cnn_lstm_caption_forward.5} parent=0 // pred_check
    _
  $region11: #{cnn_lstm_caption_forward.5} parent=0 // pred_check_branch
    %13 = sbr.rel (0) target = $region13
  $region12: #{cnn_lstm_caption_forward.5} parent=0 // pred_region
    _
  $region13: #{cnn_lstm_caption_forward.5} parent=0 // pred_fallthru
    _
  %v15 = vld [vmem:[%s0] sm:$0xf]
  %v16 = vld [vmem:[%s0 + $0x4] sm:$0xf]
  %v17 = vld [vmem:[%s1] sm:$0xff]
  %v18 = vld [vmem:[%s1 + $0x8] sm:$0xff]
  %v19 = vld [vmem:[%s1 + $0x10] sm:$0xff]
  %v20 = vld [vmem:[%s1 + $0x18] sm:$0xff]
  %v21 = vld [vmem:[%s2] sm:$0xf]
  %v23 = vlaneseq
  %v24 = vshrl.u32 %v23, 7
  %v25 = vsub.s32 0, %v24
  %v26 = vrot.slane %v21, %v25
  %v27 = vlaneseq
  %v28 = vshrl.u32 %v27, 7
  %v29 = vsub.s32 1, %v28
  %v30 = vrot.slane %v21, %v29
  %v31 = vlaneseq
  %v32 = vshrl.u32 %v31, 7
  %v33 = vsub.s32 2, %v32
  %v34 = vrot.slane %v21, %v33
  %v35 = vlaneseq
  %v36 = vshrl.u32 %v35, 7
  %v37 = vsub.s32 3, %v36
  %v38 = vrot.slane %v21, %v37
  %v45 = vunpack.c.l.b16 %v15
  %v46 = vunpack.c.l.b16 %v16
  %v47 = vpack.c.b16 %v46, %v45
  %v52 = vunpack.c.l.b16 %v17
  %v53 = vunpack.c.h.b16 %v17
  %v54 = vunpack.c.l.b16 %v18
  %v55 = vunpack.c.h.b16 %v18
  %v56 = vunpack.c.l.b16 %v19
  %v57 = vunpack.c.h.b16 %v19
  %v58 = vunpack.c.l.b16 %v20
  %v59 = vunpack.c.h.b16 %v20
  %v60 = vpack.c.b16 %v56, %v52
  %v61 = vpack.c.b16 %v57, %v53
  %v62 = vpack.c.b16 %v58, %v54
  %v63 = vpack.c.b16 %v59, %v55
  %vm68 = vcmask 130048
  %v70 = vsel %vm68, %v47, 0
  %72 = vmatprep.subr.bf16.mxu0 0
  %73 = vmatpush1.bf16.msra.mxu0 0
  %74 = vmatprep.subr.bf16.mxu0 0
  %75 = vmatpush1.bf16.msra.mxu0 0
  %76 = vmatprep.subr.bf16.mxu0 0
  %77 = vmatpush1.bf16.msra.mxu0 0
  %78 = vmatprep.subr.bf16.mxu0 0
  %79 = vmatpush1.bf16.msra.mxu0 0
  %80 = vmatprep.subr.bf16.mxu0 0
  %81 = vmatpush1.bf16.msra.mxu0 0
  %82 = vmatprep.subr.bf16.mxu0 0
  %83 = vmatpush1.bf16.msra.mxu0 0
  %84 = vmatprep.subr.bf16.mxu0 0
  %85 = vmatpush1.bf16.msra.mxu0 0
  %86 = vmatprep.subr.bf16.mxu0 %v61
  %87 = vmatpush1.bf16.msra.mxu0 %v60
  %88 = vmatprep.subr.bf16.mxu0 0
  %89 = vmatpush2.bf16.msra.mxu0 0
  %90 = vmatprep.subr.bf16.mxu0 0
  %91 = vmatpush2.bf16.msra.mxu0 0
  %92 = vmatprep.subr.bf16.mxu0 0
  %93 = vmatpush2.bf16.msra.mxu0 0
  %94 = vmatprep.subr.bf16.mxu0 0
  %95 = vmatpush2.bf16.msra.mxu0 0
  %96 = vmatprep.subr.bf16.mxu0 0
  %97 = vmatpush2.bf16.msra.mxu0 0
  %98 = vmatprep.subr.bf16.mxu0 0
  %99 = vmatpush2.bf16.msra.mxu0 0
  %100 = vmatprep.subr.bf16.mxu0 0
  %101 = vmatpush2.bf16.msra.mxu0 0
  %102 = vmatprep.subr.bf16.mxu0 0
  %103 = vmatpush2.bf16.msra.mxu0 0
  %104 = vmatprep.mubr.bf16.mxu0 0
  %105 = vmatmul.mubr.bf16.gmra.mxu0 %v70
  %v106 = vpop.f32.mrf.mxu0
  %v107 = vadd.f32 %v26, %v106
  %v108 = vpop.f32.mrf.mxu0
  %v109 = vadd.f32 %v30, %v108
  %v110 = vpop.f32.mrf.mxu0
  %v111 = vadd.f32 %v26, %v110
  %v112 = vpop.f32.mrf.mxu0
  %v113 = vadd.f32 %v30, %v112
  %114 = vdwg.mxu0
  %115 = vmatprep.subr.bf16.mxu0 0
  %116 = vmatpush1.bf16.msra.mxu0 0
  %117 = vmatprep.subr.bf16.mxu0 0
  %118 = vmatpush1.bf16.msra.mxu0 0
  %119 = vmatprep.subr.bf16.mxu0 0
  %120 = vmatpush1.bf16.msra.mxu0 0
  %121 = vmatprep.subr.bf16.mxu0 0
  %122 = vmatpush1.bf16.msra.mxu0 0
  %123 = vmatprep.subr.bf16.mxu0 0
  %124 = vmatpush1.bf16.msra.mxu0 0
  %125 = vmatprep.subr.bf16.mxu0 0
  %126 = vmatpush1.bf16.msra.mxu0 0
  %127 = vmatprep.subr.bf16.mxu0 0
  %128 = vmatpush1.bf16.msra.mxu0 0
  %129 = vmatprep.subr.bf16.mxu0 %v63
  %130 = vmatpush1.bf16.msra.mxu0 %v62
  %131 = vmatprep.subr.bf16.mxu0 0
  %132 = vmatpush2.bf16.msra.mxu0 0
  %133 = vmatprep.subr.bf16.mxu0 0
  %134 = vmatpush2.bf16.msra.mxu0 0
  %135 = vmatprep.subr.bf16.mxu0 0
  %136 = vmatpush2.bf16.msra.mxu0 0
  %137 = vmatprep.subr.bf16.mxu0 0
  %138 = vmatpush2.bf16.msra.mxu0 0
  %139 = vmatprep.subr.bf16.mxu0 0
  %140 = vmatpush2.bf16.msra.mxu0 0
  %141 = vmatprep.subr.bf16.mxu0 0
  %142 = vmatpush2.bf16.msra.mxu0 0
  %143 = vmatprep.subr.bf16.mxu0 0
  %144 = vmatpush2.bf16.msra.mxu0 0
  %145 = vmatprep.subr.bf16.mxu0 0
  %146 = vmatpush2.bf16.msra.mxu0 0
  %147 = vmatprep.mubr.bf16.mxu0 0
  %148 = vmatmul.mubr.bf16.gmra.mxu0 %v70
  %v149 = vpop.f32.mrf.mxu0
  %v150 = vadd.f32 %v34, %v149
  %v151 = vpop.f32.mrf.mxu0
  %v152 = vadd.f32 %v38, %v151
  %v153 = vpop.f32.mrf.mxu0
  %v154 = vadd.f32 %v34, %v153
  %v155 = vpop.f32.mrf.mxu0
  %v156 = vadd.f32 %v38, %v155
  %157 = vdwg.mxu0
  %158 = vst [vmem:[%s3] sm:$0xff] %v107
  %159 = vst [vmem:[%s3 + $0x8] sm:$0xff] %v109
  %160 = vst [vmem:[%s3 + $0x10] sm:$0xff] %v150
  %161 = vst [vmem:[%s3 + $0x18] sm:$0xff] %v152
  %162 = vst [vmem:[%s3 + $0x20] sm:$0xff] %v111
  %163 = vst [vmem:[%s3 + $0x28] sm:$0xff] %v113
  %164 = vst [vmem:[%s3 + $0x30] sm:$0xff] %v154
  %165 = vst [vmem:[%s3 + $0x38] sm:$0xff] %v156
  // Predicated region
  $region14: #{cnn_lstm_caption_forward.5} parent=0 // pred_check
    _
  $region15: #{cnn_lstm_caption_forward.5} parent=0 // pred_check_branch
    %167 = sbr.rel (0) target = $region17
  $region16: #{cnn_lstm_caption_forward.5} parent=0 // pred_region
    _
  $region17: #{cnn_lstm_caption_forward.5} parent=0 // pred_fallthru
    _
  // Predicated region
  $region18: #{cnn_lstm_caption_forward.5} parent=0 // pred_check
    _
  $region19: #{cnn_lstm_caption_forward.5} parent=0 // pred_check_branch
    %169 = sbr.rel (0) target = $region21
  $region20: #{cnn_lstm_caption_forward.5} parent=0 // pred_region
    _
  $region21: #{cnn_lstm_caption_forward.5} parent=0 // pred_fallthru
    _

// kernel: cnn_lstm_caption_forward.4
$region0: #{cnn_lstm_caption_forward.4}
  #allocation0 [shape = 'u32[]', space=smem, size = 0x4, offset = 0x4, fixed_abs, tag = 'smem constant byte address 0x4 - core index']
  #allocation1 [shape = 'u32[144,128]{1,0:T(1,128)}', space=vmem, size = 0x12000, scoped, tag = 'internal scratch']
  #allocation2 [shape = 'f32[2,128]{1,0:T(2,128)}', space=vmem, size = 0x400, scoped, tag = 'scratch operand']
  %s0 = inlined_call_operand.vmem [shape: bf16[2,256,36], index: 0, kind: input, shape index: {}]
  %s1 = inlined_call_operand.vmem [shape: bf16[36,128], index: 1, kind: input, shape index: {}]
  %s2 = inlined_call_operand.vmem [shape: f32[1,128], index: 2, kind: input, shape index: {}]
  %s3 = inlined_call_operand.vmem [shape: bf16[128,128], index: 3, kind: input, shape index: {}]
  %s4 = inlined_call_operand.vmem [shape: f32[1,128], index: 4, kind: input, shape index: {}]
  %s5 = inlined_call_operand.vmem [shape: f32[1,128], index: 5, kind: input, shape index: {}]
  %s6 = inlined_call_operand.vmem [shape: f32[1,128], index: 6, kind: input, shape index: {}]
  %s7 = inlined_call_operand.vmem [shape: f32[2,128], index: 7, kind: output, shape index: {}]
  %s8 = sld [smem:[#allocation0]]
  $region69: #{cnn_lstm_caption_forward.4} parent=0
    _
  %s10 = ssub.s32 1, %s8
  %s11 = scalar_select 0, %s10, %s8
  loop: start=0, step=1, limit=4
  $region2: #{cnn_lstm_caption_forward.4} parent=0 // loop_pre_header
    _
  $region3: #{cnn_lstm_caption_forward.4} parent=0 // loop_header
    %s13 = sphi 0, %s17
    %p14 = scmp.ge.s32.totalorder %s13, 4
    %s20 = sphi 0, %s32
    %s21 = sphi 0, %s28
    %s22 = sphi 0, %s20
    %s23 = sphi 0, %s21
    %s24 = sphi 0, %s22
    %s25 = sphi 0, %s23
    %s37 = sphi 0, %s39
    %s40 = sphi 0, %s37
    %s41 = sphi 0, %s40
    %s57 = sphi 0, %s41
    %s61 = sphi 0, %s61
    %s63 = sphi 0, %s61
    %s64 = sphi 0, %s63
    %s78 = sphi 0, %s64
    %s82 = sphi 0, %s82
    %s84 = sphi 0, %s82
    %s85 = sphi 0, %s84
    %s99 = sphi 0, %s85
    %s103 = sphi 0, %s103
    %s105 = sphi 0, %s103
    %s106 = sphi 0, %s105
    %s120 = sphi 0, %s106
    %s124 = sphi 0, %s124
    %s126 = sphi 0, %s124
    %s127 = sphi 0, %s126
    %s141 = sphi 0, %s127
    %s145 = sphi 0, %s145
    %s147 = sphi 0, %s145
    %s148 = sphi 0, %s147
    %s162 = sphi 0, %s148
    %s166 = sphi 0, %s166
    %s168 = sphi 0, %s166
    %s169 = sphi 0, %s168
    %s183 = sphi 0, %s169
    %s187 = sphi 0, %s187
    %s189 = sphi 0, %s187
    %s190 = sphi 0, %s189
    %s204 = sphi 0, %s190
  $region4: #{cnn_lstm_caption_forward.4} parent=0 // loop_header_branch
    %16 = sbr.rel (%p14) target = $region8
  $region5: #{cnn_lstm_caption_forward.4} parent=0 // loop_body
    %s18 = ssub.s32 %s13, 1
    %s19 = ssub.s32 %s13, 2
    %s26 = sadd.s32 1, %s21
    %p27 = scmp.ge.s32.totalorder %s26, 1
    %s28 = scalar_select %p27, 0, %s26
    %s29 = sadd.s32 1, %s20
    %s30 = scalar_select %p27, %s29, %s20
    %p31 = scmp.ge.s32.totalorder %s30, 2
    %s32 = scalar_select %p31, 0, %s30
    %s33 = ssub.s32 %s20, %s32
    %s34 = ssub.s32 %s21, %s28
    %s35 = sor.u32 %s33, %s34
    %p36 = scmp.eq.s32.totalorder %s35, 0
    %s38 = sadd.s32 %s37, 1
    %s39 = scalar_select %p36, %s37, %s38
    %p42 = pneg %p36
    %p43 = scmp.eq.s32.totalorder %s13, 1
    %p44 = por %p42, %p43
    %p45 = scmp.ne.s32.totalorder %s37, %s40
    %p46 = scmp.eq.s32.totalorder %s13, 0
    %p47 = por %p45, %p46
    %p48 = scmp.ne.s32.totalorder %s37, %s40
    %p49 = scmp.eq.s32.totalorder %s18, 1
    %p50 = por %p48, %p49
    %p51 = scmp.ne.s32.totalorder %s40, %s41
    %p52 = scmp.eq.s32.totalorder %s18, 0
    %p53 = por %p51, %p52
    %p54 = scmp.ne.s32.totalorder %s40, %s41
    %p55 = scmp.eq.s32.totalorder %s19, 1
    %p56 = por %p54, %p55
    %p58 = scmp.ne.s32.totalorder %s41, %s57
    %p59 = scmp.eq.s32.totalorder %s19, 0
    %p60 = por %p58, %p59
    %s62 = sadd.s32 %s61, 1
    %p65 = scmp.eq.s32.totalorder %s13, 1
    %p66 = scmp.ne.s32.totalorder %s61, %s63
    %p67 = scmp.eq.s32.totalorder %s13, 0
    %p68 = por %p66, %p67
    %p69 = scmp.ne.s32.totalorder %s61, %s63
    %p70 = scmp.eq.s32.totalorder %s18, 1
    %p71 = por %p69, %p70
    %p72 = scmp.ne.s32.totalorder %s63, %s64
    %p73 = scmp.eq.s32.totalorder %s18, 0
    %p74 = por %p72, %p73
    %p75 = scmp.ne.s32.totalorder %s63, %s64
    %p76 = scmp.eq.s32.totalorder %s19, 1
    %p77 = por %p75, %p76
    %p79 = scmp.ne.s32.totalorder %s64, %s78
    %p80 = scmp.eq.s32.totalorder %s19, 0
    %p81 = por %p79, %p80
    %s83 = sadd.s32 %s82, 1
    %p86 = scmp.eq.s32.totalorder %s13, 1
    %p87 = scmp.ne.s32.totalorder %s82, %s84
    %p88 = scmp.eq.s32.totalorder %s13, 0
    %p89 = por %p87, %p88
    %p90 = scmp.ne.s32.totalorder %s82, %s84
    %p91 = scmp.eq.s32.totalorder %s18, 1
    %p92 = por %p90, %p91
    %p93 = scmp.ne.s32.totalorder %s84, %s85
    %p94 = scmp.eq.s32.totalorder %s18, 0
    %p95 = por %p93, %p94
    %p96 = scmp.ne.s32.totalorder %s84, %s85
    %p97 = scmp.eq.s32.totalorder %s19, 1
    %p98 = por %p96, %p97
    %p100 = scmp.ne.s32.totalorder %s85, %s99
    %p101 = scmp.eq.s32.totalorder %s19, 0
    %p102 = por %p100, %p101
    %s104 = sadd.s32 %s103, 1
    %p107 = scmp.eq.s32.totalorder %s13, 1
    %p108 = scmp.ne.s32.totalorder %s103, %s105
    %p109 = scmp.eq.s32.totalorder %s13, 0
    %p110 = por %p108, %p109
    %p111 = scmp.ne.s32.totalorder %s103, %s105
    %p112 = scmp.eq.s32.totalorder %s18, 1
    %p113 = por %p111, %p112
    %p114 = scmp.ne.s32.totalorder %s105, %s106
    %p115 = scmp.eq.s32.totalorder %s18, 0
    %p116 = por %p114, %p115
    %p117 = scmp.ne.s32.totalorder %s105, %s106
    %p118 = scmp.eq.s32.totalorder %s19, 1
    %p119 = por %p117, %p118
    %p121 = scmp.ne.s32.totalorder %s106, %s120
    %p122 = scmp.eq.s32.totalorder %s19, 0
    %p123 = por %p121, %p122
    %s125 = sadd.s32 %s124, 1
    %p128 = scmp.eq.s32.totalorder %s13, 1
    %p129 = scmp.ne.s32.totalorder %s124, %s126
    %p130 = scmp.eq.s32.totalorder %s13, 0
    %p131 = por %p129, %p130
    %p132 = scmp.ne.s32.totalorder %s124, %s126
    %p133 = scmp.eq.s32.totalorder %s18, 1
    %p134 = por %p132, %p133
    %p135 = scmp.ne.s32.totalorder %s126, %s127
    %p136 = scmp.eq.s32.totalorder %s18, 0
    %p137 = por %p135, %p136
    %p138 = scmp.ne.s32.totalorder %s126, %s127
    %p139 = scmp.eq.s32.totalorder %s19, 1
    %p140 = por %p138, %p139
    %p142 = scmp.ne.s32.totalorder %s127, %s141
    %p143 = scmp.eq.s32.totalorder %s19, 0
    %p144 = por %p142, %p143
    %s146 = sadd.s32 %s145, 1
    %p149 = scmp.eq.s32.totalorder %s13, 1
    %p150 = scmp.ne.s32.totalorder %s145, %s147
    %p151 = scmp.eq.s32.totalorder %s13, 0
    %p152 = por %p150, %p151
    %p153 = scmp.ne.s32.totalorder %s145, %s147
    %p154 = scmp.eq.s32.totalorder %s18, 1
    %p155 = por %p153, %p154
    %p156 = scmp.ne.s32.totalorder %s147, %s148
    %p157 = scmp.eq.s32.totalorder %s18, 0
    %p158 = por %p156, %p157
    %p159 = scmp.ne.s32.totalorder %s147, %s148
    %p160 = scmp.eq.s32.totalorder %s19, 1
    %p161 = por %p159, %p160
    %p163 = scmp.ne.s32.totalorder %s148, %s162
    %p164 = scmp.eq.s32.totalorder %s19, 0
    %p165 = por %p163, %p164
    %s167 = sadd.s32 %s166, 1
    %p170 = scmp.eq.s32.totalorder %s13, 1
    %p171 = scmp.ne.s32.totalorder %s166, %s168
    %p172 = scmp.eq.s32.totalorder %s13, 0
    %p173 = por %p171, %p172
    %p174 = scmp.ne.s32.totalorder %s166, %s168
    %p175 = scmp.eq.s32.totalorder %s18, 1
    %p176 = por %p174, %p175
    %p177 = scmp.ne.s32.totalorder %s168, %s169
    %p178 = scmp.eq.s32.totalorder %s18, 0
    %p179 = por %p177, %p178
    %p180 = scmp.ne.s32.totalorder %s168, %s169
    %p181 = scmp.eq.s32.totalorder %s19, 1
    %p182 = por %p180, %p181
    %p184 = scmp.ne.s32.totalorder %s169, %s183
    %p185 = scmp.eq.s32.totalorder %s19, 0
    %p186 = por %p184, %p185
    %s188 = sadd.s32 %s187, 1
    %p191 = scmp.eq.s32.totalorder %s13, 1
    %p192 = scmp.ne.s32.totalorder %s187, %s189
    %p193 = scmp.eq.s32.totalorder %s13, 0
    %p194 = por %p192, %p193
    %p195 = scmp.ne.s32.totalorder %s187, %s189
    %p196 = scmp.eq.s32.totalorder %s18, 1
    %p197 = por %p195, %p196
    %p198 = scmp.ne.s32.totalorder %s189, %s190
    %p199 = scmp.eq.s32.totalorder %s18, 0
    %p200 = por %p198, %p199
    %p201 = scmp.ne.s32.totalorder %s189, %s190
    %p202 = scmp.eq.s32.totalorder %s19, 1
    %p203 = por %p201, %p202
    %p205 = scmp.ne.s32.totalorder %s190, %s204
    %p206 = scmp.eq.s32.totalorder %s19, 0
    %p207 = por %p205, %p206
    %p208 = scmp.le.s32.totalorder 1, %s13
    %p209 = scmp.lt.s32.totalorder %s13, 3
    %p210 = pnand %p208, %p209
    %p211 = pneg %p210
    // Predicated region
    $region9: #{cnn_lstm_caption_forward.4} parent=5 // pred_check
      _
    $region10: #{cnn_lstm_caption_forward.4} parent=5 // pred_check_branch
      %213 = sbr.rel (%p210) target = $region12
    $region11: #{cnn_lstm_caption_forward.4} parent=5 // pred_region
      %s214 = ssub.s32 %s13, 1
      // Predicated region
      $region13: #{cnn_lstm_caption_forward.4} parent=11 // pred_check
        %p215 = pneg %p74
      $region14: #{cnn_lstm_caption_forward.4} parent=11 // pred_check_branch
        %217 = sbr.rel (%p215) target = $region16
      $region15: #{cnn_lstm_caption_forward.4} parent=11 // pred_region
        _
      $region16: #{cnn_lstm_caption_forward.4} parent=11 // pred_fallthru
        _
      // Predicated region
      $region17: #{cnn_lstm_caption_forward.4} parent=11 // pred_check
        %p218 = pneg %p95
      $region18: #{cnn_lstm_caption_forward.4} parent=11 // pred_check_branch
        %220 = sbr.rel (%p218) target = $region20
      $region19: #{cnn_lstm_caption_forward.4} parent=11 // pred_region
        _
      $region20: #{cnn_lstm_caption_forward.4} parent=11 // pred_fallthru
        _
      // Predicated region
      $region21: #{cnn_lstm_caption_forward.4} parent=11 // pred_check
        %p221 = pneg %p116
      $region22: #{cnn_lstm_caption_forward.4} parent=11 // pred_check_branch
        %223 = sbr.rel (%p221) target = $region24
      $region23: #{cnn_lstm_caption_forward.4} parent=11 // pred_region
        _
      $region24: #{cnn_lstm_caption_forward.4} parent=11 // pred_fallthru
        _
      // Predicated region
      $region25: #{cnn_lstm_caption_forward.4} parent=11 // pred_check
        %p224 = pneg %p137
      $region26: #{cnn_lstm_caption_forward.4} parent=11 // pred_check_branch
        %226 = sbr.rel (%p224) target = $region28
      $region27: #{cnn_lstm_caption_forward.4} parent=11 // pred_region
        _
      $region28: #{cnn_lstm_caption_forward.4} parent=11 // pred_fallthru
        _
      // Predicated region
      $region29: #{cnn_lstm_caption_forward.4} parent=11 // pred_check
        %p227 = pneg %p158
      $region30: #{cnn_lstm_caption_forward.4} parent=11 // pred_check_branch
        %229 = sbr.rel (%p227) target = $region32
      $region31: #{cnn_lstm_caption_forward.4} parent=11 // pred_region
        _
      $region32: #{cnn_lstm_caption_forward.4} parent=11 // pred_fallthru
        _
      // Predicated region
      $region33: #{cnn_lstm_caption_forward.4} parent=11 // pred_check
        %p230 = pneg %p179
      $region34: #{cnn_lstm_caption_forward.4} parent=11 // pred_check_branch
        %232 = sbr.rel (%p230) target = $region36
      $region35: #{cnn_lstm_caption_forward.4} parent=11 // pred_region
        _
      $region36: #{cnn_lstm_caption_forward.4} parent=11 // pred_fallthru
        _
    $region12: #{cnn_lstm_caption_forward.4} parent=5 // pred_fallthru
      _
    %p233 = scmp.lt.s32.totalorder %s13, 2
    // Predicated region
    $region37: #{cnn_lstm_caption_forward.4} parent=5 // pred_check
      %p234 = pneg %p233
    $region38: #{cnn_lstm_caption_forward.4} parent=5 // pred_check_branch
      %236 = sbr.rel (%p234) target = $region40
    $region39: #{cnn_lstm_caption_forward.4} parent=5 // pred_region
      // Predicated region
      $region41: #{cnn_lstm_caption_forward.4} parent=39 // pred_check
        %p237 = pneg %p47
      $region42: #{cnn_lstm_caption_forward.4} parent=39 // pred_check_branch
        %239 = sbr.rel (%p237) target = $region44
      $region43: #{cnn_lstm_caption_forward.4} parent=39 // pred_region
        %s240 = smul.u32 32, %s21
        %p241 = scmp.lt.s32.totalorder %s20, 1
        %s242 = scalar_select %p241, %s20, 1
        %p243 = scmp.lt.s32.totalorder %s240, 31
        %s244 = scalar_select %p243, %s240, 31
        %s245 = smul.addr %s242, 32
        %s246 = sadd.s32 %s244, %s245
        %s247 = smul.addr %s246, 4
        %s248 = scalar_lea.vmem %s0, %s247
        %s249 = smul.u32 32, %s21
      $region44: #{cnn_lstm_caption_forward.4} parent=39 // pred_fallthru
        _
    $region40: #{cnn_lstm_caption_forward.4} parent=5 // pred_fallthru
      _
    %p250 = scmp.le.s32.totalorder 1, %s13
    %p251 = scmp.lt.s32.totalorder %s13, 3
    %p252 = pnand %p250, %p251
    %p253 = pneg %p252
    // Predicated region
    $region45: #{cnn_lstm_caption_forward.4} parent=5 // pred_check
      _
    $region46: #{cnn_lstm_caption_forward.4} parent=5 // pred_check_branch
      %255 = sbr.rel (%p252) target = $region48
    $region47: #{cnn_lstm_caption_forward.4} parent=5 // pred_region
      %s256 = ssub.s32 %s13, 1
      %s257 = smul.u32 32, %s23
      %p258 = scmp.lt.s32.totalorder %s22, 1
      %s259 = scalar_select %p258, %s22, 1
      %p260 = scmp.lt.s32.totalorder %s257, 31
      %s261 = scalar_select %p260, %s257, 31
      %s262 = smul.addr %s259, 32
      %s263 = sadd.s32 %s261, %s262
      %s264 = smul.addr %s263, 4
      %s265 = scalar_lea.vmem %s0, %s264
      %p266 = pneg %p53
      %p267 = pneg %p50
      %p268 = pneg %p74
      %p269 = pneg %p71
      %p270 = pneg %p95
      %p271 = pneg %p92
      %p272 = pneg %p116
      %p273 = pneg %p113
      %p274 = pneg %p137
      %p275 = pneg %p134
      %p276 = pneg %p158
      %p277 = pneg %p155
      %p278 = pneg %p179
      %p279 = pneg %p176
      %p280 = pneg %p200
      %p281 = pneg %p197
      %s282 = smul.u32 32, %s23
      %p283 = scmp.lt.s32.totalorder %s22, 1
      %s284 = scalar_select %p283, %s22, 1
      %p285 = scmp.lt.s32.totalorder %s282, 31
      %s286 = scalar_select %p285, %s282, 31
      %s287 = smul.addr %s284, 32
      %s288 = sadd.s32 %s286, %s287
      %s289 = smul.addr %s288, 4
      %s290 = scalar_lea.vmem %s0, %s289
      %s291 = smul.u32 32, %s23
      %p293 = scmp.eq.s32.totalorder %s22, 0
      %p294 = scmp.eq.s32.totalorder %s23, 0
      %p295 = pnand %p293, %p294
      %p296 = pneg %p295
      // Predicated region
      $region49: #{cnn_lstm_caption_forward.4} parent=47 // pred_check
        _
      $region50: #{cnn_lstm_caption_forward.4} parent=47 // pred_check_branch
        %298 = sbr.rel (%p295) target = $region52
      $region51: #{cnn_lstm_caption_forward.4} parent=47 // pred_region
        %299 = vst [vmem:[#allocation2] sm:$0x3] 0.0
      $region52: #{cnn_lstm_caption_forward.4} parent=47 // pred_fallthru
        _
      %v300 = vld [vmem:[%s290] sm:$0xf]
      %v301 = vld [vmem:[%s290 + $0x4] sm:$0xf]
      %v302 = vld [vmem:[%s290 + $0x8] sm:$0xf]
      %v303 = vld [vmem:[%s290 + $0xc] sm:$0xf]
      %v304 = vld [vmem:[%s290 + $0x10] sm:$0xf]
      %v305 = vld [vmem:[%s290 + $0x14] sm:$0xf]
      %v306 = vld [vmem:[%s290 + $0x18] sm:$0xf]
      %v307 = vld [vmem:[%s290 + $0x1c] sm:$0xf]
      %v308 = vld [vmem:[%s290 + $0x20] sm:$0xf]
      %v309 = vld [vmem:[%s290 + $0x24] sm:$0xf]
      %v310 = vld [vmem:[%s290 + $0x28] sm:$0xf]
      %v311 = vld [vmem:[%s290 + $0x2c] sm:$0xf]
      %v312 = vld [vmem:[%s290 + $0x30] sm:$0xf]
      %v313 = vld [vmem:[%s290 + $0x34] sm:$0xf]
      %v314 = vld [vmem:[%s290 + $0x38] sm:$0xf]
      %v315 = vld [vmem:[%s290 + $0x3c] sm:$0xf]
      %v316 = vld [vmem:[%s290 + $0x40] sm:$0xf]
      %v317 = vld [vmem:[%s290 + $0x44] sm:$0xf]
      %v318 = vld [vmem:[%s290 + $0x48] sm:$0xf]
      %v319 = vld [vmem:[%s290 + $0x4c] sm:$0xf]
      %v320 = vld [vmem:[%s290 + $0x50] sm:$0xf]
      %v321 = vld [vmem:[%s290 + $0x54] sm:$0xf]
      %v322 = vld [vmem:[%s290 + $0x58] sm:$0xf]
      %v323 = vld [vmem:[%s290 + $0x5c] sm:$0xf]
      %v324 = vld [vmem:[%s290 + $0x60] sm:$0xf]
      %v325 = vld [vmem:[%s290 + $0x64] sm:$0xf]
      %v326 = vld [vmem:[%s290 + $0x68] sm:$0xf]
      %v327 = vld [vmem:[%s290 + $0x6c] sm:$0xf]
      %v328 = vld [vmem:[%s290 + $0x70] sm:$0xf]
      %v329 = vld [vmem:[%s290 + $0x74] sm:$0xf]
      %v330 = vld [vmem:[%s290 + $0x78] sm:$0xf]
      %v331 = vld [vmem:[%s290 + $0x7c] sm:$0xf]
      %v332 = vld [vmem:[%s1] sm:$0xf]
      %v333 = vld [vmem:[%s1 + $0x4] sm:$0xf]
      %v334 = vld [vmem:[%s1 + $0x8] sm:$0xf]
      %v335 = vld [vmem:[%s1 + $0xc] sm:$0xf]
      %v336 = vld [vmem:[%s1 + $0x10] sm:$0x3]
      %v337 = vld [vmem:[%s2] sm:$0x1]
      %v339 = vlaneseq
      %v340 = vshrl.u32 %v339, 7
      %v341 = vsub.s32 0, %v340
      %v342 = vrot.slane %v337, %v341
      %v376 = vunpack.c.l.b16 %v300
      %v377 = vunpack.c.l.b16 %v301
      %v378 = vunpack.c.l.b16 %v302
      %v379 = vunpack.c.l.b16 %v303
      %v380 = vunpack.c.l.b16 %v304
      %v381 = vunpack.c.l.b16 %v305
      %v382 = vunpack.c.l.b16 %v306
      %v383 = vunpack.c.l.b16 %v307
      %v384 = vunpack.c.l.b16 %v308
      %v385 = vunpack.c.l.b16 %v309
      %v386 = vunpack.c.l.b16 %v310
      %v387 = vunpack.c.l.b16 %v311
      %v388 = vunpack.c.l.b16 %v312
      %v389 = vunpack.c.l.b16 %v313
      %v390 = vunpack.c.l.b16 %v314
      %v391 = vunpack.c.l.b16 %v315
      %v392 = vunpack.c.l.b16 %v316
      %v393 = vunpack.c.l.b16 %v317
      %v394 = vunpack.c.l.b16 %v318
      %v395 = vunpack.c.l.b16 %v319
      %v396 = vunpack.c.l.b16 %v320
      %v397 = vunpack.c.l.b16 %v321
      %v398 = vunpack.c.l.b16 %v322
      %v399 = vunpack.c.l.b16 %v323
      %v400 = vunpack.c.l.b16 %v324
      %v401 = vunpack.c.l.b16 %v325
      %v402 = vunpack.c.l.b16 %v326
      %v403 = vunpack.c.l.b16 %v327
      %v404 = vunpack.c.l.b16 %v328
      %v405 = vunpack.c.l.b16 %v329
      %v406 = vunpack.c.l.b16 %v330
      %v407 = vunpack.c.l.b16 %v331
      %v408 = vpack.c.b16 %v377, %v376
      %v409 = vpack.c.b16 %v379, %v378
      %v410 = vpack.c.b16 %v381, %v380
      %v411 = vpack.c.b16 %v383, %v382
      %v412 = vpack.c.b16 %v385, %v384
      %v413 = vpack.c.b16 %v387, %v386
      %v414 = vpack.c.b16 %v389, %v388
      %v415 = vpack.c.b16 %v391, %v390
      %v416 = vpack.c.b16 %v393, %v392
      %v417 = vpack.c.b16 %v395, %v394
      %v418 = vpack.c.b16 %v397, %v396
      %v419 = vpack.c.b16 %v399, %v398
      %v420 = vpack.c.b16 %v401, %v400
      %v421 = vpack.c.b16 %v403, %v402
      %v422 = vpack.c.b16 %v405, %v404
      %v423 = vpack.c.b16 %v407, %v406
      %v429 = vunpack.c.l.b16 %v332
      %v430 = vunpack.c.l.b16 %v333
      %v431 = vunpack.c.l.b16 %v334
      %v432 = vunpack.c.l.b16 %v335
      %v433 = vunpack.c.l.b16 %v336
      %v434 = vpack.c.b16 %v430, %v429
      %v435 = vpack.c.b16 %v432, %v431
      %v436 = vpack.c.b16 %v433, %v433
      %vm439 = vcmask 293888
      %v441 = vsel %vm439, %v408, 0
      %v444 = vsel %vm439, %v409, 0
      %v447 = vsel %vm439, %v410, 0
      %v450 = vsel %vm439, %v411, 0
      %v453 = vsel %vm439, %v412, 0
      %v456 = vsel %vm439, %v413, 0
      %v459 = vsel %vm439, %v414, 0
      %v462 = vsel %vm439, %v415, 0
      %v465 = vsel %vm439, %v416, 0
      %v468 = vsel %vm439, %v417, 0
      %v471 = vsel %vm439, %v418, 0
      %v474 = vsel %vm439, %v419, 0
      %v477 = vsel %vm439, %v420, 0
      %v480 = vsel %vm439, %v421, 0
      %v483 = vsel %vm439, %v422, 0
      %v486 = vsel %vm439, %v423, 0
      %vm488 = vcmask 1041408
      %v490 = vsel %vm488, %v436, 0
      %492 = vmatprep.subr.bf16.mxu0 0
      %493 = vmatpush1.bf16.msra.mxu0 0
      %494 = vmatprep.subr.bf16.mxu0 0
      %495 = vmatpush1.bf16.msra.mxu0 0
      %496 = vmatprep.subr.bf16.mxu0 0
      %497 = vmatpush1.bf16.msra.mxu0 0
      %498 = vmatprep.subr.bf16.mxu0 0
      %499 = vmatpush1.bf16.msra.mxu0 0
      %500 = vmatprep.subr.bf16.mxu0 0
      %501 = vmatpush1.bf16.msra.mxu0 0
      %502 = vmatprep.subr.bf16.mxu0 0
      %503 = vmatpush1.bf16.msra.mxu0 %v490
      %504 = vmatprep.subr.bf16.mxu0 0
      %505 = vmatpush1.bf16.msra.mxu0 %v435
      %506 = vmatprep.subr.bf16.mxu0 0
      %507 = vmatpush1.bf16.msra.mxu0 %v434
      %508 = vmatprep.subr.bf16.mxu0 0
      %509 = vmatpush2.bf16.msra.mxu0 0
      %510 = vmatprep.subr.bf16.mxu0 0
      %511 = vmatpush2.bf16.msra.mxu0 0
      %512 = vmatprep.subr.bf16.mxu0 0
      %513 = vmatpush2.bf16.msra.mxu0 0
      %514 = vmatprep.subr.bf16.mxu0 0
      %515 = vmatpush2.bf16.msra.mxu0 0
      %516 = vmatprep.subr.bf16.mxu0 0
      %517 = vmatpush2.bf16.msra.mxu0 0
      %518 = vmatprep.subr.bf16.mxu0 0
      %519 = vmatpush2.bf16.msra.mxu0 0
      %520 = vmatprep.subr.bf16.mxu0 0
      %521 = vmatpush2.bf16.msra.mxu0 0
      %522 = vmatprep.subr.bf16.mxu0 0
      %523 = vmatpush2.bf16.msra.mxu0 0
      %524 = vmatprep.mubr.bf16.mxu0 0
      %525 = vmatmul.mubr.bf16.gmra.mxu0 %v441
      %v526 = vpop.f32.mrf.mxu0
      %v527 = vadd.f32 %v342, %v526
      %v528 = vpop.f32.mrf.mxu0
      %v529 = vpop.f32.mrf.mxu0
      %v530 = vadd.f32 %v342, %v529
      %v531 = vpop.f32.mrf.mxu0
      %532 = vmatprep.mubr.bf16.mxu0 0
      %533 = vmatmul.mubr.bf16.gmra.mxu0 %v444
      %v534 = vpop.f32.mrf.mxu0
      %v535 = vadd.f32 %v342, %v534
      %v536 = vpop.f32.mrf.mxu0
      %v537 = vpop.f32.mrf.mxu0
      %v538 = vadd.f32 %v342, %v537
      %v539 = vpop.f32.mrf.mxu0
      %540 = vmatprep.mubr.bf16.mxu0 0
      %541 = vmatmul.mubr.bf16.gmra.mxu0 %v447
      %v542 = vpop.f32.mrf.mxu0
      %v543 = vadd.f32 %v342, %v542
      %v544 = vpop.f32.mrf.mxu0
      %v545 = vpop.f32.mrf.mxu0
      %v546 = vadd.f32 %v342, %v545
      %v547 = vpop.f32.mrf.mxu0
      %548 = vmatprep.mubr.bf16.mxu0 0
      %549 = vmatmul.mubr.bf16.gmra.mxu0 %v450
      %v550 = vpop.f32.mrf.mxu0
      %v551 = vadd.f32 %v342, %v550
      %v552 = vpop.f32.mrf.mxu0
      %v553 = vpop.f32.mrf.mxu0
      %v554 = vadd.f32 %v342, %v553
      %v555 = vpop.f32.mrf.mxu0
      %556 = vmatprep.mubr.bf16.mxu0 0
      %557 = vmatmul.mubr.bf16.gmra.mxu0 %v453
      %v558 = vpop.f32.mrf.mxu0
      %v559 = vadd.f32 %v342, %v558
      %v560 = vpop.f32.mrf.mxu0
      %v561 = vpop.f32.mrf.mxu0
      %v562 = vadd.f32 %v342, %v561
      %v563 = vpop.f32.mrf.mxu0
      %564 = vmatprep.mubr.bf16.mxu0 0
      %565 = vmatmul.mubr.bf16.gmra.mxu0 %v456
      %v566 = vpop.f32.mrf.mxu0
      %v567 = vadd.f32 %v342, %v566
      %v568 = vpop.f32.mrf.mxu0
      %v569 = vpop.f32.mrf.mxu0
      %v570 = vadd.f32 %v342, %v569
      %v571 = vpop.f32.mrf.mxu0
      %572 = vmatprep.mubr.bf16.mxu0 0
      %573 = vmatmul.mubr.bf16.gmra.mxu0 %v459
      %v574 = vpop.f32.mrf.mxu0
      %v575 = vadd.f32 %v342, %v574
      %v576 = vpop.f32.mrf.mxu0
      %v577 = vpop.f32.mrf.mxu0
      %v578 = vadd.f32 %v342, %v577
      %v579 = vpop.f32.mrf.mxu0
      %580 = vmatprep.mubr.bf16.mxu0 0
      %581 = vmatmul.mubr.bf16.gmra.mxu0 %v462
      %v582 = vpop.f32.mrf.mxu0
      %v583 = vadd.f32 %v342, %v582
      %v584 = vpop.f32.mrf.mxu0
      %v585 = vpop.f32.mrf.mxu0
      %v586 = vadd.f32 %v342, %v585
      %v587 = vpop.f32.mrf.mxu0
      %588 = vmatprep.mubr.bf16.mxu0 0
      %589 = vmatmul.mubr.bf16.gmra.mxu0 %v465
      %v590 = vpop.f32.mrf.mxu0
      %v591 = vadd.f32 %v342, %v590
      %v592 = vpop.f32.mrf.mxu0
      %v593 = vpop.f32.mrf.mxu0
      %v594 = vadd.f32 %v342, %v593
      %v595 = vpop.f32.mrf.mxu0
      %596 = vmatprep.mubr.bf16.mxu0 0
      %597 = vmatmul.mubr.bf16.gmra.mxu0 %v468
      %v598 = vpop.f32.mrf.mxu0
      %v599 = vadd.f32 %v342, %v598
      %v600 = vpop.f32.mrf.mxu0
      %v601 = vpop.f32.mrf.mxu0
      %v602 = vadd.f32 %v342, %v601
      %v603 = vpop.f32.mrf.mxu0
      %604 = vmatprep.mubr.bf16.mxu0 0
      %605 = vmatmul.mubr.bf16.gmra.mxu0 %v471
      %v606 = vpop.f32.mrf.mxu0
      %v607 = vadd.f32 %v342, %v606
      %v608 = vpop.f32.mrf.mxu0
      %v609 = vpop.f32.mrf.mxu0
      %v610 = vadd.f32 %v342, %v609
      %v611 = vpop.f32.mrf.mxu0
      %612 = vmatprep.mubr.bf16.mxu0 0
      %613 = vmatmul.mubr.bf16.gmra.mxu0 %v474
      %v614 = vpop.f32.mrf.mxu0
      %v615 = vadd.f32 %v342, %v614
      %v616 = vpop.f32.mrf.mxu0
      %v617 = vpop.f32.mrf.mxu0
      %v618 = vadd.f32 %v342, %v617
      %v619 = vpop.f32.mrf.mxu0
      %620 = vmatprep.mubr.bf16.mxu0 0
      %621 = vmatmul.mubr.bf16.gmra.mxu0 %v477
      %v622 = vpop.f32.mrf.mxu0
      %v623 = vadd.f32 %v342, %v622
      %v624 = vpop.f32.mrf.mxu0
      %v625 = vpop.f32.mrf.mxu0
      %v626 = vadd.f32 %v342, %v625
      %v627 = vpop.f32.mrf.mxu0
      %628 = vmatprep.mubr.bf16.mxu0 0
      %629 = vmatmul.mubr.bf16.gmra.mxu0 %v480
      %v630 = vpop.f32.mrf.mxu0
      %v631 = vadd.f32 %v342, %v630
      %v632 = vpop.f32.mrf.mxu0
      %v633 = vpop.f32.mrf.mxu0
      %v634 = vadd.f32 %v342, %v633
      %v635 = vpop.f32.mrf.mxu0
      %636 = vmatprep.mubr.bf16.mxu0 0
      %637 = vmatmul.mubr.bf16.gmra.mxu0 %v483
      %v638 = vpop.f32.mrf.mxu0
      %v639 = vadd.f32 %v342, %v638
      %v640 = vpop.f32.mrf.mxu0
      %v641 = vpop.f32.mrf.mxu0
      %v642 = vadd.f32 %v342, %v641
      %v643 = vpop.f32.mrf.mxu0
      %644 = vmatprep.mubr.bf16.mxu0 0
      %645 = vmatmul.mubr.bf16.gmra.mxu0 %v486
      %v646 = vpop.f32.mrf.mxu0
      %v647 = vadd.f32 %v342, %v646
      %v648 = vpop.f32.mrf.mxu0
      %v649 = vpop.f32.mrf.mxu0
      %v650 = vadd.f32 %v342, %v649
      %v651 = vpop.f32.mrf.mxu0
      %652 = vdwg.mxu0
      %v653 = vmax.f32 %v527, 0.0
      %v654 = vmax.f32 %v530, 0.0
      %v655 = vmax.f32 %v535, 0.0
      %v656 = vmax.f32 %v538, 0.0
      %v657 = vmax.f32 %v543, 0.0
      %v658 = vmax.f32 %v546, 0.0
      %v659 = vmax.f32 %v551, 0.0
      %v660 = vmax.f32 %v554, 0.0
      %v661 = vmax.f32 %v559, 0.0
      %v662 = vmax.f32 %v562, 0.0
      %v663 = vmax.f32 %v567, 0.0
      %v664 = vmax.f32 %v570, 0.0
      %v665 = vmax.f32 %v575, 0.0
      %v666 = vmax.f32 %v578, 0.0
      %v667 = vmax.f32 %v583, 0.0
      %v668 = vmax.f32 %v586, 0.0
      %v669 = vmax.f32 %v591, 0.0
      %v670 = vmax.f32 %v594, 0.0
      %v671 = vmax.f32 %v599, 0.0
      %v672 = vmax.f32 %v602, 0.0
      %v673 = vmax.f32 %v607, 0.0
      %v674 = vmax.f32 %v610, 0.0
      %v675 = vmax.f32 %v615, 0.0
      %v676 = vmax.f32 %v618, 0.0
      %v677 = vmax.f32 %v623, 0.0
      %v678 = vmax.f32 %v626, 0.0
      %v679 = vmax.f32 %v631, 0.0
      %v680 = vmax.f32 %v634, 0.0
      %v681 = vmax.f32 %v639, 0.0
      %v682 = vmax.f32 %v642, 0.0
      %v683 = vmax.f32 %v647, 0.0
      %v684 = vmax.f32 %v650, 0.0
      %v685 = vadd.f32 %v653, %v654
      %v686 = vadd.f32 %v685, %v655
      %v687 = vadd.f32 %v686, %v656
      %v688 = vadd.f32 %v687, %v657
      %v689 = vadd.f32 %v688, %v658
      %v690 = vadd.f32 %v689, %v659
      %v691 = vadd.f32 %v690, %v660
      %v692 = vadd.f32 %v691, %v661
      %v693 = vadd.f32 %v692, %v662
      %v694 = vadd.f32 %v693, %v663
      %v695 = vadd.f32 %v694, %v664
      %v696 = vadd.f32 %v695, %v665
      %v697 = vadd.f32 %v696, %v666
      %v698 = vadd.f32 %v697, %v667
      %v699 = vadd.f32 %v698, %v668
      %v700 = vadd.f32 %v699, %v669
      %v701 = vadd.f32 %v700, %v670
      %v702 = vadd.f32 %v701, %v671
      %v703 = vadd.f32 %v702, %v672
      %v704 = vadd.f32 %v703, %v673
      %v705 = vadd.f32 %v704, %v674
      %v706 = vadd.f32 %v705, %v675
      %v707 = vadd.f32 %v706, %v676
      %v708 = vadd.f32 %v707, %v677
      %v709 = vadd.f32 %v708, %v678
      %v710 = vadd.f32 %v709, %v679
      %v711 = vadd.f32 %v710, %v680
      %v712 = vadd.f32 %v711, %v681
      %v713 = vadd.f32 %v712, %v682
      %v714 = vadd.f32 %v713, %v683
      %v715 = vadd.f32 %v714, %v684
      %v716 = vrot.slane %v715, 4
      %v717 = vadd.f32 %v715, %v716
      %v718 = vrot.slane %v717, 2
      %v719 = vadd.f32 %v717, %v718
      %v720 = vrot.slane %v719, 1
      %v721 = vadd.f32 %v719, %v720
      %v722 = vlaneseq
      %v723 = vshrl.u32 %v722, 7
      %v724 = vld [vmem:[#allocation2] sm:$0x3]
      %v725 = vstv %s22
      %vm726 = vcmp.eq.s32.totalorder %v723, %v725
      %v727 = vsel %vm726, %v721, 0.0
      %v728 = vadd.f32 %v724, %v727
      %729 = vst [vmem:[#allocation2] sm:$0x3] %v728
      %p730 = scmp.eq.s32.totalorder %s22, 1
      %p731 = pnand %p730, %p294
      %p732 = pneg %p731
      // Predicated region
      $region53: #{cnn_lstm_caption_forward.4} parent=47 // pred_check
        _
      $region54: #{cnn_lstm_caption_forward.4} parent=47 // pred_check_branch
        %734 = sbr.rel (%p731) target = $region56
      $region55: #{cnn_lstm_caption_forward.4} parent=47 // pred_region
        %v735 = vld [vmem:[#allocation2] sm:$0x3]
        %v736 = vmul.f32 %v735, 0.00390625
        %v737 = vpack.c.bf16 %v736, %v736
        %v738 = vld [vmem:[%s3] sm:$0xf]
        %v739 = vld [vmem:[%s3 + $0x4] sm:$0xf]
        %v740 = vld [vmem:[%s3 + $0x8] sm:$0xf]
        %v741 = vld [vmem:[%s3 + $0xc] sm:$0xf]
        %v742 = vld [vmem:[%s3 + $0x10] sm:$0xf]
        %v743 = vld [vmem:[%s3 + $0x14] sm:$0xf]
        %v744 = vld [vmem:[%s3 + $0x18] sm:$0xf]
        %v745 = vld [vmem:[%s3 + $0x1c] sm:$0xf]
        %v746 = vld [vmem:[%s3 + $0x20] sm:$0xf]
        %v747 = vld [vmem:[%s3 + $0x24] sm:$0xf]
        %v748 = vld [vmem:[%s3 + $0x28] sm:$0xf]
        %v749 = vld [vmem:[%s3 + $0x2c] sm:$0xf]
        %v750 = vld [vmem:[%s3 + $0x30] sm:$0xf]
        %v751 = vld [vmem:[%s3 + $0x34] sm:$0xf]
        %v752 = vld [vmem:[%s3 + $0x38] sm:$0xf]
        %v753 = vld [vmem:[%s3 + $0x3c] sm:$0xf]
        %v754 = vld [vmem:[%s4] sm:$0x1]
        %v756 = vlaneseq
        %v757 = vshrl.u32 %v756, 7
        %v758 = vsub.s32 0, %v757
        %v759 = vrot.slane %v754, %v758
        %v777 = vunpack.c.l.b16 %v738
        %v778 = vunpack.c.l.b16 %v739
        %v779 = vunpack.c.l.b16 %v740
        %v780 = vunpack.c.l.b16 %v741
        %v781 = vunpack.c.l.b16 %v742
        %v782 = vunpack.c.l.b16 %v743
        %v783 = vunpack.c.l.b16 %v744
        %v784 = vunpack.c.l.b16 %v745
        %v785 = vunpack.c.l.b16 %v746
        %v786 = vunpack.c.l.b16 %v747
        %v787 = vunpack.c.l.b16 %v748
        %v788 = vunpack.c.l.b16 %v749
        %v789 = vunpack.c.l.b16 %v750
        %v790 = vunpack.c.l.b16 %v751
        %v791 = vunpack.c.l.b16 %v752
        %v792 = vunpack.c.l.b16 %v753
        %v793 = vpack.c.b16 %v778, %v777
        %v794 = vpack.c.b16 %v780, %v779
        %v795 = vpack.c.b16 %v782, %v781
        %v796 = vpack.c.b16 %v784, %v783
        %v797 = vpack.c.b16 %v786, %v785
        %v798 = vpack.c.b16 %v788, %v787
        %v799 = vpack.c.b16 %v790, %v789
        %v800 = vpack.c.b16 %v792, %v791
        %809 = vmatprep.subr.bf16.mxu0 0
        %810 = vmatpush1.bf16.msra.mxu0 %v800
        %811 = vmatprep.subr.bf16.mxu0 0
        %812 = vmatpush1.bf16.msra.mxu0 %v799
        %813 = vmatprep.subr.bf16.mxu0 0
        %814 = vmatpush1.bf16.msra.mxu0 %v798
        %815 = vmatprep.subr.bf16.mxu0 0
        %816 = vmatpush1.bf16.msra.mxu0 %v797
        %817 = vmatprep.subr.bf16.mxu0 0
        %818 = vmatpush1.bf16.msra.mxu0 %v796
        %819 = vmatprep.subr.bf16.mxu0 0
        %820 = vmatpush1.bf16.msra.mxu0 %v795
        %821 = vmatprep.subr.bf16.mxu0 0
        %822 = vmatpush1.bf16.msra.mxu0 %v794
        %823 = vmatprep.subr.bf16.mxu0 0
        %824 = vmatpush1.bf16.msra.mxu0 %v793
        %825 = vmatprep.subr.bf16.mxu0 0
        %826 = vmatpush2.bf16.msra.mxu0 0
        %827 = vmatprep.subr.bf16.mxu0 0
        %828 = vmatpush2.bf16.msra.mxu0 0
        %829 = vmatprep.subr.bf16.mxu0 0
        %830 = vmatpush2.bf16.msra.mxu0 0
        %831 = vmatprep.subr.bf16.mxu0 0
        %832 = vmatpush2.bf16.msra.mxu0 0
        %833 = vmatprep.subr.bf16.mxu0 0
        %834 = vmatpush2.bf16.msra.mxu0 0
        %835 = vmatprep.subr.bf16.mxu0 0
        %836 = vmatpush2.bf16.msra.mxu0 0
        %837 = vmatprep.subr.bf16.mxu0 0
        %838 = vmatpush2.bf16.msra.mxu0 0
        %839 = vmatprep.subr.bf16.mxu0 0
        %840 = vmatpush2.bf16.msra.mxu0 0
        %841 = vmatprep.mubr.bf16.mxu0 0
        %842 = vmatmul.mubr.bf16.gmra.mxu0 %v737
        %v843 = vpop.f32.mrf.mxu0
        %v844 = vadd.f32 %v759, %v843
        %v845 = vpop.f32.mrf.mxu0
        %v846 = vpop.f32.mrf.mxu0
        %v847 = vpop.f32.mrf.mxu0
        %848 = vdwg.mxu0
        %v849 = vsel %vm488, %v844, 0.0
        %v850 = vrot.slane %v849, 4
        %v851 = vadd.f32 %v849, %v850
        %v852 = vrot.slane %v851, 2
        %v853 = vadd.f32 %v851, %v852
        %v854 = vrot.slane %v853, 1
        %v855 = vadd.f32 %v853, %v854
        %v856 = vrcp.pop 2.0
        %v857 = vmul.f32 %v855, %v856
        %v858 = vsub.f32 %v844, %v857
        %v859 = vmul.f32 %v858, %v858
        %v860 = vsel %vm488, %v859, 0.0
        %v861 = vrot.slane %v860, 4
        %v862 = vadd.f32 %v860, %v861
        %v863 = vrot.slane %v862, 2
        %v864 = vadd.f32 %v862, %v863
        %v865 = vrot.slane %v864, 1
        %v866 = vadd.f32 %v864, %v865
        %v867 = vmul.f32 %v866, %v856
        %v868 = vadd.f32 %v867, 1e-05
        %v869 = vrsqrt.pop %v868
        %v870 = vmul.f32 %v858, %v869
        %v871 = vld [vmem:[%s5] sm:$0x1]
        %v873 = vlaneseq
        %v874 = vshrl.u32 %v873, 7
        %v875 = vsub.s32 0, %v874
        %v876 = vrot.slane %v871, %v875
        %v878 = vmul.f32 %v870, %v876
        %v879 = vld [vmem:[%s6] sm:$0x1]
        %v881 = vlaneseq
        %v882 = vshrl.u32 %v881, 7
        %v883 = vsub.s32 0, %v882
        %v884 = vrot.slane %v879, %v883
        %v886 = vadd.f32 %v878, %v884
        %v887 = vmax.f32 %v886, 0.0
        %888 = vst [vmem:[%s7] sm:$0x3] %v887
      $region56: #{cnn_lstm_caption_forward.4} parent=47 // pred_fallthru
        _
      // Predicated region
      $region57: #{cnn_lstm_caption_forward.4} parent=47 // pred_check
        %p889 = pneg %p197
      $region58: #{cnn_lstm_caption_forward.4} parent=47 // pred_check_branch
        %891 = sbr.rel (%p889) target = $region60
      $region59: #{cnn_lstm_caption_forward.4} parent=47 // pred_region
        _
      $region60: #{cnn_lstm_caption_forward.4} parent=47 // pred_fallthru
        _
      // Predicated region
      $region61: #{cnn_lstm_caption_forward.4} parent=47 // pred_check
        %p892 = pneg %p197
      $region62: #{cnn_lstm_caption_forward.4} parent=47 // pred_check_branch
        %894 = sbr.rel (%p892) target = $region64
      $region63: #{cnn_lstm_caption_forward.4} parent=47 // pred_region
        _
      $region64: #{cnn_lstm_caption_forward.4} parent=47 // pred_fallthru
        _
    $region48: #{cnn_lstm_caption_forward.4} parent=5 // pred_fallthru
      _
    %p895 = scmp.le.s32.totalorder 2, %s13
    // Predicated region
    $region65: #{cnn_lstm_caption_forward.4} parent=5 // pred_check
      %p896 = pneg %p895
    $region66: #{cnn_lstm_caption_forward.4} parent=5 // pred_check_branch
      %898 = sbr.rel (%p896) target = $region68
    $region67: #{cnn_lstm_caption_forward.4} parent=5 // pred_region
      %s899 = ssub.s32 %s13, 2
    $region68: #{cnn_lstm_caption_forward.4} parent=5 // pred_fallthru
      _
  $region6: #{cnn_lstm_caption_forward.4} parent=0 // loop_footer
    %s17 = sadd.s32 1, %s13
  $region7: #{cnn_lstm_caption_forward.4} parent=0 // loop_footer_branch
    %12 = sbr.rel target = $region3
  $region8: #{cnn_lstm_caption_forward.4} parent=0 // loop_exit
    _

// kernel: cnn_lstm_caption_forward.7
$region0: #{cnn_lstm_caption_forward.7}
  #allocation0 [shape = 'u32[]', space=smem, size = 0x4, offset = 0x4, fixed_abs, tag = 'smem constant byte address 0x4 - core index']
  #allocation1 [shape = 'u32[144,128]{1,0:T(1,128)}', space=vmem, size = 0x12000, scoped, tag = 'internal scratch']
  %s0 = inlined_call_operand.vmem [shape: bf16[16,128], index: 0, kind: input, shape index: {}]
  %s1 = inlined_call_operand.vmem [shape: bf16[128,128], index: 1, kind: input, shape index: {}]
  %s2 = inlined_call_operand.vmem [shape: f32[1,128], index: 2, kind: input, shape index: {}]
  %s3 = inlined_call_operand.vmem [shape: f32[16,128], index: 3, kind: output, shape index: {}]
  %s4 = sld [smem:[#allocation0]]
  $region22: #{cnn_lstm_caption_forward.7} parent=0
    _
  %s6 = ssub.s32 1, %s4
  %s7 = scalar_select 0, %s6, %s4
  // Predicated region
  $region2: #{cnn_lstm_caption_forward.7} parent=0 // pred_check
    _
  $region3: #{cnn_lstm_caption_forward.7} parent=0 // pred_check_branch
    %9 = sbr.rel (0) target = $region5
  $region4: #{cnn_lstm_caption_forward.7} parent=0 // pred_region
    _
  $region5: #{cnn_lstm_caption_forward.7} parent=0 // pred_fallthru
    _
  // Predicated region
  $region6: #{cnn_lstm_caption_forward.7} parent=0 // pred_check
    _
  $region7: #{cnn_lstm_caption_forward.7} parent=0 // pred_check_branch
    %11 = sbr.rel (0) target = $region9
  $region8: #{cnn_lstm_caption_forward.7} parent=0 // pred_region
    _
  $region9: #{cnn_lstm_caption_forward.7} parent=0 // pred_fallthru
    _
  // Predicated region
  $region10: #{cnn_lstm_caption_forward.7} parent=0 // pred_check
    _
  $region11: #{cnn_lstm_caption_forward.7} parent=0 // pred_check_branch
    %13 = sbr.rel (0) target = $region13
  $region12: #{cnn_lstm_caption_forward.7} parent=0 // pred_region
    _
  $region13: #{cnn_lstm_caption_forward.7} parent=0 // pred_fallthru
    _
  %v15 = vld [vmem:[%s0] sm:$0xf]
  %v16 = vld [vmem:[%s0 + $0x4] sm:$0xf]
  %v17 = vld [vmem:[%s1] sm:$0xf]
  %v18 = vld [vmem:[%s1 + $0x4] sm:$0xf]
  %v19 = vld [vmem:[%s1 + $0x8] sm:$0xf]
  %v20 = vld [vmem:[%s1 + $0xc] sm:$0xf]
  %v21 = vld [vmem:[%s1 + $0x10] sm:$0xf]
  %v22 = vld [vmem:[%s1 + $0x14] sm:$0xf]
  %v23 = vld [vmem:[%s1 + $0x18] sm:$0xf]
  %v24 = vld [vmem:[%s1 + $0x1c] sm:$0xf]
  %v25 = vld [vmem:[%s1 + $0x20] sm:$0xf]
  %v26 = vld [vmem:[%s1 + $0x24] sm:$0xf]
  %v27 = vld [vmem:[%s1 + $0x28] sm:$0xf]
  %v28 = vld [vmem:[%s1 + $0x2c] sm:$0xf]
  %v29 = vld [vmem:[%s1 + $0x30] sm:$0xf]
  %v30 = vld [vmem:[%s1 + $0x34] sm:$0xf]
  %v31 = vld [vmem:[%s1 + $0x38] sm:$0xf]
  %v32 = vld [vmem:[%s1 + $0x3c] sm:$0xf]
  %v33 = vld [vmem:[%s2] sm:$0x1]
  %v35 = vlaneseq
  %v36 = vshrl.u32 %v35, 7
  %v37 = vsub.s32 0, %v36
  %v38 = vrot.slane %v33, %v37
  %v42 = vunpack.c.l.b16 %v15
  %v43 = vunpack.c.l.b16 %v16
  %v44 = vpack.c.b16 %v43, %v42
  %v62 = vunpack.c.l.b16 %v17
  %v63 = vunpack.c.l.b16 %v18
  %v64 = vunpack.c.l.b16 %v19
  %v65 = vunpack.c.l.b16 %v20
  %v66 = vunpack.c.l.b16 %v21
  %v67 = vunpack.c.l.b16 %v22
  %v68 = vunpack.c.l.b16 %v23
  %v69 = vunpack.c.l.b16 %v24
  %v70 = vunpack.c.l.b16 %v25
  %v71 = vunpack.c.l.b16 %v26
  %v72 = vunpack.c.l.b16 %v27
  %v73 = vunpack.c.l.b16 %v28
  %v74 = vunpack.c.l.b16 %v29
  %v75 = vunpack.c.l.b16 %v30
  %v76 = vunpack.c.l.b16 %v31
  %v77 = vunpack.c.l.b16 %v32
  %v78 = vpack.c.b16 %v63, %v62
  %v79 = vpack.c.b16 %v65, %v64
  %v80 = vpack.c.b16 %v67, %v66
  %v81 = vpack.c.b16 %v69, %v68
  %v82 = vpack.c.b16 %v71, %v70
  %v83 = vpack.c.b16 %v73, %v72
  %v84 = vpack.c.b16 %v75, %v74
  %v85 = vpack.c.b16 %v77, %v76
  %94 = vmatprep.subr.bf16.mxu0 0
  %95 = vmatpush1.bf16.msra.mxu0 %v85
  %96 = vmatprep.subr.bf16.mxu0 0
  %97 = vmatpush1.bf16.msra.mxu0 %v84
  %98 = vmatprep.subr.bf16.mxu0 0
  %99 = vmatpush1.bf16.msra.mxu0 %v83
  %100 = vmatprep.subr.bf16.mxu0 0
  %101 = vmatpush1.bf16.msra.mxu0 %v82
  %102 = vmatprep.subr.bf16.mxu0 0
  %103 = vmatpush1.bf16.msra.mxu0 %v81
  %104 = vmatprep.subr.bf16.mxu0 0
  %105 = vmatpush1.bf16.msra.mxu0 %v80
  %106 = vmatprep.subr.bf16.mxu0 0
  %107 = vmatpush1.bf16.msra.mxu0 %v79
  %108 = vmatprep.subr.bf16.mxu0 0
  %109 = vmatpush1.bf16.msra.mxu0 %v78
  %110 = vmatprep.subr.bf16.mxu0 0
  %111 = vmatpush2.bf16.msra.mxu0 0
  %112 = vmatprep.subr.bf16.mxu0 0
  %113 = vmatpush2.bf16.msra.mxu0 0
  %114 = vmatprep.subr.bf16.mxu0 0
  %115 = vmatpush2.bf16.msra.mxu0 0
  %116 = vmatprep.subr.bf16.mxu0 0
  %117 = vmatpush2.bf16.msra.mxu0 0
  %118 = vmatprep.subr.bf16.mxu0 0
  %119 = vmatpush2.bf16.msra.mxu0 0
  %120 = vmatprep.subr.bf16.mxu0 0
  %121 = vmatpush2.bf16.msra.mxu0 0
  %122 = vmatprep.subr.bf16.mxu0 0
  %123 = vmatpush2.bf16.msra.mxu0 0
  %124 = vmatprep.subr.bf16.mxu0 0
  %125 = vmatpush2.bf16.msra.mxu0 0
  %126 = vmatprep.mubr.bf16.mxu0 0
  %127 = vmatmul.mubr.bf16.gmra.mxu0 %v44
  %v128 = vpop.f32.mrf.mxu0
  %v129 = vadd.f32 %v38, %v128
  %v130 = vpop.f32.mrf.mxu0
  %v131 = vpop.f32.mrf.mxu0
  %v132 = vadd.f32 %v38, %v131
  %v133 = vpop.f32.mrf.mxu0
  %134 = vdwg.mxu0
  %135 = vst [vmem:[%s3] sm:$0xff] %v129
  %136 = vst [vmem:[%s3 + $0x8] sm:$0xff] %v132
  // Predicated region
  $region14: #{cnn_lstm_caption_forward.7} parent=0 // pred_check
    _
  $region15: #{cnn_lstm_caption_forward.7} parent=0 // pred_check_branch
    %138 = sbr.rel (0) target = $region17
  $region16: #{cnn_lstm_caption_forward.7} parent=0 // pred_region
    _
  $region17: #{cnn_lstm_caption_forward.7} parent=0 // pred_fallthru
    _
  // Predicated region
  $region18: #{cnn_lstm_caption_forward.7} parent=0 // pred_check
    _
  $region19: #{cnn_lstm_caption_forward.7} parent=0 // pred_check_branch
    %140 = sbr.rel (0) target = $region21
  $region20: #{cnn_lstm_caption_forward.7} parent=0 // pred_region
    _
  $region21: #{cnn_lstm_caption_forward.7} parent=0 // pred_fallthru
    _

// kernel: cnn_lstm_caption_forward.6
$region0: #{cnn_lstm_caption_forward.6}
  #allocation0 [shape = 'u32[]', space=smem, size = 0x4, offset = 0x4, fixed_abs, tag = 'smem constant byte address 0x4 - core index']
  #allocation1 [shape = 'u32[144,128]{1,0:T(1,128)}', space=vmem, size = 0x12000, scoped, tag = 'internal scratch']
  #allocation2 [shape = 'f32[2,128]{1,0:T(2,128)}', space=vmem, size = 0x400, scoped, tag = 'scratch operand']
  #allocation3 [shape = 'f32[2,128]{1,0:T(2,128)}', space=vmem, size = 0x400, scoped, tag = 'scratch operand']
  #allocation4 [shape = 'f32[2,128]{1,0:T(2,128)}', space=vmem, size = 0x400, scoped, tag = 'scratch operand']
  #allocation5 [shape = 'f32[2,128]{1,0:T(2,128)}', space=vmem, size = 0x400, scoped, tag = 'scratch operand']
  #allocation6 [shape = 'f32[2,512]{1,0:T(2,128)}', space=vmem, size = 0x1000, scoped, tag = 'scratch operand']
  %s0 = inlined_call_operand.vmem [shape: f32[8,2,512], index: 0, kind: input, shape index: {}]
  %s1 = inlined_call_operand.vmem [shape: f32[2,128], index: 1, kind: input, shape index: {}]
  %s2 = inlined_call_operand.vmem [shape: bf16[128,512], index: 2, kind: input, shape index: {}]
  %s3 = inlined_call_operand.vmem [shape: bf16[128,512], index: 3, kind: input, shape index: {}]
  %s4 = inlined_call_operand.vmem [shape: bf16[128,512], index: 4, kind: input, shape index: {}]
  %s5 = inlined_call_operand.vmem [shape: bf16[128,512], index: 5, kind: input, shape index: {}]
  %s6 = inlined_call_operand.vmem [shape: f32[1,512], index: 6, kind: input, shape index: {}]
  %s7 = inlined_call_operand.vmem [shape: f32[8,2,128], index: 7, kind: output, shape index: {}]
  %s8 = sld [smem:[#allocation0]]
  $region46: #{cnn_lstm_caption_forward.6} parent=0
    _
  %s10 = ssub.s32 1, %s8
  %s11 = scalar_select 0, %s10, %s8
  // Predicated region
  $region2: #{cnn_lstm_caption_forward.6} parent=0 // pred_check
    _
  $region3: #{cnn_lstm_caption_forward.6} parent=0 // pred_check_branch
    %13 = sbr.rel (0) target = $region5
  $region4: #{cnn_lstm_caption_forward.6} parent=0 // pred_region
    _
  $region5: #{cnn_lstm_caption_forward.6} parent=0 // pred_fallthru
    _
  // Predicated region
  $region6: #{cnn_lstm_caption_forward.6} parent=0 // pred_check
    _
  $region7: #{cnn_lstm_caption_forward.6} parent=0 // pred_check_branch
    %15 = sbr.rel (0) target = $region9
  $region8: #{cnn_lstm_caption_forward.6} parent=0 // pred_region
    _
  $region9: #{cnn_lstm_caption_forward.6} parent=0 // pred_fallthru
    _
  // Predicated region
  $region10: #{cnn_lstm_caption_forward.6} parent=0 // pred_check
    _
  $region11: #{cnn_lstm_caption_forward.6} parent=0 // pred_check_branch
    %17 = sbr.rel (0) target = $region13
  $region12: #{cnn_lstm_caption_forward.6} parent=0 // pred_region
    _
  $region13: #{cnn_lstm_caption_forward.6} parent=0 // pred_fallthru
    _
  // Predicated region
  $region14: #{cnn_lstm_caption_forward.6} parent=0 // pred_check
    _
  $region15: #{cnn_lstm_caption_forward.6} parent=0 // pred_check_branch
    %19 = sbr.rel (0) target = $region17
  $region16: #{cnn_lstm_caption_forward.6} parent=0 // pred_region
    _
  $region17: #{cnn_lstm_caption_forward.6} parent=0 // pred_fallthru
    _
  // Predicated region
  $region18: #{cnn_lstm_caption_forward.6} parent=0 // pred_check
    _
  $region19: #{cnn_lstm_caption_forward.6} parent=0 // pred_check_branch
    %21 = sbr.rel (0) target = $region21
  $region20: #{cnn_lstm_caption_forward.6} parent=0 // pred_region
    _
  $region21: #{cnn_lstm_caption_forward.6} parent=0 // pred_fallthru
    _
  // Predicated region
  $region22: #{cnn_lstm_caption_forward.6} parent=0 // pred_check
    _
  $region23: #{cnn_lstm_caption_forward.6} parent=0 // pred_check_branch
    %23 = sbr.rel (0) target = $region25
  $region24: #{cnn_lstm_caption_forward.6} parent=0 // pred_region
    _
  $region25: #{cnn_lstm_caption_forward.6} parent=0 // pred_fallthru
    _
  // Predicated region
  $region26: #{cnn_lstm_caption_forward.6} parent=0 // pred_check
    _
  $region27: #{cnn_lstm_caption_forward.6} parent=0 // pred_check_branch
    %25 = sbr.rel (0) target = $region29
  $region28: #{cnn_lstm_caption_forward.6} parent=0 // pred_region
    _
  $region29: #{cnn_lstm_caption_forward.6} parent=0 // pred_fallthru
    _
  %p27 = scmp.eq.s32.totalorder 0, 0
  // Predicated region
  $region30: #{cnn_lstm_caption_forward.6} parent=0 // pred_check
    %p28 = pneg %p27
  $region31: #{cnn_lstm_caption_forward.6} parent=0 // pred_check_branch
    %30 = sbr.rel (%p28) target = $region33
  $region32: #{cnn_lstm_caption_forward.6} parent=0 // pred_region
    %31 = vst [vmem:[#allocation2] sm:$0x3] 0.0
    %32 = vst [vmem:[#allocation3] sm:$0x3] 0.0
    %v33 = vld [vmem:[%s1] sm:$0x3]
    %34 = vst [vmem:[#allocation4] sm:$0x3] %v33
    %v35 = vld [vmem:[%s1] sm:$0x3]
    %36 = vst [vmem:[#allocation5] sm:$0x3] %v35
    %v37 = vld [vmem:[%s1] sm:$0x3]
    %v38 = vpack.c.bf16 %v37, %v37
    %v39 = vld [vmem:[%s2] sm:$0xff]
    %v40 = vld [vmem:[%s2 + $0x8] sm:$0xff]
    %v41 = vld [vmem:[%s2 + $0x10] sm:$0xff]
    %v42 = vld [vmem:[%s2 + $0x18] sm:$0xff]
    %v43 = vld [vmem:[%s2 + $0x20] sm:$0xff]
    %v44 = vld [vmem:[%s2 + $0x28] sm:$0xff]
    %v45 = vld [vmem:[%s2 + $0x30] sm:$0xff]
    %v46 = vld [vmem:[%s2 + $0x38] sm:$0xff]
    %v47 = vld [vmem:[%s2 + $0x40] sm:$0xff]
    %v48 = vld [vmem:[%s2 + $0x48] sm:$0xff]
    %v49 = vld [vmem:[%s2 + $0x50] sm:$0xff]
    %v50 = vld [vmem:[%s2 + $0x58] sm:$0xff]
    %v51 = vld [vmem:[%s2 + $0x60] sm:$0xff]
    %v52 = vld [vmem:[%s2 + $0x68] sm:$0xff]
    %v53 = vld [vmem:[%s2 + $0x70] sm:$0xff]
    %v54 = vld [vmem:[%s2 + $0x78] sm:$0xff]
    %v55 = vld [vmem:[%s2 + $0x80] sm:$0xff]
    %v56 = vld [vmem:[%s2 + $0x88] sm:$0xff]
    %v57 = vld [vmem:[%s2 + $0x90] sm:$0xff]
    %v58 = vld [vmem:[%s2 + $0x98] sm:$0xff]
    %v59 = vld [vmem:[%s2 + $0xa0] sm:$0xff]
    %v60 = vld [vmem:[%s2 + $0xa8] sm:$0xff]
    %v61 = vld [vmem:[%s2 + $0xb0] sm:$0xff]
    %v62 = vld [vmem:[%s2 + $0xb8] sm:$0xff]
    %v63 = vld [vmem:[%s2 + $0xc0] sm:$0xff]
    %v64 = vld [vmem:[%s2 + $0xc8] sm:$0xff]
    %v65 = vld [vmem:[%s2 + $0xd0] sm:$0xff]
    %v66 = vld [vmem:[%s2 + $0xd8] sm:$0xff]
    %v67 = vld [vmem:[%s2 + $0xe0] sm:$0xff]
    %v68 = vld [vmem:[%s2 + $0xe8] sm:$0xff]
    %v69 = vld [vmem:[%s2 + $0xf0] sm:$0xff]
    %v70 = vld [vmem:[%s2 + $0xf8] sm:$0xff]
    %v103 = vunpack.c.l.b16 %v39
    %v104 = vunpack.c.h.b16 %v39
    %v105 = vunpack.c.l.b16 %v40
    %v106 = vunpack.c.h.b16 %v40
    %v107 = vunpack.c.l.b16 %v41
    %v108 = vunpack.c.h.b16 %v41
    %v109 = vunpack.c.l.b16 %v42
    %v110 = vunpack.c.h.b16 %v42
    %v111 = vunpack.c.l.b16 %v43
    %v112 = vunpack.c.h.b16 %v43
    %v113 = vunpack.c.l.b16 %v44
    %v114 = vunpack.c.h.b16 %v44
    %v115 = vunpack.c.l.b16 %v45
    %v116 = vunpack.c.h.b16 %v45
    %v117 = vunpack.c.l.b16 %v46
    %v118 = vunpack.c.h.b16 %v46
    %v119 = vunpack.c.l.b16 %v47
    %v120 = vunpack.c.h.b16 %v47
    %v121 = vunpack.c.l.b16 %v48
    %v122 = vunpack.c.h.b16 %v48
    %v123 = vunpack.c.l.b16 %v49
    %v124 = vunpack.c.h.b16 %v49
    %v125 = vunpack.c.l.b16 %v50
    %v126 = vunpack.c.h.b16 %v50
    %v127 = vunpack.c.l.b16 %v51
    %v128 = vunpack.c.h.b16 %v51
    %v129 = vunpack.c.l.b16 %v52
    %v130 = vunpack.c.h.b16 %v52
    %v131 = vunpack.c.l.b16 %v53
    %v132 = vunpack.c.h.b16 %v53
    %v133 = vunpack.c.l.b16 %v54
    %v134 = vunpack.c.h.b16 %v54
    %v135 = vunpack.c.l.b16 %v55
    %v136 = vunpack.c.h.b16 %v55
    %v137 = vunpack.c.l.b16 %v56
    %v138 = vunpack.c.h.b16 %v56
    %v139 = vunpack.c.l.b16 %v57
    %v140 = vunpack.c.h.b16 %v57
    %v141 = vunpack.c.l.b16 %v58
    %v142 = vunpack.c.h.b16 %v58
    %v143 = vunpack.c.l.b16 %v59
    %v144 = vunpack.c.h.b16 %v59
    %v145 = vunpack.c.l.b16 %v60
    %v146 = vunpack.c.h.b16 %v60
    %v147 = vunpack.c.l.b16 %v61
    %v148 = vunpack.c.h.b16 %v61
    %v149 = vunpack.c.l.b16 %v62
    %v150 = vunpack.c.h.b16 %v62
    %v151 = vunpack.c.l.b16 %v63
    %v152 = vunpack.c.h.b16 %v63
    %v153 = vunpack.c.l.b16 %v64
    %v154 = vunpack.c.h.b16 %v64
    %v155 = vunpack.c.l.b16 %v65
    %v156 = vunpack.c.h.b16 %v65
    %v157 = vunpack.c.l.b16 %v66
    %v158 = vunpack.c.h.b16 %v66
    %v159 = vunpack.c.l.b16 %v67
    %v160 = vunpack.c.h.b16 %v67
    %v161 = vunpack.c.l.b16 %v68
    %v162 = vunpack.c.h.b16 %v68
    %v163 = vunpack.c.l.b16 %v69
    %v164 = vunpack.c.h.b16 %v69
    %v165 = vunpack.c.l.b16 %v70
    %v166 = vunpack.c.h.b16 %v70
    %v167 = vpack.c.b16 %v107, %v103
    %v168 = vpack.c.b16 %v108, %v104
    %v169 = vpack.c.b16 %v109, %v105
    %v170 = vpack.c.b16 %v110, %v106
    %v171 = vpack.c.b16 %v115, %v111
    %v172 = vpack.c.b16 %v116, %v112
    %v173 = vpack.c.b16 %v117, %v113
    %v174 = vpack.c.b16 %v118, %v114
    %v175 = vpack.c.b16 %v123, %v119
    %v176 = vpack.c.b16 %v124, %v120
    %v177 = vpack.c.b16 %v125, %v121
    %v178 = vpack.c.b16 %v126, %v122
    %v179 = vpack.c.b16 %v131, %v127
    %v180 = vpack.c.b16 %v132, %v128
    %v181 = vpack.c.b16 %v133, %v129
    %v182 = vpack.c.b16 %v134, %v130
    %v183 = vpack.c.b16 %v139, %v135
    %v184 = vpack.c.b16 %v140, %v136
    %v185 = vpack.c.b16 %v141, %v137
    %v186 = vpack.c.b16 %v142, %v138
    %v187 = vpack.c.b16 %v147, %v143
    %v188 = vpack.c.b16 %v148, %v144
    %v189 = vpack.c.b16 %v149, %v145
    %v190 = vpack.c.b16 %v150, %v146
    %v191 = vpack.c.b16 %v155, %v151
    %v192 = vpack.c.b16 %v156, %v152
    %v193 = vpack.c.b16 %v157, %v153
    %v194 = vpack.c.b16 %v158, %v154
    %v195 = vpack.c.b16 %v163, %v159
    %v196 = vpack.c.b16 %v164, %v160
    %v197 = vpack.c.b16 %v165, %v161
    %v198 = vpack.c.b16 %v166, %v162
    %231 = vmatprep.subr.bf16.mxu0 %v196
    %232 = vmatpush1.bf16.msra.mxu0 %v195
    %233 = vmatprep.subr.bf16.mxu0 %v192
    %234 = vmatpush1.bf16.msra.mxu0 %v191
    %235 = vmatprep.subr.bf16.mxu0 %v188
    %236 = vmatpush1.bf16.msra.mxu0 %v187
    %237 = vmatprep.subr.bf16.mxu0 %v184
    %238 = vmatpush1.bf16.msra.mxu0 %v183
    %239 = vmatprep.subr.bf16.mxu0 %v180
    %240 = vmatpush1.bf16.msra.mxu0 %v179
    %241 = vmatprep.subr.bf16.mxu0 %v176
    %242 = vmatpush1.bf16.msra.mxu0 %v175
    %243 = vmatprep.subr.bf16.mxu0 %v172
    %244 = vmatpush1.bf16.msra.mxu0 %v171
    %245 = vmatprep.subr.bf16.mxu0 %v168
    %246 = vmatpush1.bf16.msra.mxu0 %v167
    %247 = vmatprep.subr.bf16.mxu0 0
    %248 = vmatpush2.bf16.msra.mxu0 0
    %249 = vmatprep.subr.bf16.mxu0 0
    %250 = vmatpush2.bf16.msra.mxu0 0
    %251 = vmatprep.subr.bf16.mxu0 0
    %252 = vmatpush2.bf16.msra.mxu0 0
    %253 = vmatprep.subr.bf16.mxu0 0
    %254 = vmatpush2.bf16.msra.mxu0 0
    %255 = vmatprep.subr.bf16.mxu0 0
    %256 = vmatpush2.bf16.msra.mxu0 0
    %257 = vmatprep.subr.bf16.mxu0 0
    %258 = vmatpush2.bf16.msra.mxu0 0
    %259 = vmatprep.subr.bf16.mxu0 0
    %260 = vmatpush2.bf16.msra.mxu0 0
    %261 = vmatprep.subr.bf16.mxu0 0
    %262 = vmatpush2.bf16.msra.mxu0 0
    %263 = vmatprep.mubr.bf16.mxu0 0
    %264 = vmatmul.mubr.bf16.gmra.mxu0 %v38
    %v265 = vpop.f32.mrf.mxu0
    %v266 = vadd.f32 0.0, %v265
    %v267 = vpop.f32.mrf.mxu0
    %v268 = vadd.f32 0.0, %v267
    %v269 = vpop.f32.mrf.mxu0
    %v270 = vpop.f32.mrf.mxu0
    %271 = vdwg.mxu0
    %272 = vmatprep.subr.bf16.mxu0 %v198
    %273 = vmatpush1.bf16.msra.mxu0 %v197
    %274 = vmatprep.subr.bf16.mxu0 %v194
    %275 = vmatpush1.bf16.msra.mxu0 %v193
    %276 = vmatprep.subr.bf16.mxu0 %v190
    %277 = vmatpush1.bf16.msra.mxu0 %v189
    %278 = vmatprep.subr.bf16.mxu0 %v186
    %279 = vmatpush1.bf16.msra.mxu0 %v185
    %280 = vmatprep.subr.bf16.mxu0 %v182
    %281 = vmatpush1.bf16.msra.mxu0 %v181
    %282 = vmatprep.subr.bf16.mxu0 %v178
    %283 = vmatpush1.bf16.msra.mxu0 %v177
    %284 = vmatprep.subr.bf16.mxu0 %v174
    %285 = vmatpush1.bf16.msra.mxu0 %v173
    %286 = vmatprep.subr.bf16.mxu0 %v170
    %287 = vmatpush1.bf16.msra.mxu0 %v169
    %288 = vmatprep.subr.bf16.mxu0 0
    %289 = vmatpush2.bf16.msra.mxu0 0
    %290 = vmatprep.subr.bf16.mxu0 0
    %291 = vmatpush2.bf16.msra.mxu0 0
    %292 = vmatprep.subr.bf16.mxu0 0
    %293 = vmatpush2.bf16.msra.mxu0 0
    %294 = vmatprep.subr.bf16.mxu0 0
    %295 = vmatpush2.bf16.msra.mxu0 0
    %296 = vmatprep.subr.bf16.mxu0 0
    %297 = vmatpush2.bf16.msra.mxu0 0
    %298 = vmatprep.subr.bf16.mxu0 0
    %299 = vmatpush2.bf16.msra.mxu0 0
    %300 = vmatprep.subr.bf16.mxu0 0
    %301 = vmatpush2.bf16.msra.mxu0 0
    %302 = vmatprep.subr.bf16.mxu0 0
    %303 = vmatpush2.bf16.msra.mxu0 0
    %304 = vmatprep.mubr.bf16.mxu0 0
    %305 = vmatmul.mubr.bf16.gmra.mxu0 %v38
    %v306 = vpop.f32.mrf.mxu0
    %v307 = vadd.f32 0.0, %v306
    %v308 = vpop.f32.mrf.mxu0
    %v309 = vadd.f32 0.0, %v308
    %v310 = vpop.f32.mrf.mxu0
    %v311 = vpop.f32.mrf.mxu0
    %312 = vdwg.mxu0
    %v317 = vcombine.low %v266, %v268
    %v318 = vcombine.low %v307, %v309
    %v320 = vunpack.c.l.s4 1983009808
    %v321 = vunpack.c.0.s8 %v320
    %v322 = vlaneseq
    %v323 = vshrl.u32 %v322, 7
    %v324 = vsub.s32 %v321, %v323
    %v325 = vrot.slane %v317, %v324
    %v327 = vunpack.c.l.s4 1983009808
    %v328 = vunpack.c.0.s8 %v327
    %v329 = vlaneseq
    %v330 = vshrl.u32 %v329, 7
    %v331 = vsub.s32 %v328, %v330
    %v332 = vrot.slane %v318, %v331
    %v333 = vcombine.low %v325, %v332
    %335 = vst [vmem:[#allocation6] sm:$0xff] %v333
  $region33: #{cnn_lstm_caption_forward.6} parent=0 // pred_fallthru
    _
  %p336 = scmp.gt.s32.totalorder 0, 0
  // Predicated region
  $region34: #{cnn_lstm_caption_forward.6} parent=0 // pred_check
    %p337 = pneg %p336
  $region35: #{cnn_lstm_caption_forward.6} parent=0 // pred_check_branch
    %339 = sbr.rel (%p337) target = $region37
  $region36: #{cnn_lstm_caption_forward.6} parent=0 // pred_region
    %v340 = vld [vmem:[#allocation2] sm:$0x3]
    %v341 = vpack.c.bf16 %v340, %v340
    %v342 = vld [vmem:[%s4] sm:$0xff]
    %v343 = vld [vmem:[%s4 + $0x8] sm:$0xff]
    %v344 = vld [vmem:[%s4 + $0x10] sm:$0xff]
    %v345 = vld [vmem:[%s4 + $0x18] sm:$0xff]
    %v346 = vld [vmem:[%s4 + $0x20] sm:$0xff]
    %v347 = vld [vmem:[%s4 + $0x28] sm:$0xff]
    %v348 = vld [vmem:[%s4 + $0x30] sm:$0xff]
    %v349 = vld [vmem:[%s4 + $0x38] sm:$0xff]
    %v350 = vld [vmem:[%s4 + $0x40] sm:$0xff]
    %v351 = vld [vmem:[%s4 + $0x48] sm:$0xff]
    %v352 = vld [vmem:[%s4 + $0x50] sm:$0xff]
    %v353 = vld [vmem:[%s4 + $0x58] sm:$0xff]
    %v354 = vld [vmem:[%s4 + $0x60] sm:$0xff]
    %v355 = vld [vmem:[%s4 + $0x68] sm:$0xff]
    %v356 = vld [vmem:[%s4 + $0x70] sm:$0xff]
    %v357 = vld [vmem:[%s4 + $0x78] sm:$0xff]
    %v358 = vld [vmem:[%s4 + $0x80] sm:$0xff]
    %v359 = vld [vmem:[%s4 + $0x88] sm:$0xff]
    %v360 = vld [vmem:[%s4 + $0x90] sm:$0xff]
    %v361 = vld [vmem:[%s4 + $0x98] sm:$0xff]
    %v362 = vld [vmem:[%s4 + $0xa0] sm:$0xff]
    %v363 = vld [vmem:[%s4 + $0xa8] sm:$0xff]
    %v364 = vld [vmem:[%s4 + $0xb0] sm:$0xff]
    %v365 = vld [vmem:[%s4 + $0xb8] sm:$0xff]
    %v366 = vld [vmem:[%s4 + $0xc0] sm:$0xff]
    %v367 = vld [vmem:[%s4 + $0xc8] sm:$0xff]
    %v368 = vld [vmem:[%s4 + $0xd0] sm:$0xff]
    %v369 = vld [vmem:[%s4 + $0xd8] sm:$0xff]
    %v370 = vld [vmem:[%s4 + $0xe0] sm:$0xff]
    %v371 = vld [vmem:[%s4 + $0xe8] sm:$0xff]
    %v372 = vld [vmem:[%s4 + $0xf0] sm:$0xff]
    %v373 = vld [vmem:[%s4 + $0xf8] sm:$0xff]
    %v374 = vld [vmem:[#allocation4] sm:$0x3]
    %v375 = vpack.c.bf16 %v374, %v374
    %v376 = vld [vmem:[%s5] sm:$0xff]
    %v377 = vld [vmem:[%s5 + $0x8] sm:$0xff]
    %v378 = vld [vmem:[%s5 + $0x10] sm:$0xff]
    %v379 = vld [vmem:[%s5 + $0x18] sm:$0xff]
    %v380 = vld [vmem:[%s5 + $0x20] sm:$0xff]
    %v381 = vld [vmem:[%s5 + $0x28] sm:$0xff]
    %v382 = vld [vmem:[%s5 + $0x30] sm:$0xff]
    %v383 = vld [vmem:[%s5 + $0x38] sm:$0xff]
    %v384 = vld [vmem:[%s5 + $0x40] sm:$0xff]
    %v385 = vld [vmem:[%s5 + $0x48] sm:$0xff]
    %v386 = vld [vmem:[%s5 + $0x50] sm:$0xff]
    %v387 = vld [vmem:[%s5 + $0x58] sm:$0xff]
    %v388 = vld [vmem:[%s5 + $0x60] sm:$0xff]
    %v389 = vld [vmem:[%s5 + $0x68] sm:$0xff]
    %v390 = vld [vmem:[%s5 + $0x70] sm:$0xff]
    %v391 = vld [vmem:[%s5 + $0x78] sm:$0xff]
    %v392 = vld [vmem:[%s5 + $0x80] sm:$0xff]
    %v393 = vld [vmem:[%s5 + $0x88] sm:$0xff]
    %v394 = vld [vmem:[%s5 + $0x90] sm:$0xff]
    %v395 = vld [vmem:[%s5 + $0x98] sm:$0xff]
    %v396 = vld [vmem:[%s5 + $0xa0] sm:$0xff]
    %v397 = vld [vmem:[%s5 + $0xa8] sm:$0xff]
    %v398 = vld [vmem:[%s5 + $0xb0] sm:$0xff]
    %v399 = vld [vmem:[%s5 + $0xb8] sm:$0xff]
    %v400 = vld [vmem:[%s5 + $0xc0] sm:$0xff]
    %v401 = vld [vmem:[%s5 + $0xc8] sm:$0xff]
    %v402 = vld [vmem:[%s5 + $0xd0] sm:$0xff]
    %v403 = vld [vmem:[%s5 + $0xd8] sm:$0xff]
    %v404 = vld [vmem:[%s5 + $0xe0] sm:$0xff]
    %v405 = vld [vmem:[%s5 + $0xe8] sm:$0xff]
    %v406 = vld [vmem:[%s5 + $0xf0] sm:$0xff]
    %v407 = vld [vmem:[%s5 + $0xf8] sm:$0xff]
    %v440 = vunpack.c.l.b16 %v376
    %v441 = vunpack.c.h.b16 %v376
    %v442 = vunpack.c.l.b16 %v377
    %v443 = vunpack.c.h.b16 %v377
    %v444 = vunpack.c.l.b16 %v378
    %v445 = vunpack.c.h.b16 %v378
    %v446 = vunpack.c.l.b16 %v379
    %v447 = vunpack.c.h.b16 %v379
    %v448 = vunpack.c.l.b16 %v380
    %v449 = vunpack.c.h.b16 %v380
    %v450 = vunpack.c.l.b16 %v381
    %v451 = vunpack.c.h.b16 %v381
    %v452 = vunpack.c.l.b16 %v382
    %v453 = vunpack.c.h.b16 %v382
    %v454 = vunpack.c.l.b16 %v383
    %v455 = vunpack.c.h.b16 %v383
    %v456 = vunpack.c.l.b16 %v384
    %v457 = vunpack.c.h.b16 %v384
    %v458 = vunpack.c.l.b16 %v385
    %v459 = vunpack.c.h.b16 %v385
    %v460 = vunpack.c.l.b16 %v386
    %v461 = vunpack.c.h.b16 %v386
    %v462 = vunpack.c.l.b16 %v387
    %v463 = vunpack.c.h.b16 %v387
    %v464 = vunpack.c.l.b16 %v388
    %v465 = vunpack.c.h.b16 %v388
    %v466 = vunpack.c.l.b16 %v389
    %v467 = vunpack.c.h.b16 %v389
    %v468 = vunpack.c.l.b16 %v390
    %v469 = vunpack.c.h.b16 %v390
    %v470 = vunpack.c.l.b16 %v391
    %v471 = vunpack.c.h.b16 %v391
    %v472 = vunpack.c.l.b16 %v392
    %v473 = vunpack.c.h.b16 %v392
    %v474 = vunpack.c.l.b16 %v393
    %v475 = vunpack.c.h.b16 %v393
    %v476 = vunpack.c.l.b16 %v394
    %v477 = vunpack.c.h.b16 %v394
    %v478 = vunpack.c.l.b16 %v395
    %v479 = vunpack.c.h.b16 %v395
    %v480 = vunpack.c.l.b16 %v396
    %v481 = vunpack.c.h.b16 %v396
    %v482 = vunpack.c.l.b16 %v397
    %v483 = vunpack.c.h.b16 %v397
    %v484 = vunpack.c.l.b16 %v398
    %v485 = vunpack.c.h.b16 %v398
    %v486 = vunpack.c.l.b16 %v399
    %v487 = vunpack.c.h.b16 %v399
    %v488 = vunpack.c.l.b16 %v400
    %v489 = vunpack.c.h.b16 %v400
    %v490 = vunpack.c.l.b16 %v401
    %v491 = vunpack.c.h.b16 %v401
    %v492 = vunpack.c.l.b16 %v402
    %v493 = vunpack.c.h.b16 %v402
    %v494 = vunpack.c.l.b16 %v403
    %v495 = vunpack.c.h.b16 %v403
    %v496 = vunpack.c.l.b16 %v404
    %v497 = vunpack.c.h.b16 %v404
    %v498 = vunpack.c.l.b16 %v405
    %v499 = vunpack.c.h.b16 %v405
    %v500 = vunpack.c.l.b16 %v406
    %v501 = vunpack.c.h.b16 %v406
    %v502 = vunpack.c.l.b16 %v407
    %v503 = vunpack.c.h.b16 %v407
    %v504 = vpack.c.b16 %v444, %v440
    %v505 = vpack.c.b16 %v445, %v441
    %v506 = vpack.c.b16 %v446, %v442
    %v507 = vpack.c.b16 %v447, %v443
    %v508 = vpack.c.b16 %v452, %v448
    %v509 = vpack.c.b16 %v453, %v449
    %v510 = vpack.c.b16 %v454, %v450
    %v511 = vpack.c.b16 %v455, %v451
    %v512 = vpack.c.b16 %v460, %v456
    %v513 = vpack.c.b16 %v461, %v457
    %v514 = vpack.c.b16 %v462, %v458
    %v515 = vpack.c.b16 %v463, %v459
    %v516 = vpack.c.b16 %v468, %v464
    %v517 = vpack.c.b16 %v469, %v465
    %v518 = vpack.c.b16 %v470, %v466
    %v519 = vpack.c.b16 %v471, %v467
    %v520 = vpack.c.b16 %v476, %v472
    %v521 = vpack.c.b16 %v477, %v473
    %v522 = vpack.c.b16 %v478, %v474
    %v523 = vpack.c.b16 %v479, %v475
    %v524 = vpack.c.b16 %v484, %v480
    %v525 = vpack.c.b16 %v485, %v481
    %v526 = vpack.c.b16 %v486, %v482
    %v527 = vpack.c.b16 %v487, %v483
    %v528 = vpack.c.b16 %v492, %v488
    %v529 = vpack.c.b16 %v493, %v489
    %v530 = vpack.c.b16 %v494, %v490
    %v531 = vpack.c.b16 %v495, %v491
    %v532 = vpack.c.b16 %v500, %v496
    %v533 = vpack.c.b16 %v501, %v497
    %v534 = vpack.c.b16 %v502, %v498
    %v535 = vpack.c.b16 %v503, %v499
    %568 = vmatprep.subr.bf16.mxu0 %v533
    %569 = vmatpush1.bf16.msra.mxu0 %v532
    %570 = vmatprep.subr.bf16.mxu0 %v529
    %571 = vmatpush1.bf16.msra.mxu0 %v528
    %572 = vmatprep.subr.bf16.mxu0 %v525
    %573 = vmatpush1.bf16.msra.mxu0 %v524
    %574 = vmatprep.subr.bf16.mxu0 %v521
    %575 = vmatpush1.bf16.msra.mxu0 %v520
    %576 = vmatprep.subr.bf16.mxu0 %v517
    %577 = vmatpush1.bf16.msra.mxu0 %v516
    %578 = vmatprep.subr.bf16.mxu0 %v513
    %579 = vmatpush1.bf16.msra.mxu0 %v512
    %580 = vmatprep.subr.bf16.mxu0 %v509
    %581 = vmatpush1.bf16.msra.mxu0 %v508
    %582 = vmatprep.subr.bf16.mxu0 %v505
    %583 = vmatpush1.bf16.msra.mxu0 %v504
    %584 = vmatprep.subr.bf16.mxu0 0
    %585 = vmatpush2.bf16.msra.mxu0 0
    %586 = vmatprep.subr.bf16.mxu0 0
    %587 = vmatpush2.bf16.msra.mxu0 0
    %588 = vmatprep.subr.bf16.mxu0 0
    %589 = vmatpush2.bf16.msra.mxu0 0
    %590 = vmatprep.subr.bf16.mxu0 0
    %591 = vmatpush2.bf16.msra.mxu0 0
    %592 = vmatprep.subr.bf16.mxu0 0
    %593 = vmatpush2.bf16.msra.mxu0 0
    %594 = vmatprep.subr.bf16.mxu0 0
    %595 = vmatpush2.bf16.msra.mxu0 0
    %596 = vmatprep.subr.bf16.mxu0 0
    %597 = vmatpush2.bf16.msra.mxu0 0
    %598 = vmatprep.subr.bf16.mxu0 0
    %599 = vmatpush2.bf16.msra.mxu0 0
    %600 = vmatprep.mubr.bf16.mxu0 0
    %601 = vmatmul.mubr.bf16.gmra.mxu0 %v375
    %v602 = vpop.f32.mrf.mxu0
    %v603 = vadd.f32 0.0, %v602
    %v604 = vpop.f32.mrf.mxu0
    %v605 = vadd.f32 0.0, %v604
    %v606 = vpop.f32.mrf.mxu0
    %v607 = vpop.f32.mrf.mxu0
    %608 = vdwg.mxu0
    %609 = vmatprep.subr.bf16.mxu0 %v535
    %610 = vmatpush1.bf16.msra.mxu0 %v534
    %611 = vmatprep.subr.bf16.mxu0 %v531
    %612 = vmatpush1.bf16.msra.mxu0 %v530
    %613 = vmatprep.subr.bf16.mxu0 %v527
    %614 = vmatpush1.bf16.msra.mxu0 %v526
    %615 = vmatprep.subr.bf16.mxu0 %v523
    %616 = vmatpush1.bf16.msra.mxu0 %v522
    %617 = vmatprep.subr.bf16.mxu0 %v519
    %618 = vmatpush1.bf16.msra.mxu0 %v518
    %619 = vmatprep.subr.bf16.mxu0 %v515
    %620 = vmatpush1.bf16.msra.mxu0 %v514
    %621 = vmatprep.subr.bf16.mxu0 %v511
    %622 = vmatpush1.bf16.msra.mxu0 %v510
    %623 = vmatprep.subr.bf16.mxu0 %v507
    %624 = vmatpush1.bf16.msra.mxu0 %v506
    %625 = vmatprep.subr.bf16.mxu0 0
    %626 = vmatpush2.bf16.msra.mxu0 0
    %627 = vmatprep.subr.bf16.mxu0 0
    %628 = vmatpush2.bf16.msra.mxu0 0
    %629 = vmatprep.subr.bf16.mxu0 0
    %630 = vmatpush2.bf16.msra.mxu0 0
    %631 = vmatprep.subr.bf16.mxu0 0
    %632 = vmatpush2.bf16.msra.mxu0 0
    %633 = vmatprep.subr.bf16.mxu0 0
    %634 = vmatpush2.bf16.msra.mxu0 0
    %635 = vmatprep.subr.bf16.mxu0 0
    %636 = vmatpush2.bf16.msra.mxu0 0
    %637 = vmatprep.subr.bf16.mxu0 0
    %638 = vmatpush2.bf16.msra.mxu0 0
    %639 = vmatprep.subr.bf16.mxu0 0
    %640 = vmatpush2.bf16.msra.mxu0 0
    %641 = vmatprep.mubr.bf16.mxu0 0
    %642 = vmatmul.mubr.bf16.gmra.mxu0 %v375
    %v643 = vpop.f32.mrf.mxu0
    %v644 = vadd.f32 0.0, %v643
    %v645 = vpop.f32.mrf.mxu0
    %v646 = vadd.f32 0.0, %v645
    %v647 = vpop.f32.mrf.mxu0
    %v648 = vpop.f32.mrf.mxu0
    %649 = vdwg.mxu0
    %v682 = vunpack.c.l.b16 %v342
    %v683 = vunpack.c.h.b16 %v342
    %v684 = vunpack.c.l.b16 %v343
    %v685 = vunpack.c.h.b16 %v343
    %v686 = vunpack.c.l.b16 %v344
    %v687 = vunpack.c.h.b16 %v344
    %v688 = vunpack.c.l.b16 %v345
    %v689 = vunpack.c.h.b16 %v345
    %v690 = vunpack.c.l.b16 %v346
    %v691 = vunpack.c.h.b16 %v346
    %v692 = vunpack.c.l.b16 %v347
    %v693 = vunpack.c.h.b16 %v347
    %v694 = vunpack.c.l.b16 %v348
    %v695 = vunpack.c.h.b16 %v348
    %v696 = vunpack.c.l.b16 %v349
    %v697 = vunpack.c.h.b16 %v349
    %v698 = vunpack.c.l.b16 %v350
    %v699 = vunpack.c.h.b16 %v350
    %v700 = vunpack.c.l.b16 %v351
    %v701 = vunpack.c.h.b16 %v351
    %v702 = vunpack.c.l.b16 %v352
    %v703 = vunpack.c.h.b16 %v352
    %v704 = vunpack.c.l.b16 %v353
    %v705 = vunpack.c.h.b16 %v353
    %v706 = vunpack.c.l.b16 %v354
    %v707 = vunpack.c.h.b16 %v354
    %v708 = vunpack.c.l.b16 %v355
    %v709 = vunpack.c.h.b16 %v355
    %v710 = vunpack.c.l.b16 %v356
    %v711 = vunpack.c.h.b16 %v356
    %v712 = vunpack.c.l.b16 %v357
    %v713 = vunpack.c.h.b16 %v357
    %v714 = vunpack.c.l.b16 %v358
    %v715 = vunpack.c.h.b16 %v358
    %v716 = vunpack.c.l.b16 %v359
    %v717 = vunpack.c.h.b16 %v359
    %v718 = vunpack.c.l.b16 %v360
    %v719 = vunpack.c.h.b16 %v360
    %v720 = vunpack.c.l.b16 %v361
    %v721 = vunpack.c.h.b16 %v361
    %v722 = vunpack.c.l.b16 %v362
    %v723 = vunpack.c.h.b16 %v362
    %v724 = vunpack.c.l.b16 %v363
    %v725 = vunpack.c.h.b16 %v363
    %v726 = vunpack.c.l.b16 %v364
    %v727 = vunpack.c.h.b16 %v364
    %v728 = vunpack.c.l.b16 %v365
    %v729 = vunpack.c.h.b16 %v365
    %v730 = vunpack.c.l.b16 %v366
    %v731 = vunpack.c.h.b16 %v366
    %v732 = vunpack.c.l.b16 %v367
    %v733 = vunpack.c.h.b16 %v367
    %v734 = vunpack.c.l.b16 %v368
    %v735 = vunpack.c.h.b16 %v368
    %v736 = vunpack.c.l.b16 %v369
    %v737 = vunpack.c.h.b16 %v369
    %v738 = vunpack.c.l.b16 %v370
    %v739 = vunpack.c.h.b16 %v370
    %v740 = vunpack.c.l.b16 %v371
    %v741 = vunpack.c.h.b16 %v371
    %v742 = vunpack.c.l.b16 %v372
    %v743 = vunpack.c.h.b16 %v372
    %v744 = vunpack.c.l.b16 %v373
    %v745 = vunpack.c.h.b16 %v373
    %v746 = vpack.c.b16 %v686, %v682
    %v747 = vpack.c.b16 %v687, %v683
    %v748 = vpack.c.b16 %v688, %v684
    %v749 = vpack.c.b16 %v689, %v685
    %v750 = vpack.c.b16 %v694, %v690
    %v751 = vpack.c.b16 %v695, %v691
    %v752 = vpack.c.b16 %v696, %v692
    %v753 = vpack.c.b16 %v697, %v693
    %v754 = vpack.c.b16 %v702, %v698
    %v755 = vpack.c.b16 %v703, %v699
    %v756 = vpack.c.b16 %v704, %v700
    %v757 = vpack.c.b16 %v705, %v701
    %v758 = vpack.c.b16 %v710, %v706
    %v759 = vpack.c.b16 %v711, %v707
    %v760 = vpack.c.b16 %v712, %v708
    %v761 = vpack.c.b16 %v713, %v709
    %v762 = vpack.c.b16 %v718, %v714
    %v763 = vpack.c.b16 %v719, %v715
    %v764 = vpack.c.b16 %v720, %v716
    %v765 = vpack.c.b16 %v721, %v717
    %v766 = vpack.c.b16 %v726, %v722
    %v767 = vpack.c.b16 %v727, %v723
    %v768 = vpack.c.b16 %v728, %v724
    %v769 = vpack.c.b16 %v729, %v725
    %v770 = vpack.c.b16 %v734, %v730
    %v771 = vpack.c.b16 %v735, %v731
    %v772 = vpack.c.b16 %v736, %v732
    %v773 = vpack.c.b16 %v737, %v733
    %v774 = vpack.c.b16 %v742, %v738
    %v775 = vpack.c.b16 %v743, %v739
    %v776 = vpack.c.b16 %v744, %v740
    %v777 = vpack.c.b16 %v745, %v741
    %810 = vmatprep.subr.bf16.mxu0 %v775
    %811 = vmatpush1.bf16.msra.mxu0 %v774
    %812 = vmatprep.subr.bf16.mxu0 %v771
    %813 = vmatpush1.bf16.msra.mxu0 %v770
    %814 = vmatprep.subr.bf16.mxu0 %v767
    %815 = vmatpush1.bf16.msra.mxu0 %v766
    %816 = vmatprep.subr.bf16.mxu0 %v763
    %817 = vmatpush1.bf16.msra.mxu0 %v762
    %818 = vmatprep.subr.bf16.mxu0 %v759
    %819 = vmatpush1.bf16.msra.mxu0 %v758
    %820 = vmatprep.subr.bf16.mxu0 %v755
    %821 = vmatpush1.bf16.msra.mxu0 %v754
    %822 = vmatprep.subr.bf16.mxu0 %v751
    %823 = vmatpush1.bf16.msra.mxu0 %v750
    %824 = vmatprep.subr.bf16.mxu0 %v747
    %825 = vmatpush1.bf16.msra.mxu0 %v746
    %826 = vmatprep.subr.bf16.mxu0 0
    %827 = vmatpush2.bf16.msra.mxu0 0
    %828 = vmatprep.subr.bf16.mxu0 0
    %829 = vmatpush2.bf16.msra.mxu0 0
    %830 = vmatprep.subr.bf16.mxu0 0
    %831 = vmatpush2.bf16.msra.mxu0 0
    %832 = vmatprep.subr.bf16.mxu0 0
    %833 = vmatpush2.bf16.msra.mxu0 0
    %834 = vmatprep.subr.bf16.mxu0 0
    %835 = vmatpush2.bf16.msra.mxu0 0
    %836 = vmatprep.subr.bf16.mxu0 0
    %837 = vmatpush2.bf16.msra.mxu0 0
    %838 = vmatprep.subr.bf16.mxu0 0
    %839 = vmatpush2.bf16.msra.mxu0 0
    %840 = vmatprep.subr.bf16.mxu0 0
    %841 = vmatpush2.bf16.msra.mxu0 0
    %842 = vmatprep.mubr.bf16.mxu0 0
    %843 = vmatmul.mubr.bf16.gmra.mxu0 %v341
    %v844 = vpop.f32.mrf.mxu0
    %v845 = vadd.f32 %v603, %v844
    %v846 = vpop.f32.mrf.mxu0
    %v847 = vadd.f32 %v605, %v846
    %v848 = vpop.f32.mrf.mxu0
    %v849 = vpop.f32.mrf.mxu0
    %850 = vdwg.mxu0
    %851 = vmatprep.subr.bf16.mxu0 %v777
    %852 = vmatpush1.bf16.msra.mxu0 %v776
    %853 = vmatprep.subr.bf16.mxu0 %v773
    %854 = vmatpush1.bf16.msra.mxu0 %v772
    %855 = vmatprep.subr.bf16.mxu0 %v769
    %856 = vmatpush1.bf16.msra.mxu0 %v768
    %857 = vmatprep.subr.bf16.mxu0 %v765
    %858 = vmatpush1.bf16.msra.mxu0 %v764
    %859 = vmatprep.subr.bf16.mxu0 %v761
    %860 = vmatpush1.bf16.msra.mxu0 %v760
    %861 = vmatprep.subr.bf16.mxu0 %v757
    %862 = vmatpush1.bf16.msra.mxu0 %v756
    %863 = vmatprep.subr.bf16.mxu0 %v753
    %864 = vmatpush1.bf16.msra.mxu0 %v752
    %865 = vmatprep.subr.bf16.mxu0 %v749
    %866 = vmatpush1.bf16.msra.mxu0 %v748
    %867 = vmatprep.subr.bf16.mxu0 0
    %868 = vmatpush2.bf16.msra.mxu0 0
    %869 = vmatprep.subr.bf16.mxu0 0
    %870 = vmatpush2.bf16.msra.mxu0 0
    %871 = vmatprep.subr.bf16.mxu0 0
    %872 = vmatpush2.bf16.msra.mxu0 0
    %873 = vmatprep.subr.bf16.mxu0 0
    %874 = vmatpush2.bf16.msra.mxu0 0
    %875 = vmatprep.subr.bf16.mxu0 0
    %876 = vmatpush2.bf16.msra.mxu0 0
    %877 = vmatprep.subr.bf16.mxu0 0
    %878 = vmatpush2.bf16.msra.mxu0 0
    %879 = vmatprep.subr.bf16.mxu0 0
    %880 = vmatpush2.bf16.msra.mxu0 0
    %881 = vmatprep.subr.bf16.mxu0 0
    %882 = vmatpush2.bf16.msra.mxu0 0
    %883 = vmatprep.mubr.bf16.mxu0 0
    %884 = vmatmul.mubr.bf16.gmra.mxu0 %v341
    %v885 = vpop.f32.mrf.mxu0
    %v886 = vadd.f32 %v644, %v885
    %v887 = vpop.f32.mrf.mxu0
    %v888 = vadd.f32 %v646, %v887
    %v889 = vpop.f32.mrf.mxu0
    %v890 = vpop.f32.mrf.mxu0
    %891 = vdwg.mxu0
    %v892 = vld [vmem:[%s6] sm:$0xf]
    %v894 = vlaneseq
    %v895 = vshrl.u32 %v894, 7
    %v896 = vsub.s32 0, %v895
    %v897 = vrot.slane %v892, %v896
    %v898 = vlaneseq
    %v899 = vshrl.u32 %v898, 7
    %v900 = vsub.s32 1, %v899
    %v901 = vrot.slane %v892, %v900
    %v902 = vlaneseq
    %v903 = vshrl.u32 %v902, 7
    %v904 = vsub.s32 2, %v903
    %v905 = vrot.slane %v892, %v904
    %v906 = vlaneseq
    %v907 = vshrl.u32 %v906, 7
    %v908 = vsub.s32 3, %v907
    %v909 = vrot.slane %v892, %v908
    %v914 = vadd.f32 %v845, %v897
    %v915 = vadd.f32 %v847, %v901
    %v916 = vadd.f32 %v886, %v905
    %v917 = vadd.f32 %v888, %v909
    %v918 = vld [vmem:[#allocation5] sm:$0x3]
    %v919 = vxor.u32 %v914, 2147483648
    %v920 = vmul.f32 %v919, 1.442695
    %v921 = vpow.pop %v920
    %v922 = vadd.f32 %v921, 1.0
    %v923 = vrcp.pop %v922
    %v924 = vmul.f32 1.0, %v923
    %v925 = vxor.u32 %v915, 2147483648
    %v926 = vmul.f32 %v925, 1.442695
    %v927 = vpow.pop %v926
    %v928 = vadd.f32 %v927, 1.0
    %v929 = vrcp.pop %v928
    %v930 = vmul.f32 1.0, %v929
    %v931 = vtanh.pop %v916
    %v932 = vxor.u32 %v917, 2147483648
    %v933 = vmul.f32 %v932, 1.442695
    %v934 = vpow.pop %v933
    %v935 = vadd.f32 %v934, 1.0
    %v936 = vrcp.pop %v935
    %v937 = vmul.f32 1.0, %v936
    %v938 = vmul.f32 %v930, %v918
    %v939 = vmul.f32 %v924, %v931
    %v940 = vadd.f32 %v938, %v939
    %v941 = vtanh.pop %v940
    %v942 = vmul.f32 %v937, %v941
    %943 = vst [vmem:[#allocation4] sm:$0x3] %v942
    %944 = vst [vmem:[#allocation5] sm:$0x3] %v940
  $region37: #{cnn_lstm_caption_forward.6} parent=0 // pred_fallthru
    _
  %v945 = vld [vmem:[#allocation4] sm:$0x3]
  %946 = vst [vmem:[%s7] sm:$0x3] %v945
  %v947 = vld [vmem:[%s0] sm:$0xff]
  %v948 = vld [vmem:[#allocation2] sm:$0x3]
  %v949 = vpack.c.bf16 %v948, %v948
  %v950 = vld [vmem:[%s3] sm:$0xff]
  %v951 = vld [vmem:[%s3 + $0x8] sm:$0xff]
  %v952 = vld [vmem:[%s3 + $0x10] sm:$0xff]
  %v953 = vld [vmem:[%s3 + $0x18] sm:$0xff]
  %v954 = vld [vmem:[%s3 + $0x20] sm:$0xff]
  %v955 = vld [vmem:[%s3 + $0x28] sm:$0xff]
  %v956 = vld [vmem:[%s3 + $0x30] sm:$0xff]
  %v957 = vld [vmem:[%s3 + $0x38] sm:$0xff]
  %v958 = vld [vmem:[%s3 + $0x40] sm:$0xff]
  %v959 = vld [vmem:[%s3 + $0x48] sm:$0xff]
  %v960 = vld [vmem:[%s3 + $0x50] sm:$0xff]
  %v961 = vld [vmem:[%s3 + $0x58] sm:$0xff]
  %v962 = vld [vmem:[%s3 + $0x60] sm:$0xff]
  %v963 = vld [vmem:[%s3 + $0x68] sm:$0xff]
  %v964 = vld [vmem:[%s3 + $0x70] sm:$0xff]
  %v965 = vld [vmem:[%s3 + $0x78] sm:$0xff]
  %v966 = vld [vmem:[%s3 + $0x80] sm:$0xff]
  %v967 = vld [vmem:[%s3 + $0x88] sm:$0xff]
  %v968 = vld [vmem:[%s3 + $0x90] sm:$0xff]
  %v969 = vld [vmem:[%s3 + $0x98] sm:$0xff]
  %v970 = vld [vmem:[%s3 + $0xa0] sm:$0xff]
  %v971 = vld [vmem:[%s3 + $0xa8] sm:$0xff]
  %v972 = vld [vmem:[%s3 + $0xb0] sm:$0xff]
  %v973 = vld [vmem:[%s3 + $0xb8] sm:$0xff]
  %v974 = vld [vmem:[%s3 + $0xc0] sm:$0xff]
  %v975 = vld [vmem:[%s3 + $0xc8] sm:$0xff]
  %v976 = vld [vmem:[%s3 + $0xd0] sm:$0xff]
  %v977 = vld [vmem:[%s3 + $0xd8] sm:$0xff]
  %v978 = vld [vmem:[%s3 + $0xe0] sm:$0xff]
  %v979 = vld [vmem:[%s3 + $0xe8] sm:$0xff]
  %v980 = vld [vmem:[%s3 + $0xf0] sm:$0xff]
  %v981 = vld [vmem:[%s3 + $0xf8] sm:$0xff]
  %v1014 = vunpack.c.l.b16 %v950
  %v1015 = vunpack.c.h.b16 %v950
  %v1016 = vunpack.c.l.b16 %v951
  %v1017 = vunpack.c.h.b16 %v951
  %v1018 = vunpack.c.l.b16 %v952
  %v1019 = vunpack.c.h.b16 %v952
  %v1020 = vunpack.c.l.b16 %v953
  %v1021 = vunpack.c.h.b16 %v953
  %v1022 = vunpack.c.l.b16 %v954
  %v1023 = vunpack.c.h.b16 %v954
  %v1024 = vunpack.c.l.b16 %v955
  %v1025 = vunpack.c.h.b16 %v955
  %v1026 = vunpack.c.l.b16 %v956
  %v1027 = vunpack.c.h.b16 %v956
  %v1028 = vunpack.c.l.b16 %v957
  %v1029 = vunpack.c.h.b16 %v957
  %v1030 = vunpack.c.l.b16 %v958
  %v1031 = vunpack.c.h.b16 %v958
  %v1032 = vunpack.c.l.b16 %v959
  %v1033 = vunpack.c.h.b16 %v959
  %v1034 = vunpack.c.l.b16 %v960
  %v1035 = vunpack.c.h.b16 %v960
  %v1036 = vunpack.c.l.b16 %v961
  %v1037 = vunpack.c.h.b16 %v961
  %v1038 = vunpack.c.l.b16 %v962
  %v1039 = vunpack.c.h.b16 %v962
  %v1040 = vunpack.c.l.b16 %v963
  %v1041 = vunpack.c.h.b16 %v963
  %v1042 = vunpack.c.l.b16 %v964
  %v1043 = vunpack.c.h.b16 %v964
  %v1044 = vunpack.c.l.b16 %v965
  %v1045 = vunpack.c.h.b16 %v965
  %v1046 = vunpack.c.l.b16 %v966
  %v1047 = vunpack.c.h.b16 %v966
  %v1048 = vunpack.c.l.b16 %v967
  %v1049 = vunpack.c.h.b16 %v967
  %v1050 = vunpack.c.l.b16 %v968
  %v1051 = vunpack.c.h.b16 %v968
  %v1052 = vunpack.c.l.b16 %v969
  %v1053 = vunpack.c.h.b16 %v969
  %v1054 = vunpack.c.l.b16 %v970
  %v1055 = vunpack.c.h.b16 %v970
  %v1056 = vunpack.c.l.b16 %v971
  %v1057 = vunpack.c.h.b16 %v971
  %v1058 = vunpack.c.l.b16 %v972
  %v1059 = vunpack.c.h.b16 %v972
  %v1060 = vunpack.c.l.b16 %v973
  %v1061 = vunpack.c.h.b16 %v973
  %v1062 = vunpack.c.l.b16 %v974
  %v1063 = vunpack.c.h.b16 %v974
  %v1064 = vunpack.c.l.b16 %v975
  %v1065 = vunpack.c.h.b16 %v975
  %v1066 = vunpack.c.l.b16 %v976
  %v1067 = vunpack.c.h.b16 %v976
  %v1068 = vunpack.c.l.b16 %v977
  %v1069 = vunpack.c.h.b16 %v977
  %v1070 = vunpack.c.l.b16 %v978
  %v1071 = vunpack.c.h.b16 %v978
  %v1072 = vunpack.c.l.b16 %v979
  %v1073 = vunpack.c.h.b16 %v979
  %v1074 = vunpack.c.l.b16 %v980
  %v1075 = vunpack.c.h.b16 %v980
  %v1076 = vunpack.c.l.b16 %v981
  %v1077 = vunpack.c.h.b16 %v981
  %v1078 = vpack.c.b16 %v1018, %v1014
  %v1079 = vpack.c.b16 %v1019, %v1015
  %v1080 = vpack.c.b16 %v1020, %v1016
  %v1081 = vpack.c.b16 %v1021, %v1017
  %v1082 = vpack.c.b16 %v1026, %v1022
  %v1083 = vpack.c.b16 %v1027, %v1023
  %v1084 = vpack.c.b16 %v1028, %v1024
  %v1085 = vpack.c.b16 %v1029, %v1025
  %v1086 = vpack.c.b16 %v1034, %v1030
  %v1087 = vpack.c.b16 %v1035, %v1031
  %v1088 = vpack.c.b16 %v1036, %v1032
  %v1089 = vpack.c.b16 %v1037, %v1033
  %v1090 = vpack.c.b16 %v1042, %v1038
  %v1091 = vpack.c.b16 %v1043, %v1039
  %v1092 = vpack.c.b16 %v1044, %v1040
  %v1093 = vpack.c.b16 %v1045, %v1041
  %v1094 = vpack.c.b16 %v1050, %v1046
  %v1095 = vpack.c.b16 %v1051, %v1047
  %v1096 = vpack.c.b16 %v1052, %v1048
  %v1097 = vpack.c.b16 %v1053, %v1049
  %v1098 = vpack.c.b16 %v1058, %v1054
  %v1099 = vpack.c.b16 %v1059, %v1055
  %v1100 = vpack.c.b16 %v1060, %v1056
  %v1101 = vpack.c.b16 %v1061, %v1057
  %v1102 = vpack.c.b16 %v1066, %v1062
  %v1103 = vpack.c.b16 %v1067, %v1063
  %v1104 = vpack.c.b16 %v1068, %v1064
  %v1105 = vpack.c.b16 %v1069, %v1065
  %v1106 = vpack.c.b16 %v1074, %v1070
  %v1107 = vpack.c.b16 %v1075, %v1071
  %v1108 = vpack.c.b16 %v1076, %v1072
  %v1109 = vpack.c.b16 %v1077, %v1073
  %1142 = vmatprep.subr.bf16.mxu0 %v1107
  %1143 = vmatpush1.bf16.msra.mxu0 %v1106
  %1144 = vmatprep.subr.bf16.mxu0 %v1103
  %1145 = vmatpush1.bf16.msra.mxu0 %v1102
  %1146 = vmatprep.subr.bf16.mxu0 %v1099
  %1147 = vmatpush1.bf16.msra.mxu0 %v1098
  %1148 = vmatprep.subr.bf16.mxu0 %v1095
  %1149 = vmatpush1.bf16.msra.mxu0 %v1094
  %1150 = vmatprep.subr.bf16.mxu0 %v1091
  %1151 = vmatpush1.bf16.msra.mxu0 %v1090
  %1152 = vmatprep.subr.bf16.mxu0 %v1087
  %1153 = vmatpush1.bf16.msra.mxu0 %v1086
  %1154 = vmatprep.subr.bf16.mxu0 %v1083
  %1155 = vmatpush1.bf16.msra.mxu0 %v1082
  %1156 = vmatprep.subr.bf16.mxu0 %v1079
  %1157 = vmatpush1.bf16.msra.mxu0 %v1078
  %1158 = vmatprep.subr.bf16.mxu0 0
  %1159 = vmatpush2.bf16.msra.mxu0 0
  %1160 = vmatprep.subr.bf16.mxu0 0
  %1161 = vmatpush2.bf16.msra.mxu0 0
  %1162 = vmatprep.subr.bf16.mxu0 0
  %1163 = vmatpush2.bf16.msra.mxu0 0
  %1164 = vmatprep.subr.bf16.mxu0 0
  %1165 = vmatpush2.bf16.msra.mxu0 0
  %1166 = vmatprep.subr.bf16.mxu0 0
  %1167 = vmatpush2.bf16.msra.mxu0 0
  %1168 = vmatprep.subr.bf16.mxu0 0
  %1169 = vmatpush2.bf16.msra.mxu0 0
  %1170 = vmatprep.subr.bf16.mxu0 0
  %1171 = vmatpush2.bf16.msra.mxu0 0
  %1172 = vmatprep.subr.bf16.mxu0 0
  %1173 = vmatpush2.bf16.msra.mxu0 0
  %1174 = vmatprep.mubr.bf16.mxu0 0
  %1175 = vmatmul.mubr.bf16.gmra.mxu0 %v949
  %v1176 = vpop.f32.mrf.mxu0
  %v1177 = vadd.f32 0.0, %v1176
  %v1178 = vpop.f32.mrf.mxu0
  %v1179 = vadd.f32 0.0, %v1178
  %v1180 = vpop.f32.mrf.mxu0
  %v1181 = vpop.f32.mrf.mxu0
  %1182 = vdwg.mxu0
  %1183 = vmatprep.subr.bf16.mxu0 %v1109
  %1184 = vmatpush1.bf16.msra.mxu0 %v1108
  %1185 = vmatprep.subr.bf16.mxu0 %v1105
  %1186 = vmatpush1.bf16.msra.mxu0 %v1104
  %1187 = vmatprep.subr.bf16.mxu0 %v1101
  %1188 = vmatpush1.bf16.msra.mxu0 %v1100
  %1189 = vmatprep.subr.bf16.mxu0 %v1097
  %1190 = vmatpush1.bf16.msra.mxu0 %v1096
  %1191 = vmatprep.subr.bf16.mxu0 %v1093
  %1192 = vmatpush1.bf16.msra.mxu0 %v1092
  %1193 = vmatprep.subr.bf16.mxu0 %v1089
  %1194 = vmatpush1.bf16.msra.mxu0 %v1088
  %1195 = vmatprep.subr.bf16.mxu0 %v1085
  %1196 = vmatpush1.bf16.msra.mxu0 %v1084
  %1197 = vmatprep.subr.bf16.mxu0 %v1081
  %1198 = vmatpush1.bf16.msra.mxu0 %v1080
  %1199 = vmatprep.subr.bf16.mxu0 0
  %1200 = vmatpush2.bf16.msra.mxu0 0
  %1201 = vmatprep.subr.bf16.mxu0 0
  %1202 = vmatpush2.bf16.msra.mxu0 0
  %1203 = vmatprep.subr.bf16.mxu0 0
  %1204 = vmatpush2.bf16.msra.mxu0 0
  %1205 = vmatprep.subr.bf16.mxu0 0
  %1206 = vmatpush2.bf16.msra.mxu0 0
  %1207 = vmatprep.subr.bf16.mxu0 0
  %1208 = vmatpush2.bf16.msra.mxu0 0
  %1209 = vmatprep.subr.bf16.mxu0 0
  %1210 = vmatpush2.bf16.msra.mxu0 0
  %1211 = vmatprep.subr.bf16.mxu0 0
  %1212 = vmatpush2.bf16.msra.mxu0 0
  %1213 = vmatprep.subr.bf16.mxu0 0
  %1214 = vmatpush2.bf16.msra.mxu0 0
  %1215 = vmatprep.mubr.bf16.mxu0 0
  %1216 = vmatmul.mubr.bf16.gmra.mxu0 %v949
  %v1217 = vpop.f32.mrf.mxu0
  %v1218 = vadd.f32 0.0, %v1217
  %v1219 = vpop.f32.mrf.mxu0
  %v1220 = vadd.f32 0.0, %v1219
  %v1221 = vpop.f32.mrf.mxu0
  %v1222 = vpop.f32.mrf.mxu0
  %1223 = vdwg.mxu0
  %v1228 = vcombine.low %v1177, %v1179
  %v1229 = vcombine.low %v1218, %v1220
  %v1231 = vunpack.c.l.s4 1983009808
  %v1232 = vunpack.c.0.s8 %v1231
  %v1233 = vlaneseq
  %v1234 = vshrl.u32 %v1233, 7
  %v1235 = vsub.s32 %v1232, %v1234
  %v1236 = vrot.slane %v1228, %v1235
  %v1238 = vunpack.c.l.s4 1983009808
  %v1239 = vunpack.c.0.s8 %v1238
  %v1240 = vlaneseq
  %v1241 = vshrl.u32 %v1240, 7
  %v1242 = vsub.s32 %v1239, %v1241
  %v1243 = vrot.slane %v1229, %v1242
  %v1244 = vcombine.low %v1236, %v1243
  %v1246 = vadd.f32 %v947, %v1244
  %v1247 = vld [vmem:[#allocation6] sm:$0xff]
  %v1248 = vadd.f32 %v1246, %v1247
  %v1249 = vld [vmem:[#allocation3] sm:$0x3]
  %v1250 = vxor.u32 %v1248, 2147483648
  %v1251 = vmul.f32 %v1250, 1.442695
  %v1252 = vpow.pop %v1251
  %v1253 = vadd.f32 %v1252, 1.0
  %v1254 = vrcp.pop %v1253
  %v1255 = vmul.f32 1.0, %v1254
  %v1257 = vrot.slane %v1248, 2
  %v1259 = vxor.u32 %v1257, 2147483648
  %v1260 = vmul.f32 %v1259, 1.442695
  %v1261 = vpow.pop %v1260
  %v1262 = vadd.f32 %v1261, 1.0
  %v1263 = vrcp.pop %v1262
  %v1264 = vmul.f32 1.0, %v1263
  %v1265 = vrot.slane %v1248, 4
  %v1267 = vtanh.pop %v1265
  %v1268 = vrot.slane %v1248, 6
  %v1270 = vxor.u32 %v1268, 2147483648
  %v1271 = vmul.f32 %v1270, 1.442695
  %v1272 = vpow.pop %v1271
  %v1273 = vadd.f32 %v1272, 1.0
  %v1274 = vrcp.pop %v1273
  %v1275 = vmul.f32 1.0, %v1274
  %v1276 = vmul.f32 %v1264, %v1249
  %v1277 = vmul.f32 %v1255, %v1267
  %v1278 = vadd.f32 %v1276, %v1277
  %v1279 = vtanh.pop %v1278
  %v1280 = vmul.f32 %v1275, %v1279
  %1281 = vst [vmem:[#allocation2] sm:$0x3] %v1280
  %1282 = vst [vmem:[#allocation3] sm:$0x3] %v1278
  %v1283 = vld [vmem:[#allocation2] sm:$0x3]
  %v1284 = vpack.c.bf16 %v1283, %v1283
  %v1285 = vld [vmem:[%s4] sm:$0xff]
  %v1286 = vld [vmem:[%s4 + $0x8] sm:$0xff]
  %v1287 = vld [vmem:[%s4 + $0x10] sm:$0xff]
  %v1288 = vld [vmem:[%s4 + $0x18] sm:$0xff]
  %v1289 = vld [vmem:[%s4 + $0x20] sm:$0xff]
  %v1290 = vld [vmem:[%s4 + $0x28] sm:$0xff]
  %v1291 = vld [vmem:[%s4 + $0x30] sm:$0xff]
  %v1292 = vld [vmem:[%s4 + $0x38] sm:$0xff]
  %v1293 = vld [vmem:[%s4 + $0x40] sm:$0xff]
  %v1294 = vld [vmem:[%s4 + $0x48] sm:$0xff]
  %v1295 = vld [vmem:[%s4 + $0x50] sm:$0xff]
  %v1296 = vld [vmem:[%s4 + $0x58] sm:$0xff]
  %v1297 = vld [vmem:[%s4 + $0x60] sm:$0xff]
  %v1298 = vld [vmem:[%s4 + $0x68] sm:$0xff]
  %v1299 = vld [vmem:[%s4 + $0x70] sm:$0xff]
  %v1300 = vld [vmem:[%s4 + $0x78] sm:$0xff]
  %v1301 = vld [vmem:[%s4 + $0x80] sm:$0xff]
  %v1302 = vld [vmem:[%s4 + $0x88] sm:$0xff]
  %v1303 = vld [vmem:[%s4 + $0x90] sm:$0xff]
  %v1304 = vld [vmem:[%s4 + $0x98] sm:$0xff]
  %v1305 = vld [vmem:[%s4 + $0xa0] sm:$0xff]
  %v1306 = vld [vmem:[%s4 + $0xa8] sm:$0xff]
  %v1307 = vld [vmem:[%s4 + $0xb0] sm:$0xff]
  %v1308 = vld [vmem:[%s4 + $0xb8] sm:$0xff]
  %v1309 = vld [vmem:[%s4 + $0xc0] sm:$0xff]
  %v1310 = vld [vmem:[%s4 + $0xc8] sm:$0xff]
  %v1311 = vld [vmem:[%s4 + $0xd0] sm:$0xff]
  %v1312 = vld [vmem:[%s4 + $0xd8] sm:$0xff]
  %v1313 = vld [vmem:[%s4 + $0xe0] sm:$0xff]
  %v1314 = vld [vmem:[%s4 + $0xe8] sm:$0xff]
  %v1315 = vld [vmem:[%s4 + $0xf0] sm:$0xff]
  %v1316 = vld [vmem:[%s4 + $0xf8] sm:$0xff]
  %v1317 = vld [vmem:[#allocation4] sm:$0x3]
  %v1318 = vpack.c.bf16 %v1317, %v1317
  %v1319 = vld [vmem:[%s5] sm:$0xff]
  %v1320 = vld [vmem:[%s5 + $0x8] sm:$0xff]
  %v1321 = vld [vmem:[%s5 + $0x10] sm:$0xff]
  %v1322 = vld [vmem:[%s5 + $0x18] sm:$0xff]
  %v1323 = vld [vmem:[%s5 + $0x20] sm:$0xff]
  %v1324 = vld [vmem:[%s5 + $0x28] sm:$0xff]
  %v1325 = vld [vmem:[%s5 + $0x30] sm:$0xff]
  %v1326 = vld [vmem:[%s5 + $0x38] sm:$0xff]
  %v1327 = vld [vmem:[%s5 + $0x40] sm:$0xff]
  %v1328 = vld [vmem:[%s5 + $0x48] sm:$0xff]
  %v1329 = vld [vmem:[%s5 + $0x50] sm:$0xff]
  %v1330 = vld [vmem:[%s5 + $0x58] sm:$0xff]
  %v1331 = vld [vmem:[%s5 + $0x60] sm:$0xff]
  %v1332 = vld [vmem:[%s5 + $0x68] sm:$0xff]
  %v1333 = vld [vmem:[%s5 + $0x70] sm:$0xff]
  %v1334 = vld [vmem:[%s5 + $0x78] sm:$0xff]
  %v1335 = vld [vmem:[%s5 + $0x80] sm:$0xff]
  %v1336 = vld [vmem:[%s5 + $0x88] sm:$0xff]
  %v1337 = vld [vmem:[%s5 + $0x90] sm:$0xff]
  %v1338 = vld [vmem:[%s5 + $0x98] sm:$0xff]
  %v1339 = vld [vmem:[%s5 + $0xa0] sm:$0xff]
  %v1340 = vld [vmem:[%s5 + $0xa8] sm:$0xff]
  %v1341 = vld [vmem:[%s5 + $0xb0] sm:$0xff]
  %v1342 = vld [vmem:[%s5 + $0xb8] sm:$0xff]
  %v1343 = vld [vmem:[%s5 + $0xc0] sm:$0xff]
  %v1344 = vld [vmem:[%s5 + $0xc8] sm:$0xff]
  %v1345 = vld [vmem:[%s5 + $0xd0] sm:$0xff]
  %v1346 = vld [vmem:[%s5 + $0xd8] sm:$0xff]
  %v1347 = vld [vmem:[%s5 + $0xe0] sm:$0xff]
  %v1348 = vld [vmem:[%s5 + $0xe8] sm:$0xff]
  %v1349 = vld [vmem:[%s5 + $0xf0] sm:$0xff]
  %v1350 = vld [vmem:[%s5 + $0xf8] sm:$0xff]
  %v1383 = vunpack.c.l.b16 %v1319
  %v1384 = vunpack.c.h.b16 %v1319
  %v1385 = vunpack.c.l.b16 %v1320
  %v1386 = vunpack.c.h.b16 %v1320
  %v1387 = vunpack.c.l.b16 %v1321
  %v1388 = vunpack.c.h.b16 %v1321
  %v1389 = vunpack.c.l.b16 %v1322
  %v1390 = vunpack.c.h.b16 %v1322
  %v1391 = vunpack.c.l.b16 %v1323
  %v1392 = vunpack.c.h.b16 %v1323
  %v1393 = vunpack.c.l.b16 %v1324
  %v1394 = vunpack.c.h.b16 %v1324
  %v1395 = vunpack.c.l.b16 %v1325
  %v1396 = vunpack.c.h.b16 %v1325
  %v1397 = vunpack.c.l.b16 %v1326
  %v1398 = vunpack.c.h.b16 %v1326
  %v1399 = vunpack.c.l.b16 %v1327
  %v1400 = vunpack.c.h.b16 %v1327
  %v1401 = vunpack.c.l.b16 %v1328
  %v1402 = vunpack.c.h.b16 %v1328
  %v1403 = vunpack.c.l.b16 %v1329
  %v1404 = vunpack.c.h.b16 %v1329
  %v1405 = vunpack.c.l.b16 %v1330
  %v1406 = vunpack.c.h.b16 %v1330
  %v1407 = vunpack.c.l.b16 %v1331
  %v1408 = vunpack.c.h.b16 %v1331
  %v1409 = vunpack.c.l.b16 %v1332
  %v1410 = vunpack.c.h.b16 %v1332
  %v1411 = vunpack.c.l.b16 %v1333
  %v1412 = vunpack.c.h.b16 %v1333
  %v1413 = vunpack.c.l.b16 %v1334
  %v1414 = vunpack.c.h.b16 %v1334
  %v1415 = vunpack.c.l.b16 %v1335
  %v1416 = vunpack.c.h.b16 %v1335
  %v1417 = vunpack.c.l.b16 %v1336
  %v1418 = vunpack.c.h.b16 %v1336
  %v1419 = vunpack.c.l.b16 %v1337
  %v1420 = vunpack.c.h.b16 %v1337
  %v1421 = vunpack.c.l.b16 %v1338
  %v1422 = vunpack.c.h.b16 %v1338
  %v1423 = vunpack.c.l.b16 %v1339
  %v1424 = vunpack.c.h.b16 %v1339
  %v1425 = vunpack.c.l.b16 %v1340
  %v1426 = vunpack.c.h.b16 %v1340
  %v1427 = vunpack.c.l.b16 %v1341
  %v1428 = vunpack.c.h.b16 %v1341
  %v1429 = vunpack.c.l.b16 %v1342
  %v1430 = vunpack.c.h.b16 %v1342
  %v1431 = vunpack.c.l.b16 %v1343
  %v1432 = vunpack.c.h.b16 %v1343
  %v1433 = vunpack.c.l.b16 %v1344
  %v1434 = vunpack.c.h.b16 %v1344
  %v1435 = vunpack.c.l.b16 %v1345
  %v1436 = vunpack.c.h.b16 %v1345
  %v1437 = vunpack.c.l.b16 %v1346
  %v1438 = vunpack.c.h.b16 %v1346
  %v1439 = vunpack.c.l.b16 %v1347
  %v1440 = vunpack.c.h.b16 %v1347
  %v1441 = vunpack.c.l.b16 %v1348
  %v1442 = vunpack.c.h.b16 %v1348
  %v1443 = vunpack.c.l.b16 %v1349
  %v1444 = vunpack.c.h.b16 %v1349
  %v1445 = vunpack.c.l.b16 %v1350
  %v1446 = vunpack.c.h.b16 %v1350
  %v1447 = vpack.c.b16 %v1387, %v1383
  %v1448 = vpack.c.b16 %v1388, %v1384
  %v1449 = vpack.c.b16 %v1389, %v1385
  %v1450 = vpack.c.b16 %v1390, %v1386
  %v1451 = vpack.c.b16 %v1395, %v1391
  %v1452 = vpack.c.b16 %v1396, %v1392
  %v1453 = vpack.c.b16 %v1397, %v1393
  %v1454 = vpack.c.b16 %v1398, %v1394
  %v1455 = vpack.c.b16 %v1403, %v1399
  %v1456 = vpack.c.b16 %v1404, %v1400
  %v1457 = vpack.c.b16 %v1405, %v1401
  %v1458 = vpack.c.b16 %v1406, %v1402
  %v1459 = vpack.c.b16 %v1411, %v1407
  %v1460 = vpack.c.b16 %v1412, %v1408
  %v1461 = vpack.c.b16 %v1413, %v1409
  %v1462 = vpack.c.b16 %v1414, %v1410
  %v1463 = vpack.c.b16 %v1419, %v1415
  %v1464 = vpack.c.b16 %v1420, %v1416
  %v1465 = vpack.c.b16 %v1421, %v1417
  %v1466 = vpack.c.b16 %v1422, %v1418
  %v1467 = vpack.c.b16 %v1427, %v1423
  %v1468 = vpack.c.b16 %v1428, %v1424
  %v1469 = vpack.c.b16 %v1429, %v1425
  %v1470 = vpack.c.b16 %v1430, %v1426
  %v1471 = vpack.c.b16 %v1435, %v1431
  %v1472 = vpack.c.b16 %v1436, %v1432
  %v1473 = vpack.c.b16 %v1437, %v1433
  %v1474 = vpack.c.b16 %v1438, %v1434
  %v1475 = vpack.c.b16 %v1443, %v1439
  %v1476 = vpack.c.b16 %v1444, %v1440
  %v1477 = vpack.c.b16 %v1445, %v1441
  %v1478 = vpack.c.b16 %v1446, %v1442
  %1511 = vmatprep.subr.bf16.mxu0 %v1476
  %1512 = vmatpush1.bf16.msra.mxu0 %v1475
  %1513 = vmatprep.subr.bf16.mxu0 %v1472
  %1514 = vmatpush1.bf16.msra.mxu0 %v1471
  %1515 = vmatprep.subr.bf16.mxu0 %v1468
  %1516 = vmatpush1.bf16.msra.mxu0 %v1467
  %1517 = vmatprep.subr.bf16.mxu0 %v1464
  %1518 = vmatpush1.bf16.msra.mxu0 %v1463
  %1519 = vmatprep.subr.bf16.mxu0 %v1460
  %1520 = vmatpush1.bf16.msra.mxu0 %v1459
  %1521 = vmatprep.subr.bf16.mxu0 %v1456
  %1522 = vmatpush1.bf16.msra.mxu0 %v1455
  %1523 = vmatprep.subr.bf16.mxu0 %v1452
  %1524 = vmatpush1.bf16.msra.mxu0 %v1451
  %1525 = vmatprep.subr.bf16.mxu0 %v1448
  %1526 = vmatpush1.bf16.msra.mxu0 %v1447
  %1527 = vmatprep.subr.bf16.mxu0 0
  %1528 = vmatpush2.bf16.msra.mxu0 0
  %1529 = vmatprep.subr.bf16.mxu0 0
  %1530 = vmatpush2.bf16.msra.mxu0 0
  %1531 = vmatprep.subr.bf16.mxu0 0
  %1532 = vmatpush2.bf16.msra.mxu0 0
  %1533 = vmatprep.subr.bf16.mxu0 0
  %1534 = vmatpush2.bf16.msra.mxu0 0
  %1535 = vmatprep.subr.bf16.mxu0 0
  %1536 = vmatpush2.bf16.msra.mxu0 0
  %1537 = vmatprep.subr.bf16.mxu0 0
  %1538 = vmatpush2.bf16.msra.mxu0 0
  %1539 = vmatprep.subr.bf16.mxu0 0
  %1540 = vmatpush2.bf16.msra.mxu0 0
  %1541 = vmatprep.subr.bf16.mxu0 0
  %1542 = vmatpush2.bf16.msra.mxu0 0
  %1543 = vmatprep.mubr.bf16.mxu0 0
  %1544 = vmatmul.mubr.bf16.gmra.mxu0 %v1318
  %v1545 = vpop.f32.mrf.mxu0
  %v1546 = vadd.f32 0.0, %v1545
  %v1547 = vpop.f32.mrf.mxu0
  %v1548 = vadd.f32 0.0, %v1547
  %v1549 = vpop.f32.mrf.mxu0
  %v1550 = vpop.f32.mrf.mxu0
  %1551 = vdwg.mxu0
  %1552 = vmatprep.subr.bf16.mxu0 %v1478
  %1553 = vmatpush1.bf16.msra.mxu0 %v1477
  %1554 = vmatprep.subr.bf16.mxu0 %v1474
  %1555 = vmatpush1.bf16.msra.mxu0 %v1473
  %1556 = vmatprep.subr.bf16.mxu0 %v1470
  %1557 = vmatpush1.bf16.msra.mxu0 %v1469
  %1558 = vmatprep.subr.bf16.mxu0 %v1466
  %1559 = vmatpush1.bf16.msra.mxu0 %v1465
  %1560 = vmatprep.subr.bf16.mxu0 %v1462
  %1561 = vmatpush1.bf16.msra.mxu0 %v1461
  %1562 = vmatprep.subr.bf16.mxu0 %v1458
  %1563 = vmatpush1.bf16.msra.mxu0 %v1457
  %1564 = vmatprep.subr.bf16.mxu0 %v1454
  %1565 = vmatpush1.bf16.msra.mxu0 %v1453
  %1566 = vmatprep.subr.bf16.mxu0 %v1450
  %1567 = vmatpush1.bf16.msra.mxu0 %v1449
  %1568 = vmatprep.subr.bf16.mxu0 0
  %1569 = vmatpush2.bf16.msra.mxu0 0
  %1570 = vmatprep.subr.bf16.mxu0 0
  %1571 = vmatpush2.bf16.msra.mxu0 0
  %1572 = vmatprep.subr.bf16.mxu0 0
  %1573 = vmatpush2.bf16.msra.mxu0 0
  %1574 = vmatprep.subr.bf16.mxu0 0
  %1575 = vmatpush2.bf16.msra.mxu0 0
  %1576 = vmatprep.subr.bf16.mxu0 0
  %1577 = vmatpush2.bf16.msra.mxu0 0
  %1578 = vmatprep.subr.bf16.mxu0 0
  %1579 = vmatpush2.bf16.msra.mxu0 0
  %1580 = vmatprep.subr.bf16.mxu0 0
  %1581 = vmatpush2.bf16.msra.mxu0 0
  %1582 = vmatprep.subr.bf16.mxu0 0
  %1583 = vmatpush2.bf16.msra.mxu0 0
  %1584 = vmatprep.mubr.bf16.mxu0 0
  %1585 = vmatmul.mubr.bf16.gmra.mxu0 %v1318
  %v1586 = vpop.f32.mrf.mxu0
  %v1587 = vadd.f32 0.0, %v1586
  %v1588 = vpop.f32.mrf.mxu0
  %v1589 = vadd.f32 0.0, %v1588
  %v1590 = vpop.f32.mrf.mxu0
  %v1591 = vpop.f32.mrf.mxu0
  %1592 = vdwg.mxu0
  %v1625 = vunpack.c.l.b16 %v1285
  %v1626 = vunpack.c.h.b16 %v1285
  %v1627 = vunpack.c.l.b16 %v1286
  %v1628 = vunpack.c.h.b16 %v1286
  %v1629 = vunpack.c.l.b16 %v1287
  %v1630 = vunpack.c.h.b16 %v1287
  %v1631 = vunpack.c.l.b16 %v1288
  %v1632 = vunpack.c.h.b16 %v1288
  %v1633 = vunpack.c.l.b16 %v1289
  %v1634 = vunpack.c.h.b16 %v1289
  %v1635 = vunpack.c.l.b16 %v1290
  %v1636 = vunpack.c.h.b16 %v1290
  %v1637 = vunpack.c.l.b16 %v1291
  %v1638 = vunpack.c.h.b16 %v1291
  %v1639 = vunpack.c.l.b16 %v1292
  %v1640 = vunpack.c.h.b16 %v1292
  %v1641 = vunpack.c.l.b16 %v1293
  %v1642 = vunpack.c.h.b16 %v1293
  %v1643 = vunpack.c.l.b16 %v1294
  %v1644 = vunpack.c.h.b16 %v1294
  %v1645 = vunpack.c.l.b16 %v1295
  %v1646 = vunpack.c.h.b16 %v1295
  %v1647 = vunpack.c.l.b16 %v1296
  %v1648 = vunpack.c.h.b16 %v1296
  %v1649 = vunpack.c.l.b16 %v1297
  %v1650 = vunpack.c.h.b16 %v1297
  %v1651 = vunpack.c.l.b16 %v1298
  %v1652 = vunpack.c.h.b16 %v1298
  %v1653 = vunpack.c.l.b16 %v1299
  %v1654 = vunpack.c.h.b16 %v1299
  %v1655 = vunpack.c.l.b16 %v1300
  %v1656 = vunpack.c.h.b16 %v1300
  %v1657 = vunpack.c.l.b16 %v1301
  %v1658 = vunpack.c.h.b16 %v1301
  %v1659 = vunpack.c.l.b16 %v1302
  %v1660 = vunpack.c.h.b16 %v1302
  %v1661 = vunpack.c.l.b16 %v1303
  %v1662 = vunpack.c.h.b16 %v1303
  %v1663 = vunpack.c.l.b16 %v1304
  %v1664 = vunpack.c.h.b16 %v1304
  %v1665 = vunpack.c.l.b16 %v1305
  %v1666 = vunpack.c.h.b16 %v1305
  %v1667 = vunpack.c.l.b16 %v1306
  %v1668 = vunpack.c.h.b16 %v1306
  %v1669 = vunpack.c.l.b16 %v1307
  %v1670 = vunpack.c.h.b16 %v1307
  %v1671 = vunpack.c.l.b16 %v1308
  %v1672 = vunpack.c.h.b16 %v1308
  %v1673 = vunpack.c.l.b16 %v1309
  %v1674 = vunpack.c.h.b16 %v1309
  %v1675 = vunpack.c.l.b16 %v1310
  %v1676 = vunpack.c.h.b16 %v1310
  %v1677 = vunpack.c.l.b16 %v1311
  %v1678 = vunpack.c.h.b16 %v1311
  %v1679 = vunpack.c.l.b16 %v1312
  %v1680 = vunpack.c.h.b16 %v1312
  %v1681 = vunpack.c.l.b16 %v1313
  %v1682 = vunpack.c.h.b16 %v1313
  %v1683 = vunpack.c.l.b16 %v1314
  %v1684 = vunpack.c.h.b16 %v1314
  %v1685 = vunpack.c.l.b16 %v1315
  %v1686 = vunpack.c.h.b16 %v1315
  %v1687 = vunpack.c.l.b16 %v1316
  %v1688 = vunpack.c.h.b16 %v1316
  %v1689 = vpack.c.b16 %v1629, %v1625
  %v1690 = vpack.c.b16 %v1630, %v1626
  %v1691 = vpack.c.b16 %v1631, %v1627
  %v1692 = vpack.c.b16 %v1632, %v1628
  %v1693 = vpack.c.b16 %v1637, %v1633
  %v1694 = vpack.c.b16 %v1638, %v1634
  %v1695 = vpack.c.b16 %v1639, %v1635
  %v1696 = vpack.c.b16 %v1640, %v1636
  %v1697 = vpack.c.b16 %v1645, %v1641
  %v1698 = vpack.c.b16 %v1646, %v1642
  %v1699 = vpack.c.b16 %v1647, %v1643
  %v1700 = vpack.c.b16 %v1648, %v1644
  %v1701 = vpack.c.b16 %v1653, %v1649
  %v1702 = vpack.c.b16 %v1654, %v1650
  %v1703 = vpack.c.b16 %v1655, %v1651
  %v1704 = vpack.c.b16 %v1656, %v1652
  %v1705 = vpack.c.b16 %v1661, %v1657
  %v1706 = vpack.c.b16 %v1662, %v1658
  %v1707 = vpack.c.b16 %v1663, %v1659
  %v1708 = vpack.c.b16 %v1664, %v1660
  %v1709 = vpack.c.b16 %v1669, %v1665
  %v1710 = vpack.c.b16 %v1670, %v1666
  %v1711 = vpack.c.b16 %v1671, %v1667
  %v1712 = vpack.c.b16 %v1672, %v1668
  %v1713 = vpack.c.b16 %v1677, %v1673
  %v1714 = vpack.c.b16 %v1678, %v1674
  %v1715 = vpack.c.b16 %v1679, %v1675
  %v1716 = vpack.c.b16 %v1680, %v1676
  %v1717 = vpack.c.b16 %v1685, %v1681
  %v1718 = vpack.c.b16 %v1686, %v1682
  %v1719 = vpack.c.b16 %v1687, %v1683
  %v1720 = vpack.c.b16 %v1688, %v1684
  %1753 = vmatprep.subr.bf16.mxu0 %v1718
  %1754 = vmatpush1.bf16.msra.mxu0 %v1717
  %1755 = vmatprep.subr.bf16.mxu0 %v1714
  %1756 = vmatpush1.bf16.msra.mxu0 %v1713
  %1757 = vmatprep.subr.bf16.mxu0 %v1710
  %1758 = vmatpush1.bf16.msra.mxu0 %v1709
  %1759 = vmatprep.subr.bf16.mxu0 %v1706
  %1760 = vmatpush1.bf16.msra.mxu0 %v1705
  %1761 = vmatprep.subr.bf16.mxu0 %v1702
  %1762 = vmatpush1.bf16.msra.mxu0 %v1701
  %1763 = vmatprep.subr.bf16.mxu0 %v1698
  %1764 = vmatpush1.bf16.msra.mxu0 %v1697
  %1765 = vmatprep.subr.bf16.mxu0 %v1694
  %1766 = vmatpush1.bf16.msra.mxu0 %v1693
  %1767 = vmatprep.subr.bf16.mxu0 %v1690
  %1768 = vmatpush1.bf16.msra.mxu0 %v1689
  %1769 = vmatprep.subr.bf16.mxu0 0
  %1770 = vmatpush2.bf16.msra.mxu0 0
  %1771 = vmatprep.subr.bf16.mxu0 0
  %1772 = vmatpush2.bf16.msra.mxu0 0
  %1773 = vmatprep.subr.bf16.mxu0 0
  %1774 = vmatpush2.bf16.msra.mxu0 0
  %1775 = vmatprep.subr.bf16.mxu0 0
  %1776 = vmatpush2.bf16.msra.mxu0 0
  %1777 = vmatprep.subr.bf16.mxu0 0
  %1778 = vmatpush2.bf16.msra.mxu0 0
  %1779 = vmatprep.subr.bf16.mxu0 0
  %1780 = vmatpush2.bf16.msra.mxu0 0
  %1781 = vmatprep.subr.bf16.mxu0 0
  %1782 = vmatpush2.bf16.msra.mxu0 0
  %1783 = vmatprep.subr.bf16.mxu0 0
  %1784 = vmatpush2.bf16.msra.mxu0 0
  %1785 = vmatprep.mubr.bf16.mxu0 0
  %1786 = vmatmul.mubr.bf16.gmra.mxu0 %v1284
  %v1787 = vpop.f32.mrf.mxu0
  %v1788 = vadd.f32 %v1546, %v1787
  %v1789 = vpop.f32.mrf.mxu0
  %v1790 = vadd.f32 %v1548, %v1789
  %v1791 = vpop.f32.mrf.mxu0
  %v1792 = vpop.f32.mrf.mxu0
  %1793 = vdwg.mxu0
  %1794 = vmatprep.subr.bf16.mxu0 %v1720
  %1795 = vmatpush1.bf16.msra.mxu0 %v1719
  %1796 = vmatprep.subr.bf16.mxu0 %v1716
  %1797 = vmatpush1.bf16.msra.mxu0 %v1715
  %1798 = vmatprep.subr.bf16.mxu0 %v1712
  %1799 = vmatpush1.bf16.msra.mxu0 %v1711
  %1800 = vmatprep.subr.bf16.mxu0 %v1708
  %1801 = vmatpush1.bf16.msra.mxu0 %v1707
  %1802 = vmatprep.subr.bf16.mxu0 %v1704
  %1803 = vmatpush1.bf16.msra.mxu0 %v1703
  %1804 = vmatprep.subr.bf16.mxu0 %v1700
  %1805 = vmatpush1.bf16.msra.mxu0 %v1699
  %1806 = vmatprep.subr.bf16.mxu0 %v1696
  %1807 = vmatpush1.bf16.msra.mxu0 %v1695
  %1808 = vmatprep.subr.bf16.mxu0 %v1692
  %1809 = vmatpush1.bf16.msra.mxu0 %v1691
  %1810 = vmatprep.subr.bf16.mxu0 0
  %1811 = vmatpush2.bf16.msra.mxu0 0
  %1812 = vmatprep.subr.bf16.mxu0 0
  %1813 = vmatpush2.bf16.msra.mxu0 0
  %1814 = vmatprep.subr.bf16.mxu0 0
  %1815 = vmatpush2.bf16.msra.mxu0 0
  %1816 = vmatprep.subr.bf16.mxu0 0
  %1817 = vmatpush2.bf16.msra.mxu0 0
  %1818 = vmatprep.subr.bf16.mxu0 0
  %1819 = vmatpush2.bf16.msra.mxu0 0
  %1820 = vmatprep.subr.bf16.mxu0 0
  %1821 = vmatpush2.bf16.msra.mxu0 0
  %1822 = vmatprep.subr.bf16.mxu0 0
  %1823 = vmatpush2.bf16.msra.mxu0 0
  %1824 = vmatprep.subr.bf16.mxu0 0
  %1825 = vmatpush2.bf16.msra.mxu0 0
  %1826 = vmatprep.mubr.bf16.mxu0 0
  %1827 = vmatmul.mubr.bf16.gmra.mxu0 %v1284
  %v1828 = vpop.f32.mrf.mxu0
  %v1829 = vadd.f32 %v1587, %v1828
  %v1830 = vpop.f32.mrf.mxu0
  %v1831 = vadd.f32 %v1589, %v1830
  %v1832 = vpop.f32.mrf.mxu0
  %v1833 = vpop.f32.mrf.mxu0
  %1834 = vdwg.mxu0
  %v1835 = vld [vmem:[%s6] sm:$0xf]
  %v1837 = vlaneseq
  %v1838 = vshrl.u32 %v1837, 7
  %v1839 = vsub.s32 0, %v1838
  %v1840 = vrot.slane %v1835, %v1839
  %v1841 = vlaneseq
  %v1842 = vshrl.u32 %v1841, 7
  %v1843 = vsub.s32 1, %v1842
  %v1844 = vrot.slane %v1835, %v1843
  %v1845 = vlaneseq
  %v1846 = vshrl.u32 %v1845, 7
  %v1847 = vsub.s32 2, %v1846
  %v1848 = vrot.slane %v1835, %v1847
  %v1849 = vlaneseq
  %v1850 = vshrl.u32 %v1849, 7
  %v1851 = vsub.s32 3, %v1850
  %v1852 = vrot.slane %v1835, %v1851
  %v1857 = vadd.f32 %v1788, %v1840
  %v1858 = vadd.f32 %v1790, %v1844
  %v1859 = vadd.f32 %v1829, %v1848
  %v1860 = vadd.f32 %v1831, %v1852
  %v1861 = vld [vmem:[#allocation5] sm:$0x3]
  %v1862 = vxor.u32 %v1857, 2147483648
  %v1863 = vmul.f32 %v1862, 1.442695
  %v1864 = vpow.pop %v1863
  %v1865 = vadd.f32 %v1864, 1.0
  %v1866 = vrcp.pop %v1865
  %v1867 = vmul.f32 1.0, %v1866
  %v1868 = vxor.u32 %v1858, 2147483648
  %v1869 = vmul.f32 %v1868, 1.442695
  %v1870 = vpow.pop %v1869
  %v1871 = vadd.f32 %v1870, 1.0
  %v1872 = vrcp.pop %v1871
  %v1873 = vmul.f32 1.0, %v1872
  %v1874 = vtanh.pop %v1859
  %v1875 = vxor.u32 %v1860, 2147483648
  %v1876 = vmul.f32 %v1875, 1.442695
  %v1877 = vpow.pop %v1876
  %v1878 = vadd.f32 %v1877, 1.0
  %v1879 = vrcp.pop %v1878
  %v1880 = vmul.f32 1.0, %v1879
  %v1881 = vmul.f32 %v1873, %v1861
  %v1882 = vmul.f32 %v1867, %v1874
  %v1883 = vadd.f32 %v1881, %v1882
  %v1884 = vtanh.pop %v1883
  %v1885 = vmul.f32 %v1880, %v1884
  %1886 = vst [vmem:[#allocation4] sm:$0x3] %v1885
  %1887 = vst [vmem:[#allocation5] sm:$0x3] %v1883
  %v1888 = vld [vmem:[#allocation4] sm:$0x3]
  %s1889 = scalar_lea.vmem %s7, 2
  %1890 = vst [vmem:[%s1889] sm:$0x3] %v1888
  %s1891 = scalar_lea.vmem %s0, 8
  %v1892 = vld [vmem:[%s1891] sm:$0xff]
  %v1893 = vld [vmem:[#allocation2] sm:$0x3]
  %v1894 = vpack.c.bf16 %v1893, %v1893
  %v1895 = vld [vmem:[%s3] sm:$0xff]
  %v1896 = vld [vmem:[%s3 + $0x8] sm:$0xff]
  %v1897 = vld [vmem:[%s3 + $0x10] sm:$0xff]
  %v1898 = vld [vmem:[%s3 + $0x18] sm:$0xff]
  %v1899 = vld [vmem:[%s3 + $0x20] sm:$0xff]
  %v1900 = vld [vmem:[%s3 + $0x28] sm:$0xff]
  %v1901 = vld [vmem:[%s3 + $0x30] sm:$0xff]
  %v1902 = vld [vmem:[%s3 + $0x38] sm:$0xff]
  %v1903 = vld [vmem:[%s3 + $0x40] sm:$0xff]
  %v1904 = vld [vmem:[%s3 + $0x48] sm:$0xff]
  %v1905 = vld [vmem:[%s3 + $0x50] sm:$0xff]
  %v1906 = vld [vmem:[%s3 + $0x58] sm:$0xff]
  %v1907 = vld [vmem:[%s3 + $0x60] sm:$0xff]
  %v1908 = vld [vmem:[%s3 + $0x68] sm:$0xff]
  %v1909 = vld [vmem:[%s3 + $0x70] sm:$0xff]
  %v1910 = vld [vmem:[%s3 + $0x78] sm:$0xff]
  %v1911 = vld [vmem:[%s3 + $0x80] sm:$0xff]
  %v1912 = vld [vmem:[%s3 + $0x88] sm:$0xff]
  %v1913 = vld [vmem:[%s3 + $0x90] sm:$0xff]
  %v1914 = vld [vmem:[%s3 + $0x98] sm:$0xff]
  %v1915 = vld [vmem:[%s3 + $0xa0] sm:$0xff]
  %v1916 = vld [vmem:[%s3 + $0xa8] sm:$0xff]
  %v1917 = vld [vmem:[%s3 + $0xb0] sm:$0xff]
  %v1918 = vld [vmem:[%s3 + $0xb8] sm:$0xff]
  %v1919 = vld [vmem:[%s3 + $0xc0] sm:$0xff]
  %v1920 = vld [vmem:[%s3 + $0xc8] sm:$0xff]
  %v1921 = vld [vmem:[%s3 + $0xd0] sm:$0xff]
  %v1922 = vld [vmem:[%s3 + $0xd8] sm:$0xff]
  %v1923 = vld [vmem:[%s3 + $0xe0] sm:$0xff]
  %v1924 = vld [vmem:[%s3 + $0xe8] sm:$0xff]
  %v1925 = vld [vmem:[%s3 + $0xf0] sm:$0xff]
  %v1926 = vld [vmem:[%s3 + $0xf8] sm:$0xff]
  %v1959 = vunpack.c.l.b16 %v1895
  %v1960 = vunpack.c.h.b16 %v1895
  %v1961 = vunpack.c.l.b16 %v1896
  %v1962 = vunpack.c.h.b16 %v1896
  %v1963 = vunpack.c.l.b16 %v1897
  %v1964 = vunpack.c.h.b16 %v1897
  %v1965 = vunpack.c.l.b16 %v1898
  %v1966 = vunpack.c.h.b16 %v1898
  %v1967 = vunpack.c.l.b16 %v1899
  %v1968 = vunpack.c.h.b16 %v1899
  %v1969 = vunpack.c.l.b16 %v1900
  %v1970 = vunpack.c.h.b16 %v1900
  %v1971 = vunpack.c.l.b16 %v1901
  %v1972 = vunpack.c.h.b16 %v1901
  %v1973 = vunpack.c.l.b16 %v1902
  %v1974 = vunpack.c.h.b16 %v1902
  %v1975 = vunpack.c.l.b16 %v1903
  %v1976 = vunpack.c.h.b16 %v1903
  %v1977 = vunpack.c.l.b16 %v1904
  %v1978 = vunpack.c.h.b16 %v1904
  %v1979 = vunpack.c.l.b16 %v1905
  %v1980 = vunpack.c.h.b16 %v1905
  %v1981 = vunpack.c.l.b16 %v1906
  %v1982 = vunpack.c.h.b16 %v1906
  %v1983 = vunpack.c.l.b16 %v1907
  %v1984 = vunpack.c.h.b16 %v1907
  %v1985 = vunpack.c.l.b16 %v1908
  %v1986 = vunpack.c.h.b16 %v1908
  %v1987 = vunpack.c.l.b16 %v1909
  %v1988 = vunpack.c.h.b16 %v1909
  %v1989 = vunpack.c.l.b16 %v1910
  %v1990 = vunpack.c.h.b16 %v1910
  %v1991 = vunpack.c.l.b16 %v1911
  %v1992 = vunpack.c.h.b16 %v1911
  %v1993 = vunpack.c.l.b16 %v1912
  %v1994 = vunpack.c.h.b16 %v1912
  %v1995 = vunpack.c.l.b16 %v1913
  %v1996 = vunpack.c.h.b16 %v1913
  %v1997 = vunpack.c.l.b16 %v1914
  %v1998 = vunpack.c.h.b16 %v1914
  %v1999 = vunpack.c.l.b16 %v1915
  %v2000 = vunpack.c.h.b16 %v1915
  %v2001 = vunpack.c.l.b16 %v1916
  %v2002 = vunpack.c.h.b16 %v1916
  %v2003 = vunpack.c.l.b16 %v1917
  %v2004 = vunpack.c.h.b16 %v1917
  %v2005 = vunpack.c.l.b16 %v1918
  %v2006 = vunpack.c.h.b16 %v1918
  %v2007 = vunpack.c.l.b16 %v1919
  %v2008 = vunpack.c.h.b16 %v1919
  %v2009 = vunpack.c.l.b16 %v1920
  %v2010 = vunpack.c.h.b16 %v1920
  %v2011 = vunpack.c.l.b16 %v1921
  %v2012 = vunpack.c.h.b16 %v1921
  %v2013 = vunpack.c.l.b16 %v1922
  %v2014 = vunpack.c.h.b16 %v1922
  %v2015 = vunpack.c.l.b16 %v1923
  %v2016 = vunpack.c.h.b16 %v1923
  %v2017 = vunpack.c.l.b16 %v1924
  %v2018 = vunpack.c.h.b16 %v1924
  %v2019 = vunpack.c.l.b16 %v1925
  %v2020 = vunpack.c.h.b16 %v1925
  %v2021 = vunpack.c.l.b16 %v1926
  %v2022 = vunpack.c.h.b16 %v1926
  %v2023 = vpack.c.b16 %v1963, %v1959
  %v2024 = vpack.c.b16 %v1964, %v1960
  %v2025 = vpack.c.b16 %v1965, %v1961
  %v2026 = vpack.c.b16 %v1966, %v1962
  %v2027 = vpack.c.b16 %v1971, %v1967
  %v2028 = vpack.c.b16 %v1972, %v1968
  %v2029 = vpack.c.b16 %v1973, %v1969
  %v2030 = vpack.c.b16 %v1974, %v1970
  %v2031 = vpack.c.b16 %v1979, %v1975
  %v2032 = vpack.c.b16 %v1980, %v1976
  %v2033 = vpack.c.b16 %v1981, %v1977
  %v2034 = vpack.c.b16 %v1982, %v1978
  %v2035 = vpack.c.b16 %v1987, %v1983
  %v2036 = vpack.c.b16 %v1988, %v1984
  %v2037 = vpack.c.b16 %v1989, %v1985
  %v2038 = vpack.c.b16 %v1990, %v1986
  %v2039 = vpack.c.b16 %v1995, %v1991
  %v2040 = vpack.c.b16 %v1996, %v1992
  %v2041 = vpack.c.b16 %v1997, %v1993
  %v2042 = vpack.c.b16 %v1998, %v1994
  %v2043 = vpack.c.b16 %v2003, %v1999
  %v2044 = vpack.c.b16 %v2004, %v2000
  %v2045 = vpack.c.b16 %v2005, %v2001
  %v2046 = vpack.c.b16 %v2006, %v2002
  %v2047 = vpack.c.b16 %v2011, %v2007
  %v2048 = vpack.c.b16 %v2012, %v2008
  %v2049 = vpack.c.b16 %v2013, %v2009
  %v2050 = vpack.c.b16 %v2014, %v2010
  %v2051 = vpack.c.b16 %v2019, %v2015
  %v2052 = vpack.c.b16 %v2020, %v2016
  %v2053 = vpack.c.b16 %v2021, %v2017
  %v2054 = vpack.c.b16 %v2022, %v2018
  %2087 = vmatprep.subr.bf16.mxu0 %v2052
  %2088 = vmatpush1.bf16.msra.mxu0 %v2051
  %2089 = vmatprep.subr.bf16.mxu0 %v2048
  %2090 = vmatpush1.bf16.msra.mxu0 %v2047
  %2091 = vmatprep.subr.bf16.mxu0 %v2044
  %2092 = vmatpush1.bf16.msra.mxu0 %v2043
  %2093 = vmatprep.subr.bf16.mxu0 %v2040
  %2094 = vmatpush1.bf16.msra.mxu0 %v2039
  %2095 = vmatprep.subr.bf16.mxu0 %v2036
  %2096 = vmatpush1.bf16.msra.mxu0 %v2035
  %2097 = vmatprep.subr.bf16.mxu0 %v2032
  %2098 = vmatpush1.bf16.msra.mxu0 %v2031
  %2099 = vmatprep.subr.bf16.mxu0 %v2028
  %2100 = vmatpush1.bf16.msra.mxu0 %v2027
  %2101 = vmatprep.subr.bf16.mxu0 %v2024
  %2102 = vmatpush1.bf16.msra.mxu0 %v2023
  %2103 = vmatprep.subr.bf16.mxu0 0
  %2104 = vmatpush2.bf16.msra.mxu0 0
  %2105 = vmatprep.subr.bf16.mxu0 0
  %2106 = vmatpush2.bf16.msra.mxu0 0
  %2107 = vmatprep.subr.bf16.mxu0 0
  %2108 = vmatpush2.bf16.msra.mxu0 0
  %2109 = vmatprep.subr.bf16.mxu0 0
  %2110 = vmatpush2.bf16.msra.mxu0 0
  %2111 = vmatprep.subr.bf16.mxu0 0
  %2112 = vmatpush2.bf16.msra.mxu0 0
  %2113 = vmatprep.subr.bf16.mxu0 0
  %2114 = vmatpush2.bf16.msra.mxu0 0
  %2115 = vmatprep.subr.bf16.mxu0 0
  %2116 = vmatpush2.bf16.msra.mxu0 0
  %2117 = vmatprep.subr.bf16.mxu0 0
  %2118 = vmatpush2.bf16.msra.mxu0 0
  %2119 = vmatprep.mubr.bf16.mxu0 0
  %2120 = vmatmul.mubr.bf16.gmra.mxu0 %v1894
  %v2121 = vpop.f32.mrf.mxu0
  %v2122 = vadd.f32 0.0, %v2121
  %v2123 = vpop.f32.mrf.mxu0
  %v2124 = vadd.f32 0.0, %v2123
  %v2125 = vpop.f32.mrf.mxu0
  %v2126 = vpop.f32.mrf.mxu0
  %2127 = vdwg.mxu0
  %2128 = vmatprep.subr.bf16.mxu0 %v2054
  %2129 = vmatpush1.bf16.msra.mxu0 %v2053
  %2130 = vmatprep.subr.bf16.mxu0 %v2050
  %2131 = vmatpush1.bf16.msra.mxu0 %v2049
  %2132 = vmatprep.subr.bf16.mxu0 %v2046
  %2133 = vmatpush1.bf16.msra.mxu0 %v2045
  %2134 = vmatprep.subr.bf16.mxu0 %v2042
  %2135 = vmatpush1.bf16.msra.mxu0 %v2041
  %2136 = vmatprep.subr.bf16.mxu0 %v2038
  %2137 = vmatpush1.bf16.msra.mxu0 %v2037
  %2138 = vmatprep.subr.bf16.mxu0 %v2034
  %2139 = vmatpush1.bf16.msra.mxu0 %v2033
  %2140 = vmatprep.subr.bf16.mxu0 %v2030
  %2141 = vmatpush1.bf16.msra.mxu0 %v2029
  %2142 = vmatprep.subr.bf16.mxu0 %v2026
  %2143 = vmatpush1.bf16.msra.mxu0 %v2025
  %2144 = vmatprep.subr.bf16.mxu0 0
  %2145 = vmatpush2.bf16.msra.mxu0 0
  %2146 = vmatprep.subr.bf16.mxu0 0
  %2147 = vmatpush2.bf16.msra.mxu0 0
  %2148 = vmatprep.subr.bf16.mxu0 0
  %2149 = vmatpush2.bf16.msra.mxu0 0
  %2150 = vmatprep.subr.bf16.mxu0 0
  %2151 = vmatpush2.bf16.msra.mxu0 0
  %2152 = vmatprep.subr.bf16.mxu0 0
  %2153 = vmatpush2.bf16.msra.mxu0 0
  %2154 = vmatprep.subr.bf16.mxu0 0
  %2155 = vmatpush2.bf16.msra.mxu0 0
  %2156 = vmatprep.subr.bf16.mxu0 0
  %2157 = vmatpush2.bf16.msra.mxu0 0
  %2158 = vmatprep.subr.bf16.mxu0 0
  %2159 = vmatpush2.bf16.msra.mxu0 0
  %2160 = vmatprep.mubr.bf16.mxu0 0
  %2161 = vmatmul.mubr.bf16.gmra.mxu0 %v1894
  %v2162 = vpop.f32.mrf.mxu0
  %v2163 = vadd.f32 0.0, %v2162
  %v2164 = vpop.f32.mrf.mxu0
  %v2165 = vadd.f32 0.0, %v2164
  %v2166 = vpop.f32.mrf.mxu0
  %v2167 = vpop.f32.mrf.mxu0
  %2168 = vdwg.mxu0
  %v2173 = vcombine.low %v2122, %v2124
  %v2174 = vcombine.low %v2163, %v2165
  %v2176 = vunpack.c.l.s4 1983009808
  %v2177 = vunpack.c.0.s8 %v2176
  %v2178 = vlaneseq
  %v2179 = vshrl.u32 %v2178, 7
  %v2180 = vsub.s32 %v2177, %v2179
  %v2181 = vrot.slane %v2173, %v2180
  %v2183 = vunpack.c.l.s4 1983009808
  %v2184 = vunpack.c.0.s8 %v2183
  %v2185 = vlaneseq
  %v2186 = vshrl.u32 %v2185, 7
  %v2187 = vsub.s32 %v2184, %v2186
  %v2188 = vrot.slane %v2174, %v2187
  %v2189 = vcombine.low %v2181, %v2188
  %v2191 = vadd.f32 %v1892, %v2189
  %v2192 = vld [vmem:[#allocation6] sm:$0xff]
  %v2193 = vadd.f32 %v2191, %v2192
  %v2194 = vld [vmem:[#allocation3] sm:$0x3]
  %v2195 = vxor.u32 %v2193, 2147483648
  %v2196 = vmul.f32 %v2195, 1.442695
  %v2197 = vpow.pop %v2196
  %v2198 = vadd.f32 %v2197, 1.0
  %v2199 = vrcp.pop %v2198
  %v2200 = vmul.f32 1.0, %v2199
  %v2202 = vrot.slane %v2193, 2
  %v2204 = vxor.u32 %v2202, 2147483648
  %v2205 = vmul.f32 %v2204, 1.442695
  %v2206 = vpow.pop %v2205
  %v2207 = vadd.f32 %v2206, 1.0
  %v2208 = vrcp.pop %v2207
  %v2209 = vmul.f32 1.0, %v2208
  %v2210 = vrot.slane %v2193, 4
  %v2212 = vtanh.pop %v2210
  %v2213 = vrot.slane %v2193, 6
  %v2215 = vxor.u32 %v2213, 2147483648
  %v2216 = vmul.f32 %v2215, 1.442695
  %v2217 = vpow.pop %v2216
  %v2218 = vadd.f32 %v2217, 1.0
  %v2219 = vrcp.pop %v2218
  %v2220 = vmul.f32 1.0, %v2219
  %v2221 = vmul.f32 %v2209, %v2194
  %v2222 = vmul.f32 %v2200, %v2212
  %v2223 = vadd.f32 %v2221, %v2222
  %v2224 = vtanh.pop %v2223
  %v2225 = vmul.f32 %v2220, %v2224
  %2226 = vst [vmem:[#allocation2] sm:$0x3] %v2225
  %2227 = vst [vmem:[#allocation3] sm:$0x3] %v2223
  %v2228 = vld [vmem:[#allocation2] sm:$0x3]
  %v2229 = vpack.c.bf16 %v2228, %v2228
  %v2230 = vld [vmem:[%s4] sm:$0xff]
  %v2231 = vld [vmem:[%s4 + $0x8] sm:$0xff]
  %v2232 = vld [vmem:[%s4 + $0x10] sm:$0xff]
  %v2233 = vld [vmem:[%s4 + $0x18] sm:$0xff]
  %v2234 = vld [vmem:[%s4 + $0x20] sm:$0xff]
  %v2235 = vld [vmem:[%s4 + $0x28] sm:$0xff]
  %v2236 = vld [vmem:[%s4 + $0x30] sm:$0xff]
  %v2237 = vld [vmem:[%s4 + $0x38] sm:$0xff]
  %v2238 = vld [vmem:[%s4 + $0x40] sm:$0xff]
  %v2239 = vld [vmem:[%s4 + $0x48] sm:$0xff]
  %v2240 = vld [vmem:[%s4 + $0x50] sm:$0xff]
  %v2241 = vld [vmem:[%s4 + $0x58] sm:$0xff]
  %v2242 = vld [vmem:[%s4 + $0x60] sm:$0xff]
  %v2243 = vld [vmem:[%s4 + $0x68] sm:$0xff]
  %v2244 = vld [vmem:[%s4 + $0x70] sm:$0xff]
  %v2245 = vld [vmem:[%s4 + $0x78] sm:$0xff]
  %v2246 = vld [vmem:[%s4 + $0x80] sm:$0xff]
  %v2247 = vld [vmem:[%s4 + $0x88] sm:$0xff]
  %v2248 = vld [vmem:[%s4 + $0x90] sm:$0xff]
  %v2249 = vld [vmem:[%s4 + $0x98] sm:$0xff]
  %v2250 = vld [vmem:[%s4 + $0xa0] sm:$0xff]
  %v2251 = vld [vmem:[%s4 + $0xa8] sm:$0xff]
  %v2252 = vld [vmem:[%s4 + $0xb0] sm:$0xff]
  %v2253 = vld [vmem:[%s4 + $0xb8] sm:$0xff]
  %v2254 = vld [vmem:[%s4 + $0xc0] sm:$0xff]
  %v2255 = vld [vmem:[%s4 + $0xc8] sm:$0xff]
  %v2256 = vld [vmem:[%s4 + $0xd0] sm:$0xff]
  %v2257 = vld [vmem:[%s4 + $0xd8] sm:$0xff]
  %v2258 = vld [vmem:[%s4 + $0xe0] sm:$0xff]
  %v2259 = vld [vmem:[%s4 + $0xe8] sm:$0xff]
  %v2260 = vld [vmem:[%s4 + $0xf0] sm:$0xff]
  %v2261 = vld [vmem:[%s4 + $0xf8] sm:$0xff]
  %v2262 = vld [vmem:[#allocation4] sm:$0x3]
  %v2263 = vpack.c.bf16 %v2262, %v2262
  %v2264 = vld [vmem:[%s5] sm:$0xff]
  %v2265 = vld [vmem:[%s5 + $0x8] sm:$0xff]
  %v2266 = vld [vmem:[%s5 + $0x10] sm:$0xff]
  %v2267 = vld [vmem:[%s5 + $0x18] sm:$0xff]
  %v2268 = vld [vmem:[%s5 + $0x20] sm:$0xff]
  %v2269 = vld [vmem:[%s5 + $0x28] sm:$0xff]
  %v2270 = vld [vmem:[%s5 + $0x30] sm:$0xff]
  %v2271 = vld [vmem:[%s5 + $0x38] sm:$0xff]
  %v2272 = vld [vmem:[%s5 + $0x40] sm:$0xff]
  %v2273 = vld [vmem:[%s5 + $0x48] sm:$0xff]
  %v2274 = vld [vmem:[%s5 + $0x50] sm:$0xff]
  %v2275 = vld [vmem:[%s5 + $0x58] sm:$0xff]
  %v2276 = vld [vmem:[%s5 + $0x60] sm:$0xff]
  %v2277 = vld [vmem:[%s5 + $0x68] sm:$0xff]
  %v2278 = vld [vmem:[%s5 + $0x70] sm:$0xff]
  %v2279 = vld [vmem:[%s5 + $0x78] sm:$0xff]
  %v2280 = vld [vmem:[%s5 + $0x80] sm:$0xff]
  %v2281 = vld [vmem:[%s5 + $0x88] sm:$0xff]
  %v2282 = vld [vmem:[%s5 + $0x90] sm:$0xff]
  %v2283 = vld [vmem:[%s5 + $0x98] sm:$0xff]
  %v2284 = vld [vmem:[%s5 + $0xa0] sm:$0xff]
  %v2285 = vld [vmem:[%s5 + $0xa8] sm:$0xff]
  %v2286 = vld [vmem:[%s5 + $0xb0] sm:$0xff]
  %v2287 = vld [vmem:[%s5 + $0xb8] sm:$0xff]
  %v2288 = vld [vmem:[%s5 + $0xc0] sm:$0xff]
  %v2289 = vld [vmem:[%s5 + $0xc8] sm:$0xff]
  %v2290 = vld [vmem:[%s5 + $0xd0] sm:$0xff]
  %v2291 = vld [vmem:[%s5 + $0xd8] sm:$0xff]
  %v2292 = vld [vmem:[%s5 + $0xe0] sm:$0xff]
  %v2293 = vld [vmem:[%s5 + $0xe8] sm:$0xff]
  %v2294 = vld [vmem:[%s5 + $0xf0] sm:$0xff]
  %v2295 = vld [vmem:[%s5 + $0xf8] sm:$0xff]
  %v2328 = vunpack.c.l.b16 %v2264
  %v2329 = vunpack.c.h.b16 %v2264
  %v2330 = vunpack.c.l.b16 %v2265
  %v2331 = vunpack.c.h.b16 %v2265
  %v2332 = vunpack.c.l.b16 %v2266
  %v2333 = vunpack.c.h.b16 %v2266
  %v2334 = vunpack.c.l.b16 %v2267
  %v2335 = vunpack.c.h.b16 %v2267
  %v2336 = vunpack.c.l.b16 %v2268
  %v2337 = vunpack.c.h.b16 %v2268
  %v2338 = vunpack.c.l.b16 %v2269
  %v2339 = vunpack.c.h.b16 %v2269
  %v2340 = vunpack.c.l.b16 %v2270
  %v2341 = vunpack.c.h.b16 %v2270
  %v2342 = vunpack.c.l.b16 %v2271
  %v2343 = vunpack.c.h.b16 %v2271
  %v2344 = vunpack.c.l.b16 %v2272
  %v2345 = vunpack.c.h.b16 %v2272
  %v2346 = vunpack.c.l.b16 %v2273
  %v2347 = vunpack.c.h.b16 %v2273
  %v2348 = vunpack.c.l.b16 %v2274
  %v2349 = vunpack.c.h.b16 %v2274
  %v2350 = vunpack.c.l.b16 %v2275
  %v2351 = vunpack.c.h.b16 %v2275
  %v2352 = vunpack.c.l.b16 %v2276
  %v2353 = vunpack.c.h.b16 %v2276
  %v2354 = vunpack.c.l.b16 %v2277
  %v2355 = vunpack.c.h.b16 %v2277
  %v2356 = vunpack.c.l.b16 %v2278
  %v2357 = vunpack.c.h.b16 %v2278
  %v2358 = vunpack.c.l.b16 %v2279
  %v2359 = vunpack.c.h.b16 %v2279
  %v2360 = vunpack.c.l.b16 %v2280
  %v2361 = vunpack.c.h.b16 %v2280
  %v2362 = vunpack.c.l.b16 %v2281
  %v2363 = vunpack.c.h.b16 %v2281
  %v2364 = vunpack.c.l.b16 %v2282
  %v2365 = vunpack.c.h.b16 %v2282
  %v2366 = vunpack.c.l.b16 %v2283
  %v2367 = vunpack.c.h.b16 %v2283
  %v2368 = vunpack.c.l.b16 %v2284
  %v2369 = vunpack.c.h.b16 %v2284
  %v2370 = vunpack.c.l.b16 %v2285
  %v2371 = vunpack.c.h.b16 %v2285
  %v2372 = vunpack.c.l.b16 %v2286
  %v2373 = vunpack.c.h.b16 %v2286
  %v2374 = vunpack.c.l.b16 %v2287
  %v2375 = vunpack.c.h.b16 %v2287
  %v2376 = vunpack.c.l.b16 %v2288
  %v2377 = vunpack.c.h.b16 %v2288
  %v2378 = vunpack.c.l.b16 %v2289
  %v2379 = vunpack.c.h.b16 %v2289
  %v2380 = vunpack.c.l.b16 %v2290
  %v2381 = vunpack.c.h.b16 %v2290
  %v2382 = vunpack.c.l.b16 %v2291
  %v2383 = vunpack.c.h.b16 %v2291
  %v2384 = vunpack.c.l.b16 %v2292
  %v2385 = vunpack.c.h.b16 %v2292
  %v2386 = vunpack.c.l.b16 %v2293
  %v2387 = vunpack.c.h.b16 %v2293
  %v2388 = vunpack.c.l.b16 %v2294
  %v2389 = vunpack.c.h.b16 %v2294
  %v2390 = vunpack.c.l.b16 %v2295
  %v2391 = vunpack.c.h.b16 %v2295
  %v2392 = vpack.c.b16 %v2332, %v2328
  %v2393 = vpack.c.b16 %v2333, %v2329
  %v2394 = vpack.c.b16 %v2334, %v2330
  %v2395 = vpack.c.b16 %v2335, %v2331
  %v2396 = vpack.c.b16 %v2340, %v2336
  %v2397 = vpack.c.b16 %v2341, %v2337
  %v2398 = vpack.c.b16 %v2342, %v2338
  %v2399 = vpack.c.b16 %v2343, %v2339
  %v2400 = vpack.c.b16 %v2348, %v2344
  %v2401 = vpack.c.b16 %v2349, %v2345
  %v2402 = vpack.c.b16 %v2350, %v2346
  %v2403 = vpack.c.b16 %v2351, %v2347
  %v2404 = vpack.c.b16 %v2356, %v2352
  %v2405 = vpack.c.b16 %v2357, %v2353
  %v2406 = vpack.c.b16 %v2358, %v2354
  %v2407 = vpack.c.b16 %v2359, %v2355
  %v2408 = vpack.c.b16 %v2364, %v2360
  %v2409 = vpack.c.b16 %v2365, %v2361
  %v2410 = vpack.c.b16 %v2366, %v2362
  %v2411 = vpack.c.b16 %v2367, %v2363
  %v2412 = vpack.c.b16 %v2372, %v2368
  %v2413 = vpack.c.b16 %v2373, %v2369
  %v2414 = vpack.c.b16 %v2374, %v2370
  %v2415 = vpack.c.b16 %v2375, %v2371
  %v2416 = vpack.c.b16 %v2380, %v2376
  %v2417 = vpack.c.b16 %v2381, %v2377
  %v2418 = vpack.c.b16 %v2382, %v2378
  %v2419 = vpack.c.b16 %v2383, %v2379
  %v2420 = vpack.c.b16 %v2388, %v2384
  %v2421 = vpack.c.b16 %v2389, %v2385
  %v2422 = vpack.c.b16 %v2390, %v2386
  %v2423 = vpack.c.b16 %v2391, %v2387
  %2456 = vmatprep.subr.bf16.mxu0 %v2421
  %2457 = vmatpush1.bf16.msra.mxu0 %v2420
  %2458 = vmatprep.subr.bf16.mxu0 %v2417
  %2459 = vmatpush1.bf16.msra.mxu0 %v2416
  %2460 = vmatprep.subr.bf16.mxu0 %v2413
  %2461 = vmatpush1.bf16.msra.mxu0 %v2412
  %2462 = vmatprep.subr.bf16.mxu0 %v2409
  %2463 = vmatpush1.bf16.msra.mxu0 %v2408
  %2464 = vmatprep.subr.bf16.mxu0 %v2405
  %2465 = vmatpush1.bf16.msra.mxu0 %v2404
  %2466 = vmatprep.subr.bf16.mxu0 %v2401
  %2467 = vmatpush1.bf16.msra.mxu0 %v2400
  %2468 = vmatprep.subr.bf16.mxu0 %v2397
  %2469 = vmatpush1.bf16.msra.mxu0 %v2396
  %2470 = vmatprep.subr.bf16.mxu0 %v2393
  %2471 = vmatpush1.bf16.msra.mxu0 %v2392
  %2472 = vmatprep.subr.bf16.mxu0 0
  %2473 = vmatpush2.bf16.msra.mxu0 0
  %2474 = vmatprep.subr.bf16.mxu0 0
  %2475 = vmatpush2.bf16.msra.mxu0 0
  %2476 = vmatprep.subr.bf16.mxu0 0
  %2477 = vmatpush2.bf16.msra.mxu0 0
  %2478 = vmatprep.subr.bf16.mxu0 0
  %2479 = vmatpush2.bf16.msra.mxu0 0
  %2480 = vmatprep.subr.bf16.mxu0 0
  %2481 = vmatpush2.bf16.msra.mxu0 0
  %2482 = vmatprep.subr.bf16.mxu0 0
  %2483 = vmatpush2.bf16.msra.mxu0 0
  %2484 = vmatprep.subr.bf16.mxu0 0
  %2485 = vmatpush2.bf16.msra.mxu0 0
  %2486 = vmatprep.subr.bf16.mxu0 0
  %2487 = vmatpush2.bf16.msra.mxu0 0
  %2488 = vmatprep.mubr.bf16.mxu0 0
  %2489 = vmatmul.mubr.bf16.gmra.mxu0 %v2263
  %v2490 = vpop.f32.mrf.mxu0
  %v2491 = vadd.f32 0.0, %v2490
  %v2492 = vpop.f32.mrf.mxu0
  %v2493 = vadd.f32 0.0, %v2492
  %v2494 = vpop.f32.mrf.mxu0
  %v2495 = vpop.f32.mrf.mxu0
  %2496 = vdwg.mxu0
  %2497 = vmatprep.subr.bf16.mxu0 %v2423
  %2498 = vmatpush1.bf16.msra.mxu0 %v2422
  %2499 = vmatprep.subr.bf16.mxu0 %v2419
  %2500 = vmatpush1.bf16.msra.mxu0 %v2418
  %2501 = vmatprep.subr.bf16.mxu0 %v2415
  %2502 = vmatpush1.bf16.msra.mxu0 %v2414
  %2503 = vmatprep.subr.bf16.mxu0 %v2411
  %2504 = vmatpush1.bf16.msra.mxu0 %v2410
  %2505 = vmatprep.subr.bf16.mxu0 %v2407
  %2506 = vmatpush1.bf16.msra.mxu0 %v2406
  %2507 = vmatprep.subr.bf16.mxu0 %v2403
  %2508 = vmatpush1.bf16.msra.mxu0 %v2402
  %2509 = vmatprep.subr.bf16.mxu0 %v2399
  %2510 = vmatpush1.bf16.msra.mxu0 %v2398
  %2511 = vmatprep.subr.bf16.mxu0 %v2395
  %2512 = vmatpush1.bf16.msra.mxu0 %v2394
  %2513 = vmatprep.subr.bf16.mxu0 0
  %2514 = vmatpush2.bf16.msra.mxu0 0
  %2515 = vmatprep.subr.bf16.mxu0 0
  %2516 = vmatpush2.bf16.msra.mxu0 0
  %2517 = vmatprep.subr.bf16.mxu0 0
  %2518 = vmatpush2.bf16.msra.mxu0 0
  %2519 = vmatprep.subr.bf16.mxu0 0
  %2520 = vmatpush2.bf16.msra.mxu0 0
  %2521 = vmatprep.subr.bf16.mxu0 0
  %2522 = vmatpush2.bf16.msra.mxu0 0
  %2523 = vmatprep.subr.bf16.mxu0 0
  %2524 = vmatpush2.bf16.msra.mxu0 0
  %2525 = vmatprep.subr.bf16.mxu0 0
  %2526 = vmatpush2.bf16.msra.mxu0 0
  %2527 = vmatprep.subr.bf16.mxu0 0
  %2528 = vmatpush2.bf16.msra.mxu0 0
  %2529 = vmatprep.mubr.bf16.mxu0 0
  %2530 = vmatmul.mubr.bf16.gmra.mxu0 %v2263
  %v2531 = vpop.f32.mrf.mxu0
  %v2532 = vadd.f32 0.0, %v2531
  %v2533 = vpop.f32.mrf.mxu0
  %v2534 = vadd.f32 0.0, %v2533
  %v2535 = vpop.f32.mrf.mxu0
  %v2536 = vpop.f32.mrf.mxu0
  %2537 = vdwg.mxu0
  %v2570 = vunpack.c.l.b16 %v2230
  %v2571 = vunpack.c.h.b16 %v2230
  %v2572 = vunpack.c.l.b16 %v2231
  %v2573 = vunpack.c.h.b16 %v2231
  %v2574 = vunpack.c.l.b16 %v2232
  %v2575 = vunpack.c.h.b16 %v2232
  %v2576 = vunpack.c.l.b16 %v2233
  %v2577 = vunpack.c.h.b16 %v2233
  %v2578 = vunpack.c.l.b16 %v2234
  %v2579 = vunpack.c.h.b16 %v2234
  %v2580 = vunpack.c.l.b16 %v2235
  %v2581 = vunpack.c.h.b16 %v2235
  %v2582 = vunpack.c.l.b16 %v2236
  %v2583 = vunpack.c.h.b16 %v2236
  %v2584 = vunpack.c.l.b16 %v2237
  %v2585 = vunpack.c.h.b16 %v2237
  %v2586 = vunpack.c.l.b16 %v2238
  %v2587 = vunpack.c.h.b16 %v2238
  %v2588 = vunpack.c.l.b16 %v2239
  %v2589 = vunpack.c.h.b16 %v2239
  %v2590 = vunpack.c.l.b16 %v2240
  %v2591 = vunpack.c.h.b16 %v2240
  %v2592 = vunpack.c.l.b16 %v2241
  %v2593 = vunpack.c.h.b16 %v2241
  %v2594 = vunpack.c.l.b16 %v2242
  %v2595 = vunpack.c.h.b16 %v2242
  %v2596 = vunpack.c.l.b16 %v2243
  %v2597 = vunpack.c.h.b16 %v2243
  %v2598 = vunpack.c.l.b16 %v2244
  %v2599 = vunpack.c.h.b16 %v2244
  %v2600 = vunpack.c.l.b16 %v2245
  %v2601 = vunpack.c.h.b16 %v2245
  %v2602 = vunpack.c.l.b16 %v2246
  %v2603 = vunpack.c.h.b16 %v2246
  %v2604 = vunpack.c.l.b16 %v2247
  %v2605 = vunpack.c.h.b16 %v2247
  %v2606 = vunpack.c.l.b16 %v2248
  %v2607 = vunpack.c.h.b16 %v2248
  %v2608 = vunpack.c.l.b16 %v2249
  %v2609 = vunpack.c.h.b16 %v2249
  %v2610 = vunpack.c.l.b16 %v2250
  %v2611 = vunpack.c.h.b16 %v2250
  %v2612 = vunpack.c.l.b16 %v2251
  %v2613 = vunpack.c.h.b16 %v2251
  %v2614 = vunpack.c.l.b16 %v2252
  %v2615 = vunpack.c.h.b16 %v2252
  %v2616 = vunpack.c.l.b16 %v2253
  %v2617 = vunpack.c.h.b16 %v2253
  %v2618 = vunpack.c.l.b16 %v2254
  %v2619 = vunpack.c.h.b16 %v2254
  %v2620 = vunpack.c.l.b16 %v2255
  %v2621 = vunpack.c.h.b16 %v2255
  %v2622 = vunpack.c.l.b16 %v2256
  %v2623 = vunpack.c.h.b16 %v2256
  %v2624 = vunpack.c.l.b16 %v2257
  %v2625 = vunpack.c.h.b16 %v2257
  %v2626 = vunpack.c.l.b16 %v2258
  %v2627 = vunpack.c.h.b16 %v2258
  %v2628 = vunpack.c.l.b16 %v2259
  %v2629 = vunpack.c.h.b16 %v2259
  %v2630 = vunpack.c.l.b16 %v2260
  %v2631 = vunpack.c.h.b16 %v2260
  %v2632 = vunpack.c.l.b16 %v2261
  %v2633 = vunpack.c.h.b16 %v2261
  %v2634 = vpack.c.b16 %v2574, %v2570
  %v2635 = vpack.c.b16 %v2575, %v2571
  %v2636 = vpack.c.b16 %v2576, %v2572
  %v2637 = vpack.c.b16 %v2577, %v2573
  %v2638 = vpack.c.b16 %v2582, %v2578
  %v2639 = vpack.c.b16 %v2583, %v2579
  %v2640 = vpack.c.b16 %v2584, %v2580
  %v2641 = vpack.c.b16 %v2585, %v2581
  %v2642 = vpack.c.b16 %v2590, %v2586
  %v2643 = vpack.c.b16 %v2591, %v2587
  %v2644 = vpack.c.b16 %v2592, %v2588
  %v2645 = vpack.c.b16 %v2593, %v2589
  %v2646 = vpack.c.b16 %v2598, %v2594
  %v2647 = vpack.c.b16 %v2599, %v2595
  %v2648 = vpack.c.b16 %v2600, %v2596
  %v2649 = vpack.c.b16 %v2601, %v2597
  %v2650 = vpack.c.b16 %v2606, %v2602
  %v2651 = vpack.c.b16 %v2607, %v2603
  %v2652 = vpack.c.b16 %v2608, %v2604
  %v2653 = vpack.c.b16 %v2609, %v2605
  %v2654 = vpack.c.b16 %v2614, %v2610
  %v2655 = vpack.c.b16 %v2615, %v2611
  %v2656 = vpack.c.b16 %v2616, %v2612
  %v2657 = vpack.c.b16 %v2617, %v2613
  %v2658 = vpack.c.b16 %v2622, %v2618
  %v2659 = vpack.c.b16 %v2623, %v2619
  %v2660 = vpack.c.b16 %v2624, %v2620
  %v2661 = vpack.c.b16 %v2625, %v2621
  %v2662 = vpack.c.b16 %v2630, %v2626
  %v2663 = vpack.c.b16 %v2631, %v2627
  %v2664 = vpack.c.b16 %v2632, %v2628
  %v2665 = vpack.c.b16 %v2633, %v2629
  %2698 = vmatprep.subr.bf16.mxu0 %v2663
  %2699 = vmatpush1.bf16.msra.mxu0 %v2662
  %2700 = vmatprep.subr.bf16.mxu0 %v2659
  %2701 = vmatpush1.bf16.msra.mxu0 %v2658
  %2702 = vmatprep.subr.bf16.mxu0 %v2655
  %2703 = vmatpush1.bf16.msra.mxu0 %v2654
  %2704 = vmatprep.subr.bf16.mxu0 %v2651
  %2705 = vmatpush1.bf16.msra.mxu0 %v2650
  %2706 = vmatprep.subr.bf16.mxu0 %v2647
  %2707 = vmatpush1.bf16.msra.mxu0 %v2646
  %2708 = vmatprep.subr.bf16.mxu0 %v2643
  %2709 = vmatpush1.bf16.msra.mxu0 %v2642
  %2710 = vmatprep.subr.bf16.mxu0 %v2639
  %2711 = vmatpush1.bf16.msra.mxu0 %v2638
  %2712 = vmatprep.subr.bf16.mxu0 %v2635
  %2713 = vmatpush1.bf16.msra.mxu0 %v2634
  %2714 = vmatprep.subr.bf16.mxu0 0
  %2715 = vmatpush2.bf16.msra.mxu0 0
  %2716 = vmatprep.subr.bf16.mxu0 0
  %2717 = vmatpush2.bf16.msra.mxu0 0
  %2718 = vmatprep.subr.bf16.mxu0 0
  %2719 = vmatpush2.bf16.msra.mxu0 0
  %2720 = vmatprep.subr.bf16.mxu0 0
  %2721 = vmatpush2.bf16.msra.mxu0 0
  %2722 = vmatprep.subr.bf16.mxu0 0
  %2723 = vmatpush2.bf16.msra.mxu0 0
  %2724 = vmatprep.subr.bf16.mxu0 0
  %2725 = vmatpush2.bf16.msra.mxu0 0
  %2726 = vmatprep.subr.bf16.mxu0 0
  %2727 = vmatpush2.bf16.msra.mxu0 0
  %2728 = vmatprep.subr.bf16.mxu0 0
  %2729 = vmatpush2.bf16.msra.mxu0 0
  %2730 = vmatprep.mubr.bf16.mxu0 0
  %2731 = vmatmul.mubr.bf16.gmra.mxu0 %v2229
  %v2732 = vpop.f32.mrf.mxu0
  %v2733 = vadd.f32 %v2491, %v2732
  %v2734 = vpop.f32.mrf.mxu0
  %v2735 = vadd.f32 %v2493, %v2734
  %v2736 = vpop.f32.mrf.mxu0
  %v2737 = vpop.f32.mrf.mxu0
  %2738 = vdwg.mxu0
  %2739 = vmatprep.subr.bf16.mxu0 %v2665
  %2740 = vmatpush1.bf16.msra.mxu0 %v2664
  %2741 = vmatprep.subr.bf16.mxu0 %v2661
  %2742 = vmatpush1.bf16.msra.mxu0 %v2660
  %2743 = vmatprep.subr.bf16.mxu0 %v2657
  %2744 = vmatpush1.bf16.msra.mxu0 %v2656
  %2745 = vmatprep.subr.bf16.mxu0 %v2653
  %2746 = vmatpush1.bf16.msra.mxu0 %v2652
  %2747 = vmatprep.subr.bf16.mxu0 %v2649
  %2748 = vmatpush1.bf16.msra.mxu0 %v2648
  %2749 = vmatprep.subr.bf16.mxu0 %v2645
  %2750 = vmatpush1.bf16.msra.mxu0 %v2644
  %2751 = vmatprep.subr.bf16.mxu0 %v2641
  %2752 = vmatpush1.bf16.msra.mxu0 %v2640
  %2753 = vmatprep.subr.bf16.mxu0 %v2637
  %2754 = vmatpush1.bf16.msra.mxu0 %v2636
  %2755 = vmatprep.subr.bf16.mxu0 0
  %2756 = vmatpush2.bf16.msra.mxu0 0
  %2757 = vmatprep.subr.bf16.mxu0 0
  %2758 = vmatpush2.bf16.msra.mxu0 0
  %2759 = vmatprep.subr.bf16.mxu0 0
  %2760 = vmatpush2.bf16.msra.mxu0 0
  %2761 = vmatprep.subr.bf16.mxu0 0
  %2762 = vmatpush2.bf16.msra.mxu0 0
  %2763 = vmatprep.subr.bf16.mxu0 0
  %2764 = vmatpush2.bf16.msra.mxu0 0
  %2765 = vmatprep.subr.bf16.mxu0 0
  %2766 = vmatpush2.bf16.msra.mxu0 0
  %2767 = vmatprep.subr.bf16.mxu0 0
  %2768 = vmatpush2.bf16.msra.mxu0 0
  %2769 = vmatprep.subr.bf16.mxu0 0
  %2770 = vmatpush2.bf16.msra.mxu0 0
  %2771 = vmatprep.mubr.bf16.mxu0 0
  %2772 = vmatmul.mubr.bf16.gmra.mxu0 %v2229
  %v2773 = vpop.f32.mrf.mxu0
  %v2774 = vadd.f32 %v2532, %v2773
  %v2775 = vpop.f32.mrf.mxu0
  %v2776 = vadd.f32 %v2534, %v2775
  %v2777 = vpop.f32.mrf.mxu0
  %v2778 = vpop.f32.mrf.mxu0
  %2779 = vdwg.mxu0
  %v2780 = vld [vmem:[%s6] sm:$0xf]
  %v2782 = vlaneseq
  %v2783 = vshrl.u32 %v2782, 7
  %v2784 = vsub.s32 0, %v2783
  %v2785 = vrot.slane %v2780, %v2784
  %v2786 = vlaneseq
  %v2787 = vshrl.u32 %v2786, 7
  %v2788 = vsub.s32 1, %v2787
  %v2789 = vrot.slane %v2780, %v2788
  %v2790 = vlaneseq
  %v2791 = vshrl.u32 %v2790, 7
  %v2792 = vsub.s32 2, %v2791
  %v2793 = vrot.slane %v2780, %v2792
  %v2794 = vlaneseq
  %v2795 = vshrl.u32 %v2794, 7
  %v2796 = vsub.s32 3, %v2795
  %v2797 = vrot.slane %v2780, %v2796
  %v2802 = vadd.f32 %v2733, %v2785
  %v2803 = vadd.f32 %v2735, %v2789
  %v2804 = vadd.f32 %v2774, %v2793
  %v2805 = vadd.f32 %v2776, %v2797
  %v2806 = vld [vmem:[#allocation5] sm:$0x3]
  %v2807 = vxor.u32 %v2802, 2147483648
  %v2808 = vmul.f32 %v2807, 1.442695
  %v2809 = vpow.pop %v2808
  %v2810 = vadd.f32 %v2809, 1.0
  %v2811 = vrcp.pop %v2810
  %v2812 = vmul.f32 1.0, %v2811
  %v2813 = vxor.u32 %v2803, 2147483648
  %v2814 = vmul.f32 %v2813, 1.442695
  %v2815 = vpow.pop %v2814
  %v2816 = vadd.f32 %v2815, 1.0
  %v2817 = vrcp.pop %v2816
  %v2818 = vmul.f32 1.0, %v2817
  %v2819 = vtanh.pop %v2804
  %v2820 = vxor.u32 %v2805, 2147483648
  %v2821 = vmul.f32 %v2820, 1.442695
  %v2822 = vpow.pop %v2821
  %v2823 = vadd.f32 %v2822, 1.0
  %v2824 = vrcp.pop %v2823
  %v2825 = vmul.f32 1.0, %v2824
  %v2826 = vmul.f32 %v2818, %v2806
  %v2827 = vmul.f32 %v2812, %v2819
  %v2828 = vadd.f32 %v2826, %v2827
  %v2829 = vtanh.pop %v2828
  %v2830 = vmul.f32 %v2825, %v2829
  %2831 = vst [vmem:[#allocation4] sm:$0x3] %v2830
  %2832 = vst [vmem:[#allocation5] sm:$0x3] %v2828
  %v2833 = vld [vmem:[#allocation4] sm:$0x3]
  %s2834 = scalar_lea.vmem %s7, 4
  %2835 = vst [vmem:[%s2834] sm:$0x3] %v2833
  %s2836 = scalar_lea.vmem %s0, 16
  %v2837 = vld [vmem:[%s2836] sm:$0xff]
  %v2838 = vld [vmem:[#allocation2] sm:$0x3]
  %v2839 = vpack.c.bf16 %v2838, %v2838
  %v2840 = vld [vmem:[%s3] sm:$0xff]
  %v2841 = vld [vmem:[%s3 + $0x8] sm:$0xff]
  %v2842 = vld [vmem:[%s3 + $0x10] sm:$0xff]
  %v2843 = vld [vmem:[%s3 + $0x18] sm:$0xff]
  %v2844 = vld [vmem:[%s3 + $0x20] sm:$0xff]
  %v2845 = vld [vmem:[%s3 + $0x28] sm:$0xff]
  %v2846 = vld [vmem:[%s3 + $0x30] sm:$0xff]
  %v2847 = vld [vmem:[%s3 + $0x38] sm:$0xff]
  %v2848 = vld [vmem:[%s3 + $0x40] sm:$0xff]
  %v2849 = vld [vmem:[%s3 + $0x48] sm:$0xff]
  %v2850 = vld [vmem:[%s3 + $0x50] sm:$0xff]
  %v2851 = vld [vmem:[%s3 + $0x58] sm:$0xff]
  %v2852 = vld [vmem:[%s3 + $0x60] sm:$0xff]
  %v2853 = vld [vmem:[%s3 + $0x68] sm:$0xff]
  %v2854 = vld [vmem:[%s3 + $0x70] sm:$0xff]
  %v2855 = vld [vmem:[%s3 + $0x78] sm:$0xff]
  %v2856 = vld [vmem:[%s3 + $0x80] sm:$0xff]
  %v2857 = vld [vmem:[%s3 + $0x88] sm:$0xff]
  %v2858 = vld [vmem:[%s3 + $0x90] sm:$0xff]
  %v2859 = vld [vmem:[%s3 + $0x98] sm:$0xff]
  %v2860 = vld [vmem:[%s3 + $0xa0] sm:$0xff]
  %v2861 = vld [vmem:[%s3 + $0xa8] sm:$0xff]
  %v2862 = vld [vmem:[%s3 + $0xb0] sm:$0xff]
  %v2863 = vld [vmem:[%s3 + $0xb8] sm:$0xff]
  %v2864 = vld [vmem:[%s3 + $0xc0] sm:$0xff]
  %v2865 = vld [vmem:[%s3 + $0xc8] sm:$0xff]
  %v2866 = vld [vmem:[%s3 + $0xd0] sm:$0xff]
  %v2867 = vld [vmem:[%s3 + $0xd8] sm:$0xff]
  %v2868 = vld [vmem:[%s3 + $0xe0] sm:$0xff]
  %v2869 = vld [vmem:[%s3 + $0xe8] sm:$0xff]
  %v2870 = vld [vmem:[%s3 + $0xf0] sm:$0xff]
  %v2871 = vld [vmem:[%s3 + $0xf8] sm:$0xff]
  %v2904 = vunpack.c.l.b16 %v2840
  %v2905 = vunpack.c.h.b16 %v2840
  %v2906 = vunpack.c.l.b16 %v2841
  %v2907 = vunpack.c.h.b16 %v2841
  %v2908 = vunpack.c.l.b16 %v2842
  %v2909 = vunpack.c.h.b16 %v2842
  %v2910 = vunpack.c.l.b16 %v2843
  %v2911 = vunpack.c.h.b16 %v2843
  %v2912 = vunpack.c.l.b16 %v2844
  %v2913 = vunpack.c.h.b16 %v2844
  %v2914 = vunpack.c.l.b16 %v2845
  %v2915 = vunpack.c.h.b16 %v2845
  %v2916 = vunpack.c.l.b16 %v2846
  %v2917 = vunpack.c.h.b16 %v2846
  %v2918 = vunpack.c.l.b16 %v2847
  %v2919 = vunpack.c.h.b16 %v2847
  %v2920 = vunpack.c.l.b16 %v2848
  %v2921 = vunpack.c.h.b16 %v2848
  %v2922 = vunpack.c.l.b16 %v2849
  %v2923 = vunpack.c.h.b16 %v2849
  %v2924 = vunpack.c.l.b16 %v2850
  %v2925 = vunpack.c.h.b16 %v2850
  %v2926 = vunpack.c.l.b16 %v2851
  %v2927 = vunpack.c.h.b16 %v2851
  %v2928 = vunpack.c.l.b16 %v2852
  %v2929 = vunpack.c.h.b16 %v2852
  %v2930 = vunpack.c.l.b16 %v2853
  %v2931 = vunpack.c.h.b16 %v2853
  %v2932 = vunpack.c.l.b16 %v2854
  %v2933 = vunpack.c.h.b16 %v2854
  %v2934 = vunpack.c.l.b16 %v2855
  %v2935 = vunpack.c.h.b16 %v2855
  %v2936 = vunpack.c.l.b16 %v2856
  %v2937 = vunpack.c.h.b16 %v2856
  %v2938 = vunpack.c.l.b16 %v2857
  %v2939 = vunpack.c.h.b16 %v2857
  %v2940 = vunpack.c.l.b16 %v2858
  %v2941 = vunpack.c.h.b16 %v2858
  %v2942 = vunpack.c.l.b16 %v2859
  %v2943 = vunpack.c.h.b16 %v2859
  %v2944 = vunpack.c.l.b16 %v2860
  %v2945 = vunpack.c.h.b16 %v2860
  %v2946 = vunpack.c.l.b16 %v2861
  %v2947 = vunpack.c.h.b16 %v2861
  %v2948 = vunpack.c.l.b16 %v2862
  %v2949 = vunpack.c.h.b16 %v2862
  %v2950 = vunpack.c.l.b16 %v2863
  %v2951 = vunpack.c.h.b16 %v2863
  %v2952 = vunpack.c.l.b16 %v2864
  %v2953 = vunpack.c.h.b16 %v2864
  %v2954 = vunpack.c.l.b16 %v2865
  %v2955 = vunpack.c.h.b16 %v2865
  %v2956 = vunpack.c.l.b16 %v2866
  %v2957 = vunpack.c.h.b16 %v2866
  %v2958 = vunpack.c.l.b16 %v2867
  %v2959 = vunpack.c.h.b16 %v2867
  %v2960 = vunpack.c.l.b16 %v2868
  %v2961 = vunpack.c.h.b16 %v2868
  %v2962 = vunpack.c.l.b16 %v2869
  %v2963 = vunpack.c.h.b16 %v2869
  %v2964 = vunpack.c.l.b16 %v2870
  %v2965 = vunpack.c.h.b16 %v2870
  %v2966 = vunpack.c.l.b16 %v2871
  %v2967 = vunpack.c.h.b16 %v2871
  %v2968 = vpack.c.b16 %v2908, %v2904
  %v2969 = vpack.c.b16 %v2909, %v2905
  %v2970 = vpack.c.b16 %v2910, %v2906
  %v2971 = vpack.c.b16 %v2911, %v2907
  %v2972 = vpack.c.b16 %v2916, %v2912
  %v2973 = vpack.c.b16 %v2917, %v2913
  %v2974 = vpack.c.b16 %v2918, %v2914
  %v2975 = vpack.c.b16 %v2919, %v2915
  %v2976 = vpack.c.b16 %v2924, %v2920
  %v2977 = vpack.c.b16 %v2925, %v2921
  %v2978 = vpack.c.b16 %v2926, %v2922
  %v2979 = vpack.c.b16 %v2927, %v2923
  %v2980 = vpack.c.b16 %v2932, %v2928
  %v2981 = vpack.c.b16 %v2933, %v2929
  %v2982 = vpack.c.b16 %v2934, %v2930
  %v2983 = vpack.c.b16 %v2935, %v2931
  %v2984 = vpack.c.b16 %v2940, %v2936
  %v2985 = vpack.c.b16 %v2941, %v2937
  %v2986 = vpack.c.b16 %v2942, %v2938
  %v2987 = vpack.c.b16 %v2943, %v2939
  %v2988 = vpack.c.b16 %v2948, %v2944
  %v2989 = vpack.c.b16 %v2949, %v2945
  %v2990 = vpack.c.b16 %v2950, %v2946
  %v2991 = vpack.c.b16 %v2951, %v2947
  %v2992 = vpack.c.b16 %v2956, %v2952
  %v2993 = vpack.c.b16 %v2957, %v2953
  %v2994 = vpack.c.b16 %v2958, %v2954
  %v2995 = vpack.c.b16 %v2959, %v2955
  %v2996 = vpack.c.b16 %v2964, %v2960
  %v2997 = vpack.c.b16 %v2965, %v2961
  %v2998 = vpack.c.b16 %v2966, %v2962
  %v2999 = vpack.c.b16 %v2967, %v2963
  %3032 = vmatprep.subr.bf16.mxu0 %v2997
  %3033 = vmatpush1.bf16.msra.mxu0 %v2996
  %3034 = vmatprep.subr.bf16.mxu0 %v2993
  %3035 = vmatpush1.bf16.msra.mxu0 %v2992
  %3036 = vmatprep.subr.bf16.mxu0 %v2989
  %3037 = vmatpush1.bf16.msra.mxu0 %v2988
  %3038 = vmatprep.subr.bf16.mxu0 %v2985
  %3039 = vmatpush1.bf16.msra.mxu0 %v2984
  %3040 = vmatprep.subr.bf16.mxu0 %v2981
  %3041 = vmatpush1.bf16.msra.mxu0 %v2980
  %3042 = vmatprep.subr.bf16.mxu0 %v2977
  %3043 = vmatpush1.bf16.msra.mxu0 %v2976
  %3044 = vmatprep.subr.bf16.mxu0 %v2973
  %3045 = vmatpush1.bf16.msra.mxu0 %v2972
  %3046 = vmatprep.subr.bf16.mxu0 %v2969
  %3047 = vmatpush1.bf16.msra.mxu0 %v2968
  %3048 = vmatprep.subr.bf16.mxu0 0
  %3049 = vmatpush2.bf16.msra.mxu0 0
  %3050 = vmatprep.subr.bf16.mxu0 0
  %3051 = vmatpush2.bf16.msra.mxu0 0
  %3052 = vmatprep.subr.bf16.mxu0 0
  %3053 = vmatpush2.bf16.msra.mxu0 0
  %3054 = vmatprep.subr.bf16.mxu0 0
  %3055 = vmatpush2.bf16.msra.mxu0 0
  %3056 = vmatprep.subr.bf16.mxu0 0
  %3057 = vmatpush2.bf16.msra.mxu0 0
  %3058 = vmatprep.subr.bf16.mxu0 0
  %3059 = vmatpush2.bf16.msra.mxu0 0
  %3060 = vmatprep.subr.bf16.mxu0 0
  %3061 = vmatpush2.bf16.msra.mxu0 0
  %3062 = vmatprep.subr.bf16.mxu0 0
  %3063 = vmatpush2.bf16.msra.mxu0 0
  %3064 = vmatprep.mubr.bf16.mxu0 0
  %3065 = vmatmul.mubr.bf16.gmra.mxu0 %v2839
  %v3066 = vpop.f32.mrf.mxu0
  %v3067 = vadd.f32 0.0, %v3066
  %v3068 = vpop.f32.mrf.mxu0
  %v3069 = vadd.f32 0.0, %v3068
  %v3070 = vpop.f32.mrf.mxu0
  %v3071 = vpop.f32.mrf.mxu0
  %3072 = vdwg.mxu0
  %3073 = vmatprep.subr.bf16.mxu0 %v2999
  %3074 = vmatpush1.bf16.msra.mxu0 %v2998
  %3075 = vmatprep.subr.bf16.mxu0 %v2995
  %3076 = vmatpush1.bf16.msra.mxu0 %v2994
  %3077 = vmatprep.subr.bf16.mxu0 %v2991
  %3078 = vmatpush1.bf16.msra.mxu0 %v2990
  %3079 = vmatprep.subr.bf16.mxu0 %v2987
  %3080 = vmatpush1.bf16.msra.mxu0 %v2986
  %3081 = vmatprep.subr.bf16.mxu0 %v2983
  %3082 = vmatpush1.bf16.msra.mxu0 %v2982
  %3083 = vmatprep.subr.bf16.mxu0 %v2979
  %3084 = vmatpush1.bf16.msra.mxu0 %v2978
  %3085 = vmatprep.subr.bf16.mxu0 %v2975
  %3086 = vmatpush1.bf16.msra.mxu0 %v2974
  %3087 = vmatprep.subr.bf16.mxu0 %v2971
  %3088 = vmatpush1.bf16.msra.mxu0 %v2970
  %3089 = vmatprep.subr.bf16.mxu0 0
  %3090 = vmatpush2.bf16.msra.mxu0 0
  %3091 = vmatprep.subr.bf16.mxu0 0
  %3092 = vmatpush2.bf16.msra.mxu0 0
  %3093 = vmatprep.subr.bf16.mxu0 0
  %3094 = vmatpush2.bf16.msra.mxu0 0
  %3095 = vmatprep.subr.bf16.mxu0 0
  %3096 = vmatpush2.bf16.msra.mxu0 0
  %3097 = vmatprep.subr.bf16.mxu0 0
  %3098 = vmatpush2.bf16.msra.mxu0 0
  %3099 = vmatprep.subr.bf16.mxu0 0
  %3100 = vmatpush2.bf16.msra.mxu0 0
  %3101 = vmatprep.subr.bf16.mxu0 0
  %3102 = vmatpush2.bf16.msra.mxu0 0
  %3103 = vmatprep.subr.bf16.mxu0 0
  %3104 = vmatpush2.bf16.msra.mxu0 0
  %3105 = vmatprep.mubr.bf16.mxu0 0
  %3106 = vmatmul.mubr.bf16.gmra.mxu0 %v2839
  %v3107 = vpop.f32.mrf.mxu0
  %v3108 = vadd.f32 0.0, %v3107
  %v3109 = vpop.f32.mrf.mxu0
  %v3110 = vadd.f32 0.0, %v3109
  %v3111 = vpop.f32.mrf.mxu0
  %v3112 = vpop.f32.mrf.mxu0
  %3113 = vdwg.mxu0
  %v3118 = vcombine.low %v3067, %v3069
  %v3119 = vcombine.low %v3108, %v3110
  %v3121 = vunpack.c.l.s4 1983009808
  %v3122 = vunpack.c.0.s8 %v3121
  %v3123 = vlaneseq
  %v3124 = vshrl.u32 %v3123, 7
  %v3125 = vsub.s32 %v3122, %v3124
  %v3126 = vrot.slane %v3118, %v3125
  %v3128 = vunpack.c.l.s4 1983009808
  %v3129 = vunpack.c.0.s8 %v3128
  %v3130 = vlaneseq
  %v3131 = vshrl.u32 %v3130, 7
  %v3132 = vsub.s32 %v3129, %v3131
  %v3133 = vrot.slane %v3119, %v3132
  %v3134 = vcombine.low %v3126, %v3133
  %v3136 = vadd.f32 %v2837, %v3134
  %v3137 = vld [vmem:[#allocation6] sm:$0xff]
  %v3138 = vadd.f32 %v3136, %v3137
  %v3139 = vld [vmem:[#allocation3] sm:$0x3]
  %v3140 = vxor.u32 %v3138, 2147483648
  %v3141 = vmul.f32 %v3140, 1.442695
  %v3142 = vpow.pop %v3141
  %v3143 = vadd.f32 %v3142, 1.0
  %v3144 = vrcp.pop %v3143
  %v3145 = vmul.f32 1.0, %v3144
  %v3147 = vrot.slane %v3138, 2
  %v3149 = vxor.u32 %v3147, 2147483648
  %v3150 = vmul.f32 %v3149, 1.442695
  %v3151 = vpow.pop %v3150
  %v3152 = vadd.f32 %v3151, 1.0
  %v3153 = vrcp.pop %v3152
  %v3154 = vmul.f32 1.0, %v3153
  %v3155 = vrot.slane %v3138, 4
  %v3157 = vtanh.pop %v3155
  %v3158 = vrot.slane %v3138, 6
  %v3160 = vxor.u32 %v3158, 2147483648
  %v3161 = vmul.f32 %v3160, 1.442695
  %v3162 = vpow.pop %v3161
  %v3163 = vadd.f32 %v3162, 1.0
  %v3164 = vrcp.pop %v3163
  %v3165 = vmul.f32 1.0, %v3164
  %v3166 = vmul.f32 %v3154, %v3139
  %v3167 = vmul.f32 %v3145, %v3157
  %v3168 = vadd.f32 %v3166, %v3167
  %v3169 = vtanh.pop %v3168
  %v3170 = vmul.f32 %v3165, %v3169
  %3171 = vst [vmem:[#allocation2] sm:$0x3] %v3170
  %3172 = vst [vmem:[#allocation3] sm:$0x3] %v3168
  %v3173 = vld [vmem:[#allocation2] sm:$0x3]
  %v3174 = vpack.c.bf16 %v3173, %v3173
  %v3175 = vld [vmem:[%s4] sm:$0xff]
  %v3176 = vld [vmem:[%s4 + $0x8] sm:$0xff]
  %v3177 = vld [vmem:[%s4 + $0x10] sm:$0xff]
  %v3178 = vld [vmem:[%s4 + $0x18] sm:$0xff]
  %v3179 = vld [vmem:[%s4 + $0x20] sm:$0xff]
  %v3180 = vld [vmem:[%s4 + $0x28] sm:$0xff]
  %v3181 = vld [vmem:[%s4 + $0x30] sm:$0xff]
  %v3182 = vld [vmem:[%s4 + $0x38] sm:$0xff]
  %v3183 = vld [vmem:[%s4 + $0x40] sm:$0xff]
  %v3184 = vld [vmem:[%s4 + $0x48] sm:$0xff]
  %v3185 = vld [vmem:[%s4 + $0x50] sm:$0xff]
  %v3186 = vld [vmem:[%s4 + $0x58] sm:$0xff]
  %v3187 = vld [vmem:[%s4 + $0x60] sm:$0xff]
  %v3188 = vld [vmem:[%s4 + $0x68] sm:$0xff]
  %v3189 = vld [vmem:[%s4 + $0x70] sm:$0xff]
  %v3190 = vld [vmem:[%s4 + $0x78] sm:$0xff]
  %v3191 = vld [vmem:[%s4 + $0x80] sm:$0xff]
  %v3192 = vld [vmem:[%s4 + $0x88] sm:$0xff]
  %v3193 = vld [vmem:[%s4 + $0x90] sm:$0xff]
  %v3194 = vld [vmem:[%s4 + $0x98] sm:$0xff]
  %v3195 = vld [vmem:[%s4 + $0xa0] sm:$0xff]
  %v3196 = vld [vmem:[%s4 + $0xa8] sm:$0xff]
  %v3197 = vld [vmem:[%s4 + $0xb0] sm:$0xff]
  %v3198 = vld [vmem:[%s4 + $0xb8] sm:$0xff]
  %v3199 = vld [vmem:[%s4 + $0xc0] sm:$0xff]
  %v3200 = vld [vmem:[%s4 + $0xc8] sm:$0xff]
  %v3201 = vld [vmem:[%s4 + $0xd0] sm:$0xff]
  %v3202 = vld [vmem:[%s4 + $0xd8] sm:$0xff]
  %v3203 = vld [vmem:[%s4 + $0xe0] sm:$0xff]
  %v3204 = vld [vmem:[%s4 + $0xe8] sm:$0xff]
  %v3205 = vld [vmem:[%s4 + $0xf0] sm:$0xff]
  %v3206 = vld [vmem:[%s4 + $0xf8] sm:$0xff]
  %v3207 = vld [vmem:[#allocation4] sm:$0x3]
  %v3208 = vpack.c.bf16 %v3207, %v3207
  %v3209 = vld [vmem:[%s5] sm:$0xff]
  %v3210 = vld [vmem:[%s5 + $0x8] sm:$0xff]
  %v3211 = vld [vmem:[%s5 + $0x10] sm:$0xff]
  %v3212 = vld [vmem:[%s5 + $0x18] sm:$0xff]
  %v3213 = vld [vmem:[%s5 + $0x20] sm:$0xff]
  %v3214 = vld [vmem:[%s5 + $0x28] sm:$0xff]
  %v3215 = vld [vmem:[%s5 + $0x30] sm:$0xff]
  %v3216 = vld [vmem:[%s5 + $0x38] sm:$0xff]
  %v3217 = vld [vmem:[%s5 + $0x40] sm:$0xff]
  %v3218 = vld [vmem:[%s5 + $0x48] sm:$0xff]
  %v3219 = vld [vmem:[%s5 + $0x50] sm:$0xff]
  %v3220 = vld [vmem:[%s5 + $0x58] sm:$0xff]
  %v3221 = vld [vmem:[%s5 + $0x60] sm:$0xff]
  %v3222 = vld [vmem:[%s5 + $0x68] sm:$0xff]
  %v3223 = vld [vmem:[%s5 + $0x70] sm:$0xff]
  %v3224 = vld [vmem:[%s5 + $0x78] sm:$0xff]
  %v3225 = vld [vmem:[%s5 + $0x80] sm:$0xff]
  %v3226 = vld [vmem:[%s5 + $0x88] sm:$0xff]
  %v3227 = vld [vmem:[%s5 + $0x90] sm:$0xff]
  %v3228 = vld [vmem:[%s5 + $0x98] sm:$0xff]
  %v3229 = vld [vmem:[%s5 + $0xa0] sm:$0xff]
  %v3230 = vld [vmem:[%s5 + $0xa8] sm:$0xff]
  %v3231 = vld [vmem:[%s5 + $0xb0] sm:$0xff]
  %v3232 = vld [vmem:[%s5 + $0xb8] sm:$0xff]
  %v3233 = vld [vmem:[%s5 + $0xc0] sm:$0xff]
  %v3234 = vld [vmem:[%s5 + $0xc8] sm:$0xff]
  %v3235 = vld [vmem:[%s5 + $0xd0] sm:$0xff]
  %v3236 = vld [vmem:[%s5 + $0xd8] sm:$0xff]
  %v3237 = vld [vmem:[%s5 + $0xe0] sm:$0xff]
  %v3238 = vld [vmem:[%s5 + $0xe8] sm:$0xff]
  %v3239 = vld [vmem:[%s5 + $0xf0] sm:$0xff]
  %v3240 = vld [vmem:[%s5 + $0xf8] sm:$0xff]
  %v3273 = vunpack.c.l.b16 %v3209
  %v3274 = vunpack.c.h.b16 %v3209
  %v3275 = vunpack.c.l.b16 %v3210
  %v3276 = vunpack.c.h.b16 %v3210
  %v3277 = vunpack.c.l.b16 %v3211
  %v3278 = vunpack.c.h.b16 %v3211
  %v3279 = vunpack.c.l.b16 %v3212
  %v3280 = vunpack.c.h.b16 %v3212
  %v3281 = vunpack.c.l.b16 %v3213
  %v3282 = vunpack.c.h.b16 %v3213
  %v3283 = vunpack.c.l.b16 %v3214
  %v3284 = vunpack.c.h.b16 %v3214
  %v3285 = vunpack.c.l.b16 %v3215
  %v3286 = vunpack.c.h.b16 %v3215
  %v3287 = vunpack.c.l.b16 %v3216
  %v3288 = vunpack.c.h.b16 %v3216
  %v3289 = vunpack.c.l.b16 %v3217
  %v3290 = vunpack.c.h.b16 %v3217
  %v3291 = vunpack.c.l.b16 %v3218
  %v3292 = vunpack.c.h.b16 %v3218
  %v3293 = vunpack.c.l.b16 %v3219
  %v3294 = vunpack.c.h.b16 %v3219
  %v3295 = vunpack.c.l.b16 %v3220
  %v3296 = vunpack.c.h.b16 %v3220
  %v3297 = vunpack.c.l.b16 %v3221
  %v3298 = vunpack.c.h.b16 %v3221
  %v3299 = vunpack.c.l.b16 %v3222
  %v3300 = vunpack.c.h.b16 %v3222
  %v3301 = vunpack.c.l.b16 %v3223
  %v3302 = vunpack.c.h.b16 %v3223
  %v3303 = vunpack.c.l.b16 %v3224
  %v3304 = vunpack.c.h.b16 %v3224
  %v3305 = vunpack.c.l.b16 %v3225
  %v3306 = vunpack.c.h.b16 %v3225
  %v3307 = vunpack.c.l.b16 %v3226
  %v3308 = vunpack.c.h.b16 %v3226
  %v3309 = vunpack.c.l.b16 %v3227
  %v3310 = vunpack.c.h.b16 %v3227
  %v3311 = vunpack.c.l.b16 %v3228
  %v3312 = vunpack.c.h.b16 %v3228
  %v3313 = vunpack.c.l.b16 %v3229
  %v3314 = vunpack.c.h.b16 %v3229
  %v3315 = vunpack.c.l.b16 %v3230
  %v3316 = vunpack.c.h.b16 %v3230
  %v3317 = vunpack.c.l.b16 %v3231
  %v3318 = vunpack.c.h.b16 %v3231
  %v3319 = vunpack.c.l.b16 %v3232
  %v3320 = vunpack.c.h.b16 %v3232
  %v3321 = vunpack.c.l.b16 %v3233
  %v3322 = vunpack.c.h.b16 %v3233
  %v3323 = vunpack.c.l.b16 %v3234
  %v3324 = vunpack.c.h.b16 %v3234
  %v3325 = vunpack.c.l.b16 %v3235
  %v3326 = vunpack.c.h.b16 %v3235
  %v3327 = vunpack.c.l.b16 %v3236
  %v3328 = vunpack.c.h.b16 %v3236
  %v3329 = vunpack.c.l.b16 %v3237
  %v3330 = vunpack.c.h.b16 %v3237
  %v3331 = vunpack.c.l.b16 %v3238
  %v3332 = vunpack.c.h.b16 %v3238
  %v3333 = vunpack.c.l.b16 %v3239
  %v3334 = vunpack.c.h.b16 %v3239
  %v3335 = vunpack.c.l.b16 %v3240
  %v3336 = vunpack.c.h.b16 %v3240
  %v3337 = vpack.c.b16 %v3277, %v3273
  %v3338 = vpack.c.b16 %v3278, %v3274
  %v3339 = vpack.c.b16 %v3279, %v3275
  %v3340 = vpack.c.b16 %v3280, %v3276
  %v3341 = vpack.c.b16 %v3285, %v3281
  %v3342 = vpack.c.b16 %v3286, %v3282
  %v3343 = vpack.c.b16 %v3287, %v3283
  %v3344 = vpack.c.b16 %v3288, %v3284
  %v3345 = vpack.c.b16 %v3293, %v3289
  %v3346 = vpack.c.b16 %v3294, %v3290
  %v3347 = vpack.c.b16 %v3295, %v3291
  %v3348 = vpack.c.b16 %v3296, %v3292
  %v3349 = vpack.c.b16 %v3301, %v3297
  %v3350 = vpack.c.b16 %v3302, %v3298
  %v3351 = vpack.c.b16 %v3303, %v3299
  %v3352 = vpack.c.b16 %v3304, %v3300
  %v3353 = vpack.c.b16 %v3309, %v3305
  %v3354 = vpack.c.b16 %v3310, %v3306
  %v3355 = vpack.c.b16 %v3311, %v3307
  %v3356 = vpack.c.b16 %v3312, %v3308
  %v3357 = vpack.c.b16 %v3317, %v3313
  %v3358 = vpack.c.b16 %v3318, %v3314
  %v3359 = vpack.c.b16 %v3319, %v3315
  %v3360 = vpack.c.b16 %v3320, %v3316
  %v3361 = vpack.c.b16 %v3325, %v3321
  %v3362 = vpack.c.b16 %v3326, %v3322
  %v3363 = vpack.c.b16 %v3327, %v3323
  %v3364 = vpack.c.b16 %v3328, %v3324
  %v3365 = vpack.c.b16 %v3333, %v3329
  %v3366 = vpack.c.b16 %v3334, %v3330
  %v3367 = vpack.c.b16 %v3335, %v3331
  %v3368 = vpack.c.b16 %v3336, %v3332
  %3401 = vmatprep.subr.bf16.mxu0 %v3366
  %3402 = vmatpush1.bf16.msra.mxu0 %v3365
  %3403 = vmatprep.subr.bf16.mxu0 %v3362
  %3404 = vmatpush1.bf16.msra.mxu0 %v3361
  %3405 = vmatprep.subr.bf16.mxu0 %v3358
  %3406 = vmatpush1.bf16.msra.mxu0 %v3357
  %3407 = vmatprep.subr.bf16.mxu0 %v3354
  %3408 = vmatpush1.bf16.msra.mxu0 %v3353
  %3409 = vmatprep.subr.bf16.mxu0 %v3350
  %3410 = vmatpush1.bf16.msra.mxu0 %v3349
  %3411 = vmatprep.subr.bf16.mxu0 %v3346
  %3412 = vmatpush1.bf16.msra.mxu0 %v3345
  %3413 = vmatprep.subr.bf16.mxu0 %v3342
  %3414 = vmatpush1.bf16.msra.mxu0 %v3341
  %3415 = vmatprep.subr.bf16.mxu0 %v3338
  %3416 = vmatpush1.bf16.msra.mxu0 %v3337
  %3417 = vmatprep.subr.bf16.mxu0 0
  %3418 = vmatpush2.bf16.msra.mxu0 0
  %3419 = vmatprep.subr.bf16.mxu0 0
  %3420 = vmatpush2.bf16.msra.mxu0 0
  %3421 = vmatprep.subr.bf16.mxu0 0
  %3422 = vmatpush2.bf16.msra.mxu0 0
  %3423 = vmatprep.subr.bf16.mxu0 0
  %3424 = vmatpush2.bf16.msra.mxu0 0
  %3425 = vmatprep.subr.bf16.mxu0 0
  %3426 = vmatpush2.bf16.msra.mxu0 0
  %3427 = vmatprep.subr.bf16.mxu0 0
  %3428 = vmatpush2.bf16.msra.mxu0 0
  %3429 = vmatprep.subr.bf16.mxu0 0
  %3430 = vmatpush2.bf16.msra.mxu0 0
  %3431 = vmatprep.subr.bf16.mxu0 0
  %3432 = vmatpush2.bf16.msra.mxu0 0
  %3433 = vmatprep.mubr.bf16.mxu0 0
  %3434 = vmatmul.mubr.bf16.gmra.mxu0 %v3208
  %v3435 = vpop.f32.mrf.mxu0
  %v3436 = vadd.f32 0.0, %v3435
  %v3437 = vpop.f32.mrf.mxu0
  %v3438 = vadd.f32 0.0, %v3437
  %v3439 = vpop.f32.mrf.mxu0
  %v3440 = vpop.f32.mrf.mxu0
  %3441 = vdwg.mxu0
  %3442 = vmatprep.subr.bf16.mxu0 %v3368
  %3443 = vmatpush1.bf16.msra.mxu0 %v3367
  %3444 = vmatprep.subr.bf16.mxu0 %v3364
  %3445 = vmatpush1.bf16.msra.mxu0 %v3363
  %3446 = vmatprep.subr.bf16.mxu0 %v3360
  %3447 = vmatpush1.bf16.msra.mxu0 %v3359
  %3448 = vmatprep.subr.bf16.mxu0 %v3356
  %3449 = vmatpush1.bf16.msra.mxu0 %v3355
  %3450 = vmatprep.subr.bf16.mxu0 %v3352
  %3451 = vmatpush1.bf16.msra.mxu0 %v3351
  %3452 = vmatprep.subr.bf16.mxu0 %v3348
  %3453 = vmatpush1.bf16.msra.mxu0 %v3347
  %3454 = vmatprep.subr.bf16.mxu0 %v3344
  %3455 = vmatpush1.bf16.msra.mxu0 %v3343
  %3456 = vmatprep.subr.bf16.mxu0 %v3340
  %3457 = vmatpush1.bf16.msra.mxu0 %v3339
  %3458 = vmatprep.subr.bf16.mxu0 0
  %3459 = vmatpush2.bf16.msra.mxu0 0
  %3460 = vmatprep.subr.bf16.mxu0 0
  %3461 = vmatpush2.bf16.msra.mxu0 0
  %3462 = vmatprep.subr.bf16.mxu0 0
  %3463 = vmatpush2.bf16.msra.mxu0 0
  %3464 = vmatprep.subr.bf16.mxu0 0
  %3465 = vmatpush2.bf16.msra.mxu0 0
  %3466 = vmatprep.subr.bf16.mxu0 0
  %3467 = vmatpush2.bf16.msra.mxu0 0
  %3468 = vmatprep.subr.bf16.mxu0 0
  %3469 = vmatpush2.bf16.msra.mxu0 0
  %3470 = vmatprep.subr.bf16.mxu0 0
  %3471 = vmatpush2.bf16.msra.mxu0 0
  %3472 = vmatprep.subr.bf16.mxu0 0
  %3473 = vmatpush2.bf16.msra.mxu0 0
  %3474 = vmatprep.mubr.bf16.mxu0 0
  %3475 = vmatmul.mubr.bf16.gmra.mxu0 %v3208
  %v3476 = vpop.f32.mrf.mxu0
  %v3477 = vadd.f32 0.0, %v3476
  %v3478 = vpop.f32.mrf.mxu0
  %v3479 = vadd.f32 0.0, %v3478
  %v3480 = vpop.f32.mrf.mxu0
  %v3481 = vpop.f32.mrf.mxu0
  %3482 = vdwg.mxu0
  %v3515 = vunpack.c.l.b16 %v3175
  %v3516 = vunpack.c.h.b16 %v3175
  %v3517 = vunpack.c.l.b16 %v3176
  %v3518 = vunpack.c.h.b16 %v3176
  %v3519 = vunpack.c.l.b16 %v3177
  %v3520 = vunpack.c.h.b16 %v3177
  %v3521 = vunpack.c.l.b16 %v3178
  %v3522 = vunpack.c.h.b16 %v3178
  %v3523 = vunpack.c.l.b16 %v3179
  %v3524 = vunpack.c.h.b16 %v3179
  %v3525 = vunpack.c.l.b16 %v3180
  %v3526 = vunpack.c.h.b16 %v3180
  %v3527 = vunpack.c.l.b16 %v3181
  %v3528 = vunpack.c.h.b16 %v3181
  %v3529 = vunpack.c.l.b16 %v3182
  %v3530 = vunpack.c.h.b16 %v3182
  %v3531 = vunpack.c.l.b16 %v3183
  %v3532 = vunpack.c.h.b16 %v3183
  %v3533 = vunpack.c.l.b16 %v3184
  %v3534 = vunpack.c.h.b16 %v3184
  %v3535 = vunpack.c.l.b16 %v3185
  %v3536 = vunpack.c.h.b16 %v3185
  %v3537 = vunpack.c.l.b16 %v3186
  %v3538 = vunpack.c.h.b16 %v3186
  %v3539 = vunpack.c.l.b16 %v3187
  %v3540 = vunpack.c.h.b16 %v3187
  %v3541 = vunpack.c.l.b16 %v3188
  %v3542 = vunpack.c.h.b16 %v3188
  %v3543 = vunpack.c.l.b16 %v3189
  %v3544 = vunpack.c.h.b16 %v3189
  %v3545 = vunpack.c.l.b16 %v3190
  %v3546 = vunpack.c.h.b16 %v3190
  %v3547 = vunpack.c.l.b16 %v3191
  %v3548 = vunpack.c.h.b16 %v3191
  %v3549 = vunpack.c.l.b16 %v3192
  %v3550 = vunpack.c.h.b16 %v3192
  %v3551 = vunpack.c.l.b16 %v3193
  %v3552 = vunpack.c.h.b16 %v3193
  %v3553 = vunpack.c.l.b16 %v3194
  %v3554 = vunpack.c.h.b16 %v3194
  %v3555 = vunpack.c.l.b16 %v3195
  %v3556 = vunpack.c.h.b16 %v3195
  %v3557 = vunpack.c.l.b16 %v3196
  %v3558 = vunpack.c.h.b16 %v3196
  %v3559 = vunpack.c.l.b16 %v3197
  %v3560 = vunpack.c.h.b16 %v3197
  %v3561 = vunpack.c.l.b16 %v3198
  %v3562 = vunpack.c.h.b16 %v3198
  %v3563 = vunpack.c.l.b16 %v3199
  %v3564 = vunpack.c.h.b16 %v3199
  %v3565 = vunpack.c.l.b16 %v3200
  %v3566 = vunpack.c.h.b16 %v3200
  %v3567 = vunpack.c.l.b16 %v3201
  %v3568 = vunpack.c.h.b16 %v3201
  %v3569 = vunpack.c.l.b16 %v3202
  %v3570 = vunpack.c.h.b16 %v3202
  %v3571 = vunpack.c.l.b16 %v3203
  %v3572 = vunpack.c.h.b16 %v3203
  %v3573 = vunpack.c.l.b16 %v3204
  %v3574 = vunpack.c.h.b16 %v3204
  %v3575 = vunpack.c.l.b16 %v3205
  %v3576 = vunpack.c.h.b16 %v3205
  %v3577 = vunpack.c.l.b16 %v3206
  %v3578 = vunpack.c.h.b16 %v3206
  %v3579 = vpack.c.b16 %v3519, %v3515
  %v3580 = vpack.c.b16 %v3520, %v3516
  %v3581 = vpack.c.b16 %v3521, %v3517
  %v3582 = vpack.c.b16 %v3522, %v3518
  %v3583 = vpack.c.b16 %v3527, %v3523
  %v3584 = vpack.c.b16 %v3528, %v3524
  %v3585 = vpack.c.b16 %v3529, %v3525
  %v3586 = vpack.c.b16 %v3530, %v3526
  %v3587 = vpack.c.b16 %v3535, %v3531
  %v3588 = vpack.c.b16 %v3536, %v3532
  %v3589 = vpack.c.b16 %v3537, %v3533
  %v3590 = vpack.c.b16 %v3538, %v3534
  %v3591 = vpack.c.b16 %v3543, %v3539
  %v3592 = vpack.c.b16 %v3544, %v3540
  %v3593 = vpack.c.b16 %v3545, %v3541
  %v3594 = vpack.c.b16 %v3546, %v3542
  %v3595 = vpack.c.b16 %v3551, %v3547
  %v3596 = vpack.c.b16 %v3552, %v3548
  %v3597 = vpack.c.b16 %v3553, %v3549
  %v3598 = vpack.c.b16 %v3554, %v3550
  %v3599 = vpack.c.b16 %v3559, %v3555
  %v3600 = vpack.c.b16 %v3560, %v3556
  %v3601 = vpack.c.b16 %v3561, %v3557
  %v3602 = vpack.c.b16 %v3562, %v3558
  %v3603 = vpack.c.b16 %v3567, %v3563
  %v3604 = vpack.c.b16 %v3568, %v3564
  %v3605 = vpack.c.b16 %v3569, %v3565
  %v3606 = vpack.c.b16 %v3570, %v3566
  %v3607 = vpack.c.b16 %v3575, %v3571
  %v3608 = vpack.c.b16 %v3576, %v3572
  %v3609 = vpack.c.b16 %v3577, %v3573
  %v3610 = vpack.c.b16 %v3578, %v3574
  %3643 = vmatprep.subr.bf16.mxu0 %v3608
  %3644 = vmatpush1.bf16.msra.mxu0 %v3607
  %3645 = vmatprep.subr.bf16.mxu0 %v3604
  %3646 = vmatpush1.bf16.msra.mxu0 %v3603
  %3647 = vmatprep.subr.bf16.mxu0 %v3600
  %3648 = vmatpush1.bf16.msra.mxu0 %v3599
  %3649 = vmatprep.subr.bf16.mxu0 %v3596
  %3650 = vmatpush1.bf16.msra.mxu0 %v3595
  %3651 = vmatprep.subr.bf16.mxu0 %v3592
  %3652 = vmatpush1.bf16.msra.mxu0 %v3591
  %3653 = vmatprep.subr.bf16.mxu0 %v3588
  %3654 = vmatpush1.bf16.msra.mxu0 %v3587
  %3655 = vmatprep.subr.bf16.mxu0 %v3584
  %3656 = vmatpush1.bf16.msra.mxu0 %v3583
  %3657 = vmatprep.subr.bf16.mxu0 %v3580
  %3658 = vmatpush1.bf16.msra.mxu0 %v3579
  %3659 = vmatprep.subr.bf16.mxu0 0
  %3660 = vmatpush2.bf16.msra.mxu0 0
  %3661 = vmatprep.subr.bf16.mxu0 0
  %3662 = vmatpush2.bf16.msra.mxu0 0
  %3663 = vmatprep.subr.bf16.mxu0 0
  %3664 = vmatpush2.bf16.msra.mxu0 0
  %3665 = vmatprep.subr.bf16.mxu0 0
  %3666 = vmatpush2.bf16.msra.mxu0 0
  %3667 = vmatprep.subr.bf16.mxu0 0
  %3668 = vmatpush2.bf16.msra.mxu0 0
  %3669 = vmatprep.subr.bf16.mxu0 0
  %3670 = vmatpush2.bf16.msra.mxu0 0
  %3671 = vmatprep.subr.bf16.mxu0 0
  %3672 = vmatpush2.bf16.msra.mxu0 0
  %3673 = vmatprep.subr.bf16.mxu0 0
  %3674 = vmatpush2.bf16.msra.mxu0 0
  %3675 = vmatprep.mubr.bf16.mxu0 0
  %3676 = vmatmul.mubr.bf16.gmra.mxu0 %v3174
  %v3677 = vpop.f32.mrf.mxu0
  %v3678 = vadd.f32 %v3436, %v3677
  %v3679 = vpop.f32.mrf.mxu0
  %v3680 = vadd.f32 %v3438, %v3679
  %v3681 = vpop.f32.mrf.mxu0
  %v3682 = vpop.f32.mrf.mxu0
  %3683 = vdwg.mxu0
  %3684 = vmatprep.subr.bf16.mxu0 %v3610
  %3685 = vmatpush1.bf16.msra.mxu0 %v3609
  %3686 = vmatprep.subr.bf16.mxu0 %v3606
  %3687 = vmatpush1.bf16.msra.mxu0 %v3605
  %3688 = vmatprep.subr.bf16.mxu0 %v3602
  %3689 = vmatpush1.bf16.msra.mxu0 %v3601
  %3690 = vmatprep.subr.bf16.mxu0 %v3598
  %3691 = vmatpush1.bf16.msra.mxu0 %v3597
  %3692 = vmatprep.subr.bf16.mxu0 %v3594
  %3693 = vmatpush1.bf16.msra.mxu0 %v3593
  %3694 = vmatprep.subr.bf16.mxu0 %v3590
  %3695 = vmatpush1.bf16.msra.mxu0 %v3589
  %3696 = vmatprep.subr.bf16.mxu0 %v3586
  %3697 = vmatpush1.bf16.msra.mxu0 %v3585
  %3698 = vmatprep.subr.bf16.mxu0 %v3582
  %3699 = vmatpush1.bf16.msra.mxu0 %v3581
  %3700 = vmatprep.subr.bf16.mxu0 0
  %3701 = vmatpush2.bf16.msra.mxu0 0
  %3702 = vmatprep.subr.bf16.mxu0 0
  %3703 = vmatpush2.bf16.msra.mxu0 0
  %3704 = vmatprep.subr.bf16.mxu0 0
  %3705 = vmatpush2.bf16.msra.mxu0 0
  %3706 = vmatprep.subr.bf16.mxu0 0
  %3707 = vmatpush2.bf16.msra.mxu0 0
  %3708 = vmatprep.subr.bf16.mxu0 0
  %3709 = vmatpush2.bf16.msra.mxu0 0
  %3710 = vmatprep.subr.bf16.mxu0 0
  %3711 = vmatpush2.bf16.msra.mxu0 0
  %3712 = vmatprep.subr.bf16.mxu0 0
  %3713 = vmatpush2.bf16.msra.mxu0 0
  %3714 = vmatprep.subr.bf16.mxu0 0
  %3715 = vmatpush2.bf16.msra.mxu0 0
  %3716 = vmatprep.mubr.bf16.mxu0 0
  %3717 = vmatmul.mubr.bf16.gmra.mxu0 %v3174
  %v3718 = vpop.f32.mrf.mxu0
  %v3719 = vadd.f32 %v3477, %v3718
  %v3720 = vpop.f32.mrf.mxu0
  %v3721 = vadd.f32 %v3479, %v3720
  %v3722 = vpop.f32.mrf.mxu0
  %v3723 = vpop.f32.mrf.mxu0
  %3724 = vdwg.mxu0
  %v3725 = vld [vmem:[%s6] sm:$0xf]
  %v3727 = vlaneseq
  %v3728 = vshrl.u32 %v3727, 7
  %v3729 = vsub.s32 0, %v3728
  %v3730 = vrot.slane %v3725, %v3729
  %v3731 = vlaneseq
  %v3732 = vshrl.u32 %v3731, 7
  %v3733 = vsub.s32 1, %v3732
  %v3734 = vrot.slane %v3725, %v3733
  %v3735 = vlaneseq
  %v3736 = vshrl.u32 %v3735, 7
  %v3737 = vsub.s32 2, %v3736
  %v3738 = vrot.slane %v3725, %v3737
  %v3739 = vlaneseq
  %v3740 = vshrl.u32 %v3739, 7
  %v3741 = vsub.s32 3, %v3740
  %v3742 = vrot.slane %v3725, %v3741
  %v3747 = vadd.f32 %v3678, %v3730
  %v3748 = vadd.f32 %v3680, %v3734
  %v3749 = vadd.f32 %v3719, %v3738
  %v3750 = vadd.f32 %v3721, %v3742
  %v3751 = vld [vmem:[#allocation5] sm:$0x3]
  %v3752 = vxor.u32 %v3747, 2147483648
  %v3753 = vmul.f32 %v3752, 1.442695
  %v3754 = vpow.pop %v3753
  %v3755 = vadd.f32 %v3754, 1.0
  %v3756 = vrcp.pop %v3755
  %v3757 = vmul.f32 1.0, %v3756
  %v3758 = vxor.u32 %v3748, 2147483648
  %v3759 = vmul.f32 %v3758, 1.442695
  %v3760 = vpow.pop %v3759
  %v3761 = vadd.f32 %v3760, 1.0
  %v3762 = vrcp.pop %v3761
  %v3763 = vmul.f32 1.0, %v3762
  %v3764 = vtanh.pop %v3749
  %v3765 = vxor.u32 %v3750, 2147483648
  %v3766 = vmul.f32 %v3765, 1.442695
  %v3767 = vpow.pop %v3766
  %v3768 = vadd.f32 %v3767, 1.0
  %v3769 = vrcp.pop %v3768
  %v3770 = vmul.f32 1.0, %v3769
  %v3771 = vmul.f32 %v3763, %v3751
  %v3772 = vmul.f32 %v3757, %v3764
  %v3773 = vadd.f32 %v3771, %v3772
  %v3774 = vtanh.pop %v3773
  %v3775 = vmul.f32 %v3770, %v3774
  %3776 = vst [vmem:[#allocation4] sm:$0x3] %v3775
  %3777 = vst [vmem:[#allocation5] sm:$0x3] %v3773
  %v3778 = vld [vmem:[#allocation4] sm:$0x3]
  %s3779 = scalar_lea.vmem %s7, 6
  %3780 = vst [vmem:[%s3779] sm:$0x3] %v3778
  %s3781 = scalar_lea.vmem %s0, 24
  %v3782 = vld [vmem:[%s3781] sm:$0xff]
  %v3783 = vld [vmem:[#allocation2] sm:$0x3]
  %v3784 = vpack.c.bf16 %v3783, %v3783
  %v3785 = vld [vmem:[%s3] sm:$0xff]
  %v3786 = vld [vmem:[%s3 + $0x8] sm:$0xff]
  %v3787 = vld [vmem:[%s3 + $0x10] sm:$0xff]
  %v3788 = vld [vmem:[%s3 + $0x18] sm:$0xff]
  %v3789 = vld [vmem:[%s3 + $0x20] sm:$0xff]
  %v3790 = vld [vmem:[%s3 + $0x28] sm:$0xff]
  %v3791 = vld [vmem:[%s3 + $0x30] sm:$0xff]
  %v3792 = vld [vmem:[%s3 + $0x38] sm:$0xff]
  %v3793 = vld [vmem:[%s3 + $0x40] sm:$0xff]
  %v3794 = vld [vmem:[%s3 + $0x48] sm:$0xff]
  %v3795 = vld [vmem:[%s3 + $0x50] sm:$0xff]
  %v3796 = vld [vmem:[%s3 + $0x58] sm:$0xff]
  %v3797 = vld [vmem:[%s3 + $0x60] sm:$0xff]
  %v3798 = vld [vmem:[%s3 + $0x68] sm:$0xff]
  %v3799 = vld [vmem:[%s3 + $0x70] sm:$0xff]
  %v3800 = vld [vmem:[%s3 + $0x78] sm:$0xff]
  %v3801 = vld [vmem:[%s3 + $0x80] sm:$0xff]
  %v3802 = vld [vmem:[%s3 + $0x88] sm:$0xff]
  %v3803 = vld [vmem:[%s3 + $0x90] sm:$0xff]
  %v3804 = vld [vmem:[%s3 + $0x98] sm:$0xff]
  %v3805 = vld [vmem:[%s3 + $0xa0] sm:$0xff]
  %v3806 = vld [vmem:[%s3 + $0xa8] sm:$0xff]
  %v3807 = vld [vmem:[%s3 + $0xb0] sm:$0xff]
  %v3808 = vld [vmem:[%s3 + $0xb8] sm:$0xff]
  %v3809 = vld [vmem:[%s3 + $0xc0] sm:$0xff]
  %v3810 = vld [vmem:[%s3 + $0xc8] sm:$0xff]
  %v3811 = vld [vmem:[%s3 + $0xd0] sm:$0xff]
  %v3812 = vld [vmem:[%s3 + $0xd8] sm:$0xff]
  %v3813 = vld [vmem:[%s3 + $0xe0] sm:$0xff]
  %v3814 = vld [vmem:[%s3 + $0xe8] sm:$0xff]
  %v3815 = vld [vmem:[%s3 + $0xf0] sm:$0xff]
  %v3816 = vld [vmem:[%s3 + $0xf8] sm:$0xff]
  %v3849 = vunpack.c.l.b16 %v3785
  %v3850 = vunpack.c.h.b16 %v3785
  %v3851 = vunpack.c.l.b16 %v3786
  %v3852 = vunpack.c.h.b16 %v3786
  %v3853 = vunpack.c.l.b16 %v3787
  %v3854 = vunpack.c.h.b16 %v3787
  %v3855 = vunpack.c.l.b16 %v3788
  %v3856 = vunpack.c.h.b16 %v3788
  %v3857 = vunpack.c.l.b16 %v3789
  %v3858 = vunpack.c.h.b16 %v3789
  %v3859 = vunpack.c.l.b16 %v3790
  %v3860 = vunpack.c.h.b16 %v3790
  %v3861 = vunpack.c.l.b16 %v3791
  %v3862 = vunpack.c.h.b16 %v3791
  %v3863 = vunpack.c.l.b16 %v3792
  %v3864 = vunpack.c.h.b16 %v3792
  %v3865 = vunpack.c.l.b16 %v3793
  %v3866 = vunpack.c.h.b16 %v3793
  %v3867 = vunpack.c.l.b16 %v3794
  %v3868 = vunpack.c.h.b16 %v3794
  %v3869 = vunpack.c.l.b16 %v3795
  %v3870 = vunpack.c.h.b16 %v3795
  %v3871 = vunpack.c.l.b16 %v3796
  %v3872 = vunpack.c.h.b16 %v3796
  %v3873 = vunpack.c.l.b16 %v3797
  %v3874 = vunpack.c.h.b16 %v3797
  %v3875 = vunpack.c.l.b16 %v3798
  %v3876 = vunpack.c.h.b16 %v3798
  %v3877 = vunpack.c.l.b16 %v3799
  %v3878 = vunpack.c.h.b16 %v3799
  %v3879 = vunpack.c.l.b16 %v3800
  %v3880 = vunpack.c.h.b16 %v3800
  %v3881 = vunpack.c.l.b16 %v3801
  %v3882 = vunpack.c.h.b16 %v3801
  %v3883 = vunpack.c.l.b16 %v3802
  %v3884 = vunpack.c.h.b16 %v3802
  %v3885 = vunpack.c.l.b16 %v3803
  %v3886 = vunpack.c.h.b16 %v3803
  %v3887 = vunpack.c.l.b16 %v3804
  %v3888 = vunpack.c.h.b16 %v3804
  %v3889 = vunpack.c.l.b16 %v3805
  %v3890 = vunpack.c.h.b16 %v3805
  %v3891 = vunpack.c.l.b16 %v3806
  %v3892 = vunpack.c.h.b16 %v3806
  %v3893 = vunpack.c.l.b16 %v3807
  %v3894 = vunpack.c.h.b16 %v3807
  %v3895 = vunpack.c.l.b16 %v3808
  %v3896 = vunpack.c.h.b16 %v3808
  %v3897 = vunpack.c.l.b16 %v3809
  %v3898 = vunpack.c.h.b16 %v3809
  %v3899 = vunpack.c.l.b16 %v3810
  %v3900 = vunpack.c.h.b16 %v3810
  %v3901 = vunpack.c.l.b16 %v3811
  %v3902 = vunpack.c.h.b16 %v3811
  %v3903 = vunpack.c.l.b16 %v3812
  %v3904 = vunpack.c.h.b16 %v3812
  %v3905 = vunpack.c.l.b16 %v3813
  %v3906 = vunpack.c.h.b16 %v3813
  %v3907 = vunpack.c.l.b16 %v3814
  %v3908 = vunpack.c.h.b16 %v3814
  %v3909 = vunpack.c.l.b16 %v3815
  %v3910 = vunpack.c.h.b16 %v3815
  %v3911 = vunpack.c.l.b16 %v3816
  %v3912 = vunpack.c.h.b16 %v3816
  %v3913 = vpack.c.b16 %v3853, %v3849
  %v3914 = vpack.c.b16 %v3854, %v3850
  %v3915 = vpack.c.b16 %v3855, %v3851
  %v3916 = vpack.c.b16 %v3856, %v3852
  %v3917 = vpack.c.b16 %v3861, %v3857
  %v3918 = vpack.c.b16 %v3862, %v3858
  %v3919 = vpack.c.b16 %v3863, %v3859
  %v3920 = vpack.c.b16 %v3864, %v3860
  %v3921 = vpack.c.b16 %v3869, %v3865
  %v3922 = vpack.c.b16 %v3870, %v3866
  %v3923 = vpack.c.b16 %v3871, %v3867
  %v3924 = vpack.c.b16 %v3872, %v3868
  %v3925 = vpack.c.b16 %v3877, %v3873
  %v3926 = vpack.c.b16 %v3878, %v3874
  %v3927 = vpack.c.b16 %v3879, %v3875
  %v3928 = vpack.c.b16 %v3880, %v3876
  %v3929 = vpack.c.b16 %v3885, %v3881
  %v3930 = vpack.c.b16 %v3886, %v3882
  %v3931 = vpack.c.b16 %v3887, %v3883
  %v3932 = vpack.c.b16 %v3888, %v3884
  %v3933 = vpack.c.b16 %v3893, %v3889
  %v3934 = vpack.c.b16 %v3894, %v3890
  %v3935 = vpack.c.b16 %v3895, %v3891
  %v3936 = vpack.c.b16 %v3896, %v3892
  %v3937 = vpack.c.b16 %v3901, %v3897
  %v3938 = vpack.c.b16 %v3902, %v3898
  %v3939 = vpack.c.b16 %v3903, %v3899
  %v3940 = vpack.c.b16 %v3904, %v3900
  %v3941 = vpack.c.b16 %v3909, %v3905
  %v3942 = vpack.c.b16 %v3910, %v3906
  %v3943 = vpack.c.b16 %v3911, %v3907
  %v3944 = vpack.c.b16 %v3912, %v3908
  %3977 = vmatprep.subr.bf16.mxu0 %v3942
  %3978 = vmatpush1.bf16.msra.mxu0 %v3941
  %3979 = vmatprep.subr.bf16.mxu0 %v3938
  %3980 = vmatpush1.bf16.msra.mxu0 %v3937
  %3981 = vmatprep.subr.bf16.mxu0 %v3934
  %3982 = vmatpush1.bf16.msra.mxu0 %v3933
  %3983 = vmatprep.subr.bf16.mxu0 %v3930
  %3984 = vmatpush1.bf16.msra.mxu0 %v3929
  %3985 = vmatprep.subr.bf16.mxu0 %v3926
  %3986 = vmatpush1.bf16.msra.mxu0 %v3925
  %3987 = vmatprep.subr.bf16.mxu0 %v3922
  %3988 = vmatpush1.bf16.msra.mxu0 %v3921
  %3989 = vmatprep.subr.bf16.mxu0 %v3918
  %3990 = vmatpush1.bf16.msra.mxu0 %v3917
  %3991 = vmatprep.subr.bf16.mxu0 %v3914
  %3992 = vmatpush1.bf16.msra.mxu0 %v3913
  %3993 = vmatprep.subr.bf16.mxu0 0
  %3994 = vmatpush2.bf16.msra.mxu0 0
  %3995 = vmatprep.subr.bf16.mxu0 0
  %3996 = vmatpush2.bf16.msra.mxu0 0
  %3997 = vmatprep.subr.bf16.mxu0 0
  %3998 = vmatpush2.bf16.msra.mxu0 0
  %3999 = vmatprep.subr.bf16.mxu0 0
  %4000 = vmatpush2.bf16.msra.mxu0 0
  %4001 = vmatprep.subr.bf16.mxu0 0
  %4002 = vmatpush2.bf16.msra.mxu0 0
  %4003 = vmatprep.subr.bf16.mxu0 0
  %4004 = vmatpush2.bf16.msra.mxu0 0
  %4005 = vmatprep.subr.bf16.mxu0 0
  %4006 = vmatpush2.bf16.msra.mxu0 0
  %4007 = vmatprep.subr.bf16.mxu0 0
  %4008 = vmatpush2.bf16.msra.mxu0 0
  %4009 = vmatprep.mubr.bf16.mxu0 0
  %4010 = vmatmul.mubr.bf16.gmra.mxu0 %v3784
  %v4011 = vpop.f32.mrf.mxu0
  %v4012 = vadd.f32 0.0, %v4011
  %v4013 = vpop.f32.mrf.mxu0
  %v4014 = vadd.f32 0.0, %v4013
  %v4015 = vpop.f32.mrf.mxu0
  %v4016 = vpop.f32.mrf.mxu0
  %4017 = vdwg.mxu0
  %4018 = vmatprep.subr.bf16.mxu0 %v3944
  %4019 = vmatpush1.bf16.msra.mxu0 %v3943
  %4020 = vmatprep.subr.bf16.mxu0 %v3940
  %4021 = vmatpush1.bf16.msra.mxu0 %v3939
  %4022 = vmatprep.subr.bf16.mxu0 %v3936
  %4023 = vmatpush1.bf16.msra.mxu0 %v3935
  %4024 = vmatprep.subr.bf16.mxu0 %v3932
  %4025 = vmatpush1.bf16.msra.mxu0 %v3931
  %4026 = vmatprep.subr.bf16.mxu0 %v3928
  %4027 = vmatpush1.bf16.msra.mxu0 %v3927
  %4028 = vmatprep.subr.bf16.mxu0 %v3924
  %4029 = vmatpush1.bf16.msra.mxu0 %v3923
  %4030 = vmatprep.subr.bf16.mxu0 %v3920
  %4031 = vmatpush1.bf16.msra.mxu0 %v3919
  %4032 = vmatprep.subr.bf16.mxu0 %v3916
  %4033 = vmatpush1.bf16.msra.mxu0 %v3915
  %4034 = vmatprep.subr.bf16.mxu0 0
  %4035 = vmatpush2.bf16.msra.mxu0 0
  %4036 = vmatprep.subr.bf16.mxu0 0
  %4037 = vmatpush2.bf16.msra.mxu0 0
  %4038 = vmatprep.subr.bf16.mxu0 0
  %4039 = vmatpush2.bf16.msra.mxu0 0
  %4040 = vmatprep.subr.bf16.mxu0 0
  %4041 = vmatpush2.bf16.msra.mxu0 0
  %4042 = vmatprep.subr.bf16.mxu0 0
  %4043 = vmatpush2.bf16.msra.mxu0 0
  %4044 = vmatprep.subr.bf16.mxu0 0
  %4045 = vmatpush2.bf16.msra.mxu0 0
  %4046 = vmatprep.subr.bf16.mxu0 0
  %4047 = vmatpush2.bf16.msra.mxu0 0
  %4048 = vmatprep.subr.bf16.mxu0 0
  %4049 = vmatpush2.bf16.msra.mxu0 0
  %4050 = vmatprep.mubr.bf16.mxu0 0
  %4051 = vmatmul.mubr.bf16.gmra.mxu0 %v3784
  %v4052 = vpop.f32.mrf.mxu0
  %v4053 = vadd.f32 0.0, %v4052
  %v4054 = vpop.f32.mrf.mxu0
  %v4055 = vadd.f32 0.0, %v4054
  %v4056 = vpop.f32.mrf.mxu0
  %v4057 = vpop.f32.mrf.mxu0
  %4058 = vdwg.mxu0
  %v4063 = vcombine.low %v4012, %v4014
  %v4064 = vcombine.low %v4053, %v4055
  %v4066 = vunpack.c.l.s4 1983009808
  %v4067 = vunpack.c.0.s8 %v4066
  %v4068 = vlaneseq
  %v4069 = vshrl.u32 %v4068, 7
  %v4070 = vsub.s32 %v4067, %v4069
  %v4071 = vrot.slane %v4063, %v4070
  %v4073 = vunpack.c.l.s4 1983009808
  %v4074 = vunpack.c.0.s8 %v4073
  %v4075 = vlaneseq
  %v4076 = vshrl.u32 %v4075, 7
  %v4077 = vsub.s32 %v4074, %v4076
  %v4078 = vrot.slane %v4064, %v4077
  %v4079 = vcombine.low %v4071, %v4078
  %v4081 = vadd.f32 %v3782, %v4079
  %v4082 = vld [vmem:[#allocation6] sm:$0xff]
  %v4083 = vadd.f32 %v4081, %v4082
  %v4084 = vld [vmem:[#allocation3] sm:$0x3]
  %v4085 = vxor.u32 %v4083, 2147483648
  %v4086 = vmul.f32 %v4085, 1.442695
  %v4087 = vpow.pop %v4086
  %v4088 = vadd.f32 %v4087, 1.0
  %v4089 = vrcp.pop %v4088
  %v4090 = vmul.f32 1.0, %v4089
  %v4092 = vrot.slane %v4083, 2
  %v4094 = vxor.u32 %v4092, 2147483648
  %v4095 = vmul.f32 %v4094, 1.442695
  %v4096 = vpow.pop %v4095
  %v4097 = vadd.f32 %v4096, 1.0
  %v4098 = vrcp.pop %v4097
  %v4099 = vmul.f32 1.0, %v4098
  %v4100 = vrot.slane %v4083, 4
  %v4102 = vtanh.pop %v4100
  %v4103 = vrot.slane %v4083, 6
  %v4105 = vxor.u32 %v4103, 2147483648
  %v4106 = vmul.f32 %v4105, 1.442695
  %v4107 = vpow.pop %v4106
  %v4108 = vadd.f32 %v4107, 1.0
  %v4109 = vrcp.pop %v4108
  %v4110 = vmul.f32 1.0, %v4109
  %v4111 = vmul.f32 %v4099, %v4084
  %v4112 = vmul.f32 %v4090, %v4102
  %v4113 = vadd.f32 %v4111, %v4112
  %v4114 = vtanh.pop %v4113
  %v4115 = vmul.f32 %v4110, %v4114
  %4116 = vst [vmem:[#allocation2] sm:$0x3] %v4115
  %4117 = vst [vmem:[#allocation3] sm:$0x3] %v4113
  %v4118 = vld [vmem:[#allocation2] sm:$0x3]
  %v4119 = vpack.c.bf16 %v4118, %v4118
  %v4120 = vld [vmem:[%s4] sm:$0xff]
  %v4121 = vld [vmem:[%s4 + $0x8] sm:$0xff]
  %v4122 = vld [vmem:[%s4 + $0x10] sm:$0xff]
  %v4123 = vld [vmem:[%s4 + $0x18] sm:$0xff]
  %v4124 = vld [vmem:[%s4 + $0x20] sm:$0xff]
  %v4125 = vld [vmem:[%s4 + $0x28] sm:$0xff]
  %v4126 = vld [vmem:[%s4 + $0x30] sm:$0xff]
  %v4127 = vld [vmem:[%s4 + $0x38] sm:$0xff]
  %v4128 = vld [vmem:[%s4 + $0x40] sm:$0xff]
  %v4129 = vld [vmem:[%s4 + $0x48] sm:$0xff]
  %v4130 = vld [vmem:[%s4 + $0x50] sm:$0xff]
  %v4131 = vld [vmem:[%s4 + $0x58] sm:$0xff]
  %v4132 = vld [vmem:[%s4 + $0x60] sm:$0xff]
  %v4133 = vld [vmem:[%s4 + $0x68] sm:$0xff]
  %v4134 = vld [vmem:[%s4 + $0x70] sm:$0xff]
  %v4135 = vld [vmem:[%s4 + $0x78] sm:$0xff]
  %v4136 = vld [vmem:[%s4 + $0x80] sm:$0xff]
  %v4137 = vld [vmem:[%s4 + $0x88] sm:$0xff]
  %v4138 = vld [vmem:[%s4 + $0x90] sm:$0xff]
  %v4139 = vld [vmem:[%s4 + $0x98] sm:$0xff]
  %v4140 = vld [vmem:[%s4 + $0xa0] sm:$0xff]
  %v4141 = vld [vmem:[%s4 + $0xa8] sm:$0xff]
  %v4142 = vld [vmem:[%s4 + $0xb0] sm:$0xff]
  %v4143 = vld [vmem:[%s4 + $0xb8] sm:$0xff]
  %v4144 = vld [vmem:[%s4 + $0xc0] sm:$0xff]
  %v4145 = vld [vmem:[%s4 + $0xc8] sm:$0xff]
  %v4146 = vld [vmem:[%s4 + $0xd0] sm:$0xff]
  %v4147 = vld [vmem:[%s4 + $0xd8] sm:$0xff]
  %v4148 = vld [vmem:[%s4 + $0xe0] sm:$0xff]
  %v4149 = vld [vmem:[%s4 + $0xe8] sm:$0xff]
  %v4150 = vld [vmem:[%s4 + $0xf0] sm:$0xff]
  %v4151 = vld [vmem:[%s4 + $0xf8] sm:$0xff]
  %v4152 = vld [vmem:[#allocation4] sm:$0x3]
  %v4153 = vpack.c.bf16 %v4152, %v4152
  %v4154 = vld [vmem:[%s5] sm:$0xff]
  %v4155 = vld [vmem:[%s5 + $0x8] sm:$0xff]
  %v4156 = vld [vmem:[%s5 + $0x10] sm:$0xff]
  %v4157 = vld [vmem:[%s5 + $0x18] sm:$0xff]
  %v4158 = vld [vmem:[%s5 + $0x20] sm:$0xff]
  %v4159 = vld [vmem:[%s5 + $0x28] sm:$0xff]
  %v4160 = vld [vmem:[%s5 + $0x30] sm:$0xff]
  %v4161 = vld [vmem:[%s5 + $0x38] sm:$0xff]
  %v4162 = vld [vmem:[%s5 + $0x40] sm:$0xff]
  %v4163 = vld [vmem:[%s5 + $0x48] sm:$0xff]
  %v4164 = vld [vmem:[%s5 + $0x50] sm:$0xff]
  %v4165 = vld [vmem:[%s5 + $0x58] sm:$0xff]
  %v4166 = vld [vmem:[%s5 + $0x60] sm:$0xff]
  %v4167 = vld [vmem:[%s5 + $0x68] sm:$0xff]
  %v4168 = vld [vmem:[%s5 + $0x70] sm:$0xff]
  %v4169 = vld [vmem:[%s5 + $0x78] sm:$0xff]
  %v4170 = vld [vmem:[%s5 + $0x80] sm:$0xff]
  %v4171 = vld [vmem:[%s5 + $0x88] sm:$0xff]
  %v4172 = vld [vmem:[%s5 + $0x90] sm:$0xff]
  %v4173 = vld [vmem:[%s5 + $0x98] sm:$0xff]
  %v4174 = vld [vmem:[%s5 + $0xa0] sm:$0xff]
  %v4175 = vld [vmem:[%s5 + $0xa8] sm:$0xff]
  %v4176 = vld [vmem:[%s5 + $0xb0] sm:$0xff]
  %v4177 = vld [vmem:[%s5 + $0xb8] sm:$0xff]
  %v4178 = vld [vmem:[%s5 + $0xc0] sm:$0xff]
  %v4179 = vld [vmem:[%s5 + $0xc8] sm:$0xff]
  %v4180 = vld [vmem:[%s5 + $0xd0] sm:$0xff]
  %v4181 = vld [vmem:[%s5 + $0xd8] sm:$0xff]
  %v4182 = vld [vmem:[%s5 + $0xe0] sm:$0xff]
  %v4183 = vld [vmem:[%s5 + $0xe8] sm:$0xff]
  %v4184 = vld [vmem:[%s5 + $0xf0] sm:$0xff]
  %v4185 = vld [vmem:[%s5 + $0xf8] sm:$0xff]
  %v4218 = vunpack.c.l.b16 %v4154
  %v4219 = vunpack.c.h.b16 %v4154
  %v4220 = vunpack.c.l.b16 %v4155
  %v4221 = vunpack.c.h.b16 %v4155
  %v4222 = vunpack.c.l.b16 %v4156
  %v4223 = vunpack.c.h.b16 %v4156
  %v4224 = vunpack.c.l.b16 %v4157
  %v4225 = vunpack.c.h.b16 %v4157
  %v4226 = vunpack.c.l.b16 %v4158
  %v4227 = vunpack.c.h.b16 %v4158
  %v4228 = vunpack.c.l.b16 %v4159
  %v4229 = vunpack.c.h.b16 %v4159
  %v4230 = vunpack.c.l.b16 %v4160
  %v4231 = vunpack.c.h.b16 %v4160
  %v4232 = vunpack.c.l.b16 %v4161
  %v4233 = vunpack.c.h.b16 %v4161
  %v4234 = vunpack.c.l.b16 %v4162
  %v4235 = vunpack.c.h.b16 %v4162
  %v4236 = vunpack.c.l.b16 %v4163
  %v4237 = vunpack.c.h.b16 %v4163
  %v4238 = vunpack.c.l.b16 %v4164
  %v4239 = vunpack.c.h.b16 %v4164
  %v4240 = vunpack.c.l.b16 %v4165
  %v4241 = vunpack.c.h.b16 %v4165
  %v4242 = vunpack.c.l.b16 %v4166
  %v4243 = vunpack.c.h.b16 %v4166
  %v4244 = vunpack.c.l.b16 %v4167
  %v4245 = vunpack.c.h.b16 %v4167
  %v4246 = vunpack.c.l.b16 %v4168
  %v4247 = vunpack.c.h.b16 %v4168
  %v4248 = vunpack.c.l.b16 %v4169
  %v4249 = vunpack.c.h.b16 %v4169
  %v4250 = vunpack.c.l.b16 %v4170
  %v4251 = vunpack.c.h.b16 %v4170
  %v4252 = vunpack.c.l.b16 %v4171
  %v4253 = vunpack.c.h.b16 %v4171
  %v4254 = vunpack.c.l.b16 %v4172
  %v4255 = vunpack.c.h.b16 %v4172
  %v4256 = vunpack.c.l.b16 %v4173
  %v4257 = vunpack.c.h.b16 %v4173
  %v4258 = vunpack.c.l.b16 %v4174
  %v4259 = vunpack.c.h.b16 %v4174
  %v4260 = vunpack.c.l.b16 %v4175
  %v4261 = vunpack.c.h.b16 %v4175
  %v4262 = vunpack.c.l.b16 %v4176
  %v4263 = vunpack.c.h.b16 %v4176
  %v4264 = vunpack.c.l.b16 %v4177
  %v4265 = vunpack.c.h.b16 %v4177
  %v4266 = vunpack.c.l.b16 %v4178
  %v4267 = vunpack.c.h.b16 %v4178
  %v4268 = vunpack.c.l.b16 %v4179
  %v4269 = vunpack.c.h.b16 %v4179
  %v4270 = vunpack.c.l.b16 %v4180
  %v4271 = vunpack.c.h.b16 %v4180
  %v4272 = vunpack.c.l.b16 %v4181
  %v4273 = vunpack.c.h.b16 %v4181
  %v4274 = vunpack.c.l.b16 %v4182
  %v4275 = vunpack.c.h.b16 %v4182
  %v4276 = vunpack.c.l.b16 %v4183
  %v4277 = vunpack.c.h.b16 %v4183
  %v4278 = vunpack.c.l.b16 %v4184
  %v4279 = vunpack.c.h.b16 %v4184
  %v4280 = vunpack.c.l.b16 %v4185
  %v4281 = vunpack.c.h.b16 %v4185
  %v4282 = vpack.c.b16 %v4222, %v4218
  %v4283 = vpack.c.b16 %v4223, %v4219
  %v4284 = vpack.c.b16 %v4224, %v4220
  %v4285 = vpack.c.b16 %v4225, %v4221
  %v4286 = vpack.c.b16 %v4230, %v4226
  %v4287 = vpack.c.b16 %v4231, %v4227
  %v4288 = vpack.c.b16 %v4232, %v4228
  %v4289 = vpack.c.b16 %v4233, %v4229
  %v4290 = vpack.c.b16 %v4238, %v4234
  %v4291 = vpack.c.b16 %v4239, %v4235
  %v4292 = vpack.c.b16 %v4240, %v4236
  %v4293 = vpack.c.b16 %v4241, %v4237
  %v4294 = vpack.c.b16 %v4246, %v4242
  %v4295 = vpack.c.b16 %v4247, %v4243
  %v4296 = vpack.c.b16 %v4248, %v4244
  %v4297 = vpack.c.b16 %v4249, %v4245
  %v4298 = vpack.c.b16 %v4254, %v4250
  %v4299 = vpack.c.b16 %v4255, %v4251
  %v4300 = vpack.c.b16 %v4256, %v4252
  %v4301 = vpack.c.b16 %v4257, %v4253
  %v4302 = vpack.c.b16 %v4262, %v4258
  %v4303 = vpack.c.b16 %v4263, %v4259
  %v4304 = vpack.c.b16 %v4264, %v4260
  %v4305 = vpack.c.b16 %v4265, %v4261
  %v4306 = vpack.c.b16 %v4270, %v4266
  %v4307 = vpack.c.b16 %v4271, %v4267
  %v4308 = vpack.c.b16 %v4272, %v4268
  %v4309 = vpack.c.b16 %v4273, %v4269
  %v4310 = vpack.c.b16 %v4278, %v4274
  %v4311 = vpack.c.b16 %v4279, %v4275
  %v4312 = vpack.c.b16 %v4280, %v4276
  %v4313 = vpack.c.b16 %v4281, %v4277
  %4346 = vmatprep.subr.bf16.mxu0 %v4311
  %4347 = vmatpush1.bf16.msra.mxu0 %v4310
  %4348 = vmatprep.subr.bf16.mxu0 %v4307
  %4349 = vmatpush1.bf16.msra.mxu0 %v4306
  %4350 = vmatprep.subr.bf16.mxu0 %v4303
  %4351 = vmatpush1.bf16.msra.mxu0 %v4302
  %4352 = vmatprep.subr.bf16.mxu0 %v4299
  %4353 = vmatpush1.bf16.msra.mxu0 %v4298
  %4354 = vmatprep.subr.bf16.mxu0 %v4295
  %4355 = vmatpush1.bf16.msra.mxu0 %v4294
  %4356 = vmatprep.subr.bf16.mxu0 %v4291
  %4357 = vmatpush1.bf16.msra.mxu0 %v4290
  %4358 = vmatprep.subr.bf16.mxu0 %v4287
  %4359 = vmatpush1.bf16.msra.mxu0 %v4286
  %4360 = vmatprep.subr.bf16.mxu0 %v4283
  %4361 = vmatpush1.bf16.msra.mxu0 %v4282
  %4362 = vmatprep.subr.bf16.mxu0 0
  %4363 = vmatpush2.bf16.msra.mxu0 0
  %4364 = vmatprep.subr.bf16.mxu0 0
  %4365 = vmatpush2.bf16.msra.mxu0 0
  %4366 = vmatprep.subr.bf16.mxu0 0
  %4367 = vmatpush2.bf16.msra.mxu0 0
  %4368 = vmatprep.subr.bf16.mxu0 0
  %4369 = vmatpush2.bf16.msra.mxu0 0
  %4370 = vmatprep.subr.bf16.mxu0 0
  %4371 = vmatpush2.bf16.msra.mxu0 0
  %4372 = vmatprep.subr.bf16.mxu0 0
  %4373 = vmatpush2.bf16.msra.mxu0 0
  %4374 = vmatprep.subr.bf16.mxu0 0
  %4375 = vmatpush2.bf16.msra.mxu0 0
  %4376 = vmatprep.subr.bf16.mxu0 0
  %4377 = vmatpush2.bf16.msra.mxu0 0
  %4378 = vmatprep.mubr.bf16.mxu0 0
  %4379 = vmatmul.mubr.bf16.gmra.mxu0 %v4153
  %v4380 = vpop.f32.mrf.mxu0
  %v4381 = vadd.f32 0.0, %v4380
  %v4382 = vpop.f32.mrf.mxu0
  %v4383 = vadd.f32 0.0, %v4382
  %v4384 = vpop.f32.mrf.mxu0
  %v4385 = vpop.f32.mrf.mxu0
  %4386 = vdwg.mxu0
  %4387 = vmatprep.subr.bf16.mxu0 %v4313
  %4388 = vmatpush1.bf16.msra.mxu0 %v4312
  %4389 = vmatprep.subr.bf16.mxu0 %v4309
  %4390 = vmatpush1.bf16.msra.mxu0 %v4308
  %4391 = vmatprep.subr.bf16.mxu0 %v4305
  %4392 = vmatpush1.bf16.msra.mxu0 %v4304
  %4393 = vmatprep.subr.bf16.mxu0 %v4301
  %4394 = vmatpush1.bf16.msra.mxu0 %v4300
  %4395 = vmatprep.subr.bf16.mxu0 %v4297
  %4396 = vmatpush1.bf16.msra.mxu0 %v4296
  %4397 = vmatprep.subr.bf16.mxu0 %v4293
  %4398 = vmatpush1.bf16.msra.mxu0 %v4292
  %4399 = vmatprep.subr.bf16.mxu0 %v4289
  %4400 = vmatpush1.bf16.msra.mxu0 %v4288
  %4401 = vmatprep.subr.bf16.mxu0 %v4285
  %4402 = vmatpush1.bf16.msra.mxu0 %v4284
  %4403 = vmatprep.subr.bf16.mxu0 0
  %4404 = vmatpush2.bf16.msra.mxu0 0
  %4405 = vmatprep.subr.bf16.mxu0 0
  %4406 = vmatpush2.bf16.msra.mxu0 0
  %4407 = vmatprep.subr.bf16.mxu0 0
  %4408 = vmatpush2.bf16.msra.mxu0 0
  %4409 = vmatprep.subr.bf16.mxu0 0
  %4410 = vmatpush2.bf16.msra.mxu0 0
  %4411 = vmatprep.subr.bf16.mxu0 0
  %4412 = vmatpush2.bf16.msra.mxu0 0
  %4413 = vmatprep.subr.bf16.mxu0 0
  %4414 = vmatpush2.bf16.msra.mxu0 0
  %4415 = vmatprep.subr.bf16.mxu0 0
  %4416 = vmatpush2.bf16.msra.mxu0 0
  %4417 = vmatprep.subr.bf16.mxu0 0
  %4418 = vmatpush2.bf16.msra.mxu0 0
  %4419 = vmatprep.mubr.bf16.mxu0 0
  %4420 = vmatmul.mubr.bf16.gmra.mxu0 %v4153
  %v4421 = vpop.f32.mrf.mxu0
  %v4422 = vadd.f32 0.0, %v4421
  %v4423 = vpop.f32.mrf.mxu0
  %v4424 = vadd.f32 0.0, %v4423
  %v4425 = vpop.f32.mrf.mxu0
  %v4426 = vpop.f32.mrf.mxu0
  %4427 = vdwg.mxu0
  %v4460 = vunpack.c.l.b16 %v4120
  %v4461 = vunpack.c.h.b16 %v4120
  %v4462 = vunpack.c.l.b16 %v4121
  %v4463 = vunpack.c.h.b16 %v4121
  %v4464 = vunpack.c.l.b16 %v4122
  %v4465 = vunpack.c.h.b16 %v4122
  %v4466 = vunpack.c.l.b16 %v4123
  %v4467 = vunpack.c.h.b16 %v4123
  %v4468 = vunpack.c.l.b16 %v4124
  %v4469 = vunpack.c.h.b16 %v4124
  %v4470 = vunpack.c.l.b16 %v4125
  %v4471 = vunpack.c.h.b16 %v4125
  %v4472 = vunpack.c.l.b16 %v4126
  %v4473 = vunpack.c.h.b16 %v4126
  %v4474 = vunpack.c.l.b16 %v4127
  %v4475 = vunpack.c.h.b16 %v4127
  %v4476 = vunpack.c.l.b16 %v4128
  %v4477 = vunpack.c.h.b16 %v4128
  %v4478 = vunpack.c.l.b16 %v4129
  %v4479 = vunpack.c.h.b16 %v4129
  %v4480 = vunpack.c.l.b16 %v4130
  %v4481 = vunpack.c.h.b16 %v4130
  %v4482 = vunpack.c.l.b16 %v4131
  %v4483 = vunpack.c.h.b16 %v4131
  %v4484 = vunpack.c.l.b16 %v4132
  %v4485 = vunpack.c.h.b16 %v4132
  %v4486 = vunpack.c.l.b16 %v4133
  %v4487 = vunpack.c.h.b16 %v4133
  %v4488 = vunpack.c.l.b16 %v4134
  %v4489 = vunpack.c.h.b16 %v4134
  %v4490 = vunpack.c.l.b16 %v4135
  %v4491 = vunpack.c.h.b16 %v4135
  %v4492 = vunpack.c.l.b16 %v4136
  %v4493 = vunpack.c.h.b16 %v4136
  %v4494 = vunpack.c.l.b16 %v4137
  %v4495 = vunpack.c.h.b16 %v4137
  %v4496 = vunpack.c.l.b16 %v4138
  %v4497 = vunpack.c.h.b16 %v4138
  %v4498 = vunpack.c.l.b16 %v4139
  %v4499 = vunpack.c.h.b16 %v4139
  %v4500 = vunpack.c.l.b16 %v4140
  %v4501 = vunpack.c.h.b16 %v4140
  %v4502 = vunpack.c.l.b16 %v4141
  %v4503 = vunpack.c.h.b16 %v4141
  %v4504 = vunpack.c.l.b16 %v4142
  %v4505 = vunpack.c.h.b16 %v4142
  %v4506 = vunpack.c.l.b16 %v4143
  %v4507 = vunpack.c.h.b16 %v4143
  %v4508 = vunpack.c.l.b16 %v4144
  %v4509 = vunpack.c.h.b16 %v4144
  %v4510 = vunpack.c.l.b16 %v4145
  %v4511 = vunpack.c.h.b16 %v4145
  %v4512 = vunpack.c.l.b16 %v4146
  %v4513 = vunpack.c.h.b16 %v4146
  %v4514 = vunpack.c.l.b16 %v4147
  %v4515 = vunpack.c.h.b16 %v4147
  %v4516 = vunpack.c.l.b16 %v4148
  %v4517 = vunpack.c.h.b16 %v4148
  %v4518 = vunpack.c.l.b16 %v4149
  %v4519 = vunpack.c.h.b16 %v4149
  %v4520 = vunpack.c.l.b16 %v4150
  %v4521 = vunpack.c.h.b16 %v4150
  %v4522 = vunpack.c.l.b16 %v4151
  %v4523 = vunpack.c.h.b16 %v4151
  %v4524 = vpack.c.b16 %v4464, %v4460
  %v4525 = vpack.c.b16 %v4465, %v4461
  %v4526 = vpack.c.b16 %v4466, %v4462
  %v4527 = vpack.c.b16 %v4467, %v4463
  %v4528 = vpack.c.b16 %v4472, %v4468
  %v4529 = vpack.c.b16 %v4473, %v4469
  %v4530 = vpack.c.b16 %v4474, %v4470
  %v4531 = vpack.c.b16 %v4475, %v4471
  %v4532 = vpack.c.b16 %v4480, %v4476
  %v4533 = vpack.c.b16 %v4481, %v4477
  %v4534 = vpack.c.b16 %v4482, %v4478
  %v4535 = vpack.c.b16 %v4483, %v4479
  %v4536 = vpack.c.b16 %v4488, %v4484
  %v4537 = vpack.c.b16 %v4489, %v4485
  %v4538 = vpack.c.b16 %v4490, %v4486
  %v4539 = vpack.c.b16 %v4491, %v4487
  %v4540 = vpack.c.b16 %v4496, %v4492
  %v4541 = vpack.c.b16 %v4497, %v4493
  %v4542 = vpack.c.b16 %v4498, %v4494
  %v4543 = vpack.c.b16 %v4499, %v4495
  %v4544 = vpack.c.b16 %v4504, %v4500
  %v4545 = vpack.c.b16 %v4505, %v4501
  %v4546 = vpack.c.b16 %v4506, %v4502
  %v4547 = vpack.c.b16 %v4507, %v4503
  %v4548 = vpack.c.b16 %v4512, %v4508
  %v4549 = vpack.c.b16 %v4513, %v4509
  %v4550 = vpack.c.b16 %v4514, %v4510
  %v4551 = vpack.c.b16 %v4515, %v4511
  %v4552 = vpack.c.b16 %v4520, %v4516
  %v4553 = vpack.c.b16 %v4521, %v4517
  %v4554 = vpack.c.b16 %v4522, %v4518
  %v4555 = vpack.c.b16 %v4523, %v4519
  %4588 = vmatprep.subr.bf16.mxu0 %v4553
  %4589 = vmatpush1.bf16.msra.mxu0 %v4552
  %4590 = vmatprep.subr.bf16.mxu0 %v4549
  %4591 = vmatpush1.bf16.msra.mxu0 %v4548
  %4592 = vmatprep.subr.bf16.mxu0 %v4545
  %4593 = vmatpush1.bf16.msra.mxu0 %v4544
  %4594 = vmatprep.subr.bf16.mxu0 %v4541
  %4595 = vmatpush1.bf16.msra.mxu0 %v4540
  %4596 = vmatprep.subr.bf16.mxu0 %v4537
  %4597 = vmatpush1.bf16.msra.mxu0 %v4536
  %4598 = vmatprep.subr.bf16.mxu0 %v4533
  %4599 = vmatpush1.bf16.msra.mxu0 %v4532
  %4600 = vmatprep.subr.bf16.mxu0 %v4529
  %4601 = vmatpush1.bf16.msra.mxu0 %v4528
  %4602 = vmatprep.subr.bf16.mxu0 %v4525
  %4603 = vmatpush1.bf16.msra.mxu0 %v4524
  %4604 = vmatprep.subr.bf16.mxu0 0
  %4605 = vmatpush2.bf16.msra.mxu0 0
  %4606 = vmatprep.subr.bf16.mxu0 0
  %4607 = vmatpush2.bf16.msra.mxu0 0
  %4608 = vmatprep.subr.bf16.mxu0 0
  %4609 = vmatpush2.bf16.msra.mxu0 0
  %4610 = vmatprep.subr.bf16.mxu0 0
  %4611 = vmatpush2.bf16.msra.mxu0 0
  %4612 = vmatprep.subr.bf16.mxu0 0
  %4613 = vmatpush2.bf16.msra.mxu0 0
  %4614 = vmatprep.subr.bf16.mxu0 0
  %4615 = vmatpush2.bf16.msra.mxu0 0
  %4616 = vmatprep.subr.bf16.mxu0 0
  %4617 = vmatpush2.bf16.msra.mxu0 0
  %4618 = vmatprep.subr.bf16.mxu0 0
  %4619 = vmatpush2.bf16.msra.mxu0 0
  %4620 = vmatprep.mubr.bf16.mxu0 0
  %4621 = vmatmul.mubr.bf16.gmra.mxu0 %v4119
  %v4622 = vpop.f32.mrf.mxu0
  %v4623 = vadd.f32 %v4381, %v4622
  %v4624 = vpop.f32.mrf.mxu0
  %v4625 = vadd.f32 %v4383, %v4624
  %v4626 = vpop.f32.mrf.mxu0
  %v4627 = vpop.f32.mrf.mxu0
  %4628 = vdwg.mxu0
  %4629 = vmatprep.subr.bf16.mxu0 %v4555
  %4630 = vmatpush1.bf16.msra.mxu0 %v4554
  %4631 = vmatprep.subr.bf16.mxu0 %v4551
  %4632 = vmatpush1.bf16.msra.mxu0 %v4550
  %4633 = vmatprep.subr.bf16.mxu0 %v4547
  %4634 = vmatpush1.bf16.msra.mxu0 %v4546
  %4635 = vmatprep.subr.bf16.mxu0 %v4543
  %4636 = vmatpush1.bf16.msra.mxu0 %v4542
  %4637 = vmatprep.subr.bf16.mxu0 %v4539
  %4638 = vmatpush1.bf16.msra.mxu0 %v4538
  %4639 = vmatprep.subr.bf16.mxu0 %v4535
  %4640 = vmatpush1.bf16.msra.mxu0 %v4534
  %4641 = vmatprep.subr.bf16.mxu0 %v4531
  %4642 = vmatpush1.bf16.msra.mxu0 %v4530
  %4643 = vmatprep.subr.bf16.mxu0 %v4527
  %4644 = vmatpush1.bf16.msra.mxu0 %v4526
  %4645 = vmatprep.subr.bf16.mxu0 0
  %4646 = vmatpush2.bf16.msra.mxu0 0
  %4647 = vmatprep.subr.bf16.mxu0 0
  %4648 = vmatpush2.bf16.msra.mxu0 0
  %4649 = vmatprep.subr.bf16.mxu0 0
  %4650 = vmatpush2.bf16.msra.mxu0 0
  %4651 = vmatprep.subr.bf16.mxu0 0
  %4652 = vmatpush2.bf16.msra.mxu0 0
  %4653 = vmatprep.subr.bf16.mxu0 0
  %4654 = vmatpush2.bf16.msra.mxu0 0
  %4655 = vmatprep.subr.bf16.mxu0 0
  %4656 = vmatpush2.bf16.msra.mxu0 0
  %4657 = vmatprep.subr.bf16.mxu0 0
  %4658 = vmatpush2.bf16.msra.mxu0 0
  %4659 = vmatprep.subr.bf16.mxu0 0
  %4660 = vmatpush2.bf16.msra.mxu0 0
  %4661 = vmatprep.mubr.bf16.mxu0 0
  %4662 = vmatmul.mubr.bf16.gmra.mxu0 %v4119
  %v4663 = vpop.f32.mrf.mxu0
  %v4664 = vadd.f32 %v4422, %v4663
  %v4665 = vpop.f32.mrf.mxu0
  %v4666 = vadd.f32 %v4424, %v4665
  %v4667 = vpop.f32.mrf.mxu0
  %v4668 = vpop.f32.mrf.mxu0
  %4669 = vdwg.mxu0
  %v4670 = vld [vmem:[%s6] sm:$0xf]
  %v4672 = vlaneseq
  %v4673 = vshrl.u32 %v4672, 7
  %v4674 = vsub.s32 0, %v4673
  %v4675 = vrot.slane %v4670, %v4674
  %v4676 = vlaneseq
  %v4677 = vshrl.u32 %v4676, 7
  %v4678 = vsub.s32 1, %v4677
  %v4679 = vrot.slane %v4670, %v4678
  %v4680 = vlaneseq
  %v4681 = vshrl.u32 %v4680, 7
  %v4682 = vsub.s32 2, %v4681
  %v4683 = vrot.slane %v4670, %v4682
  %v4684 = vlaneseq
  %v4685 = vshrl.u32 %v4684, 7
  %v4686 = vsub.s32 3, %v4685
  %v4687 = vrot.slane %v4670, %v4686
  %v4692 = vadd.f32 %v4623, %v4675
  %v4693 = vadd.f32 %v4625, %v4679
  %v4694 = vadd.f32 %v4664, %v4683
  %v4695 = vadd.f32 %v4666, %v4687
  %v4696 = vld [vmem:[#allocation5] sm:$0x3]
  %v4697 = vxor.u32 %v4692, 2147483648
  %v4698 = vmul.f32 %v4697, 1.442695
  %v4699 = vpow.pop %v4698
  %v4700 = vadd.f32 %v4699, 1.0
  %v4701 = vrcp.pop %v4700
  %v4702 = vmul.f32 1.0, %v4701
  %v4703 = vxor.u32 %v4693, 2147483648
  %v4704 = vmul.f32 %v4703, 1.442695
  %v4705 = vpow.pop %v4704
  %v4706 = vadd.f32 %v4705, 1.0
  %v4707 = vrcp.pop %v4706
  %v4708 = vmul.f32 1.0, %v4707
  %v4709 = vtanh.pop %v4694
  %v4710 = vxor.u32 %v4695, 2147483648
  %v4711 = vmul.f32 %v4710, 1.442695
  %v4712 = vpow.pop %v4711
  %v4713 = vadd.f32 %v4712, 1.0
  %v4714 = vrcp.pop %v4713
  %v4715 = vmul.f32 1.0, %v4714
  %v4716 = vmul.f32 %v4708, %v4696
  %v4717 = vmul.f32 %v4702, %v4709
  %v4718 = vadd.f32 %v4716, %v4717
  %v4719 = vtanh.pop %v4718
  %v4720 = vmul.f32 %v4715, %v4719
  %4721 = vst [vmem:[#allocation4] sm:$0x3] %v4720
  %4722 = vst [vmem:[#allocation5] sm:$0x3] %v4718
  %v4723 = vld [vmem:[#allocation4] sm:$0x3]
  %s4724 = scalar_lea.vmem %s7, 8
  %4725 = vst [vmem:[%s4724] sm:$0x3] %v4723
  %s4726 = scalar_lea.vmem %s0, 32
  %v4727 = vld [vmem:[%s4726] sm:$0xff]
  %v4728 = vld [vmem:[#allocation2] sm:$0x3]
  %v4729 = vpack.c.bf16 %v4728, %v4728
  %v4730 = vld [vmem:[%s3] sm:$0xff]
  %v4731 = vld [vmem:[%s3 + $0x8] sm:$0xff]
  %v4732 = vld [vmem:[%s3 + $0x10] sm:$0xff]
  %v4733 = vld [vmem:[%s3 + $0x18] sm:$0xff]
  %v4734 = vld [vmem:[%s3 + $0x20] sm:$0xff]
  %v4735 = vld [vmem:[%s3 + $0x28] sm:$0xff]
  %v4736 = vld [vmem:[%s3 + $0x30] sm:$0xff]
  %v4737 = vld [vmem:[%s3 + $0x38] sm:$0xff]
  %v4738 = vld [vmem:[%s3 + $0x40] sm:$0xff]
  %v4739 = vld [vmem:[%s3 + $0x48] sm:$0xff]
  %v4740 = vld [vmem:[%s3 + $0x50] sm:$0xff]
  %v4741 = vld [vmem:[%s3 + $0x58] sm:$0xff]
  %v4742 = vld [vmem:[%s3 + $0x60] sm:$0xff]
  %v4743 = vld [vmem:[%s3 + $0x68] sm:$0xff]
  %v4744 = vld [vmem:[%s3 + $0x70] sm:$0xff]
  %v4745 = vld [vmem:[%s3 + $0x78] sm:$0xff]
  %v4746 = vld [vmem:[%s3 + $0x80] sm:$0xff]
  %v4747 = vld [vmem:[%s3 + $0x88] sm:$0xff]
  %v4748 = vld [vmem:[%s3 + $0x90] sm:$0xff]
  %v4749 = vld [vmem:[%s3 + $0x98] sm:$0xff]
  %v4750 = vld [vmem:[%s3 + $0xa0] sm:$0xff]
  %v4751 = vld [vmem:[%s3 + $0xa8] sm:$0xff]
  %v4752 = vld [vmem:[%s3 + $0xb0] sm:$0xff]
  %v4753 = vld [vmem:[%s3 + $0xb8] sm:$0xff]
  %v4754 = vld [vmem:[%s3 + $0xc0] sm:$0xff]
  %v4755 = vld [vmem:[%s3 + $0xc8] sm:$0xff]
  %v4756 = vld [vmem:[%s3 + $0xd0] sm:$0xff]
  %v4757 = vld [vmem:[%s3 + $0xd8] sm:$0xff]
  %v4758 = vld [vmem:[%s3 + $0xe0] sm:$0xff]
  %v4759 = vld [vmem:[%s3 + $0xe8] sm:$0xff]
  %v4760 = vld [vmem:[%s3 + $0xf0] sm:$0xff]
  %v4761 = vld [vmem:[%s3 + $0xf8] sm:$0xff]
  %v4794 = vunpack.c.l.b16 %v4730
  %v4795 = vunpack.c.h.b16 %v4730
  %v4796 = vunpack.c.l.b16 %v4731
  %v4797 = vunpack.c.h.b16 %v4731
  %v4798 = vunpack.c.l.b16 %v4732
  %v4799 = vunpack.c.h.b16 %v4732
  %v4800 = vunpack.c.l.b16 %v4733
  %v4801 = vunpack.c.h.b16 %v4733
  %v4802 = vunpack.c.l.b16 %v4734
  %v4803 = vunpack.c.h.b16 %v4734
  %v4804 = vunpack.c.l.b16 %v4735
  %v4805 = vunpack.c.h.b16 %v4735
  %v4806 = vunpack.c.l.b16 %v4736
  %v4807 = vunpack.c.h.b16 %v4736
  %v4808 = vunpack.c.l.b16 %v4737
  %v4809 = vunpack.c.h.b16 %v4737
  %v4810 = vunpack.c.l.b16 %v4738
  %v4811 = vunpack.c.h.b16 %v4738
  %v4812 = vunpack.c.l.b16 %v4739
  %v4813 = vunpack.c.h.b16 %v4739
  %v4814 = vunpack.c.l.b16 %v4740
  %v4815 = vunpack.c.h.b16 %v4740
  %v4816 = vunpack.c.l.b16 %v4741
  %v4817 = vunpack.c.h.b16 %v4741
  %v4818 = vunpack.c.l.b16 %v4742
  %v4819 = vunpack.c.h.b16 %v4742
  %v4820 = vunpack.c.l.b16 %v4743
  %v4821 = vunpack.c.h.b16 %v4743
  %v4822 = vunpack.c.l.b16 %v4744
  %v4823 = vunpack.c.h.b16 %v4744
  %v4824 = vunpack.c.l.b16 %v4745
  %v4825 = vunpack.c.h.b16 %v4745
  %v4826 = vunpack.c.l.b16 %v4746
  %v4827 = vunpack.c.h.b16 %v4746
  %v4828 = vunpack.c.l.b16 %v4747
  %v4829 = vunpack.c.h.b16 %v4747
  %v4830 = vunpack.c.l.b16 %v4748
  %v4831 = vunpack.c.h.b16 %v4748
  %v4832 = vunpack.c.l.b16 %v4749
  %v4833 = vunpack.c.h.b16 %v4749
  %v4834 = vunpack.c.l.b16 %v4750
  %v4835 = vunpack.c.h.b16 %v4750
  %v4836 = vunpack.c.l.b16 %v4751
  %v4837 = vunpack.c.h.b16 %v4751
  %v4838 = vunpack.c.l.b16 %v4752
  %v4839 = vunpack.c.h.b16 %v4752
  %v4840 = vunpack.c.l.b16 %v4753
  %v4841 = vunpack.c.h.b16 %v4753
  %v4842 = vunpack.c.l.b16 %v4754
  %v4843 = vunpack.c.h.b16 %v4754
  %v4844 = vunpack.c.l.b16 %v4755
  %v4845 = vunpack.c.h.b16 %v4755
  %v4846 = vunpack.c.l.b16 %v4756
  %v4847 = vunpack.c.h.b16 %v4756
  %v4848 = vunpack.c.l.b16 %v4757
  %v4849 = vunpack.c.h.b16 %v4757
  %v4850 = vunpack.c.l.b16 %v4758
  %v4851 = vunpack.c.h.b16 %v4758
  %v4852 = vunpack.c.l.b16 %v4759
  %v4853 = vunpack.c.h.b16 %v4759
  %v4854 = vunpack.c.l.b16 %v4760
  %v4855 = vunpack.c.h.b16 %v4760
  %v4856 = vunpack.c.l.b16 %v4761
  %v4857 = vunpack.c.h.b16 %v4761
  %v4858 = vpack.c.b16 %v4798, %v4794
  %v4859 = vpack.c.b16 %v4799, %v4795
  %v4860 = vpack.c.b16 %v4800, %v4796
  %v4861 = vpack.c.b16 %v4801, %v4797
  %v4862 = vpack.c.b16 %v4806, %v4802
  %v4863 = vpack.c.b16 %v4807, %v4803
  %v4864 = vpack.c.b16 %v4808, %v4804
  %v4865 = vpack.c.b16 %v4809, %v4805
  %v4866 = vpack.c.b16 %v4814, %v4810
  %v4867 = vpack.c.b16 %v4815, %v4811
  %v4868 = vpack.c.b16 %v4816, %v4812
  %v4869 = vpack.c.b16 %v4817, %v4813
  %v4870 = vpack.c.b16 %v4822, %v4818
  %v4871 = vpack.c.b16 %v4823, %v4819
  %v4872 = vpack.c.b16 %v4824, %v4820
  %v4873 = vpack.c.b16 %v4825, %v4821
  %v4874 = vpack.c.b16 %v4830, %v4826
  %v4875 = vpack.c.b16 %v4831, %v4827
  %v4876 = vpack.c.b16 %v4832, %v4828
  %v4877 = vpack.c.b16 %v4833, %v4829
  %v4878 = vpack.c.b16 %v4838, %v4834
  %v4879 = vpack.c.b16 %v4839, %v4835
  %v4880 = vpack.c.b16 %v4840, %v4836
  %v4881 = vpack.c.b16 %v4841, %v4837
  %v4882 = vpack.c.b16 %v4846, %v4842
  %v4883 = vpack.c.b16 %v4847, %v4843
  %v4884 = vpack.c.b16 %v4848, %v4844
  %v4885 = vpack.c.b16 %v4849, %v4845
  %v4886 = vpack.c.b16 %v4854, %v4850
  %v4887 = vpack.c.b16 %v4855, %v4851
  %v4888 = vpack.c.b16 %v4856, %v4852
  %v4889 = vpack.c.b16 %v4857, %v4853
  %4922 = vmatprep.subr.bf16.mxu0 %v4887
  %4923 = vmatpush1.bf16.msra.mxu0 %v4886
  %4924 = vmatprep.subr.bf16.mxu0 %v4883
  %4925 = vmatpush1.bf16.msra.mxu0 %v4882
  %4926 = vmatprep.subr.bf16.mxu0 %v4879
  %4927 = vmatpush1.bf16.msra.mxu0 %v4878
  %4928 = vmatprep.subr.bf16.mxu0 %v4875
  %4929 = vmatpush1.bf16.msra.mxu0 %v4874
  %4930 = vmatprep.subr.bf16.mxu0 %v4871
  %4931 = vmatpush1.bf16.msra.mxu0 %v4870
  %4932 = vmatprep.subr.bf16.mxu0 %v4867
  %4933 = vmatpush1.bf16.msra.mxu0 %v4866
  %4934 = vmatprep.subr.bf16.mxu0 %v4863
  %4935 = vmatpush1.bf16.msra.mxu0 %v4862
  %4936 = vmatprep.subr.bf16.mxu0 %v4859
  %4937 = vmatpush1.bf16.msra.mxu0 %v4858
  %4938 = vmatprep.subr.bf16.mxu0 0
  %4939 = vmatpush2.bf16.msra.mxu0 0
  %4940 = vmatprep.subr.bf16.mxu0 0
  %4941 = vmatpush2.bf16.msra.mxu0 0
  %4942 = vmatprep.subr.bf16.mxu0 0
  %4943 = vmatpush2.bf16.msra.mxu0 0
  %4944 = vmatprep.subr.bf16.mxu0 0
  %4945 = vmatpush2.bf16.msra.mxu0 0
  %4946 = vmatprep.subr.bf16.mxu0 0
  %4947 = vmatpush2.bf16.msra.mxu0 0
  %4948 = vmatprep.subr.bf16.mxu0 0
  %4949 = vmatpush2.bf16.msra.mxu0 0
  %4950 = vmatprep.subr.bf16.mxu0 0
  %4951 = vmatpush2.bf16.msra.mxu0 0
  %4952 = vmatprep.subr.bf16.mxu0 0
  %4953 = vmatpush2.bf16.msra.mxu0 0
  %4954 = vmatprep.mubr.bf16.mxu0 0
  %4955 = vmatmul.mubr.bf16.gmra.mxu0 %v4729
  %v4956 = vpop.f32.mrf.mxu0
  %v4957 = vadd.f32 0.0, %v4956
  %v4958 = vpop.f32.mrf.mxu0
  %v4959 = vadd.f32 0.0, %v4958
  %v4960 = vpop.f32.mrf.mxu0
  %v4961 = vpop.f32.mrf.mxu0
  %4962 = vdwg.mxu0
  %4963 = vmatprep.subr.bf16.mxu0 %v4889
  %4964 = vmatpush1.bf16.msra.mxu0 %v4888
  %4965 = vmatprep.subr.bf16.mxu0 %v4885
  %4966 = vmatpush1.bf16.msra.mxu0 %v4884
  %4967 = vmatprep.subr.bf16.mxu0 %v4881
  %4968 = vmatpush1.bf16.msra.mxu0 %v4880
  %4969 = vmatprep.subr.bf16.mxu0 %v4877
  %4970 = vmatpush1.bf16.msra.mxu0 %v4876
  %4971 = vmatprep.subr.bf16.mxu0 %v4873
  %4972 = vmatpush1.bf16.msra.mxu0 %v4872
  %4973 = vmatprep.subr.bf16.mxu0 %v4869
  %4974 = vmatpush1.bf16.msra.mxu0 %v4868
  %4975 = vmatprep.subr.bf16.mxu0 %v4865
  %4976 = vmatpush1.bf16.msra.mxu0 %v4864
  %4977 = vmatprep.subr.bf16.mxu0 %v4861
  %4978 = vmatpush1.bf16.msra.mxu0 %v4860
  %4979 = vmatprep.subr.bf16.mxu0 0
  %4980 = vmatpush2.bf16.msra.mxu0 0
  %4981 = vmatprep.subr.bf16.mxu0 0
  %4982 = vmatpush2.bf16.msra.mxu0 0
  %4983 = vmatprep.subr.bf16.mxu0 0
  %4984 = vmatpush2.bf16.msra.mxu0 0
  %4985 = vmatprep.subr.bf16.mxu0 0
  %4986 = vmatpush2.bf16.msra.mxu0 0
  %4987 = vmatprep.subr.bf16.mxu0 0
  %4988 = vmatpush2.bf16.msra.mxu0 0
  %4989 = vmatprep.subr.bf16.mxu0 0
  %4990 = vmatpush2.bf16.msra.mxu0 0
  %4991 = vmatprep.subr.bf16.mxu0 0
  %4992 = vmatpush2.bf16.msra.mxu0 0
  %4993 = vmatprep.subr.bf16.mxu0 0
  %4994 = vmatpush2.bf16.msra.mxu0 0
  %4995 = vmatprep.mubr.bf16.mxu0 0
  %4996 = vmatmul.mubr.bf16.gmra.mxu0 %v4729
  %v4997 = vpop.f32.mrf.mxu0
  %v4998 = vadd.f32 0.0, %v4997
  %v4999 = vpop.f32.mrf.mxu0
  %v5000 = vadd.f32 0.0, %v4999
  %v5001 = vpop.f32.mrf.mxu0
  %v5002 = vpop.f32.mrf.mxu0
  %5003 = vdwg.mxu0
  %v5008 = vcombine.low %v4957, %v4959
  %v5009 = vcombine.low %v4998, %v5000
  %v5011 = vunpack.c.l.s4 1983009808
  %v5012 = vunpack.c.0.s8 %v5011
  %v5013 = vlaneseq
  %v5014 = vshrl.u32 %v5013, 7
  %v5015 = vsub.s32 %v5012, %v5014
  %v5016 = vrot.slane %v5008, %v5015
  %v5018 = vunpack.c.l.s4 1983009808
  %v5019 = vunpack.c.0.s8 %v5018
  %v5020 = vlaneseq
  %v5021 = vshrl.u32 %v5020, 7
  %v5022 = vsub.s32 %v5019, %v5021
  %v5023 = vrot.slane %v5009, %v5022
  %v5024 = vcombine.low %v5016, %v5023
  %v5026 = vadd.f32 %v4727, %v5024
  %v5027 = vld [vmem:[#allocation6] sm:$0xff]
  %v5028 = vadd.f32 %v5026, %v5027
  %v5029 = vld [vmem:[#allocation3] sm:$0x3]
  %v5030 = vxor.u32 %v5028, 2147483648
  %v5031 = vmul.f32 %v5030, 1.442695
  %v5032 = vpow.pop %v5031
  %v5033 = vadd.f32 %v5032, 1.0
  %v5034 = vrcp.pop %v5033
  %v5035 = vmul.f32 1.0, %v5034
  %v5037 = vrot.slane %v5028, 2
  %v5039 = vxor.u32 %v5037, 2147483648
  %v5040 = vmul.f32 %v5039, 1.442695
  %v5041 = vpow.pop %v5040
  %v5042 = vadd.f32 %v5041, 1.0
  %v5043 = vrcp.pop %v5042
  %v5044 = vmul.f32 1.0, %v5043
  %v5045 = vrot.slane %v5028, 4
  %v5047 = vtanh.pop %v5045
  %v5048 = vrot.slane %v5028, 6
  %v5050 = vxor.u32 %v5048, 2147483648
  %v5051 = vmul.f32 %v5050, 1.442695
  %v5052 = vpow.pop %v5051
  %v5053 = vadd.f32 %v5052, 1.0
  %v5054 = vrcp.pop %v5053
  %v5055 = vmul.f32 1.0, %v5054
  %v5056 = vmul.f32 %v5044, %v5029
  %v5057 = vmul.f32 %v5035, %v5047
  %v5058 = vadd.f32 %v5056, %v5057
  %v5059 = vtanh.pop %v5058
  %v5060 = vmul.f32 %v5055, %v5059
  %5061 = vst [vmem:[#allocation2] sm:$0x3] %v5060
  %5062 = vst [vmem:[#allocation3] sm:$0x3] %v5058
  %v5063 = vld [vmem:[#allocation2] sm:$0x3]
  %v5064 = vpack.c.bf16 %v5063, %v5063
  %v5065 = vld [vmem:[%s4] sm:$0xff]
  %v5066 = vld [vmem:[%s4 + $0x8] sm:$0xff]
  %v5067 = vld [vmem:[%s4 + $0x10] sm:$0xff]
  %v5068 = vld [vmem:[%s4 + $0x18] sm:$0xff]
  %v5069 = vld [vmem:[%s4 + $0x20] sm:$0xff]
  %v5070 = vld [vmem:[%s4 + $0x28] sm:$0xff]
  %v5071 = vld [vmem:[%s4 + $0x30] sm:$0xff]
  %v5072 = vld [vmem:[%s4 + $0x38] sm:$0xff]
  %v5073 = vld [vmem:[%s4 + $0x40] sm:$0xff]
  %v5074 = vld [vmem:[%s4 + $0x48] sm:$0xff]
  %v5075 = vld [vmem:[%s4 + $0x50] sm:$0xff]
  %v5076 = vld [vmem:[%s4 + $0x58] sm:$0xff]
  %v5077 = vld [vmem:[%s4 + $0x60] sm:$0xff]
  %v5078 = vld [vmem:[%s4 + $0x68] sm:$0xff]
  %v5079 = vld [vmem:[%s4 + $0x70] sm:$0xff]
  %v5080 = vld [vmem:[%s4 + $0x78] sm:$0xff]
  %v5081 = vld [vmem:[%s4 + $0x80] sm:$0xff]
  %v5082 = vld [vmem:[%s4 + $0x88] sm:$0xff]
  %v5083 = vld [vmem:[%s4 + $0x90] sm:$0xff]
  %v5084 = vld [vmem:[%s4 + $0x98] sm:$0xff]
  %v5085 = vld [vmem:[%s4 + $0xa0] sm:$0xff]
  %v5086 = vld [vmem:[%s4 + $0xa8] sm:$0xff]
  %v5087 = vld [vmem:[%s4 + $0xb0] sm:$0xff]
  %v5088 = vld [vmem:[%s4 + $0xb8] sm:$0xff]
  %v5089 = vld [vmem:[%s4 + $0xc0] sm:$0xff]
  %v5090 = vld [vmem:[%s4 + $0xc8] sm:$0xff]
  %v5091 = vld [vmem:[%s4 + $0xd0] sm:$0xff]
  %v5092 = vld [vmem:[%s4 + $0xd8] sm:$0xff]
  %v5093 = vld [vmem:[%s4 + $0xe0] sm:$0xff]
  %v5094 = vld [vmem:[%s4 + $0xe8] sm:$0xff]
  %v5095 = vld [vmem:[%s4 + $0xf0] sm:$0xff]
  %v5096 = vld [vmem:[%s4 + $0xf8] sm:$0xff]
  %v5097 = vld [vmem:[#allocation4] sm:$0x3]
  %v5098 = vpack.c.bf16 %v5097, %v5097
  %v5099 = vld [vmem:[%s5] sm:$0xff]
  %v5100 = vld [vmem:[%s5 + $0x8] sm:$0xff]
  %v5101 = vld [vmem:[%s5 + $0x10] sm:$0xff]
  %v5102 = vld [vmem:[%s5 + $0x18] sm:$0xff]
  %v5103 = vld [vmem:[%s5 + $0x20] sm:$0xff]
  %v5104 = vld [vmem:[%s5 + $0x28] sm:$0xff]
  %v5105 = vld [vmem:[%s5 + $0x30] sm:$0xff]
  %v5106 = vld [vmem:[%s5 + $0x38] sm:$0xff]
  %v5107 = vld [vmem:[%s5 + $0x40] sm:$0xff]
  %v5108 = vld [vmem:[%s5 + $0x48] sm:$0xff]
  %v5109 = vld [vmem:[%s5 + $0x50] sm:$0xff]
  %v5110 = vld [vmem:[%s5 + $0x58] sm:$0xff]
  %v5111 = vld [vmem:[%s5 + $0x60] sm:$0xff]
  %v5112 = vld [vmem:[%s5 + $0x68] sm:$0xff]
  %v5113 = vld [vmem:[%s5 + $0x70] sm:$0xff]
  %v5114 = vld [vmem:[%s5 + $0x78] sm:$0xff]
  %v5115 = vld [vmem:[%s5 + $0x80] sm:$0xff]
  %v5116 = vld [vmem:[%s5 + $0x88] sm:$0xff]
  %v5117 = vld [vmem:[%s5 + $0x90] sm:$0xff]
  %v5118 = vld [vmem:[%s5 + $0x98] sm:$0xff]
  %v5119 = vld [vmem:[%s5 + $0xa0] sm:$0xff]
  %v5120 = vld [vmem:[%s5 + $0xa8] sm:$0xff]
  %v5121 = vld [vmem:[%s5 + $0xb0] sm:$0xff]
  %v5122 = vld [vmem:[%s5 + $0xb8] sm:$0xff]
  %v5123 = vld [vmem:[%s5 + $0xc0] sm:$0xff]
  %v5124 = vld [vmem:[%s5 + $0xc8] sm:$0xff]
  %v5125 = vld [vmem:[%s5 + $0xd0] sm:$0xff]
  %v5126 = vld [vmem:[%s5 + $0xd8] sm:$0xff]
  %v5127 = vld [vmem:[%s5 + $0xe0] sm:$0xff]
  %v5128 = vld [vmem:[%s5 + $0xe8] sm:$0xff]
  %v5129 = vld [vmem:[%s5 + $0xf0] sm:$0xff]
  %v5130 = vld [vmem:[%s5 + $0xf8] sm:$0xff]
  %v5163 = vunpack.c.l.b16 %v5099
  %v5164 = vunpack.c.h.b16 %v5099
  %v5165 = vunpack.c.l.b16 %v5100
  %v5166 = vunpack.c.h.b16 %v5100
  %v5167 = vunpack.c.l.b16 %v5101
  %v5168 = vunpack.c.h.b16 %v5101
  %v5169 = vunpack.c.l.b16 %v5102
  %v5170 = vunpack.c.h.b16 %v5102
  %v5171 = vunpack.c.l.b16 %v5103
  %v5172 = vunpack.c.h.b16 %v5103
  %v5173 = vunpack.c.l.b16 %v5104
  %v5174 = vunpack.c.h.b16 %v5104
  %v5175 = vunpack.c.l.b16 %v5105
  %v5176 = vunpack.c.h.b16 %v5105
  %v5177 = vunpack.c.l.b16 %v5106
  %v5178 = vunpack.c.h.b16 %v5106
  %v5179 = vunpack.c.l.b16 %v5107
  %v5180 = vunpack.c.h.b16 %v5107
  %v5181 = vunpack.c.l.b16 %v5108
  %v5182 = vunpack.c.h.b16 %v5108
  %v5183 = vunpack.c.l.b16 %v5109
  %v5184 = vunpack.c.h.b16 %v5109
  %v5185 = vunpack.c.l.b16 %v5110
  %v5186 = vunpack.c.h.b16 %v5110
  %v5187 = vunpack.c.l.b16 %v5111
  %v5188 = vunpack.c.h.b16 %v5111
  %v5189 = vunpack.c.l.b16 %v5112
  %v5190 = vunpack.c.h.b16 %v5112
  %v5191 = vunpack.c.l.b16 %v5113
  %v5192 = vunpack.c.h.b16 %v5113
  %v5193 = vunpack.c.l.b16 %v5114
  %v5194 = vunpack.c.h.b16 %v5114
  %v5195 = vunpack.c.l.b16 %v5115
  %v5196 = vunpack.c.h.b16 %v5115
  %v5197 = vunpack.c.l.b16 %v5116
  %v5198 = vunpack.c.h.b16 %v5116
  %v5199 = vunpack.c.l.b16 %v5117
  %v5200 = vunpack.c.h.b16 %v5117
  %v5201 = vunpack.c.l.b16 %v5118
  %v5202 = vunpack.c.h.b16 %v5118
  %v5203 = vunpack.c.l.b16 %v5119
  %v5204 = vunpack.c.h.b16 %v5119
  %v5205 = vunpack.c.l.b16 %v5120
  %v5206 = vunpack.c.h.b16 %v5120
  %v5207 = vunpack.c.l.b16 %v5121
  %v5208 = vunpack.c.h.b16 %v5121
  %v5209 = vunpack.c.l.b16 %v5122
  %v5210 = vunpack.c.h.b16 %v5122
  %v5211 = vunpack.c.l.b16 %v5123
  %v5212 = vunpack.c.h.b16 %v5123
  %v5213 = vunpack.c.l.b16 %v5124
  %v5214 = vunpack.c.h.b16 %v5124
  %v5215 = vunpack.c.l.b16 %v5125
  %v5216 = vunpack.c.h.b16 %v5125
  %v5217 = vunpack.c.l.b16 %v5126
  %v5218 = vunpack.c.h.b16 %v5126
  %v5219 = vunpack.c.l.b16 %v5127
  %v5220 = vunpack.c.h.b16 %v5127
  %v5221 = vunpack.c.l.b16 %v5128
  %v5222 = vunpack.c.h.b16 %v5128
  %v5223 = vunpack.c.l.b16 %v5129
  %v5224 = vunpack.c.h.b16 %v5129
  %v5225 = vunpack.c.l.b16 %v5130
  %v5226 = vunpack.c.h.b16 %v5130
  %v5227 = vpack.c.b16 %v5167, %v5163
  %v5228 = vpack.c.b16 %v5168, %v5164
  %v5229 = vpack.c.b16 %v5169, %v5165
  %v5230 = vpack.c.b16 %v5170, %v5166
  %v5231 = vpack.c.b16 %v5175, %v5171
  %v5232 = vpack.c.b16 %v5176, %v5172
  %v5233 = vpack.c.b16 %v5177, %v5173
  %v5234 = vpack.c.b16 %v5178, %v5174
  %v5235 = vpack.c.b16 %v5183, %v5179
  %v5236 = vpack.c.b16 %v5184, %v5180
  %v5237 = vpack.c.b16 %v5185, %v5181
  %v5238 = vpack.c.b16 %v5186, %v5182
  %v5239 = vpack.c.b16 %v5191, %v5187
  %v5240 = vpack.c.b16 %v5192, %v5188
  %v5241 = vpack.c.b16 %v5193, %v5189
  %v5242 = vpack.c.b16 %v5194, %v5190
  %v5243 = vpack.c.b16 %v5199, %v5195
  %v5244 = vpack.c.b16 %v5200, %v5196
  %v5245 = vpack.c.b16 %v5201, %v5197
  %v5246 = vpack.c.b16 %v5202, %v5198
  %v5247 = vpack.c.b16 %v5207, %v5203
  %v5248 = vpack.c.b16 %v5208, %v5204
  %v5249 = vpack.c.b16 %v5209, %v5205
  %v5250 = vpack.c.b16 %v5210, %v5206
  %v5251 = vpack.c.b16 %v5215, %v5211
  %v5252 = vpack.c.b16 %v5216, %v5212
  %v5253 = vpack.c.b16 %v5217, %v5213
  %v5254 = vpack.c.b16 %v5218, %v5214
  %v5255 = vpack.c.b16 %v5223, %v5219
  %v5256 = vpack.c.b16 %v5224, %v5220
  %v5257 = vpack.c.b16 %v5225, %v5221
  %v5258 = vpack.c.b16 %v5226, %v5222
  %5291 = vmatprep.subr.bf16.mxu0 %v5256
  %5292 = vmatpush1.bf16.msra.mxu0 %v5255
  %5293 = vmatprep.subr.bf16.mxu0 %v5252
  %5294 = vmatpush1.bf16.msra.mxu0 %v5251
  %5295 = vmatprep.subr.bf16.mxu0 %v5248
  %5296 = vmatpush1.bf16.msra.mxu0 %v5247
  %5297 = vmatprep.subr.bf16.mxu0 %v5244
  %5298 = vmatpush1.bf16.msra.mxu0 %v5243
  %5299 = vmatprep.subr.bf16.mxu0 %v5240
  %5300 = vmatpush1.bf16.msra.mxu0 %v5239
  %5301 = vmatprep.subr.bf16.mxu0 %v5236
  %5302 = vmatpush1.bf16.msra.mxu0 %v5235
  %5303 = vmatprep.subr.bf16.mxu0 %v5232
  %5304 = vmatpush1.bf16.msra.mxu0 %v5231
  %5305 = vmatprep.subr.bf16.mxu0 %v5228
  %5306 = vmatpush1.bf16.msra.mxu0 %v5227
  %5307 = vmatprep.subr.bf16.mxu0 0
  %5308 = vmatpush2.bf16.msra.mxu0 0
  %5309 = vmatprep.subr.bf16.mxu0 0
  %5310 = vmatpush2.bf16.msra.mxu0 0
  %5311 = vmatprep.subr.bf16.mxu0 0
  %5312 = vmatpush2.bf16.msra.mxu0 0
  %5313 = vmatprep.subr.bf16.mxu0 0
  %5314 = vmatpush2.bf16.msra.mxu0 0
  %5315 = vmatprep.subr.bf16.mxu0 0
  %5316 = vmatpush2.bf16.msra.mxu0 0
  %5317 = vmatprep.subr.bf16.mxu0 0
  %5318 = vmatpush2.bf16.msra.mxu0 0
  %5319 = vmatprep.subr.bf16.mxu0 0
  %5320 = vmatpush2.bf16.msra.mxu0 0
  %5321 = vmatprep.subr.bf16.mxu0 0
  %5322 = vmatpush2.bf16.msra.mxu0 0
  %5323 = vmatprep.mubr.bf16.mxu0 0
  %5324 = vmatmul.mubr.bf16.gmra.mxu0 %v5098
  %v5325 = vpop.f32.mrf.mxu0
  %v5326 = vadd.f32 0.0, %v5325
  %v5327 = vpop.f32.mrf.mxu0
  %v5328 = vadd.f32 0.0, %v5327
  %v5329 = vpop.f32.mrf.mxu0
  %v5330 = vpop.f32.mrf.mxu0
  %5331 = vdwg.mxu0
  %5332 = vmatprep.subr.bf16.mxu0 %v5258
  %5333 = vmatpush1.bf16.msra.mxu0 %v5257
  %5334 = vmatprep.subr.bf16.mxu0 %v5254
  %5335 = vmatpush1.bf16.msra.mxu0 %v5253
  %5336 = vmatprep.subr.bf16.mxu0 %v5250
  %5337 = vmatpush1.bf16.msra.mxu0 %v5249
  %5338 = vmatprep.subr.bf16.mxu0 %v5246
  %5339 = vmatpush1.bf16.msra.mxu0 %v5245
  %5340 = vmatprep.subr.bf16.mxu0 %v5242
  %5341 = vmatpush1.bf16.msra.mxu0 %v5241
  %5342 = vmatprep.subr.bf16.mxu0 %v5238
  %5343 = vmatpush1.bf16.msra.mxu0 %v5237
  %5344 = vmatprep.subr.bf16.mxu0 %v5234
  %5345 = vmatpush1.bf16.msra.mxu0 %v5233
  %5346 = vmatprep.subr.bf16.mxu0 %v5230
  %5347 = vmatpush1.bf16.msra.mxu0 %v5229
  %5348 = vmatprep.subr.bf16.mxu0 0
  %5349 = vmatpush2.bf16.msra.mxu0 0
  %5350 = vmatprep.subr.bf16.mxu0 0
  %5351 = vmatpush2.bf16.msra.mxu0 0
  %5352 = vmatprep.subr.bf16.mxu0 0
  %5353 = vmatpush2.bf16.msra.mxu0 0
  %5354 = vmatprep.subr.bf16.mxu0 0
  %5355 = vmatpush2.bf16.msra.mxu0 0
  %5356 = vmatprep.subr.bf16.mxu0 0
  %5357 = vmatpush2.bf16.msra.mxu0 0
  %5358 = vmatprep.subr.bf16.mxu0 0
  %5359 = vmatpush2.bf16.msra.mxu0 0
  %5360 = vmatprep.subr.bf16.mxu0 0
  %5361 = vmatpush2.bf16.msra.mxu0 0
  %5362 = vmatprep.subr.bf16.mxu0 0
  %5363 = vmatpush2.bf16.msra.mxu0 0
  %5364 = vmatprep.mubr.bf16.mxu0 0
  %5365 = vmatmul.mubr.bf16.gmra.mxu0 %v5098
  %v5366 = vpop.f32.mrf.mxu0
  %v5367 = vadd.f32 0.0, %v5366
  %v5368 = vpop.f32.mrf.mxu0
  %v5369 = vadd.f32 0.0, %v5368
  %v5370 = vpop.f32.mrf.mxu0
  %v5371 = vpop.f32.mrf.mxu0
  %5372 = vdwg.mxu0
  %v5405 = vunpack.c.l.b16 %v5065
  %v5406 = vunpack.c.h.b16 %v5065
  %v5407 = vunpack.c.l.b16 %v5066
  %v5408 = vunpack.c.h.b16 %v5066
  %v5409 = vunpack.c.l.b16 %v5067
  %v5410 = vunpack.c.h.b16 %v5067
  %v5411 = vunpack.c.l.b16 %v5068
  %v5412 = vunpack.c.h.b16 %v5068
  %v5413 = vunpack.c.l.b16 %v5069
  %v5414 = vunpack.c.h.b16 %v5069
  %v5415 = vunpack.c.l.b16 %v5070
  %v5416 = vunpack.c.h.b16 %v5070
  %v5417 = vunpack.c.l.b16 %v5071
  %v5418 = vunpack.c.h.b16 %v5071
  %v5419 = vunpack.c.l.b16 %v5072
  %v5420 = vunpack.c.h.b16 %v5072
  %v5421 = vunpack.c.l.b16 %v5073
  %v5422 = vunpack.c.h.b16 %v5073
  %v5423 = vunpack.c.l.b16 %v5074
  %v5424 = vunpack.c.h.b16 %v5074
  %v5425 = vunpack.c.l.b16 %v5075
  %v5426 = vunpack.c.h.b16 %v5075
  %v5427 = vunpack.c.l.b16 %v5076
  %v5428 = vunpack.c.h.b16 %v5076
  %v5429 = vunpack.c.l.b16 %v5077
  %v5430 = vunpack.c.h.b16 %v5077
  %v5431 = vunpack.c.l.b16 %v5078
  %v5432 = vunpack.c.h.b16 %v5078
  %v5433 = vunpack.c.l.b16 %v5079
  %v5434 = vunpack.c.h.b16 %v5079
  %v5435 = vunpack.c.l.b16 %v5080
  %v5436 = vunpack.c.h.b16 %v5080
  %v5437 = vunpack.c.l.b16 %v5081
  %v5438 = vunpack.c.h.b16 %v5081
  %v5439 = vunpack.c.l.b16 %v5082
  %v5440 = vunpack.c.h.b16 %v5082
  %v5441 = vunpack.c.l.b16 %v5083
  %v5442 = vunpack.c.h.b16 %v5083
  %v5443 = vunpack.c.l.b16 %v5084
  %v5444 = vunpack.c.h.b16 %v5084
  %v5445 = vunpack.c.l.b16 %v5085
  %v5446 = vunpack.c.h.b16 %v5085
  %v5447 = vunpack.c.l.b16 %v5086
  %v5448 = vunpack.c.h.b16 %v5086
  %v5449 = vunpack.c.l.b16 %v5087
  %v5450 = vunpack.c.h.b16 %v5087
  %v5451 = vunpack.c.l.b16 %v5088
  %v5452 = vunpack.c.h.b16 %v5088
  %v5453 = vunpack.c.l.b16 %v5089
  %v5454 = vunpack.c.h.b16 %v5089
  %v5455 = vunpack.c.l.b16 %v5090
  %v5456 = vunpack.c.h.b16 %v5090
  %v5457 = vunpack.c.l.b16 %v5091
  %v5458 = vunpack.c.h.b16 %v5091
  %v5459 = vunpack.c.l.b16 %v5092
  %v5460 = vunpack.c.h.b16 %v5092
  %v5461 = vunpack.c.l.b16 %v5093
  %v5462 = vunpack.c.h.b16 %v5093
  %v5463 = vunpack.c.l.b16 %v5094
  %v5464 = vunpack.c.h.b16 %v5094
  %v5465 = vunpack.c.l.b16 %v5095
  %v5466 = vunpack.c.h.b16 %v5095
  %v5467 = vunpack.c.l.b16 %v5096
  %v5468 = vunpack.c.h.b16 %v5096
  %v5469 = vpack.c.b16 %v5409, %v5405
  %v5470 = vpack.c.b16 %v5410, %v5406
  %v5471 = vpack.c.b16 %v5411, %v5407
  %v5472 = vpack.c.b16 %v5412, %v5408
  %v5473 = vpack.c.b16 %v5417, %v5413
  %v5474 = vpack.c.b16 %v5418, %v5414
  %v5475 = vpack.c.b16 %v5419, %v5415
  %v5476 = vpack.c.b16 %v5420, %v5416
  %v5477 = vpack.c.b16 %v5425, %v5421
  %v5478 = vpack.c.b16 %v5426, %v5422
  %v5479 = vpack.c.b16 %v5427, %v5423
  %v5480 = vpack.c.b16 %v5428, %v5424
  %v5481 = vpack.c.b16 %v5433, %v5429
  %v5482 = vpack.c.b16 %v5434, %v5430
  %v5483 = vpack.c.b16 %v5435, %v5431
  %v5484 = vpack.c.b16 %v5436, %v5432
  %v5485 = vpack.c.b16 %v5441, %v5437
  %v5486 = vpack.c.b16 %v5442, %v5438
  %v5487 = vpack.c.b16 %v5443, %v5439
  %v5488 = vpack.c.b16 %v5444, %v5440
  %v5489 = vpack.c.b16 %v5449, %v5445
  %v5490 = vpack.c.b16 %v5450, %v5446
  %v5491 = vpack.c.b16 %v5451, %v5447
  %v5492 = vpack.c.b16 %v5452, %v5448
  %v5493 = vpack.c.b16 %v5457, %v5453
  %v5494 = vpack.c.b16 %v5458, %v5454
  %v5495 = vpack.c.b16 %v5459, %v5455
  %v5496 = vpack.c.b16 %v5460, %v5456
  %v5497 = vpack.c.b16 %v5465, %v5461
  %v5498 = vpack.c.b16 %v5466, %v5462
  %v5499 = vpack.c.b16 %v5467, %v5463
  %v5500 = vpack.c.b16 %v5468, %v5464
  %5533 = vmatprep.subr.bf16.mxu0 %v5498
  %5534 = vmatpush1.bf16.msra.mxu0 %v5497
  %5535 = vmatprep.subr.bf16.mxu0 %v5494
  %5536 = vmatpush1.bf16.msra.mxu0 %v5493
  %5537 = vmatprep.subr.bf16.mxu0 %v5490
  %5538 = vmatpush1.bf16.msra.mxu0 %v5489
  %5539 = vmatprep.subr.bf16.mxu0 %v5486
  %5540 = vmatpush1.bf16.msra.mxu0 %v5485
  %5541 = vmatprep.subr.bf16.mxu0 %v5482
  %5542 = vmatpush1.bf16.msra.mxu0 %v5481
  %5543 = vmatprep.subr.bf16.mxu0 %v5478
  %5544 = vmatpush1.bf16.msra.mxu0 %v5477
  %5545 = vmatprep.subr.bf16.mxu0 %v5474
  %5546 = vmatpush1.bf16.msra.mxu0 %v5473
  %5547 = vmatprep.subr.bf16.mxu0 %v5470
  %5548 = vmatpush1.bf16.msra.mxu0 %v5469
  %5549 = vmatprep.subr.bf16.mxu0 0
  %5550 = vmatpush2.bf16.msra.mxu0 0
  %5551 = vmatprep.subr.bf16.mxu0 0
  %5552 = vmatpush2.bf16.msra.mxu0 0
  %5553 = vmatprep.subr.bf16.mxu0 0
  %5554 = vmatpush2.bf16.msra.mxu0 0
  %5555 = vmatprep.subr.bf16.mxu0 0
  %5556 = vmatpush2.bf16.msra.mxu0 0
  %5557 = vmatprep.subr.bf16.mxu0 0
  %5558 = vmatpush2.bf16.msra.mxu0 0
  %5559 = vmatprep.subr.bf16.mxu0 0
  %5560 = vmatpush2.bf16.msra.mxu0 0
  %5561 = vmatprep.subr.bf16.mxu0 0
  %5562 = vmatpush2.bf16.msra.mxu0 0
  %5563 = vmatprep.subr.bf16.mxu0 0
  %5564 = vmatpush2.bf16.msra.mxu0 0
  %5565 = vmatprep.mubr.bf16.mxu0 0
  %5566 = vmatmul.mubr.bf16.gmra.mxu0 %v5064
  %v5567 = vpop.f32.mrf.mxu0
  %v5568 = vadd.f32 %v5326, %v5567
  %v5569 = vpop.f32.mrf.mxu0
  %v5570 = vadd.f32 %v5328, %v5569
  %v5571 = vpop.f32.mrf.mxu0
  %v5572 = vpop.f32.mrf.mxu0
  %5573 = vdwg.mxu0
  %5574 = vmatprep.subr.bf16.mxu0 %v5500
  %5575 = vmatpush1.bf16.msra.mxu0 %v5499
  %5576 = vmatprep.subr.bf16.mxu0 %v5496
  %5577 = vmatpush1.bf16.msra.mxu0 %v5495
  %5578 = vmatprep.subr.bf16.mxu0 %v5492
  %5579 = vmatpush1.bf16.msra.mxu0 %v5491
  %5580 = vmatprep.subr.bf16.mxu0 %v5488
  %5581 = vmatpush1.bf16.msra.mxu0 %v5487
  %5582 = vmatprep.subr.bf16.mxu0 %v5484
  %5583 = vmatpush1.bf16.msra.mxu0 %v5483
  %5584 = vmatprep.subr.bf16.mxu0 %v5480
  %5585 = vmatpush1.bf16.msra.mxu0 %v5479
  %5586 = vmatprep.subr.bf16.mxu0 %v5476
  %5587 = vmatpush1.bf16.msra.mxu0 %v5475
  %5588 = vmatprep.subr.bf16.mxu0 %v5472
  %5589 = vmatpush1.bf16.msra.mxu0 %v5471
  %5590 = vmatprep.subr.bf16.mxu0 0
  %5591 = vmatpush2.bf16.msra.mxu0 0
  %5592 = vmatprep.subr.bf16.mxu0 0
  %5593 = vmatpush2.bf16.msra.mxu0 0
  %5594 = vmatprep.subr.bf16.mxu0 0
  %5595 = vmatpush2.bf16.msra.mxu0 0
  %5596 = vmatprep.subr.bf16.mxu0 0
  %5597 = vmatpush2.bf16.msra.mxu0 0
  %5598 = vmatprep.subr.bf16.mxu0 0
  %5599 = vmatpush2.bf16.msra.mxu0 0
  %5600 = vmatprep.subr.bf16.mxu0 0
  %5601 = vmatpush2.bf16.msra.mxu0 0
  %5602 = vmatprep.subr.bf16.mxu0 0
  %5603 = vmatpush2.bf16.msra.mxu0 0
  %5604 = vmatprep.subr.bf16.mxu0 0
  %5605 = vmatpush2.bf16.msra.mxu0 0
  %5606 = vmatprep.mubr.bf16.mxu0 0
  %5607 = vmatmul.mubr.bf16.gmra.mxu0 %v5064
  %v5608 = vpop.f32.mrf.mxu0
  %v5609 = vadd.f32 %v5367, %v5608
  %v5610 = vpop.f32.mrf.mxu0
  %v5611 = vadd.f32 %v5369, %v5610
  %v5612 = vpop.f32.mrf.mxu0
  %v5613 = vpop.f32.mrf.mxu0
  %5614 = vdwg.mxu0
  %v5615 = vld [vmem:[%s6] sm:$0xf]
  %v5617 = vlaneseq
  %v5618 = vshrl.u32 %v5617, 7
  %v5619 = vsub.s32 0, %v5618
  %v5620 = vrot.slane %v5615, %v5619
  %v5621 = vlaneseq
  %v5622 = vshrl.u32 %v5621, 7
  %v5623 = vsub.s32 1, %v5622
  %v5624 = vrot.slane %v5615, %v5623
  %v5625 = vlaneseq
  %v5626 = vshrl.u32 %v5625, 7
  %v5627 = vsub.s32 2, %v5626
  %v5628 = vrot.slane %v5615, %v5627
  %v5629 = vlaneseq
  %v5630 = vshrl.u32 %v5629, 7
  %v5631 = vsub.s32 3, %v5630
  %v5632 = vrot.slane %v5615, %v5631
  %v5637 = vadd.f32 %v5568, %v5620
  %v5638 = vadd.f32 %v5570, %v5624
  %v5639 = vadd.f32 %v5609, %v5628
  %v5640 = vadd.f32 %v5611, %v5632
  %v5641 = vld [vmem:[#allocation5] sm:$0x3]
  %v5642 = vxor.u32 %v5637, 2147483648
  %v5643 = vmul.f32 %v5642, 1.442695
  %v5644 = vpow.pop %v5643
  %v5645 = vadd.f32 %v5644, 1.0
  %v5646 = vrcp.pop %v5645
  %v5647 = vmul.f32 1.0, %v5646
  %v5648 = vxor.u32 %v5638, 2147483648
  %v5649 = vmul.f32 %v5648, 1.442695
  %v5650 = vpow.pop %v5649
  %v5651 = vadd.f32 %v5650, 1.0
  %v5652 = vrcp.pop %v5651
  %v5653 = vmul.f32 1.0, %v5652
  %v5654 = vtanh.pop %v5639
  %v5655 = vxor.u32 %v5640, 2147483648
  %v5656 = vmul.f32 %v5655, 1.442695
  %v5657 = vpow.pop %v5656
  %v5658 = vadd.f32 %v5657, 1.0
  %v5659 = vrcp.pop %v5658
  %v5660 = vmul.f32 1.0, %v5659
  %v5661 = vmul.f32 %v5653, %v5641
  %v5662 = vmul.f32 %v5647, %v5654
  %v5663 = vadd.f32 %v5661, %v5662
  %v5664 = vtanh.pop %v5663
  %v5665 = vmul.f32 %v5660, %v5664
  %5666 = vst [vmem:[#allocation4] sm:$0x3] %v5665
  %5667 = vst [vmem:[#allocation5] sm:$0x3] %v5663
  %v5668 = vld [vmem:[#allocation4] sm:$0x3]
  %s5669 = scalar_lea.vmem %s7, 10
  %5670 = vst [vmem:[%s5669] sm:$0x3] %v5668
  %s5671 = scalar_lea.vmem %s0, 40
  %v5672 = vld [vmem:[%s5671] sm:$0xff]
  %v5673 = vld [vmem:[#allocation2] sm:$0x3]
  %v5674 = vpack.c.bf16 %v5673, %v5673
  %v5675 = vld [vmem:[%s3] sm:$0xff]
  %v5676 = vld [vmem:[%s3 + $0x8] sm:$0xff]
  %v5677 = vld [vmem:[%s3 + $0x10] sm:$0xff]
  %v5678 = vld [vmem:[%s3 + $0x18] sm:$0xff]
  %v5679 = vld [vmem:[%s3 + $0x20] sm:$0xff]
  %v5680 = vld [vmem:[%s3 + $0x28] sm:$0xff]
  %v5681 = vld [vmem:[%s3 + $0x30] sm:$0xff]
  %v5682 = vld [vmem:[%s3 + $0x38] sm:$0xff]
  %v5683 = vld [vmem:[%s3 + $0x40] sm:$0xff]
  %v5684 = vld [vmem:[%s3 + $0x48] sm:$0xff]
  %v5685 = vld [vmem:[%s3 + $0x50] sm:$0xff]
  %v5686 = vld [vmem:[%s3 + $0x58] sm:$0xff]
  %v5687 = vld [vmem:[%s3 + $0x60] sm:$0xff]
  %v5688 = vld [vmem:[%s3 + $0x68] sm:$0xff]
  %v5689 = vld [vmem:[%s3 + $0x70] sm:$0xff]
  %v5690 = vld [vmem:[%s3 + $0x78] sm:$0xff]
  %v5691 = vld [vmem:[%s3 + $0x80] sm:$0xff]
  %v5692 = vld [vmem:[%s3 + $0x88] sm:$0xff]
  %v5693 = vld [vmem:[%s3 + $0x90] sm:$0xff]
  %v5694 = vld [vmem:[%s3 + $0x98] sm:$0xff]
  %v5695 = vld [vmem:[%s3 + $0xa0] sm:$0xff]
  %v5696 = vld [vmem:[%s3 + $0xa8] sm:$0xff]
  %v5697 = vld [vmem:[%s3 + $0xb0] sm:$0xff]
  %v5698 = vld [vmem:[%s3 + $0xb8] sm:$0xff]
  %v5699 = vld [vmem:[%s3 + $0xc0] sm:$0xff]
  %v5700 = vld [vmem:[%s3 + $0xc8] sm:$0xff]
  %v5701 = vld [vmem:[%s3 + $0xd0] sm:$0xff]
  %v5702 = vld [vmem:[%s3 + $0xd8] sm:$0xff]
  %v5703 = vld [vmem:[%s3 + $0xe0] sm:$0xff]
  %v5704 = vld [vmem:[%s3 + $0xe8] sm:$0xff]
  %v5705 = vld [vmem:[%s3 + $0xf0] sm:$0xff]
  %v5706 = vld [vmem:[%s3 + $0xf8] sm:$0xff]
  %v5739 = vunpack.c.l.b16 %v5675
  %v5740 = vunpack.c.h.b16 %v5675
  %v5741 = vunpack.c.l.b16 %v5676
  %v5742 = vunpack.c.h.b16 %v5676
  %v5743 = vunpack.c.l.b16 %v5677
  %v5744 = vunpack.c.h.b16 %v5677
  %v5745 = vunpack.c.l.b16 %v5678
  %v5746 = vunpack.c.h.b16 %v5678
  %v5747 = vunpack.c.l.b16 %v5679
  %v5748 = vunpack.c.h.b16 %v5679
  %v5749 = vunpack.c.l.b16 %v5680
  %v5750 = vunpack.c.h.b16 %v5680
  %v5751 = vunpack.c.l.b16 %v5681
  %v5752 = vunpack.c.h.b16 %v5681
  %v5753 = vunpack.c.l.b16 %v5682
  %v5754 = vunpack.c.h.b16 %v5682
  %v5755 = vunpack.c.l.b16 %v5683
  %v5756 = vunpack.c.h.b16 %v5683
  %v5757 = vunpack.c.l.b16 %v5684
  %v5758 = vunpack.c.h.b16 %v5684
  %v5759 = vunpack.c.l.b16 %v5685
  %v5760 = vunpack.c.h.b16 %v5685
  %v5761 = vunpack.c.l.b16 %v5686
  %v5762 = vunpack.c.h.b16 %v5686
  %v5763 = vunpack.c.l.b16 %v5687
  %v5764 = vunpack.c.h.b16 %v5687
  %v5765 = vunpack.c.l.b16 %v5688
  %v5766 = vunpack.c.h.b16 %v5688
  %v5767 = vunpack.c.l.b16 %v5689
  %v5768 = vunpack.c.h.b16 %v5689
  %v5769 = vunpack.c.l.b16 %v5690
  %v5770 = vunpack.c.h.b16 %v5690
  %v5771 = vunpack.c.l.b16 %v5691
  %v5772 = vunpack.c.h.b16 %v5691
  %v5773 = vunpack.c.l.b16 %v5692
  %v5774 = vunpack.c.h.b16 %v5692
  %v5775 = vunpack.c.l.b16 %v5693
  %v5776 = vunpack.c.h.b16 %v5693
  %v5777 = vunpack.c.l.b16 %v5694
  %v5778 = vunpack.c.h.b16 %v5694
  %v5779 = vunpack.c.l.b16 %v5695
  %v5780 = vunpack.c.h.b16 %v5695
  %v5781 = vunpack.c.l.b16 %v5696
  %v5782 = vunpack.c.h.b16 %v5696
  %v5783 = vunpack.c.l.b16 %v5697
  %v5784 = vunpack.c.h.b16 %v5697
  %v5785 = vunpack.c.l.b16 %v5698
  %v5786 = vunpack.c.h.b16 %v5698
  %v5787 = vunpack.c.l.b16 %v5699
  %v5788 = vunpack.c.h.b16 %v5699
  %v5789 = vunpack.c.l.b16 %v5700
  %v5790 = vunpack.c.h.b16 %v5700
  %v5791 = vunpack.c.l.b16 %v5701
  %v5792 = vunpack.c.h.b16 %v5701
  %v5793 = vunpack.c.l.b16 %v5702
  %v5794 = vunpack.c.h.b16 %v5702
  %v5795 = vunpack.c.l.b16 %v5703
  %v5796 = vunpack.c.h.b16 %v5703
  %v5797 = vunpack.c.l.b16 %v5704
  %v5798 = vunpack.c.h.b16 %v5704
  %v5799 = vunpack.c.l.b16 %v5705
  %v5800 = vunpack.c.h.b16 %v5705
  %v5801 = vunpack.c.l.b16 %v5706
  %v5802 = vunpack.c.h.b16 %v5706
  %v5803 = vpack.c.b16 %v5743, %v5739
  %v5804 = vpack.c.b16 %v5744, %v5740
  %v5805 = vpack.c.b16 %v5745, %v5741
  %v5806 = vpack.c.b16 %v5746, %v5742
  %v5807 = vpack.c.b16 %v5751, %v5747
  %v5808 = vpack.c.b16 %v5752, %v5748
  %v5809 = vpack.c.b16 %v5753, %v5749
  %v5810 = vpack.c.b16 %v5754, %v5750
  %v5811 = vpack.c.b16 %v5759, %v5755
  %v5812 = vpack.c.b16 %v5760, %v5756
  %v5813 = vpack.c.b16 %v5761, %v5757
  %v5814 = vpack.c.b16 %v5762, %v5758
  %v5815 = vpack.c.b16 %v5767, %v5763
  %v5816 = vpack.c.b16 %v5768, %v5764
  %v5817 = vpack.c.b16 %v5769, %v5765
  %v5818 = vpack.c.b16 %v5770, %v5766
  %v5819 = vpack.c.b16 %v5775, %v5771
  %v5820 = vpack.c.b16 %v5776, %v5772
  %v5821 = vpack.c.b16 %v5777, %v5773
  %v5822 = vpack.c.b16 %v5778, %v5774
  %v5823 = vpack.c.b16 %v5783, %v5779
  %v5824 = vpack.c.b16 %v5784, %v5780
  %v5825 = vpack.c.b16 %v5785, %v5781
  %v5826 = vpack.c.b16 %v5786, %v5782
  %v5827 = vpack.c.b16 %v5791, %v5787
  %v5828 = vpack.c.b16 %v5792, %v5788
  %v5829 = vpack.c.b16 %v5793, %v5789
  %v5830 = vpack.c.b16 %v5794, %v5790
  %v5831 = vpack.c.b16 %v5799, %v5795
  %v5832 = vpack.c.b16 %v5800, %v5796
  %v5833 = vpack.c.b16 %v5801, %v5797
  %v5834 = vpack.c.b16 %v5802, %v5798
  %5867 = vmatprep.subr.bf16.mxu0 %v5832
  %5868 = vmatpush1.bf16.msra.mxu0 %v5831
  %5869 = vmatprep.subr.bf16.mxu0 %v5828
  %5870 = vmatpush1.bf16.msra.mxu0 %v5827
  %5871 = vmatprep.subr.bf16.mxu0 %v5824
  %5872 = vmatpush1.bf16.msra.mxu0 %v5823
  %5873 = vmatprep.subr.bf16.mxu0 %v5820
  %5874 = vmatpush1.bf16.msra.mxu0 %v5819
  %5875 = vmatprep.subr.bf16.mxu0 %v5816
  %5876 = vmatpush1.bf16.msra.mxu0 %v5815
  %5877 = vmatprep.subr.bf16.mxu0 %v5812
  %5878 = vmatpush1.bf16.msra.mxu0 %v5811
  %5879 = vmatprep.subr.bf16.mxu0 %v5808
  %5880 = vmatpush1.bf16.msra.mxu0 %v5807
  %5881 = vmatprep.subr.bf16.mxu0 %v5804
  %5882 = vmatpush1.bf16.msra.mxu0 %v5803
  %5883 = vmatprep.subr.bf16.mxu0 0
  %5884 = vmatpush2.bf16.msra.mxu0 0
  %5885 = vmatprep.subr.bf16.mxu0 0
  %5886 = vmatpush2.bf16.msra.mxu0 0
  %5887 = vmatprep.subr.bf16.mxu0 0
  %5888 = vmatpush2.bf16.msra.mxu0 0
  %5889 = vmatprep.subr.bf16.mxu0 0
  %5890 = vmatpush2.bf16.msra.mxu0 0
  %5891 = vmatprep.subr.bf16.mxu0 0
  %5892 = vmatpush2.bf16.msra.mxu0 0
  %5893 = vmatprep.subr.bf16.mxu0 0
  %5894 = vmatpush2.bf16.msra.mxu0 0
  %5895 = vmatprep.subr.bf16.mxu0 0
  %5896 = vmatpush2.bf16.msra.mxu0 0
  %5897 = vmatprep.subr.bf16.mxu0 0
  %5898 = vmatpush2.bf16.msra.mxu0 0
  %5899 = vmatprep.mubr.bf16.mxu0 0
  %5900 = vmatmul.mubr.bf16.gmra.mxu0 %v5674
  %v5901 = vpop.f32.mrf.mxu0
  %v5902 = vadd.f32 0.0, %v5901
  %v5903 = vpop.f32.mrf.mxu0
  %v5904 = vadd.f32 0.0, %v5903
  %v5905 = vpop.f32.mrf.mxu0
  %v5906 = vpop.f32.mrf.mxu0
  %5907 = vdwg.mxu0
  %5908 = vmatprep.subr.bf16.mxu0 %v5834
  %5909 = vmatpush1.bf16.msra.mxu0 %v5833
  %5910 = vmatprep.subr.bf16.mxu0 %v5830
  %5911 = vmatpush1.bf16.msra.mxu0 %v5829
  %5912 = vmatprep.subr.bf16.mxu0 %v5826
  %5913 = vmatpush1.bf16.msra.mxu0 %v5825
  %5914 = vmatprep.subr.bf16.mxu0 %v5822
  %5915 = vmatpush1.bf16.msra.mxu0 %v5821
  %5916 = vmatprep.subr.bf16.mxu0 %v5818
  %5917 = vmatpush1.bf16.msra.mxu0 %v5817
  %5918 = vmatprep.subr.bf16.mxu0 %v5814
  %5919 = vmatpush1.bf16.msra.mxu0 %v5813
  %5920 = vmatprep.subr.bf16.mxu0 %v5810
  %5921 = vmatpush1.bf16.msra.mxu0 %v5809
  %5922 = vmatprep.subr.bf16.mxu0 %v5806
  %5923 = vmatpush1.bf16.msra.mxu0 %v5805
  %5924 = vmatprep.subr.bf16.mxu0 0
  %5925 = vmatpush2.bf16.msra.mxu0 0
  %5926 = vmatprep.subr.bf16.mxu0 0
  %5927 = vmatpush2.bf16.msra.mxu0 0
  %5928 = vmatprep.subr.bf16.mxu0 0
  %5929 = vmatpush2.bf16.msra.mxu0 0
  %5930 = vmatprep.subr.bf16.mxu0 0
  %5931 = vmatpush2.bf16.msra.mxu0 0
  %5932 = vmatprep.subr.bf16.mxu0 0
  %5933 = vmatpush2.bf16.msra.mxu0 0
  %5934 = vmatprep.subr.bf16.mxu0 0
  %5935 = vmatpush2.bf16.msra.mxu0 0
  %5936 = vmatprep.subr.bf16.mxu0 0
  %5937 = vmatpush2.bf16.msra.mxu0 0
  %5938 = vmatprep.subr.bf16.mxu0 0
  %5939 = vmatpush2.bf16.msra.mxu0 0
  %5940 = vmatprep.mubr.bf16.mxu0 0
  %5941 = vmatmul.mubr.bf16.gmra.mxu0 %v5674
  %v5942 = vpop.f32.mrf.mxu0
  %v5943 = vadd.f32 0.0, %v5942
  %v5944 = vpop.f32.mrf.mxu0
  %v5945 = vadd.f32 0.0, %v5944
  %v5946 = vpop.f32.mrf.mxu0
  %v5947 = vpop.f32.mrf.mxu0
  %5948 = vdwg.mxu0
  %v5953 = vcombine.low %v5902, %v5904
  %v5954 = vcombine.low %v5943, %v5945
  %v5956 = vunpack.c.l.s4 1983009808
  %v5957 = vunpack.c.0.s8 %v5956
  %v5958 = vlaneseq
  %v5959 = vshrl.u32 %v5958, 7
  %v5960 = vsub.s32 %v5957, %v5959
  %v5961 = vrot.slane %v5953, %v5960
  %v5963 = vunpack.c.l.s4 1983009808
  %v5964 = vunpack.c.0.s8 %v5963
  %v5965 = vlaneseq
  %v5966 = vshrl.u32 %v5965, 7
  %v5967 = vsub.s32 %v5964, %v5966
  %v5968 = vrot.slane %v5954, %v5967
  %v5969 = vcombine.low %v5961, %v5968
  %v5971 = vadd.f32 %v5672, %v5969
  %v5972 = vld [vmem:[#allocation6] sm:$0xff]
  %v5973 = vadd.f32 %v5971, %v5972
  %v5974 = vld [vmem:[#allocation3] sm:$0x3]
  %v5975 = vxor.u32 %v5973, 2147483648
  %v5976 = vmul.f32 %v5975, 1.442695
  %v5977 = vpow.pop %v5976
  %v5978 = vadd.f32 %v5977, 1.0
  %v5979 = vrcp.pop %v5978
  %v5980 = vmul.f32 1.0, %v5979
  %v5982 = vrot.slane %v5973, 2
  %v5984 = vxor.u32 %v5982, 2147483648
  %v5985 = vmul.f32 %v5984, 1.442695
  %v5986 = vpow.pop %v5985
  %v5987 = vadd.f32 %v5986, 1.0
  %v5988 = vrcp.pop %v5987
  %v5989 = vmul.f32 1.0, %v5988
  %v5990 = vrot.slane %v5973, 4
  %v5992 = vtanh.pop %v5990
  %v5993 = vrot.slane %v5973, 6
  %v5995 = vxor.u32 %v5993, 2147483648
  %v5996 = vmul.f32 %v5995, 1.442695
  %v5997 = vpow.pop %v5996
  %v5998 = vadd.f32 %v5997, 1.0
  %v5999 = vrcp.pop %v5998
  %v6000 = vmul.f32 1.0, %v5999
  %v6001 = vmul.f32 %v5989, %v5974
  %v6002 = vmul.f32 %v5980, %v5992
  %v6003 = vadd.f32 %v6001, %v6002
  %v6004 = vtanh.pop %v6003
  %v6005 = vmul.f32 %v6000, %v6004
  %6006 = vst [vmem:[#allocation2] sm:$0x3] %v6005
  %6007 = vst [vmem:[#allocation3] sm:$0x3] %v6003
  %v6008 = vld [vmem:[#allocation2] sm:$0x3]
  %v6009 = vpack.c.bf16 %v6008, %v6008
  %v6010 = vld [vmem:[%s4] sm:$0xff]
  %v6011 = vld [vmem:[%s4 + $0x8] sm:$0xff]
  %v6012 = vld [vmem:[%s4 + $0x10] sm:$0xff]
  %v6013 = vld [vmem:[%s4 + $0x18] sm:$0xff]
  %v6014 = vld [vmem:[%s4 + $0x20] sm:$0xff]
  %v6015 = vld [vmem:[%s4 + $0x28] sm:$0xff]
  %v6016 = vld [vmem:[%s4 + $0x30] sm:$0xff]
  %v6017 = vld [vmem:[%s4 + $0x38] sm:$0xff]
  %v6018 = vld [vmem:[%s4 + $0x40] sm:$0xff]
  %v6019 = vld [vmem:[%s4 + $0x48] sm:$0xff]
  %v6020 = vld [vmem:[%s4 + $0x50] sm:$0xff]
  %v6021 = vld [vmem:[%s4 + $0x58] sm:$0xff]
  %v6022 = vld [vmem:[%s4 + $0x60] sm:$0xff]
  %v6023 = vld [vmem:[%s4 + $0x68] sm:$0xff]
  %v6024 = vld [vmem:[%s4 + $0x70] sm:$0xff]
  %v6025 = vld [vmem:[%s4 + $0x78] sm:$0xff]
  %v6026 = vld [vmem:[%s4 + $0x80] sm:$0xff]
  %v6027 = vld [vmem:[%s4 + $0x88] sm:$0xff]
  %v6028 = vld [vmem:[%s4 + $0x90] sm:$0xff]
  %v6029 = vld [vmem:[%s4 + $0x98] sm:$0xff]
  %v6030 = vld [vmem:[%s4 + $0xa0] sm:$0xff]
  %v6031 = vld [vmem:[%s4 + $0xa8] sm:$0xff]
  %v6032 = vld [vmem:[%s4 + $0xb0] sm:$0xff]
  %v6033 = vld [vmem:[%s4 + $0xb8] sm:$0xff]
  %v6034 = vld [vmem:[%s4 + $0xc0] sm:$0xff]
  %v6035 = vld [vmem:[%s4 + $0xc8] sm:$0xff]
  %v6036 = vld [vmem:[%s4 + $0xd0] sm:$0xff]
  %v6037 = vld [vmem:[%s4 + $0xd8] sm:$0xff]
  %v6038 = vld [vmem:[%s4 + $0xe0] sm:$0xff]
  %v6039 = vld [vmem:[%s4 + $0xe8] sm:$0xff]
  %v6040 = vld [vmem:[%s4 + $0xf0] sm:$0xff]
  %v6041 = vld [vmem:[%s4 + $0xf8] sm:$0xff]
  %v6042 = vld [vmem:[#allocation4] sm:$0x3]
  %v6043 = vpack.c.bf16 %v6042, %v6042
  %v6044 = vld [vmem:[%s5] sm:$0xff]
  %v6045 = vld [vmem:[%s5 + $0x8] sm:$0xff]
  %v6046 = vld [vmem:[%s5 + $0x10] sm:$0xff]
  %v6047 = vld [vmem:[%s5 + $0x18] sm:$0xff]
  %v6048 = vld [vmem:[%s5 + $0x20] sm:$0xff]
  %v6049 = vld [vmem:[%s5 + $0x28] sm:$0xff]
  %v6050 = vld [vmem:[%s5 + $0x30] sm:$0xff]
  %v6051 = vld [vmem:[%s5 + $0x38] sm:$0xff]
  %v6052 = vld [vmem:[%s5 + $0x40] sm:$0xff]
  %v6053 = vld [vmem:[%s5 + $0x48] sm:$0xff]
  %v6054 = vld [vmem:[%s5 + $0x50] sm:$0xff]
  %v6055 = vld [vmem:[%s5 + $0x58] sm:$0xff]
  %v6056 = vld [vmem:[%s5 + $0x60] sm:$0xff]
  %v6057 = vld [vmem:[%s5 + $0x68] sm:$0xff]
  %v6058 = vld [vmem:[%s5 + $0x70] sm:$0xff]
  %v6059 = vld [vmem:[%s5 + $0x78] sm:$0xff]
  %v6060 = vld [vmem:[%s5 + $0x80] sm:$0xff]
  %v6061 = vld [vmem:[%s5 + $0x88] sm:$0xff]
  %v6062 = vld [vmem:[%s5 + $0x90] sm:$0xff]
  %v6063 = vld [vmem:[%s5 + $0x98] sm:$0xff]
  %v6064 = vld [vmem:[%s5 + $0xa0] sm:$0xff]
  %v6065 = vld [vmem:[%s5 + $0xa8] sm:$0xff]
  %v6066 = vld [vmem:[%s5 + $0xb0] sm:$0xff]
  %v6067 = vld [vmem:[%s5 + $0xb8] sm:$0xff]
  %v6068 = vld [vmem:[%s5 + $0xc0] sm:$0xff]
  %v6069 = vld [vmem:[%s5 + $0xc8] sm:$0xff]
  %v6070 = vld [vmem:[%s5 + $0xd0] sm:$0xff]
  %v6071 = vld [vmem:[%s5 + $0xd8] sm:$0xff]
  %v6072 = vld [vmem:[%s5 + $0xe0] sm:$0xff]
  %v6073 = vld [vmem:[%s5 + $0xe8] sm:$0xff]
  %v6074 = vld [vmem:[%s5 + $0xf0] sm:$0xff]
  %v6075 = vld [vmem:[%s5 + $0xf8] sm:$0xff]
  %v6108 = vunpack.c.l.b16 %v6044
  %v6109 = vunpack.c.h.b16 %v6044
  %v6110 = vunpack.c.l.b16 %v6045
  %v6111 = vunpack.c.h.b16 %v6045
  %v6112 = vunpack.c.l.b16 %v6046
  %v6113 = vunpack.c.h.b16 %v6046
  %v6114 = vunpack.c.l.b16 %v6047
  %v6115 = vunpack.c.h.b16 %v6047
  %v6116 = vunpack.c.l.b16 %v6048
  %v6117 = vunpack.c.h.b16 %v6048
  %v6118 = vunpack.c.l.b16 %v6049
  %v6119 = vunpack.c.h.b16 %v6049
  %v6120 = vunpack.c.l.b16 %v6050
  %v6121 = vunpack.c.h.b16 %v6050
  %v6122 = vunpack.c.l.b16 %v6051
  %v6123 = vunpack.c.h.b16 %v6051
  %v6124 = vunpack.c.l.b16 %v6052
  %v6125 = vunpack.c.h.b16 %v6052
  %v6126 = vunpack.c.l.b16 %v6053
  %v6127 = vunpack.c.h.b16 %v6053
  %v6128 = vunpack.c.l.b16 %v6054
  %v6129 = vunpack.c.h.b16 %v6054
  %v6130 = vunpack.c.l.b16 %v6055
  %v6131 = vunpack.c.h.b16 %v6055
  %v6132 = vunpack.c.l.b16 %v6056
  %v6133 = vunpack.c.h.b16 %v6056
  %v6134 = vunpack.c.l.b16 %v6057
  %v6135 = vunpack.c.h.b16 %v6057
  %v6136 = vunpack.c.l.b16 %v6058
  %v6137 = vunpack.c.h.b16 %v6058
  %v6138 = vunpack.c.l.b16 %v6059
  %v6139 = vunpack.c.h.b16 %v6059
  %v6140 = vunpack.c.l.b16 %v6060
  %v6141 = vunpack.c.h.b16 %v6060
  %v6142 = vunpack.c.l.b16 %v6061
  %v6143 = vunpack.c.h.b16 %v6061
  %v6144 = vunpack.c.l.b16 %v6062
  %v6145 = vunpack.c.h.b16 %v6062
  %v6146 = vunpack.c.l.b16 %v6063
  %v6147 = vunpack.c.h.b16 %v6063
  %v6148 = vunpack.c.l.b16 %v6064
  %v6149 = vunpack.c.h.b16 %v6064
  %v6150 = vunpack.c.l.b16 %v6065
  %v6151 = vunpack.c.h.b16 %v6065
  %v6152 = vunpack.c.l.b16 %v6066
  %v6153 = vunpack.c.h.b16 %v6066
  %v6154 = vunpack.c.l.b16 %v6067
  %v6155 = vunpack.c.h.b16 %v6067
  %v6156 = vunpack.c.l.b16 %v6068
  %v6157 = vunpack.c.h.b16 %v6068
  %v6158 = vunpack.c.l.b16 %v6069
  %v6159 = vunpack.c.h.b16 %v6069
  %v6160 = vunpack.c.l.b16 %v6070
  %v6161 = vunpack.c.h.b16 %v6070
  %v6162 = vunpack.c.l.b16 %v6071
  %v6163 = vunpack.c.h.b16 %v6071
  %v6164 = vunpack.c.l.b16 %v6072
  %v6165 = vunpack.c.h.b16 %v6072
  %v6166 = vunpack.c.l.b16 %v6073
  %v6167 = vunpack.c.h.b16 %v6073
  %v6168 = vunpack.c.l.b16 %v6074
  %v6169 = vunpack.c.h.b16 %v6074
  %v6170 = vunpack.c.l.b16 %v6075
  %v6171 = vunpack.c.h.b16 %v6075
  %v6172 = vpack.c.b16 %v6112, %v6108
  %v6173 = vpack.c.b16 %v6113, %v6109
  %v6174 = vpack.c.b16 %v6114, %v6110
  %v6175 = vpack.c.b16 %v6115, %v6111
  %v6176 = vpack.c.b16 %v6120, %v6116
  %v6177 = vpack.c.b16 %v6121, %v6117
  %v6178 = vpack.c.b16 %v6122, %v6118
  %v6179 = vpack.c.b16 %v6123, %v6119
  %v6180 = vpack.c.b16 %v6128, %v6124
  %v6181 = vpack.c.b16 %v6129, %v6125
  %v6182 = vpack.c.b16 %v6130, %v6126
  %v6183 = vpack.c.b16 %v6131, %v6127
  %v6184 = vpack.c.b16 %v6136, %v6132
  %v6185 = vpack.c.b16 %v6137, %v6133
  %v6186 = vpack.c.b16 %v6138, %v6134
  %v6187 = vpack.c.b16 %v6139, %v6135
  %v6188 = vpack.c.b16 %v6144, %v6140
  %v6189 = vpack.c.b16 %v6145, %v6141
  %v6190 = vpack.c.b16 %v6146, %v6142
  %v6191 = vpack.c.b16 %v6147, %v6143
  %v6192 = vpack.c.b16 %v6152, %v6148
  %v6193 = vpack.c.b16 %v6153, %v6149
  %v6194 = vpack.c.b16 %v6154, %v6150
  %v6195 = vpack.c.b16 %v6155, %v6151
  %v6196 = vpack.c.b16 %v6160, %v6156
  %v6197 = vpack.c.b16 %v6161, %v6157
  %v6198 = vpack.c.b16 %v6162, %v6158
  %v6199 = vpack.c.b16 %v6163, %v6159
  %v6200 = vpack.c.b16 %v6168, %v6164
  %v6201 = vpack.c.b16 %v6169, %v6165
  %v6202 = vpack.c.b16 %v6170, %v6166
  %v6203 = vpack.c.b16 %v6171, %v6167
  %6236 = vmatprep.subr.bf16.mxu0 %v6201
  %6237 = vmatpush1.bf16.msra.mxu0 %v6200
  %6238 = vmatprep.subr.bf16.mxu0 %v6197
  %6239 = vmatpush1.bf16.msra.mxu0 %v6196
  %6240 = vmatprep.subr.bf16.mxu0 %v6193
  %6241 = vmatpush1.bf16.msra.mxu0 %v6192
  %6242 = vmatprep.subr.bf16.mxu0 %v6189
  %6243 = vmatpush1.bf16.msra.mxu0 %v6188
  %6244 = vmatprep.subr.bf16.mxu0 %v6185
  %6245 = vmatpush1.bf16.msra.mxu0 %v6184
  %6246 = vmatprep.subr.bf16.mxu0 %v6181
  %6247 = vmatpush1.bf16.msra.mxu0 %v6180
  %6248 = vmatprep.subr.bf16.mxu0 %v6177
  %6249 = vmatpush1.bf16.msra.mxu0 %v6176
  %6250 = vmatprep.subr.bf16.mxu0 %v6173
  %6251 = vmatpush1.bf16.msra.mxu0 %v6172
  %6252 = vmatprep.subr.bf16.mxu0 0
  %6253 = vmatpush2.bf16.msra.mxu0 0
  %6254 = vmatprep.subr.bf16.mxu0 0
  %6255 = vmatpush2.bf16.msra.mxu0 0
  %6256 = vmatprep.subr.bf16.mxu0 0
  %6257 = vmatpush2.bf16.msra.mxu0 0
  %6258 = vmatprep.subr.bf16.mxu0 0
  %6259 = vmatpush2.bf16.msra.mxu0 0
  %6260 = vmatprep.subr.bf16.mxu0 0
  %6261 = vmatpush2.bf16.msra.mxu0 0
  %6262 = vmatprep.subr.bf16.mxu0 0
  %6263 = vmatpush2.bf16.msra.mxu0 0
  %6264 = vmatprep.subr.bf16.mxu0 0
  %6265 = vmatpush2.bf16.msra.mxu0 0
  %6266 = vmatprep.subr.bf16.mxu0 0
  %6267 = vmatpush2.bf16.msra.mxu0 0
  %6268 = vmatprep.mubr.bf16.mxu0 0
  %6269 = vmatmul.mubr.bf16.gmra.mxu0 %v6043
  %v6270 = vpop.f32.mrf.mxu0
  %v6271 = vadd.f32 0.0, %v6270
  %v6272 = vpop.f32.mrf.mxu0
  %v6273 = vadd.f32 0.0, %v6272
  %v6274 = vpop.f32.mrf.mxu0
  %v6275 = vpop.f32.mrf.mxu0
  %6276 = vdwg.mxu0
  %6277 = vmatprep.subr.bf16.mxu0 %v6203
  %6278 = vmatpush1.bf16.msra.mxu0 %v6202
  %6279 = vmatprep.subr.bf16.mxu0 %v6199
  %6280 = vmatpush1.bf16.msra.mxu0 %v6198
  %6281 = vmatprep.subr.bf16.mxu0 %v6195
  %6282 = vmatpush1.bf16.msra.mxu0 %v6194
  %6283 = vmatprep.subr.bf16.mxu0 %v6191
  %6284 = vmatpush1.bf16.msra.mxu0 %v6190
  %6285 = vmatprep.subr.bf16.mxu0 %v6187
  %6286 = vmatpush1.bf16.msra.mxu0 %v6186
  %6287 = vmatprep.subr.bf16.mxu0 %v6183
  %6288 = vmatpush1.bf16.msra.mxu0 %v6182
  %6289 = vmatprep.subr.bf16.mxu0 %v6179
  %6290 = vmatpush1.bf16.msra.mxu0 %v6178
  %6291 = vmatprep.subr.bf16.mxu0 %v6175
  %6292 = vmatpush1.bf16.msra.mxu0 %v6174
  %6293 = vmatprep.subr.bf16.mxu0 0
  %6294 = vmatpush2.bf16.msra.mxu0 0
  %6295 = vmatprep.subr.bf16.mxu0 0
  %6296 = vmatpush2.bf16.msra.mxu0 0
  %6297 = vmatprep.subr.bf16.mxu0 0
  %6298 = vmatpush2.bf16.msra.mxu0 0
  %6299 = vmatprep.subr.bf16.mxu0 0
  %6300 = vmatpush2.bf16.msra.mxu0 0
  %6301 = vmatprep.subr.bf16.mxu0 0
  %6302 = vmatpush2.bf16.msra.mxu0 0
  %6303 = vmatprep.subr.bf16.mxu0 0
  %6304 = vmatpush2.bf16.msra.mxu0 0
  %6305 = vmatprep.subr.bf16.mxu0 0
  %6306 = vmatpush2.bf16.msra.mxu0 0
  %6307 = vmatprep.subr.bf16.mxu0 0
  %6308 = vmatpush2.bf16.msra.mxu0 0
  %6309 = vmatprep.mubr.bf16.mxu0 0
  %6310 = vmatmul.mubr.bf16.gmra.mxu0 %v6043
  %v6311 = vpop.f32.mrf.mxu0
  %v6312 = vadd.f32 0.0, %v6311
  %v6313 = vpop.f32.mrf.mxu0
  %v6314 = vadd.f32 0.0, %v6313
  %v6315 = vpop.f32.mrf.mxu0
  %v6316 = vpop.f32.mrf.mxu0
  %6317 = vdwg.mxu0
  %v6350 = vunpack.c.l.b16 %v6010
  %v6351 = vunpack.c.h.b16 %v6010
  %v6352 = vunpack.c.l.b16 %v6011
  %v6353 = vunpack.c.h.b16 %v6011
  %v6354 = vunpack.c.l.b16 %v6012
  %v6355 = vunpack.c.h.b16 %v6012
  %v6356 = vunpack.c.l.b16 %v6013
  %v6357 = vunpack.c.h.b16 %v6013
  %v6358 = vunpack.c.l.b16 %v6014
  %v6359 = vunpack.c.h.b16 %v6014
  %v6360 = vunpack.c.l.b16 %v6015
  %v6361 = vunpack.c.h.b16 %v6015
  %v6362 = vunpack.c.l.b16 %v6016
  %v6363 = vunpack.c.h.b16 %v6016
  %v6364 = vunpack.c.l.b16 %v6017
  %v6365 = vunpack.c.h.b16 %v6017
  %v6366 = vunpack.c.l.b16 %v6018
  %v6367 = vunpack.c.h.b16 %v6018
  %v6368 = vunpack.c.l.b16 %v6019
  %v6369 = vunpack.c.h.b16 %v6019
  %v6370 = vunpack.c.l.b16 %v6020
  %v6371 = vunpack.c.h.b16 %v6020
  %v6372 = vunpack.c.l.b16 %v6021
  %v6373 = vunpack.c.h.b16 %v6021
  %v6374 = vunpack.c.l.b16 %v6022
  %v6375 = vunpack.c.h.b16 %v6022
  %v6376 = vunpack.c.l.b16 %v6023
  %v6377 = vunpack.c.h.b16 %v6023
  %v6378 = vunpack.c.l.b16 %v6024
  %v6379 = vunpack.c.h.b16 %v6024
  %v6380 = vunpack.c.l.b16 %v6025
  %v6381 = vunpack.c.h.b16 %v6025
  %v6382 = vunpack.c.l.b16 %v6026
  %v6383 = vunpack.c.h.b16 %v6026
  %v6384 = vunpack.c.l.b16 %v6027
  %v6385 = vunpack.c.h.b16 %v6027
  %v6386 = vunpack.c.l.b16 %v6028
  %v6387 = vunpack.c.h.b16 %v6028
  %v6388 = vunpack.c.l.b16 %v6029
  %v6389 = vunpack.c.h.b16 %v6029
  %v6390 = vunpack.c.l.b16 %v6030
  %v6391 = vunpack.c.h.b16 %v6030
  %v6392 = vunpack.c.l.b16 %v6031
  %v6393 = vunpack.c.h.b16 %v6031
  %v6394 = vunpack.c.l.b16 %v6032
  %v6395 = vunpack.c.h.b16 %v6032
  %v6396 = vunpack.c.l.b16 %v6033
  %v6397 = vunpack.c.h.b16 %v6033
  %v6398 = vunpack.c.l.b16 %v6034
  %v6399 = vunpack.c.h.b16 %v6034
  %v6400 = vunpack.c.l.b16 %v6035
  %v6401 = vunpack.c.h.b16 %v6035
  %v6402 = vunpack.c.l.b16 %v6036
  %v6403 = vunpack.c.h.b16 %v6036
  %v6404 = vunpack.c.l.b16 %v6037
  %v6405 = vunpack.c.h.b16 %v6037
  %v6406 = vunpack.c.l.b16 %v6038
  %v6407 = vunpack.c.h.b16 %v6038
  %v6408 = vunpack.c.l.b16 %v6039
  %v6409 = vunpack.c.h.b16 %v6039
  %v6410 = vunpack.c.l.b16 %v6040
  %v6411 = vunpack.c.h.b16 %v6040
  %v6412 = vunpack.c.l.b16 %v6041
  %v6413 = vunpack.c.h.b16 %v6041
  %v6414 = vpack.c.b16 %v6354, %v6350
  %v6415 = vpack.c.b16 %v6355, %v6351
  %v6416 = vpack.c.b16 %v6356, %v6352
  %v6417 = vpack.c.b16 %v6357, %v6353
  %v6418 = vpack.c.b16 %v6362, %v6358
  %v6419 = vpack.c.b16 %v6363, %v6359
  %v6420 = vpack.c.b16 %v6364, %v6360
  %v6421 = vpack.c.b16 %v6365, %v6361
  %v6422 = vpack.c.b16 %v6370, %v6366
  %v6423 = vpack.c.b16 %v6371, %v6367
  %v6424 = vpack.c.b16 %v6372, %v6368
  %v6425 = vpack.c.b16 %v6373, %v6369
  %v6426 = vpack.c.b16 %v6378, %v6374
  %v6427 = vpack.c.b16 %v6379, %v6375
  %v6428 = vpack.c.b16 %v6380, %v6376
  %v6429 = vpack.c.b16 %v6381, %v6377
  %v6430 = vpack.c.b16 %v6386, %v6382
  %v6431 = vpack.c.b16 %v6387, %v6383
  %v6432 = vpack.c.b16 %v6388, %v6384
  %v6433 = vpack.c.b16 %v6389, %v6385
  %v6434 = vpack.c.b16 %v6394, %v6390
  %v6435 = vpack.c.b16 %v6395, %v6391
  %v6436 = vpack.c.b16 %v6396, %v6392
  %v6437 = vpack.c.b16 %v6397, %v6393
  %v6438 = vpack.c.b16 %v6402, %v6398
  %v6439 = vpack.c.b16 %v6403, %v6399
  %v6440 = vpack.c.b16 %v6404, %v6400
  %v6441 = vpack.c.b16 %v6405, %v6401
  %v6442 = vpack.c.b16 %v6410, %v6406
  %v6443 = vpack.c.b16 %v6411, %v6407
  %v6444 = vpack.c.b16 %v6412, %v6408
  %v6445 = vpack.c.b16 %v6413, %v6409
  %6478 = vmatprep.subr.bf16.mxu0 %v6443
  %6479 = vmatpush1.bf16.msra.mxu0 %v6442
  %6480 = vmatprep.subr.bf16.mxu0 %v6439
  %6481 = vmatpush1.bf16.msra.mxu0 %v6438
  %6482 = vmatprep.subr.bf16.mxu0 %v6435
  %6483 = vmatpush1.bf16.msra.mxu0 %v6434
  %6484 = vmatprep.subr.bf16.mxu0 %v6431
  %6485 = vmatpush1.bf16.msra.mxu0 %v6430
  %6486 = vmatprep.subr.bf16.mxu0 %v6427
  %6487 = vmatpush1.bf16.msra.mxu0 %v6426
  %6488 = vmatprep.subr.bf16.mxu0 %v6423
  %6489 = vmatpush1.bf16.msra.mxu0 %v6422
  %6490 = vmatprep.subr.bf16.mxu0 %v6419
  %6491 = vmatpush1.bf16.msra.mxu0 %v6418
  %6492 = vmatprep.subr.bf16.mxu0 %v6415
  %6493 = vmatpush1.bf16.msra.mxu0 %v6414
  %6494 = vmatprep.subr.bf16.mxu0 0
  %6495 = vmatpush2.bf16.msra.mxu0 0
  %6496 = vmatprep.subr.bf16.mxu0 0
  %6497 = vmatpush2.bf16.msra.mxu0 0
  %6498 = vmatprep.subr.bf16.mxu0 0
  %6499 = vmatpush2.bf16.msra.mxu0 0
  %6500 = vmatprep.subr.bf16.mxu0 0
  %6501 = vmatpush2.bf16.msra.mxu0 0
  %6502 = vmatprep.subr.bf16.mxu0 0
  %6503 = vmatpush2.bf16.msra.mxu0 0
  %6504 = vmatprep.subr.bf16.mxu0 0
  %6505 = vmatpush2.bf16.msra.mxu0 0
  %6506 = vmatprep.subr.bf16.mxu0 0
  %6507 = vmatpush2.bf16.msra.mxu0 0
  %6508 = vmatprep.subr.bf16.mxu0 0
  %6509 = vmatpush2.bf16.msra.mxu0 0
  %6510 = vmatprep.mubr.bf16.mxu0 0
  %6511 = vmatmul.mubr.bf16.gmra.mxu0 %v6009
  %v6512 = vpop.f32.mrf.mxu0
  %v6513 = vadd.f32 %v6271, %v6512
  %v6514 = vpop.f32.mrf.mxu0
  %v6515 = vadd.f32 %v6273, %v6514
  %v6516 = vpop.f32.mrf.mxu0
  %v6517 = vpop.f32.mrf.mxu0
  %6518 = vdwg.mxu0
  %6519 = vmatprep.subr.bf16.mxu0 %v6445
  %6520 = vmatpush1.bf16.msra.mxu0 %v6444
  %6521 = vmatprep.subr.bf16.mxu0 %v6441
  %6522 = vmatpush1.bf16.msra.mxu0 %v6440
  %6523 = vmatprep.subr.bf16.mxu0 %v6437
  %6524 = vmatpush1.bf16.msra.mxu0 %v6436
  %6525 = vmatprep.subr.bf16.mxu0 %v6433
  %6526 = vmatpush1.bf16.msra.mxu0 %v6432
  %6527 = vmatprep.subr.bf16.mxu0 %v6429
  %6528 = vmatpush1.bf16.msra.mxu0 %v6428
  %6529 = vmatprep.subr.bf16.mxu0 %v6425
  %6530 = vmatpush1.bf16.msra.mxu0 %v6424
  %6531 = vmatprep.subr.bf16.mxu0 %v6421
  %6532 = vmatpush1.bf16.msra.mxu0 %v6420
  %6533 = vmatprep.subr.bf16.mxu0 %v6417
  %6534 = vmatpush1.bf16.msra.mxu0 %v6416
  %6535 = vmatprep.subr.bf16.mxu0 0
  %6536 = vmatpush2.bf16.msra.mxu0 0
  %6537 = vmatprep.subr.bf16.mxu0 0
  %6538 = vmatpush2.bf16.msra.mxu0 0
  %6539 = vmatprep.subr.bf16.mxu0 0
  %6540 = vmatpush2.bf16.msra.mxu0 0
  %6541 = vmatprep.subr.bf16.mxu0 0
  %6542 = vmatpush2.bf16.msra.mxu0 0
  %6543 = vmatprep.subr.bf16.mxu0 0
  %6544 = vmatpush2.bf16.msra.mxu0 0
  %6545 = vmatprep.subr.bf16.mxu0 0
  %6546 = vmatpush2.bf16.msra.mxu0 0
  %6547 = vmatprep.subr.bf16.mxu0 0
  %6548 = vmatpush2.bf16.msra.mxu0 0
  %6549 = vmatprep.subr.bf16.mxu0 0
  %6550 = vmatpush2.bf16.msra.mxu0 0
  %6551 = vmatprep.mubr.bf16.mxu0 0
  %6552 = vmatmul.mubr.bf16.gmra.mxu0 %v6009
  %v6553 = vpop.f32.mrf.mxu0
  %v6554 = vadd.f32 %v6312, %v6553
  %v6555 = vpop.f32.mrf.mxu0
  %v6556 = vadd.f32 %v6314, %v6555
  %v6557 = vpop.f32.mrf.mxu0
  %v6558 = vpop.f32.mrf.mxu0
  %6559 = vdwg.mxu0
  %v6560 = vld [vmem:[%s6] sm:$0xf]
  %v6562 = vlaneseq
  %v6563 = vshrl.u32 %v6562, 7
  %v6564 = vsub.s32 0, %v6563
  %v6565 = vrot.slane %v6560, %v6564
  %v6566 = vlaneseq
  %v6567 = vshrl.u32 %v6566, 7
  %v6568 = vsub.s32 1, %v6567
  %v6569 = vrot.slane %v6560, %v6568
  %v6570 = vlaneseq
  %v6571 = vshrl.u32 %v6570, 7
  %v6572 = vsub.s32 2, %v6571
  %v6573 = vrot.slane %v6560, %v6572
  %v6574 = vlaneseq
  %v6575 = vshrl.u32 %v6574, 7
  %v6576 = vsub.s32 3, %v6575
  %v6577 = vrot.slane %v6560, %v6576
  %v6582 = vadd.f32 %v6513, %v6565
  %v6583 = vadd.f32 %v6515, %v6569
  %v6584 = vadd.f32 %v6554, %v6573
  %v6585 = vadd.f32 %v6556, %v6577
  %v6586 = vld [vmem:[#allocation5] sm:$0x3]
  %v6587 = vxor.u32 %v6582, 2147483648
  %v6588 = vmul.f32 %v6587, 1.442695
  %v6589 = vpow.pop %v6588
  %v6590 = vadd.f32 %v6589, 1.0
  %v6591 = vrcp.pop %v6590
  %v6592 = vmul.f32 1.0, %v6591
  %v6593 = vxor.u32 %v6583, 2147483648
  %v6594 = vmul.f32 %v6593, 1.442695
  %v6595 = vpow.pop %v6594
  %v6596 = vadd.f32 %v6595, 1.0
  %v6597 = vrcp.pop %v6596
  %v6598 = vmul.f32 1.0, %v6597
  %v6599 = vtanh.pop %v6584
  %v6600 = vxor.u32 %v6585, 2147483648
  %v6601 = vmul.f32 %v6600, 1.442695
  %v6602 = vpow.pop %v6601
  %v6603 = vadd.f32 %v6602, 1.0
  %v6604 = vrcp.pop %v6603
  %v6605 = vmul.f32 1.0, %v6604
  %v6606 = vmul.f32 %v6598, %v6586
  %v6607 = vmul.f32 %v6592, %v6599
  %v6608 = vadd.f32 %v6606, %v6607
  %v6609 = vtanh.pop %v6608
  %v6610 = vmul.f32 %v6605, %v6609
  %6611 = vst [vmem:[#allocation4] sm:$0x3] %v6610
  %6612 = vst [vmem:[#allocation5] sm:$0x3] %v6608
  %v6613 = vld [vmem:[#allocation4] sm:$0x3]
  %s6614 = scalar_lea.vmem %s7, 12
  %6615 = vst [vmem:[%s6614] sm:$0x3] %v6613
  %s6616 = scalar_lea.vmem %s0, 48
  %v6617 = vld [vmem:[%s6616] sm:$0xff]
  %v6618 = vld [vmem:[#allocation2] sm:$0x3]
  %v6619 = vpack.c.bf16 %v6618, %v6618
  %v6620 = vld [vmem:[%s3] sm:$0xff]
  %v6621 = vld [vmem:[%s3 + $0x8] sm:$0xff]
  %v6622 = vld [vmem:[%s3 + $0x10] sm:$0xff]
  %v6623 = vld [vmem:[%s3 + $0x18] sm:$0xff]
  %v6624 = vld [vmem:[%s3 + $0x20] sm:$0xff]
  %v6625 = vld [vmem:[%s3 + $0x28] sm:$0xff]
  %v6626 = vld [vmem:[%s3 + $0x30] sm:$0xff]
  %v6627 = vld [vmem:[%s3 + $0x38] sm:$0xff]
  %v6628 = vld [vmem:[%s3 + $0x40] sm:$0xff]
  %v6629 = vld [vmem:[%s3 + $0x48] sm:$0xff]
  %v6630 = vld [vmem:[%s3 + $0x50] sm:$0xff]
  %v6631 = vld [vmem:[%s3 + $0x58] sm:$0xff]
  %v6632 = vld [vmem:[%s3 + $0x60] sm:$0xff]
  %v6633 = vld [vmem:[%s3 + $0x68] sm:$0xff]
  %v6634 = vld [vmem:[%s3 + $0x70] sm:$0xff]
  %v6635 = vld [vmem:[%s3 + $0x78] sm:$0xff]
  %v6636 = vld [vmem:[%s3 + $0x80] sm:$0xff]
  %v6637 = vld [vmem:[%s3 + $0x88] sm:$0xff]
  %v6638 = vld [vmem:[%s3 + $0x90] sm:$0xff]
  %v6639 = vld [vmem:[%s3 + $0x98] sm:$0xff]
  %v6640 = vld [vmem:[%s3 + $0xa0] sm:$0xff]
  %v6641 = vld [vmem:[%s3 + $0xa8] sm:$0xff]
  %v6642 = vld [vmem:[%s3 + $0xb0] sm:$0xff]
  %v6643 = vld [vmem:[%s3 + $0xb8] sm:$0xff]
  %v6644 = vld [vmem:[%s3 + $0xc0] sm:$0xff]
  %v6645 = vld [vmem:[%s3 + $0xc8] sm:$0xff]
  %v6646 = vld [vmem:[%s3 + $0xd0] sm:$0xff]
  %v6647 = vld [vmem:[%s3 + $0xd8] sm:$0xff]
  %v6648 = vld [vmem:[%s3 + $0xe0] sm:$0xff]
  %v6649 = vld [vmem:[%s3 + $0xe8] sm:$0xff]
  %v6650 = vld [vmem:[%s3 + $0xf0] sm:$0xff]
  %v6651 = vld [vmem:[%s3 + $0xf8] sm:$0xff]
  %v6684 = vunpack.c.l.b16 %v6620
  %v6685 = vunpack.c.h.b16 %v6620
  %v6686 = vunpack.c.l.b16 %v6621
  %v6687 = vunpack.c.h.b16 %v6621
  %v6688 = vunpack.c.l.b16 %v6622
  %v6689 = vunpack.c.h.b16 %v6622
  %v6690 = vunpack.c.l.b16 %v6623
  %v6691 = vunpack.c.h.b16 %v6623
  %v6692 = vunpack.c.l.b16 %v6624
  %v6693 = vunpack.c.h.b16 %v6624
  %v6694 = vunpack.c.l.b16 %v6625
  %v6695 = vunpack.c.h.b16 %v6625
  %v6696 = vunpack.c.l.b16 %v6626
  %v6697 = vunpack.c.h.b16 %v6626
  %v6698 = vunpack.c.l.b16 %v6627
  %v6699 = vunpack.c.h.b16 %v6627
  %v6700 = vunpack.c.l.b16 %v6628
  %v6701 = vunpack.c.h.b16 %v6628
  %v6702 = vunpack.c.l.b16 %v6629
  %v6703 = vunpack.c.h.b16 %v6629
  %v6704 = vunpack.c.l.b16 %v6630
  %v6705 = vunpack.c.h.b16 %v6630
  %v6706 = vunpack.c.l.b16 %v6631
  %v6707 = vunpack.c.h.b16 %v6631
  %v6708 = vunpack.c.l.b16 %v6632
  %v6709 = vunpack.c.h.b16 %v6632
  %v6710 = vunpack.c.l.b16 %v6633
  %v6711 = vunpack.c.h.b16 %v6633
  %v6712 = vunpack.c.l.b16 %v6634
  %v6713 = vunpack.c.h.b16 %v6634
  %v6714 = vunpack.c.l.b16 %v6635
  %v6715 = vunpack.c.h.b16 %v6635
  %v6716 = vunpack.c.l.b16 %v6636
  %v6717 = vunpack.c.h.b16 %v6636
  %v6718 = vunpack.c.l.b16 %v6637
  %v6719 = vunpack.c.h.b16 %v6637
  %v6720 = vunpack.c.l.b16 %v6638
  %v6721 = vunpack.c.h.b16 %v6638
  %v6722 = vunpack.c.l.b16 %v6639
  %v6723 = vunpack.c.h.b16 %v6639
  %v6724 = vunpack.c.l.b16 %v6640
  %v6725 = vunpack.c.h.b16 %v6640
  %v6726 = vunpack.c.l.b16 %v6641
  %v6727 = vunpack.c.h.b16 %v6641
  %v6728 = vunpack.c.l.b16 %v6642
  %v6729 = vunpack.c.h.b16 %v6642
  %v6730 = vunpack.c.l.b16 %v6643
  %v6731 = vunpack.c.h.b16 %v6643
  %v6732 = vunpack.c.l.b16 %v6644
  %v6733 = vunpack.c.h.b16 %v6644
  %v6734 = vunpack.c.l.b16 %v6645
  %v6735 = vunpack.c.h.b16 %v6645
  %v6736 = vunpack.c.l.b16 %v6646
  %v6737 = vunpack.c.h.b16 %v6646
  %v6738 = vunpack.c.l.b16 %v6647
  %v6739 = vunpack.c.h.b16 %v6647
  %v6740 = vunpack.c.l.b16 %v6648
  %v6741 = vunpack.c.h.b16 %v6648
  %v6742 = vunpack.c.l.b16 %v6649
  %v6743 = vunpack.c.h.b16 %v6649
  %v6744 = vunpack.c.l.b16 %v6650
  %v6745 = vunpack.c.h.b16 %v6650
  %v6746 = vunpack.c.l.b16 %v6651
  %v6747 = vunpack.c.h.b16 %v6651
  %v6748 = vpack.c.b16 %v6688, %v6684
  %v6749 = vpack.c.b16 %v6689, %v6685
  %v6750 = vpack.c.b16 %v6690, %v6686
  %v6751 = vpack.c.b16 %v6691, %v6687
  %v6752 = vpack.c.b16 %v6696, %v6692
  %v6753 = vpack.c.b16 %v6697, %v6693
  %v6754 = vpack.c.b16 %v6698, %v6694
  %v6755 = vpack.c.b16 %v6699, %v6695
  %v6756 = vpack.c.b16 %v6704, %v6700
  %v6757 = vpack.c.b16 %v6705, %v6701
  %v6758 = vpack.c.b16 %v6706, %v6702
  %v6759 = vpack.c.b16 %v6707, %v6703
  %v6760 = vpack.c.b16 %v6712, %v6708
  %v6761 = vpack.c.b16 %v6713, %v6709
  %v6762 = vpack.c.b16 %v6714, %v6710
  %v6763 = vpack.c.b16 %v6715, %v6711
  %v6764 = vpack.c.b16 %v6720, %v6716
  %v6765 = vpack.c.b16 %v6721, %v6717
  %v6766 = vpack.c.b16 %v6722, %v6718
  %v6767 = vpack.c.b16 %v6723, %v6719
  %v6768 = vpack.c.b16 %v6728, %v6724
  %v6769 = vpack.c.b16 %v6729, %v6725
  %v6770 = vpack.c.b16 %v6730, %v6726
  %v6771 = vpack.c.b16 %v6731, %v6727
  %v6772 = vpack.c.b16 %v6736, %v6732
  %v6773 = vpack.c.b16 %v6737, %v6733
  %v6774 = vpack.c.b16 %v6738, %v6734
  %v6775 = vpack.c.b16 %v6739, %v6735
  %v6776 = vpack.c.b16 %v6744, %v6740
  %v6777 = vpack.c.b16 %v6745, %v6741
  %v6778 = vpack.c.b16 %v6746, %v6742
  %v6779 = vpack.c.b16 %v6747, %v6743
  %6812 = vmatprep.subr.bf16.mxu0 %v6777
  %6813 = vmatpush1.bf16.msra.mxu0 %v6776
  %6814 = vmatprep.subr.bf16.mxu0 %v6773
  %6815 = vmatpush1.bf16.msra.mxu0 %v6772
  %6816 = vmatprep.subr.bf16.mxu0 %v6769
  %6817 = vmatpush1.bf16.msra.mxu0 %v6768
  %6818 = vmatprep.subr.bf16.mxu0 %v6765
  %6819 = vmatpush1.bf16.msra.mxu0 %v6764
  %6820 = vmatprep.subr.bf16.mxu0 %v6761
  %6821 = vmatpush1.bf16.msra.mxu0 %v6760
  %6822 = vmatprep.subr.bf16.mxu0 %v6757
  %6823 = vmatpush1.bf16.msra.mxu0 %v6756
  %6824 = vmatprep.subr.bf16.mxu0 %v6753
  %6825 = vmatpush1.bf16.msra.mxu0 %v6752
  %6826 = vmatprep.subr.bf16.mxu0 %v6749
  %6827 = vmatpush1.bf16.msra.mxu0 %v6748
  %6828 = vmatprep.subr.bf16.mxu0 0
  %6829 = vmatpush2.bf16.msra.mxu0 0
  %6830 = vmatprep.subr.bf16.mxu0 0
  %6831 = vmatpush2.bf16.msra.mxu0 0
  %6832 = vmatprep.subr.bf16.mxu0 0
  %6833 = vmatpush2.bf16.msra.mxu0 0
  %6834 = vmatprep.subr.bf16.mxu0 0
  %6835 = vmatpush2.bf16.msra.mxu0 0
  %6836 = vmatprep.subr.bf16.mxu0 0
  %6837 = vmatpush2.bf16.msra.mxu0 0
  %6838 = vmatprep.subr.bf16.mxu0 0
  %6839 = vmatpush2.bf16.msra.mxu0 0
  %6840 = vmatprep.subr.bf16.mxu0 0
  %6841 = vmatpush2.bf16.msra.mxu0 0
  %6842 = vmatprep.subr.bf16.mxu0 0
  %6843 = vmatpush2.bf16.msra.mxu0 0
  %6844 = vmatprep.mubr.bf16.mxu0 0
  %6845 = vmatmul.mubr.bf16.gmra.mxu0 %v6619
  %v6846 = vpop.f32.mrf.mxu0
  %v6847 = vadd.f32 0.0, %v6846
  %v6848 = vpop.f32.mrf.mxu0
  %v6849 = vadd.f32 0.0, %v6848
  %v6850 = vpop.f32.mrf.mxu0
  %v6851 = vpop.f32.mrf.mxu0
  %6852 = vdwg.mxu0
  %6853 = vmatprep.subr.bf16.mxu0 %v6779
  %6854 = vmatpush1.bf16.msra.mxu0 %v6778
  %6855 = vmatprep.subr.bf16.mxu0 %v6775
  %6856 = vmatpush1.bf16.msra.mxu0 %v6774
  %6857 = vmatprep.subr.bf16.mxu0 %v6771
  %6858 = vmatpush1.bf16.msra.mxu0 %v6770
  %6859 = vmatprep.subr.bf16.mxu0 %v6767
  %6860 = vmatpush1.bf16.msra.mxu0 %v6766
  %6861 = vmatprep.subr.bf16.mxu0 %v6763
  %6862 = vmatpush1.bf16.msra.mxu0 %v6762
  %6863 = vmatprep.subr.bf16.mxu0 %v6759
  %6864 = vmatpush1.bf16.msra.mxu0 %v6758
  %6865 = vmatprep.subr.bf16.mxu0 %v6755
  %6866 = vmatpush1.bf16.msra.mxu0 %v6754
  %6867 = vmatprep.subr.bf16.mxu0 %v6751
  %6868 = vmatpush1.bf16.msra.mxu0 %v6750
  %6869 = vmatprep.subr.bf16.mxu0 0
  %6870 = vmatpush2.bf16.msra.mxu0 0
  %6871 = vmatprep.subr.bf16.mxu0 0
  %6872 = vmatpush2.bf16.msra.mxu0 0
  %6873 = vmatprep.subr.bf16.mxu0 0
  %6874 = vmatpush2.bf16.msra.mxu0 0
  %6875 = vmatprep.subr.bf16.mxu0 0
  %6876 = vmatpush2.bf16.msra.mxu0 0
  %6877 = vmatprep.subr.bf16.mxu0 0
  %6878 = vmatpush2.bf16.msra.mxu0 0
  %6879 = vmatprep.subr.bf16.mxu0 0
  %6880 = vmatpush2.bf16.msra.mxu0 0
  %6881 = vmatprep.subr.bf16.mxu0 0
  %6882 = vmatpush2.bf16.msra.mxu0 0
  %6883 = vmatprep.subr.bf16.mxu0 0
  %6884 = vmatpush2.bf16.msra.mxu0 0
  %6885 = vmatprep.mubr.bf16.mxu0 0
  %6886 = vmatmul.mubr.bf16.gmra.mxu0 %v6619
  %v6887 = vpop.f32.mrf.mxu0
  %v6888 = vadd.f32 0.0, %v6887
  %v6889 = vpop.f32.mrf.mxu0
  %v6890 = vadd.f32 0.0, %v6889
  %v6891 = vpop.f32.mrf.mxu0
  %v6892 = vpop.f32.mrf.mxu0
  %6893 = vdwg.mxu0
  %v6898 = vcombine.low %v6847, %v6849
  %v6899 = vcombine.low %v6888, %v6890
  %v6901 = vunpack.c.l.s4 1983009808
  %v6902 = vunpack.c.0.s8 %v6901
  %v6903 = vlaneseq
  %v6904 = vshrl.u32 %v6903, 7
  %v6905 = vsub.s32 %v6902, %v6904
  %v6906 = vrot.slane %v6898, %v6905
  %v6908 = vunpack.c.l.s4 1983009808
  %v6909 = vunpack.c.0.s8 %v6908
  %v6910 = vlaneseq
  %v6911 = vshrl.u32 %v6910, 7
  %v6912 = vsub.s32 %v6909, %v6911
  %v6913 = vrot.slane %v6899, %v6912
  %v6914 = vcombine.low %v6906, %v6913
  %v6916 = vadd.f32 %v6617, %v6914
  %v6917 = vld [vmem:[#allocation6] sm:$0xff]
  %v6918 = vadd.f32 %v6916, %v6917
  %v6919 = vld [vmem:[#allocation3] sm:$0x3]
  %v6920 = vxor.u32 %v6918, 2147483648
  %v6921 = vmul.f32 %v6920, 1.442695
  %v6922 = vpow.pop %v6921
  %v6923 = vadd.f32 %v6922, 1.0
  %v6924 = vrcp.pop %v6923
  %v6925 = vmul.f32 1.0, %v6924
  %v6927 = vrot.slane %v6918, 2
  %v6929 = vxor.u32 %v6927, 2147483648
  %v6930 = vmul.f32 %v6929, 1.442695
  %v6931 = vpow.pop %v6930
  %v6932 = vadd.f32 %v6931, 1.0
  %v6933 = vrcp.pop %v6932
  %v6934 = vmul.f32 1.0, %v6933
  %v6935 = vrot.slane %v6918, 4
  %v6937 = vtanh.pop %v6935
  %v6938 = vrot.slane %v6918, 6
  %v6940 = vxor.u32 %v6938, 2147483648
  %v6941 = vmul.f32 %v6940, 1.442695
  %v6942 = vpow.pop %v6941
  %v6943 = vadd.f32 %v6942, 1.0
  %v6944 = vrcp.pop %v6943
  %v6945 = vmul.f32 1.0, %v6944
  %v6946 = vmul.f32 %v6934, %v6919
  %v6947 = vmul.f32 %v6925, %v6937
  %v6948 = vadd.f32 %v6946, %v6947
  %v6949 = vtanh.pop %v6948
  %v6950 = vmul.f32 %v6945, %v6949
  %6951 = vst [vmem:[#allocation2] sm:$0x3] %v6950
  %6952 = vst [vmem:[#allocation3] sm:$0x3] %v6948
  %v6953 = vld [vmem:[#allocation2] sm:$0x3]
  %v6954 = vpack.c.bf16 %v6953, %v6953
  %v6955 = vld [vmem:[%s4] sm:$0xff]
  %v6956 = vld [vmem:[%s4 + $0x8] sm:$0xff]
  %v6957 = vld [vmem:[%s4 + $0x10] sm:$0xff]
  %v6958 = vld [vmem:[%s4 + $0x18] sm:$0xff]
  %v6959 = vld [vmem:[%s4 + $0x20] sm:$0xff]
  %v6960 = vld [vmem:[%s4 + $0x28] sm:$0xff]
  %v6961 = vld [vmem:[%s4 + $0x30] sm:$0xff]
  %v6962 = vld [vmem:[%s4 + $0x38] sm:$0xff]
  %v6963 = vld [vmem:[%s4 + $0x40] sm:$0xff]
  %v6964 = vld [vmem:[%s4 + $0x48] sm:$0xff]
  %v6965 = vld [vmem:[%s4 + $0x50] sm:$0xff]
  %v6966 = vld [vmem:[%s4 + $0x58] sm:$0xff]
  %v6967 = vld [vmem:[%s4 + $0x60] sm:$0xff]
  %v6968 = vld [vmem:[%s4 + $0x68] sm:$0xff]
  %v6969 = vld [vmem:[%s4 + $0x70] sm:$0xff]
  %v6970 = vld [vmem:[%s4 + $0x78] sm:$0xff]
  %v6971 = vld [vmem:[%s4 + $0x80] sm:$0xff]
  %v6972 = vld [vmem:[%s4 + $0x88] sm:$0xff]
  %v6973 = vld [vmem:[%s4 + $0x90] sm:$0xff]
  %v6974 = vld [vmem:[%s4 + $0x98] sm:$0xff]
  %v6975 = vld [vmem:[%s4 + $0xa0] sm:$0xff]
  %v6976 = vld [vmem:[%s4 + $0xa8] sm:$0xff]
  %v6977 = vld [vmem:[%s4 + $0xb0] sm:$0xff]
  %v6978 = vld [vmem:[%s4 + $0xb8] sm:$0xff]
  %v6979 = vld [vmem:[%s4 + $0xc0] sm:$0xff]
  %v6980 = vld [vmem:[%s4 + $0xc8] sm:$0xff]
  %v6981 = vld [vmem:[%s4 + $0xd0] sm:$0xff]
  %v6982 = vld [vmem:[%s4 + $0xd8] sm:$0xff]
  %v6983 = vld [vmem:[%s4 + $0xe0] sm:$0xff]
  %v6984 = vld [vmem:[%s4 + $0xe8] sm:$0xff]
  %v6985 = vld [vmem:[%s4 + $0xf0] sm:$0xff]
  %v6986 = vld [vmem:[%s4 + $0xf8] sm:$0xff]
  %v6987 = vld [vmem:[#allocation4] sm:$0x3]
  %v6988 = vpack.c.bf16 %v6987, %v6987
  %v6989 = vld [vmem:[%s5] sm:$0xff]
  %v6990 = vld [vmem:[%s5 + $0x8] sm:$0xff]
  %v6991 = vld [vmem:[%s5 + $0x10] sm:$0xff]
  %v6992 = vld [vmem:[%s5 + $0x18] sm:$0xff]
  %v6993 = vld [vmem:[%s5 + $0x20] sm:$0xff]
  %v6994 = vld [vmem:[%s5 + $0x28] sm:$0xff]
  %v6995 = vld [vmem:[%s5 + $0x30] sm:$0xff]
  %v6996 = vld [vmem:[%s5 + $0x38] sm:$0xff]
  %v6997 = vld [vmem:[%s5 + $0x40] sm:$0xff]
  %v6998 = vld [vmem:[%s5 + $0x48] sm:$0xff]
  %v6999 = vld [vmem:[%s5 + $0x50] sm:$0xff]
  %v7000 = vld [vmem:[%s5 + $0x58] sm:$0xff]
  %v7001 = vld [vmem:[%s5 + $0x60] sm:$0xff]
  %v7002 = vld [vmem:[%s5 + $0x68] sm:$0xff]
  %v7003 = vld [vmem:[%s5 + $0x70] sm:$0xff]
  %v7004 = vld [vmem:[%s5 + $0x78] sm:$0xff]
  %v7005 = vld [vmem:[%s5 + $0x80] sm:$0xff]
  %v7006 = vld [vmem:[%s5 + $0x88] sm:$0xff]
  %v7007 = vld [vmem:[%s5 + $0x90] sm:$0xff]
  %v7008 = vld [vmem:[%s5 + $0x98] sm:$0xff]
  %v7009 = vld [vmem:[%s5 + $0xa0] sm:$0xff]
  %v7010 = vld [vmem:[%s5 + $0xa8] sm:$0xff]
  %v7011 = vld [vmem:[%s5 + $0xb0] sm:$0xff]
  %v7012 = vld [vmem:[%s5 + $0xb8] sm:$0xff]
  %v7013 = vld [vmem:[%s5 + $0xc0] sm:$0xff]
  %v7014 = vld [vmem:[%s5 + $0xc8] sm:$0xff]
  %v7015 = vld [vmem:[%s5 + $0xd0] sm:$0xff]
  %v7016 = vld [vmem:[%s5 + $0xd8] sm:$0xff]
  %v7017 = vld [vmem:[%s5 + $0xe0] sm:$0xff]
  %v7018 = vld [vmem:[%s5 + $0xe8] sm:$0xff]
  %v7019 = vld [vmem:[%s5 + $0xf0] sm:$0xff]
  %v7020 = vld [vmem:[%s5 + $0xf8] sm:$0xff]
  %v7053 = vunpack.c.l.b16 %v6989
  %v7054 = vunpack.c.h.b16 %v6989
  %v7055 = vunpack.c.l.b16 %v6990
  %v7056 = vunpack.c.h.b16 %v6990
  %v7057 = vunpack.c.l.b16 %v6991
  %v7058 = vunpack.c.h.b16 %v6991
  %v7059 = vunpack.c.l.b16 %v6992
  %v7060 = vunpack.c.h.b16 %v6992
  %v7061 = vunpack.c.l.b16 %v6993
  %v7062 = vunpack.c.h.b16 %v6993
  %v7063 = vunpack.c.l.b16 %v6994
  %v7064 = vunpack.c.h.b16 %v6994
  %v7065 = vunpack.c.l.b16 %v6995
  %v7066 = vunpack.c.h.b16 %v6995
  %v7067 = vunpack.c.l.b16 %v6996
  %v7068 = vunpack.c.h.b16 %v6996
  %v7069 = vunpack.c.l.b16 %v6997
  %v7070 = vunpack.c.h.b16 %v6997
  %v7071 = vunpack.c.l.b16 %v6998
  %v7072 = vunpack.c.h.b16 %v6998
  %v7073 = vunpack.c.l.b16 %v6999
  %v7074 = vunpack.c.h.b16 %v6999
  %v7075 = vunpack.c.l.b16 %v7000
  %v7076 = vunpack.c.h.b16 %v7000
  %v7077 = vunpack.c.l.b16 %v7001
  %v7078 = vunpack.c.h.b16 %v7001
  %v7079 = vunpack.c.l.b16 %v7002
  %v7080 = vunpack.c.h.b16 %v7002
  %v7081 = vunpack.c.l.b16 %v7003
  %v7082 = vunpack.c.h.b16 %v7003
  %v7083 = vunpack.c.l.b16 %v7004
  %v7084 = vunpack.c.h.b16 %v7004
  %v7085 = vunpack.c.l.b16 %v7005
  %v7086 = vunpack.c.h.b16 %v7005
  %v7087 = vunpack.c.l.b16 %v7006
  %v7088 = vunpack.c.h.b16 %v7006
  %v7089 = vunpack.c.l.b16 %v7007
  %v7090 = vunpack.c.h.b16 %v7007
  %v7091 = vunpack.c.l.b16 %v7008
  %v7092 = vunpack.c.h.b16 %v7008
  %v7093 = vunpack.c.l.b16 %v7009
  %v7094 = vunpack.c.h.b16 %v7009
  %v7095 = vunpack.c.l.b16 %v7010
  %v7096 = vunpack.c.h.b16 %v7010
  %v7097 = vunpack.c.l.b16 %v7011
  %v7098 = vunpack.c.h.b16 %v7011
  %v7099 = vunpack.c.l.b16 %v7012
  %v7100 = vunpack.c.h.b16 %v7012
  %v7101 = vunpack.c.l.b16 %v7013
  %v7102 = vunpack.c.h.b16 %v7013
  %v7103 = vunpack.c.l.b16 %v7014
  %v7104 = vunpack.c.h.b16 %v7014
  %v7105 = vunpack.c.l.b16 %v7015
  %v7106 = vunpack.c.h.b16 %v7015
  %v7107 = vunpack.c.l.b16 %v7016
  %v7108 = vunpack.c.h.b16 %v7016
  %v7109 = vunpack.c.l.b16 %v7017
  %v7110 = vunpack.c.h.b16 %v7017
  %v7111 = vunpack.c.l.b16 %v7018
  %v7112 = vunpack.c.h.b16 %v7018
  %v7113 = vunpack.c.l.b16 %v7019
  %v7114 = vunpack.c.h.b16 %v7019
  %v7115 = vunpack.c.l.b16 %v7020
  %v7116 = vunpack.c.h.b16 %v7020
  %v7117 = vpack.c.b16 %v7057, %v7053
  %v7118 = vpack.c.b16 %v7058, %v7054
  %v7119 = vpack.c.b16 %v7059, %v7055
  %v7120 = vpack.c.b16 %v7060, %v7056
  %v7121 = vpack.c.b16 %v7065, %v7061
  %v7122 = vpack.c.b16 %v7066, %v7062
  %v7123 = vpack.c.b16 %v7067, %v7063
  %v7124 = vpack.c.b16 %v7068, %v7064
  %v7125 = vpack.c.b16 %v7073, %v7069
  %v7126 = vpack.c.b16 %v7074, %v7070
  %v7127 = vpack.c.b16 %v7075, %v7071
  %v7128 = vpack.c.b16 %v7076, %v7072
  %v7129 = vpack.c.b16 %v7081, %v7077
  %v7130 = vpack.c.b16 %v7082, %v7078
  %v7131 = vpack.c.b16 %v7083, %v7079
  %v7132 = vpack.c.b16 %v7084, %v7080
  %v7133 = vpack.c.b16 %v7089, %v7085
  %v7134 = vpack.c.b16 %v7090, %v7086
  %v7135 = vpack.c.b16 %v7091, %v7087
  %v7136 = vpack.c.b16 %v7092, %v7088
  %v7137 = vpack.c.b16 %v7097, %v7093
  %v7138 = vpack.c.b16 %v7098, %v7094
  %v7139 = vpack.c.b16 %v7099, %v7095
  %v7140 = vpack.c.b16 %v7100, %v7096
  %v7141 = vpack.c.b16 %v7105, %v7101
  %v7142 = vpack.c.b16 %v7106, %v7102
  %v7143 = vpack.c.b16 %v7107, %v7103
  %v7144 = vpack.c.b16 %v7108, %v7104
  %v7145 = vpack.c.b16 %v7113, %v7109
  %v7146 = vpack.c.b16 %v7114, %v7110
  %v7147 = vpack.c.b16 %v7115, %v7111
  %v7148 = vpack.c.b16 %v7116, %v7112
  %7181 = vmatprep.subr.bf16.mxu0 %v7146
  %7182 = vmatpush1.bf16.msra.mxu0 %v7145
  %7183 = vmatprep.subr.bf16.mxu0 %v7142
  %7184 = vmatpush1.bf16.msra.mxu0 %v7141
  %7185 = vmatprep.subr.bf16.mxu0 %v7138
  %7186 = vmatpush1.bf16.msra.mxu0 %v7137
  %7187 = vmatprep.subr.bf16.mxu0 %v7134
  %7188 = vmatpush1.bf16.msra.mxu0 %v7133
  %7189 = vmatprep.subr.bf16.mxu0 %v7130
  %7190 = vmatpush1.bf16.msra.mxu0 %v7129
  %7191 = vmatprep.subr.bf16.mxu0 %v7126
  %7192 = vmatpush1.bf16.msra.mxu0 %v7125
  %7193 = vmatprep.subr.bf16.mxu0 %v7122
  %7194 = vmatpush1.bf16.msra.mxu0 %v7121
  %7195 = vmatprep.subr.bf16.mxu0 %v7118
  %7196 = vmatpush1.bf16.msra.mxu0 %v7117
  %7197 = vmatprep.subr.bf16.mxu0 0
  %7198 = vmatpush2.bf16.msra.mxu0 0
  %7199 = vmatprep.subr.bf16.mxu0 0
  %7200 = vmatpush2.bf16.msra.mxu0 0
  %7201 = vmatprep.subr.bf16.mxu0 0
  %7202 = vmatpush2.bf16.msra.mxu0 0
  %7203 = vmatprep.subr.bf16.mxu0 0
  %7204 = vmatpush2.bf16.msra.mxu0 0
  %7205 = vmatprep.subr.bf16.mxu0 0
  %7206 = vmatpush2.bf16.msra.mxu0 0
  %7207 = vmatprep.subr.bf16.mxu0 0
  %7208 = vmatpush2.bf16.msra.mxu0 0
  %7209 = vmatprep.subr.bf16.mxu0 0
  %7210 = vmatpush2.bf16.msra.mxu0 0
  %7211 = vmatprep.subr.bf16.mxu0 0
  %7212 = vmatpush2.bf16.msra.mxu0 0
  %7213 = vmatprep.mubr.bf16.mxu0 0
  %7214 = vmatmul.mubr.bf16.gmra.mxu0 %v6988
  %v7215 = vpop.f32.mrf.mxu0
  %v7216 = vadd.f32 0.0, %v7215
  %v7217 = vpop.f32.mrf.mxu0
  %v7218 = vadd.f32 0.0, %v7217
  %v7219 = vpop.f32.mrf.mxu0
  %v7220 = vpop.f32.mrf.mxu0
  %7221 = vdwg.mxu0
  %7222 = vmatprep.subr.bf16.mxu0 %v7148
  %7223 = vmatpush1.bf16.msra.mxu0 %v7147
  %7224 = vmatprep.subr.bf16.mxu0 %v7144
  %7225 = vmatpush1.bf16.msra.mxu0 %v7143
  %7226 = vmatprep.subr.bf16.mxu0 %v7140
  %7227 = vmatpush1.bf16.msra.mxu0 %v7139
  %7228 = vmatprep.subr.bf16.mxu0 %v7136
  %7229 = vmatpush1.bf16.msra.mxu0 %v7135
  %7230 = vmatprep.subr.bf16.mxu0 %v7132
  %7231 = vmatpush1.bf16.msra.mxu0 %v7131
  %7232 = vmatprep.subr.bf16.mxu0 %v7128
  %7233 = vmatpush1.bf16.msra.mxu0 %v7127
  %7234 = vmatprep.subr.bf16.mxu0 %v7124
  %7235 = vmatpush1.bf16.msra.mxu0 %v7123
  %7236 = vmatprep.subr.bf16.mxu0 %v7120
  %7237 = vmatpush1.bf16.msra.mxu0 %v7119
  %7238 = vmatprep.subr.bf16.mxu0 0
  %7239 = vmatpush2.bf16.msra.mxu0 0
  %7240 = vmatprep.subr.bf16.mxu0 0
  %7241 = vmatpush2.bf16.msra.mxu0 0
  %7242 = vmatprep.subr.bf16.mxu0 0
  %7243 = vmatpush2.bf16.msra.mxu0 0
  %7244 = vmatprep.subr.bf16.mxu0 0
  %7245 = vmatpush2.bf16.msra.mxu0 0
  %7246 = vmatprep.subr.bf16.mxu0 0
  %7247 = vmatpush2.bf16.msra.mxu0 0
  %7248 = vmatprep.subr.bf16.mxu0 0
  %7249 = vmatpush2.bf16.msra.mxu0 0
  %7250 = vmatprep.subr.bf16.mxu0 0
  %7251 = vmatpush2.bf16.msra.mxu0 0
  %7252 = vmatprep.subr.bf16.mxu0 0
  %7253 = vmatpush2.bf16.msra.mxu0 0
  %7254 = vmatprep.mubr.bf16.mxu0 0
  %7255 = vmatmul.mubr.bf16.gmra.mxu0 %v6988
  %v7256 = vpop.f32.mrf.mxu0
  %v7257 = vadd.f32 0.0, %v7256
  %v7258 = vpop.f32.mrf.mxu0
  %v7259 = vadd.f32 0.0, %v7258
  %v7260 = vpop.f32.mrf.mxu0
  %v7261 = vpop.f32.mrf.mxu0
  %7262 = vdwg.mxu0
  %v7295 = vunpack.c.l.b16 %v6955
  %v7296 = vunpack.c.h.b16 %v6955
  %v7297 = vunpack.c.l.b16 %v6956
  %v7298 = vunpack.c.h.b16 %v6956
  %v7299 = vunpack.c.l.b16 %v6957
  %v7300 = vunpack.c.h.b16 %v6957
  %v7301 = vunpack.c.l.b16 %v6958
  %v7302 = vunpack.c.h.b16 %v6958
  %v7303 = vunpack.c.l.b16 %v6959
  %v7304 = vunpack.c.h.b16 %v6959
  %v7305 = vunpack.c.l.b16 %v6960
  %v7306 = vunpack.c.h.b16 %v6960
  %v7307 = vunpack.c.l.b16 %v6961
  %v7308 = vunpack.c.h.b16 %v6961
  %v7309 = vunpack.c.l.b16 %v6962
  %v7310 = vunpack.c.h.b16 %v6962
  %v7311 = vunpack.c.l.b16 %v6963
  %v7312 = vunpack.c.h.b16 %v6963
  %v7313 = vunpack.c.l.b16 %v6964
  %v7314 = vunpack.c.h.b16 %v6964
  %v7315 = vunpack.c.l.b16 %v6965
  %v7316 = vunpack.c.h.b16 %v6965
  %v7317 = vunpack.c.l.b16 %v6966
  %v7318 = vunpack.c.h.b16 %v6966
  %v7319 = vunpack.c.l.b16 %v6967
  %v7320 = vunpack.c.h.b16 %v6967
  %v7321 = vunpack.c.l.b16 %v6968
  %v7322 = vunpack.c.h.b16 %v6968
  %v7323 = vunpack.c.l.b16 %v6969
  %v7324 = vunpack.c.h.b16 %v6969
  %v7325 = vunpack.c.l.b16 %v6970
  %v7326 = vunpack.c.h.b16 %v6970
  %v7327 = vunpack.c.l.b16 %v6971
  %v7328 = vunpack.c.h.b16 %v6971
  %v7329 = vunpack.c.l.b16 %v6972
  %v7330 = vunpack.c.h.b16 %v6972
  %v7331 = vunpack.c.l.b16 %v6973
  %v7332 = vunpack.c.h.b16 %v6973
  %v7333 = vunpack.c.l.b16 %v6974
  %v7334 = vunpack.c.h.b16 %v6974
  %v7335 = vunpack.c.l.b16 %v6975
  %v7336 = vunpack.c.h.b16 %v6975
  %v7337 = vunpack.c.l.b16 %v6976
  %v7338 = vunpack.c.h.b16 %v6976
  %v7339 = vunpack.c.l.b16 %v6977
  %v7340 = vunpack.c.h.b16 %v6977
  %v7341 = vunpack.c.l.b16 %v6978
  %v7342 = vunpack.c.h.b16 %v6978
  %v7343 = vunpack.c.l.b16 %v6979
  %v7344 = vunpack.c.h.b16 %v6979
  %v7345 = vunpack.c.l.b16 %v6980
  %v7346 = vunpack.c.h.b16 %v6980
  %v7347 = vunpack.c.l.b16 %v6981
  %v7348 = vunpack.c.h.b16 %v6981
  %v7349 = vunpack.c.l.b16 %v6982
  %v7350 = vunpack.c.h.b16 %v6982
  %v7351 = vunpack.c.l.b16 %v6983
  %v7352 = vunpack.c.h.b16 %v6983
  %v7353 = vunpack.c.l.b16 %v6984
  %v7354 = vunpack.c.h.b16 %v6984
  %v7355 = vunpack.c.l.b16 %v6985
  %v7356 = vunpack.c.h.b16 %v6985
  %v7357 = vunpack.c.l.b16 %v6986
  %v7358 = vunpack.c.h.b16 %v6986
  %v7359 = vpack.c.b16 %v7299, %v7295
  %v7360 = vpack.c.b16 %v7300, %v7296
  %v7361 = vpack.c.b16 %v7301, %v7297
  %v7362 = vpack.c.b16 %v7302, %v7298
  %v7363 = vpack.c.b16 %v7307, %v7303
  %v7364 = vpack.c.b16 %v7308, %v7304
  %v7365 = vpack.c.b16 %v7309, %v7305
  %v7366 = vpack.c.b16 %v7310, %v7306
  %v7367 = vpack.c.b16 %v7315, %v7311
  %v7368 = vpack.c.b16 %v7316, %v7312
  %v7369 = vpack.c.b16 %v7317, %v7313
  %v7370 = vpack.c.b16 %v7318, %v7314
  %v7371 = vpack.c.b16 %v7323, %v7319
  %v7372 = vpack.c.b16 %v7324, %v7320
  %v7373 = vpack.c.b16 %v7325, %v7321
  %v7374 = vpack.c.b16 %v7326, %v7322
  %v7375 = vpack.c.b16 %v7331, %v7327
  %v7376 = vpack.c.b16 %v7332, %v7328
  %v7377 = vpack.c.b16 %v7333, %v7329
  %v7378 = vpack.c.b16 %v7334, %v7330
  %v7379 = vpack.c.b16 %v7339, %v7335
  %v7380 = vpack.c.b16 %v7340, %v7336
  %v7381 = vpack.c.b16 %v7341, %v7337
  %v7382 = vpack.c.b16 %v7342, %v7338
  %v7383 = vpack.c.b16 %v7347, %v7343
  %v7384 = vpack.c.b16 %v7348, %v7344
  %v7385 = vpack.c.b16 %v7349, %v7345
  %v7386 = vpack.c.b16 %v7350, %v7346
  %v7387 = vpack.c.b16 %v7355, %v7351
  %v7388 = vpack.c.b16 %v7356, %v7352
  %v7389 = vpack.c.b16 %v7357, %v7353
  %v7390 = vpack.c.b16 %v7358, %v7354
  %7423 = vmatprep.subr.bf16.mxu0 %v7388
  %7424 = vmatpush1.bf16.msra.mxu0 %v7387
  %7425 = vmatprep.subr.bf16.mxu0 %v7384
  %7426 = vmatpush1.bf16.msra.mxu0 %v7383
  %7427 = vmatprep.subr.bf16.mxu0 %v7380
  %7428 = vmatpush1.bf16.msra.mxu0 %v7379
  %7429 = vmatprep.subr.bf16.mxu0 %v7376
  %7430 = vmatpush1.bf16.msra.mxu0 %v7375
  %7431 = vmatprep.subr.bf16.mxu0 %v7372
  %7432 = vmatpush1.bf16.msra.mxu0 %v7371
  %7433 = vmatprep.subr.bf16.mxu0 %v7368
  %7434 = vmatpush1.bf16.msra.mxu0 %v7367
  %7435 = vmatprep.subr.bf16.mxu0 %v7364
  %7436 = vmatpush1.bf16.msra.mxu0 %v7363
  %7437 = vmatprep.subr.bf16.mxu0 %v7360
  %7438 = vmatpush1.bf16.msra.mxu0 %v7359
  %7439 = vmatprep.subr.bf16.mxu0 0
  %7440 = vmatpush2.bf16.msra.mxu0 0
  %7441 = vmatprep.subr.bf16.mxu0 0
  %7442 = vmatpush2.bf16.msra.mxu0 0
  %7443 = vmatprep.subr.bf16.mxu0 0
  %7444 = vmatpush2.bf16.msra.mxu0 0
  %7445 = vmatprep.subr.bf16.mxu0 0
  %7446 = vmatpush2.bf16.msra.mxu0 0
  %7447 = vmatprep.subr.bf16.mxu0 0
  %7448 = vmatpush2.bf16.msra.mxu0 0
  %7449 = vmatprep.subr.bf16.mxu0 0
  %7450 = vmatpush2.bf16.msra.mxu0 0
  %7451 = vmatprep.subr.bf16.mxu0 0
  %7452 = vmatpush2.bf16.msra.mxu0 0
  %7453 = vmatprep.subr.bf16.mxu0 0
  %7454 = vmatpush2.bf16.msra.mxu0 0
  %7455 = vmatprep.mubr.bf16.mxu0 0
  %7456 = vmatmul.mubr.bf16.gmra.mxu0 %v6954
  %v7457 = vpop.f32.mrf.mxu0
  %v7458 = vadd.f32 %v7216, %v7457
  %v7459 = vpop.f32.mrf.mxu0
  %v7460 = vadd.f32 %v7218, %v7459
  %v7461 = vpop.f32.mrf.mxu0
  %v7462 = vpop.f32.mrf.mxu0
  %7463 = vdwg.mxu0
  %7464 = vmatprep.subr.bf16.mxu0 %v7390
  %7465 = vmatpush1.bf16.msra.mxu0 %v7389
  %7466 = vmatprep.subr.bf16.mxu0 %v7386
  %7467 = vmatpush1.bf16.msra.mxu0 %v7385
  %7468 = vmatprep.subr.bf16.mxu0 %v7382
  %7469 = vmatpush1.bf16.msra.mxu0 %v7381
  %7470 = vmatprep.subr.bf16.mxu0 %v7378
  %7471 = vmatpush1.bf16.msra.mxu0 %v7377
  %7472 = vmatprep.subr.bf16.mxu0 %v7374
  %7473 = vmatpush1.bf16.msra.mxu0 %v7373
  %7474 = vmatprep.subr.bf16.mxu0 %v7370
  %7475 = vmatpush1.bf16.msra.mxu0 %v7369
  %7476 = vmatprep.subr.bf16.mxu0 %v7366
  %7477 = vmatpush1.bf16.msra.mxu0 %v7365
  %7478 = vmatprep.subr.bf16.mxu0 %v7362
  %7479 = vmatpush1.bf16.msra.mxu0 %v7361
  %7480 = vmatprep.subr.bf16.mxu0 0
  %7481 = vmatpush2.bf16.msra.mxu0 0
  %7482 = vmatprep.subr.bf16.mxu0 0
  %7483 = vmatpush2.bf16.msra.mxu0 0
  %7484 = vmatprep.subr.bf16.mxu0 0
  %7485 = vmatpush2.bf16.msra.mxu0 0
  %7486 = vmatprep.subr.bf16.mxu0 0
  %7487 = vmatpush2.bf16.msra.mxu0 0
  %7488 = vmatprep.subr.bf16.mxu0 0
  %7489 = vmatpush2.bf16.msra.mxu0 0
  %7490 = vmatprep.subr.bf16.mxu0 0
  %7491 = vmatpush2.bf16.msra.mxu0 0
  %7492 = vmatprep.subr.bf16.mxu0 0
  %7493 = vmatpush2.bf16.msra.mxu0 0
  %7494 = vmatprep.subr.bf16.mxu0 0
  %7495 = vmatpush2.bf16.msra.mxu0 0
  %7496 = vmatprep.mubr.bf16.mxu0 0
  %7497 = vmatmul.mubr.bf16.gmra.mxu0 %v6954
  %v7498 = vpop.f32.mrf.mxu0
  %v7499 = vadd.f32 %v7257, %v7498
  %v7500 = vpop.f32.mrf.mxu0
  %v7501 = vadd.f32 %v7259, %v7500
  %v7502 = vpop.f32.mrf.mxu0
  %v7503 = vpop.f32.mrf.mxu0
  %7504 = vdwg.mxu0
  %v7505 = vld [vmem:[%s6] sm:$0xf]
  %v7507 = vlaneseq
  %v7508 = vshrl.u32 %v7507, 7
  %v7509 = vsub.s32 0, %v7508
  %v7510 = vrot.slane %v7505, %v7509
  %v7511 = vlaneseq
  %v7512 = vshrl.u32 %v7511, 7
  %v7513 = vsub.s32 1, %v7512
  %v7514 = vrot.slane %v7505, %v7513
  %v7515 = vlaneseq
  %v7516 = vshrl.u32 %v7515, 7
  %v7517 = vsub.s32 2, %v7516
  %v7518 = vrot.slane %v7505, %v7517
  %v7519 = vlaneseq
  %v7520 = vshrl.u32 %v7519, 7
  %v7521 = vsub.s32 3, %v7520
  %v7522 = vrot.slane %v7505, %v7521
  %v7527 = vadd.f32 %v7458, %v7510
  %v7528 = vadd.f32 %v7460, %v7514
  %v7529 = vadd.f32 %v7499, %v7518
  %v7530 = vadd.f32 %v7501, %v7522
  %v7531 = vld [vmem:[#allocation5] sm:$0x3]
  %v7532 = vxor.u32 %v7527, 2147483648
  %v7533 = vmul.f32 %v7532, 1.442695
  %v7534 = vpow.pop %v7533
  %v7535 = vadd.f32 %v7534, 1.0
  %v7536 = vrcp.pop %v7535
  %v7537 = vmul.f32 1.0, %v7536
  %v7538 = vxor.u32 %v7528, 2147483648
  %v7539 = vmul.f32 %v7538, 1.442695
  %v7540 = vpow.pop %v7539
  %v7541 = vadd.f32 %v7540, 1.0
  %v7542 = vrcp.pop %v7541
  %v7543 = vmul.f32 1.0, %v7542
  %v7544 = vtanh.pop %v7529
  %v7545 = vxor.u32 %v7530, 2147483648
  %v7546 = vmul.f32 %v7545, 1.442695
  %v7547 = vpow.pop %v7546
  %v7548 = vadd.f32 %v7547, 1.0
  %v7549 = vrcp.pop %v7548
  %v7550 = vmul.f32 1.0, %v7549
  %v7551 = vmul.f32 %v7543, %v7531
  %v7552 = vmul.f32 %v7537, %v7544
  %v7553 = vadd.f32 %v7551, %v7552
  %v7554 = vtanh.pop %v7553
  %v7555 = vmul.f32 %v7550, %v7554
  %7556 = vst [vmem:[#allocation4] sm:$0x3] %v7555
  %7557 = vst [vmem:[#allocation5] sm:$0x3] %v7553
  %v7558 = vld [vmem:[#allocation4] sm:$0x3]
  %s7559 = scalar_lea.vmem %s7, 14
  %7560 = vst [vmem:[%s7559] sm:$0x3] %v7558
  %s7561 = scalar_lea.vmem %s0, 56
  %v7562 = vld [vmem:[%s7561] sm:$0xff]
  %v7563 = vld [vmem:[#allocation2] sm:$0x3]
  %v7564 = vpack.c.bf16 %v7563, %v7563
  %v7565 = vld [vmem:[%s3] sm:$0xff]
  %v7566 = vld [vmem:[%s3 + $0x8] sm:$0xff]
  %v7567 = vld [vmem:[%s3 + $0x10] sm:$0xff]
  %v7568 = vld [vmem:[%s3 + $0x18] sm:$0xff]
  %v7569 = vld [vmem:[%s3 + $0x20] sm:$0xff]
  %v7570 = vld [vmem:[%s3 + $0x28] sm:$0xff]
  %v7571 = vld [vmem:[%s3 + $0x30] sm:$0xff]
  %v7572 = vld [vmem:[%s3 + $0x38] sm:$0xff]
  %v7573 = vld [vmem:[%s3 + $0x40] sm:$0xff]
  %v7574 = vld [vmem:[%s3 + $0x48] sm:$0xff]
  %v7575 = vld [vmem:[%s3 + $0x50] sm:$0xff]
  %v7576 = vld [vmem:[%s3 + $0x58] sm:$0xff]
  %v7577 = vld [vmem:[%s3 + $0x60] sm:$0xff]
  %v7578 = vld [vmem:[%s3 + $0x68] sm:$0xff]
  %v7579 = vld [vmem:[%s3 + $0x70] sm:$0xff]
  %v7580 = vld [vmem:[%s3 + $0x78] sm:$0xff]
  %v7581 = vld [vmem:[%s3 + $0x80] sm:$0xff]
  %v7582 = vld [vmem:[%s3 + $0x88] sm:$0xff]
  %v7583 = vld [vmem:[%s3 + $0x90] sm:$0xff]
  %v7584 = vld [vmem:[%s3 + $0x98] sm:$0xff]
  %v7585 = vld [vmem:[%s3 + $0xa0] sm:$0xff]
  %v7586 = vld [vmem:[%s3 + $0xa8] sm:$0xff]
  %v7587 = vld [vmem:[%s3 + $0xb0] sm:$0xff]
  %v7588 = vld [vmem:[%s3 + $0xb8] sm:$0xff]
  %v7589 = vld [vmem:[%s3 + $0xc0] sm:$0xff]
  %v7590 = vld [vmem:[%s3 + $0xc8] sm:$0xff]
  %v7591 = vld [vmem:[%s3 + $0xd0] sm:$0xff]
  %v7592 = vld [vmem:[%s3 + $0xd8] sm:$0xff]
  %v7593 = vld [vmem:[%s3 + $0xe0] sm:$0xff]
  %v7594 = vld [vmem:[%s3 + $0xe8] sm:$0xff]
  %v7595 = vld [vmem:[%s3 + $0xf0] sm:$0xff]
  %v7596 = vld [vmem:[%s3 + $0xf8] sm:$0xff]
  %v7629 = vunpack.c.l.b16 %v7565
  %v7630 = vunpack.c.h.b16 %v7565
  %v7631 = vunpack.c.l.b16 %v7566
  %v7632 = vunpack.c.h.b16 %v7566
  %v7633 = vunpack.c.l.b16 %v7567
  %v7634 = vunpack.c.h.b16 %v7567
  %v7635 = vunpack.c.l.b16 %v7568
  %v7636 = vunpack.c.h.b16 %v7568
  %v7637 = vunpack.c.l.b16 %v7569
  %v7638 = vunpack.c.h.b16 %v7569
  %v7639 = vunpack.c.l.b16 %v7570
  %v7640 = vunpack.c.h.b16 %v7570
  %v7641 = vunpack.c.l.b16 %v7571
  %v7642 = vunpack.c.h.b16 %v7571
  %v7643 = vunpack.c.l.b16 %v7572
  %v7644 = vunpack.c.h.b16 %v7572
  %v7645 = vunpack.c.l.b16 %v7573
  %v7646 = vunpack.c.h.b16 %v7573
  %v7647 = vunpack.c.l.b16 %v7574
  %v7648 = vunpack.c.h.b16 %v7574
  %v7649 = vunpack.c.l.b16 %v7575
  %v7650 = vunpack.c.h.b16 %v7575
  %v7651 = vunpack.c.l.b16 %v7576
  %v7652 = vunpack.c.h.b16 %v7576
  %v7653 = vunpack.c.l.b16 %v7577
  %v7654 = vunpack.c.h.b16 %v7577
  %v7655 = vunpack.c.l.b16 %v7578
  %v7656 = vunpack.c.h.b16 %v7578
  %v7657 = vunpack.c.l.b16 %v7579
  %v7658 = vunpack.c.h.b16 %v7579
  %v7659 = vunpack.c.l.b16 %v7580
  %v7660 = vunpack.c.h.b16 %v7580
  %v7661 = vunpack.c.l.b16 %v7581
  %v7662 = vunpack.c.h.b16 %v7581
  %v7663 = vunpack.c.l.b16 %v7582
  %v7664 = vunpack.c.h.b16 %v7582
  %v7665 = vunpack.c.l.b16 %v7583
  %v7666 = vunpack.c.h.b16 %v7583
  %v7667 = vunpack.c.l.b16 %v7584
  %v7668 = vunpack.c.h.b16 %v7584
  %v7669 = vunpack.c.l.b16 %v7585
  %v7670 = vunpack.c.h.b16 %v7585
  %v7671 = vunpack.c.l.b16 %v7586
  %v7672 = vunpack.c.h.b16 %v7586
  %v7673 = vunpack.c.l.b16 %v7587
  %v7674 = vunpack.c.h.b16 %v7587
  %v7675 = vunpack.c.l.b16 %v7588
  %v7676 = vunpack.c.h.b16 %v7588
  %v7677 = vunpack.c.l.b16 %v7589
  %v7678 = vunpack.c.h.b16 %v7589
  %v7679 = vunpack.c.l.b16 %v7590
  %v7680 = vunpack.c.h.b16 %v7590
  %v7681 = vunpack.c.l.b16 %v7591
  %v7682 = vunpack.c.h.b16 %v7591
  %v7683 = vunpack.c.l.b16 %v7592
  %v7684 = vunpack.c.h.b16 %v7592
  %v7685 = vunpack.c.l.b16 %v7593
  %v7686 = vunpack.c.h.b16 %v7593
  %v7687 = vunpack.c.l.b16 %v7594
  %v7688 = vunpack.c.h.b16 %v7594
  %v7689 = vunpack.c.l.b16 %v7595
  %v7690 = vunpack.c.h.b16 %v7595
  %v7691 = vunpack.c.l.b16 %v7596
  %v7692 = vunpack.c.h.b16 %v7596
  %v7693 = vpack.c.b16 %v7633, %v7629
  %v7694 = vpack.c.b16 %v7634, %v7630
  %v7695 = vpack.c.b16 %v7635, %v7631
  %v7696 = vpack.c.b16 %v7636, %v7632
  %v7697 = vpack.c.b16 %v7641, %v7637
  %v7698 = vpack.c.b16 %v7642, %v7638
  %v7699 = vpack.c.b16 %v7643, %v7639
  %v7700 = vpack.c.b16 %v7644, %v7640
  %v7701 = vpack.c.b16 %v7649, %v7645
  %v7702 = vpack.c.b16 %v7650, %v7646
  %v7703 = vpack.c.b16 %v7651, %v7647
  %v7704 = vpack.c.b16 %v7652, %v7648
  %v7705 = vpack.c.b16 %v7657, %v7653
  %v7706 = vpack.c.b16 %v7658, %v7654
  %v7707 = vpack.c.b16 %v7659, %v7655
  %v7708 = vpack.c.b16 %v7660, %v7656
  %v7709 = vpack.c.b16 %v7665, %v7661
  %v7710 = vpack.c.b16 %v7666, %v7662
  %v7711 = vpack.c.b16 %v7667, %v7663
  %v7712 = vpack.c.b16 %v7668, %v7664
  %v7713 = vpack.c.b16 %v7673, %v7669
  %v7714 = vpack.c.b16 %v7674, %v7670
  %v7715 = vpack.c.b16 %v7675, %v7671
  %v7716 = vpack.c.b16 %v7676, %v7672
  %v7717 = vpack.c.b16 %v7681, %v7677
  %v7718 = vpack.c.b16 %v7682, %v7678
  %v7719 = vpack.c.b16 %v7683, %v7679
  %v7720 = vpack.c.b16 %v7684, %v7680
  %v7721 = vpack.c.b16 %v7689, %v7685
  %v7722 = vpack.c.b16 %v7690, %v7686
  %v7723 = vpack.c.b16 %v7691, %v7687
  %v7724 = vpack.c.b16 %v7692, %v7688
  %7757 = vmatprep.subr.bf16.mxu0 %v7722
  %7758 = vmatpush1.bf16.msra.mxu0 %v7721
  %7759 = vmatprep.subr.bf16.mxu0 %v7718
  %7760 = vmatpush1.bf16.msra.mxu0 %v7717
  %7761 = vmatprep.subr.bf16.mxu0 %v7714
  %7762 = vmatpush1.bf16.msra.mxu0 %v7713
  %7763 = vmatprep.subr.bf16.mxu0 %v7710
  %7764 = vmatpush1.bf16.msra.mxu0 %v7709
  %7765 = vmatprep.subr.bf16.mxu0 %v7706
  %7766 = vmatpush1.bf16.msra.mxu0 %v7705
  %7767 = vmatprep.subr.bf16.mxu0 %v7702
  %7768 = vmatpush1.bf16.msra.mxu0 %v7701
  %7769 = vmatprep.subr.bf16.mxu0 %v7698
  %7770 = vmatpush1.bf16.msra.mxu0 %v7697
  %7771 = vmatprep.subr.bf16.mxu0 %v7694
  %7772 = vmatpush1.bf16.msra.mxu0 %v7693
  %7773 = vmatprep.subr.bf16.mxu0 0
  %7774 = vmatpush2.bf16.msra.mxu0 0
  %7775 = vmatprep.subr.bf16.mxu0 0
  %7776 = vmatpush2.bf16.msra.mxu0 0
  %7777 = vmatprep.subr.bf16.mxu0 0
  %7778 = vmatpush2.bf16.msra.mxu0 0
  %7779 = vmatprep.subr.bf16.mxu0 0
  %7780 = vmatpush2.bf16.msra.mxu0 0
  %7781 = vmatprep.subr.bf16.mxu0 0
  %7782 = vmatpush2.bf16.msra.mxu0 0
  %7783 = vmatprep.subr.bf16.mxu0 0
  %7784 = vmatpush2.bf16.msra.mxu0 0
  %7785 = vmatprep.subr.bf16.mxu0 0
  %7786 = vmatpush2.bf16.msra.mxu0 0
  %7787 = vmatprep.subr.bf16.mxu0 0
  %7788 = vmatpush2.bf16.msra.mxu0 0
  %7789 = vmatprep.mubr.bf16.mxu0 0
  %7790 = vmatmul.mubr.bf16.gmra.mxu0 %v7564
  %v7791 = vpop.f32.mrf.mxu0
  %v7792 = vadd.f32 0.0, %v7791
  %v7793 = vpop.f32.mrf.mxu0
  %v7794 = vadd.f32 0.0, %v7793
  %v7795 = vpop.f32.mrf.mxu0
  %v7796 = vpop.f32.mrf.mxu0
  %7797 = vdwg.mxu0
  %7798 = vmatprep.subr.bf16.mxu0 %v7724
  %7799 = vmatpush1.bf16.msra.mxu0 %v7723
  %7800 = vmatprep.subr.bf16.mxu0 %v7720
  %7801 = vmatpush1.bf16.msra.mxu0 %v7719
  %7802 = vmatprep.subr.bf16.mxu0 %v7716
  %7803 = vmatpush1.bf16.msra.mxu0 %v7715
  %7804 = vmatprep.subr.bf16.mxu0 %v7712
  %7805 = vmatpush1.bf16.msra.mxu0 %v7711
  %7806 = vmatprep.subr.bf16.mxu0 %v7708
  %7807 = vmatpush1.bf16.msra.mxu0 %v7707
  %7808 = vmatprep.subr.bf16.mxu0 %v7704
  %7809 = vmatpush1.bf16.msra.mxu0 %v7703
  %7810 = vmatprep.subr.bf16.mxu0 %v7700
  %7811 = vmatpush1.bf16.msra.mxu0 %v7699
  %7812 = vmatprep.subr.bf16.mxu0 %v7696
  %7813 = vmatpush1.bf16.msra.mxu0 %v7695
  %7814 = vmatprep.subr.bf16.mxu0 0
  %7815 = vmatpush2.bf16.msra.mxu0 0
  %7816 = vmatprep.subr.bf16.mxu0 0
  %7817 = vmatpush2.bf16.msra.mxu0 0
  %7818 = vmatprep.subr.bf16.mxu0 0
  %7819 = vmatpush2.bf16.msra.mxu0 0
  %7820 = vmatprep.subr.bf16.mxu0 0
  %7821 = vmatpush2.bf16.msra.mxu0 0
  %7822 = vmatprep.subr.bf16.mxu0 0
  %7823 = vmatpush2.bf16.msra.mxu0 0
  %7824 = vmatprep.subr.bf16.mxu0 0
  %7825 = vmatpush2.bf16.msra.mxu0 0
  %7826 = vmatprep.subr.bf16.mxu0 0
  %7827 = vmatpush2.bf16.msra.mxu0 0
  %7828 = vmatprep.subr.bf16.mxu0 0
  %7829 = vmatpush2.bf16.msra.mxu0 0
  %7830 = vmatprep.mubr.bf16.mxu0 0
  %7831 = vmatmul.mubr.bf16.gmra.mxu0 %v7564
  %v7832 = vpop.f32.mrf.mxu0
  %v7833 = vadd.f32 0.0, %v7832
  %v7834 = vpop.f32.mrf.mxu0
  %v7835 = vadd.f32 0.0, %v7834
  %v7836 = vpop.f32.mrf.mxu0
  %v7837 = vpop.f32.mrf.mxu0
  %7838 = vdwg.mxu0
  %v7843 = vcombine.low %v7792, %v7794
  %v7844 = vcombine.low %v7833, %v7835
  %v7846 = vunpack.c.l.s4 1983009808
  %v7847 = vunpack.c.0.s8 %v7846
  %v7848 = vlaneseq
  %v7849 = vshrl.u32 %v7848, 7
  %v7850 = vsub.s32 %v7847, %v7849
  %v7851 = vrot.slane %v7843, %v7850
  %v7853 = vunpack.c.l.s4 1983009808
  %v7854 = vunpack.c.0.s8 %v7853
  %v7855 = vlaneseq
  %v7856 = vshrl.u32 %v7855, 7
  %v7857 = vsub.s32 %v7854, %v7856
  %v7858 = vrot.slane %v7844, %v7857
  %v7859 = vcombine.low %v7851, %v7858
  %v7861 = vadd.f32 %v7562, %v7859
  %v7862 = vld [vmem:[#allocation6] sm:$0xff]
  %v7863 = vadd.f32 %v7861, %v7862
  %v7864 = vld [vmem:[#allocation3] sm:$0x3]
  %v7865 = vxor.u32 %v7863, 2147483648
  %v7866 = vmul.f32 %v7865, 1.442695
  %v7867 = vpow.pop %v7866
  %v7868 = vadd.f32 %v7867, 1.0
  %v7869 = vrcp.pop %v7868
  %v7870 = vmul.f32 1.0, %v7869
  %v7872 = vrot.slane %v7863, 2
  %v7874 = vxor.u32 %v7872, 2147483648
  %v7875 = vmul.f32 %v7874, 1.442695
  %v7876 = vpow.pop %v7875
  %v7877 = vadd.f32 %v7876, 1.0
  %v7878 = vrcp.pop %v7877
  %v7879 = vmul.f32 1.0, %v7878
  %v7880 = vrot.slane %v7863, 4
  %v7882 = vtanh.pop %v7880
  %v7883 = vrot.slane %v7863, 6
  %v7885 = vxor.u32 %v7883, 2147483648
  %v7886 = vmul.f32 %v7885, 1.442695
  %v7887 = vpow.pop %v7886
  %v7888 = vadd.f32 %v7887, 1.0
  %v7889 = vrcp.pop %v7888
  %v7890 = vmul.f32 1.0, %v7889
  %v7891 = vmul.f32 %v7879, %v7864
  %v7892 = vmul.f32 %v7870, %v7882
  %v7893 = vadd.f32 %v7891, %v7892
  %v7894 = vtanh.pop %v7893
  %v7895 = vmul.f32 %v7890, %v7894
  %7896 = vst [vmem:[#allocation2] sm:$0x3] %v7895
  %7897 = vst [vmem:[#allocation3] sm:$0x3] %v7893
  // Predicated region
  $region38: #{cnn_lstm_caption_forward.6} parent=0 // pred_check
    _
  $region39: #{cnn_lstm_caption_forward.6} parent=0 // pred_check_branch
    %7899 = sbr.rel (0) target = $region41
  $region40: #{cnn_lstm_caption_forward.6} parent=0 // pred_region
    _
  $region41: #{cnn_lstm_caption_forward.6} parent=0 // pred_fallthru
    _
  // Predicated region
  $region42: #{cnn_lstm_caption_forward.6} parent=0 // pred_check
    _
  $region43: #{cnn_lstm_caption_forward.6} parent=0 // pred_check_branch
    %7901 = sbr.rel (0) target = $region45
  $region44: #{cnn_lstm_caption_forward.6} parent=0 // pred_region
    _
  $region45: #{cnn_lstm_caption_forward.6} parent=0 // pred_fallthru
    _

</llo_original>
